<compile_context>
chip_gen: v5e
topology: v5e:2x2
jax: 0.10.0
libtpu: 0.0.40
codegen_flags: <defaults>
</compile_context>

<pallas_src>
import numpy as np
import jax
import jax.numpy as jnp
from jax.experimental import pallas as pl
from jax.experimental.pallas import tpu as pltpu

# ------------------------- small, structure-faithful config -------------------------
IN_CHS = 32
DIM = 32
D_STATE = 8
D_CONV = 4
EXPAND = 2
LAST_FEAT = 8                                            # last_feat_size == H == W
POOL_SCALES = list(range(1, LAST_FEAT, LAST_FEAT // 4))  # [1, 3, 5, 7]
POOL_LEN = len(POOL_SCALES)                              # 4
D_MODEL = DIM * POOL_LEN + IN_CHS                        # 160
D_INNER = EXPAND * D_MODEL                               # 320
DT_RANK = int(np.ceil(D_MODEL / 16))                     # 10
BN_EPS = 1e-5


# =============================== Pallas kernels ===============================

def _pool_convbnrelu_kernel(x_ref, w_ref, g_ref, b_ref, cnt_ref, o_ref):
    """All four PPM 1x1-conv branches at once.

    x_ref:   (R, POOL_LEN*IN_CHS)  stacked per-branch inputs (zero-padded rows)
    w_ref:   (POOL_LEN*IN_CHS, POOL_LEN*DIM) block-diagonal weights
    g/b_ref: (1, POOL_LEN*DIM) concatenated BN gamma/beta
    cnt_ref: (1, POOL_LEN*DIM) valid-row count per output column (per branch)
    """
    y = jnp.dot(x_ref[...], w_ref[...], preferred_element_type=jnp.float32)
    cnt = cnt_ref[...]                                               # (1, M)
    row = jax.lax.broadcasted_iota(jnp.int32, y.shape, 0).astype(jnp.float32)
    mask = (row < cnt).astype(jnp.float32)                           # valid rows per column
    # BatchNorm2d train-mode batch statistics, per branch (masked, biased var)
    mean = jnp.sum(y * mask, axis=0, keepdims=True) / cnt
    var = jnp.sum(jnp.square(y - mean) * mask, axis=0, keepdims=True) / cnt
    out = (y - mean) * jax.lax.rsqrt(var + BN_EPS) * g_ref[...] + b_ref[...]
    o_ref[...] = jnp.clip(out, 0.0, 6.0)                             # ReLU6


def pallas_pool_convbnrelu(x_stack, w_bd, gamma, beta, cnt):
    R, Kc = x_stack.shape
    M = w_bd.shape[1]
    return pl.pallas_call(
        _pool_convbnrelu_kernel,
        out_shape=jax.ShapeDtypeStruct((R, M), jnp.float32),
        grid=(1,),
        in_specs=[pl.BlockSpec((R, Kc), lambda i: (0, 0)),
                  pl.BlockSpec((Kc, M), lambda i: (0, 0)),
                  pl.BlockSpec((1, M), lambda i: (0, 0)),
                  pl.BlockSpec((1, M), lambda i: (0, 0)),
                  pl.BlockSpec((1, M), lambda i: (0, 0))],
        out_specs=pl.BlockSpec((R, M), lambda i: (0, 0)),
    )(x_stack, w_bd, gamma, beta, cnt)


def _mamba_fused_kernel(seq_ref, in_x_ref, in_z_ref, conv_w_ref, conv_b_ref,
                        xp_dt_ref, xp_B_ref, xp_C_ref, dt_w_ref, dt_b_ref,
                        A_ref, D_ref, out_w_ref, o_ref,
                        xpad_ref, dA_ref, dBu_ref, h_ref):
    """Whole Mamba block for one batch element. seq_ref: (1, L, D_MODEL)."""
    L = dA_ref.shape[0]
    K = conv_w_ref.shape[0]

    # ---- in_proj (pre-split weights: two lane-dense MXU matmuls, no lane slicing)
    xseq = seq_ref[0]                                                  # (L, D_MODEL)
    x_in = jnp.dot(xseq, in_x_ref[...], preferred_element_type=jnp.float32)  # (L, D_INNER)
    z = jnp.dot(xseq, in_z_ref[...], preferred_element_type=jnp.float32)     # (L, D_INNER)

    # ---- causal depthwise conv1d along L (sublane shifts, channels-last) + SiLU
    xpad_ref[pl.ds(0, K - 1), :] = jnp.zeros((K - 1, D_INNER), jnp.float32)
    xpad_ref[pl.ds(K - 1, L), :] = x_in
    w = conv_w_ref[...]                                                # (K, D_INNER)
    acc = xpad_ref[pl.ds(0, L), :] * w[0:1, :]
    for k in range(1, K):
        acc = acc + xpad_ref[pl.ds(k, L), :] * w[k:k + 1, :]
    acc = acc + conv_b_ref[...]
    u = acc * jax.nn.sigmoid(acc)                                      # SiLU, (L, D_INNER)

    # ---- x_proj / dt_proj (values stay in VMEM; nothing narrow goes to HBM)
    dt_low = jnp.dot(u, xp_dt_ref[...], preferred_element_type=jnp.float32)   # (L, DT_RANK)
    Bc = jnp.dot(u, xp_B_ref[...], preferred_element_type=jnp.float32)        # (L, N)
    Cc = jnp.dot(u, xp_C_ref[...], preferred_element_type=jnp.float32)        # (L, N)
    delta = jnp.dot(dt_low, dt_w_ref[...], preferred_element_type=jnp.float32)  # (L, D)

    # ---- transcendentals hoisted out of the recurrence (one vectorized pass)
    dt = jax.nn.softplus(delta + dt_b_ref[...])                        # (L, D_INNER)
    A = A_ref[...]                                                     # (N, D) == (-exp(A_log)).T
    dA_ref[...] = jnp.exp(dt[:, None, :] * A[None, :, :])              # (L, N, D)
    dBu_ref[...] = (dt * u)[:, None, :] * Bc[:, :, None]               # (L, N, D)

    # ---- serial selective-scan recurrence: FMA + store only
    def body(t, h):
        h = dA_ref[t] * h + dBu_ref[t]                                 # (N, D)
        h_ref[t] = h
        return h

    jax.lax.fori_loop(0, L, body, jnp.zeros((D_STATE, D_INNER), jnp.float32))

    # ---- vectorized epilogue: C contraction, D skip, SiLU(z) gate, out_proj
    y = jnp.sum(h_ref[...] * Cc[:, :, None], axis=1)                   # (L, D_INNER)
    y = y + u * D_ref[...]
    y = y * (z * jax.nn.sigmoid(z))
    o_ref[0] = jnp.dot(y, out_w_ref[...], preferred_element_type=jnp.float32)


def pallas_mamba_block(seq, p):
    """seq: (B, L, D_MODEL) -> (B, L, D_MODEL); one fused kernel, grid over batch."""
    B, L, Dm = seq.shape
    full = lambda a: pl.BlockSpec(a.shape, lambda b: (0, 0))
    grid_spec = pltpu.PrefetchScalarGridSpec(
        num_scalar_prefetch=0,
        grid=(B,),
        in_specs=[pl.BlockSpec((1, L, Dm), lambda b: (b, 0, 0)),
                  full(p['in_proj_x_w']), full(p['in_proj_z_w']),
                  full(p['conv1d_w']), full(p['conv1d_b']),
                  full(p['x_proj_dt_w']), full(p['x_proj_B_w']), full(p['x_proj_C_w']),
                  full(p['dt_proj_w']), full(p['dt_proj_b']),
                  full(p['A_t']), full(p['D']), full(p['out_proj_w'])],
        out_specs=pl.BlockSpec((1, L, Dm), lambda b: (b, 0, 0)),
        scratch_shapes=[pltpu.VMEM((L + D_CONV - 1, D_INNER), jnp.float32),   # padded conv input
                        pltpu.VMEM((L, D_STATE, D_INNER), jnp.float32),       # dA
                        pltpu.VMEM((L, D_STATE, D_INNER), jnp.float32),       # dB*u
                        pltpu.VMEM((L, D_STATE, D_INNER), jnp.float32)],      # h history
    )
    return pl.pallas_call(
        _mamba_fused_kernel,
        out_shape=jax.ShapeDtypeStruct((B, L, Dm), jnp.float32),
        grid_spec=grid_spec,
        compiler_params=pltpu.CompilerParams(dimension_semantics=("parallel",)),
    )(seq, p['in_proj_x_w'], p['in_proj_z_w'], p['conv1d_w'], p['conv1d_b'],
      p['x_proj_dt_w'], p['x_proj_B_w'], p['x_proj_C_w'],
      p['dt_proj_w'], p['dt_proj_b'], p['A_t'], p['D'], p['out_proj_w'])


# ============================ plain-JAX glue helpers ============================

def adaptive_pool_matrix(out_size, in_size):
    P = np.zeros((out_size, in_size), np.float32)
    for i in range(out_size):
        start = (i * in_size) // out_size
        end = -((-(i + 1) * in_size) // out_size)
        P[i, start:end] = 1.0 / (end - start)
    return jnp.asarray(P)


def bilinear_upsample_matrix(out_size, in_size):
    # torch F.interpolate(mode='bilinear', align_corners=False)
    U = np.zeros((out_size, in_size), np.float32)
    scale = in_size / out_size
    for i in range(out_size):
        src = max((i + 0.5) * scale - 0.5, 0.0)
        i0 = min(int(np.floor(src)), in_size - 1)
        i1 = min(i0 + 1, in_size - 1)
        lam = src - i0
        U[i, i0] += 1.0 - lam
        U[i, i1] += lam
    return jnp.asarray(U)


def init_params(key):
    def nrm(k, shape, scale):
        return jax.random.normal(k, shape, jnp.float32) * scale
    ks = jax.random.split(key, 10)
    p = {}
    # PPM 1x1 conv weights, stored block-diagonal for the batched branch kernel.
    pool_w = [nrm(jax.random.fold_in(ks[0], i), (IN_CHS, DIM), 1.0 / np.sqrt(IN_CHS))
              for i in range(POOL_LEN)]
    w_bd = jnp.zeros((POOL_LEN * IN_CHS, POOL_LEN * DIM), jnp.float32)
    for i in range(POOL_LEN):
        w_bd = w_bd.at[i * IN_CHS:(i + 1) * IN_CHS, i * DIM:(i + 1) * DIM].set(pool_w[i])
    p['pool_w_bd'] = w_bd
    p['pool_gamma_cat'] = jnp.ones((1, POOL_LEN * DIM), jnp.float32)
    p['pool_beta_cat'] = jnp.zeros((1, POOL_LEN * DIM), jnp.float32)

    # Mamba weights; in_proj / x_proj are generated full-size then column-split so
    # the fused kernel never needs unaligned lane slicing.
    in_proj_w = nrm(ks[1], (D_MODEL, 2 * D_INNER), 1.0 / np.sqrt(D_MODEL))
    p['in_proj_x_w'] = in_proj_w[:, :D_INNER]
    p['in_proj_z_w'] = in_proj_w[:, D_INNER:]
    p['conv1d_w'] = nrm(ks[2], (D_CONV, D_INNER), 1.0 / np.sqrt(D_CONV))   # (K, D) channels-last
    p['conv1d_b'] = nrm(ks[3], (1, D_INNER), 0.02)
    x_proj_w = nrm(ks[4], (D_INNER, DT_RANK + 2 * D_STATE), 1.0 / np.sqrt(D_INNER))
    p['x_proj_dt_w'] = x_proj_w[:, :DT_RANK]
    p['x_proj_B_w'] = x_proj_w[:, DT_RANK:DT_RANK + D_STATE]
    p['x_proj_C_w'] = x_proj_w[:, DT_RANK + D_STATE:]
    p['dt_proj_w'] = nrm(ks[5], (DT_RANK, D_INNER), 1.0 / np.sqrt(DT_RANK))
    p['dt_proj_b'] = nrm(ks[6], (1, D_INNER), 0.02)
    A_log = jnp.broadcast_to(jnp.log(jnp.arange(1, D_STATE + 1, dtype=jnp.float32)),
                             (D_INNER, D_STATE))
    p['A_t'] = (-jnp.exp(A_log)).T                 # (D_STATE, D_INNER)
    p['D'] = jnp.ones((1, D_INNER), jnp.float32)
    p['out_proj_w'] = nrm(ks[7], (D_INNER, D_MODEL), 1.0 / np.sqrt(D_INNER))
    return p


def mamba_layer_forward(x, params):
    """x: (B, C, H, W) NCHW float32 -> (B, D_MODEL, H, W)."""
    B, C, H, W = x.shape
    L = H * W
    x_nhwc = x.transpose(0, 2, 3, 1)                                  # channels-last

    # ------- PPM branches: one batched ConvBNReLU kernel (block-diag matmul) -------
    rows = B * H * W
    slabs = [x_nhwc.reshape(rows, C)]                                 # branch 0: full res
    counts = [rows]
    for s in POOL_SCALES[1:]:
        P = adaptive_pool_matrix(s, H)                                # (s, H)
        pooled = jnp.einsum('sh,bhwc,tw->bstc', P, x_nhwc, P)         # separable adaptive pool
        flat = pooled.reshape(B * s * s, C)
        slabs.append(jnp.pad(flat, ((0, rows - B * s * s), (0, 0))))
        counts.append(B * s * s)
    x_stack = jnp.concatenate(slabs, axis=1)                          # (rows, POOL_LEN*C)
    cnt = jnp.asarray(np.repeat(np.array(counts, np.float32), DIM)).reshape(1, POOL_LEN * DIM)

    y_all = pallas_pool_convbnrelu(x_stack, params['pool_w_bd'],
                                   params['pool_gamma_cat'], params['pool_beta_cat'], cnt)

    ppm = [x_nhwc]
    # branch 0: ConvBNReLU at full res -> AdaptiveAvgPool2d(1) -> (constant) upsample
    y0 = y_all[:, :DIM].reshape(B, H, W, DIM)
    g0 = jnp.mean(y0, axis=(1, 2), keepdims=True)
    ppm.append(jnp.broadcast_to(g0, (B, H, W, DIM)))
    # branches 1..: AdaptiveAvgPool2d(s) -> ConvBNReLU -> bilinear upsample
    for idx, s in enumerate(POOL_SCALES[1:], start=1):
        yi = y_all[:B * s * s, idx * DIM:(idx + 1) * DIM].reshape(B, s, s, DIM)
        U = bilinear_upsample_matrix(H, s)                            # (H, s)
        ppm.append(jnp.einsum('hs,bstc,wt->bhwc', U, yi, U))

    feat = jnp.concatenate(ppm, axis=-1)                              # (B, H, W, D_MODEL)
    seq = feat.reshape(B, L, D_MODEL)                                 # b (h w) c, no transpose

    # ------- fused Mamba block (single kernel, grid over batch) -------
    out_seq = pallas_mamba_block(seq, params)                         # (B, L, D_MODEL)

    return out_seq.transpose(0, 2, 1).reshape(B, D_MODEL, H, W)


if __name__ == "__main__":
    key = jax.random.PRNGKey(0)
    pkey, xkey = jax.random.split(key)
    params = init_params(pkey)
    x = jax.random.normal(xkey, (2, IN_CHS, LAST_FEAT, LAST_FEAT), jnp.float32)

    fwd = jax.jit(mamba_layer_forward)
    out = jax.block_until_ready(fwd(x, params))

    assert out.shape == (2, D_MODEL, LAST_FEAT, LAST_FEAT), out.shape
    assert bool(jnp.all(jnp.isfinite(out)))
    print("KERNEL_OK")
</pallas_src>

<mosaic_0001>
module attributes {stable_mosaic.version = 11 : i64} {
  func.func @_pool_convbnrelu_kernel(%arg0: i32, %arg1: memref<128x128xf32, #tpu.memory_space<vmem>>, %arg2: memref<128x128xf32, #tpu.memory_space<vmem>>, %arg3: memref<1x128xf32, #tpu.memory_space<vmem>>, %arg4: memref<1x128xf32, #tpu.memory_space<vmem>>, %arg5: memref<1x128xf32, #tpu.memory_space<vmem>>, %arg6: memref<128x128xf32, #tpu.memory_space<vmem>>) attributes {dimension_semantics = [#tpu.dimension_semantics<arbitrary>], iteration_bounds = array<i64: 1>, scalar_prefetch = 0 : i64, scratch_operands = 0 : i64, tpu.core_type = #tpu.core_type<tc>, window_params = [{pipeline_mode = #tpu.pipeline_mode<synchronous>, transform_indices = @transform_0, window_bounds = array<i64: 128, 128>}, {pipeline_mode = #tpu.pipeline_mode<synchronous>, transform_indices = @transform_1, window_bounds = array<i64: 128, 128>}, {pipeline_mode = #tpu.pipeline_mode<synchronous>, transform_indices = @transform_2, window_bounds = array<i64: 1, 128>}, {pipeline_mode = #tpu.pipeline_mode<synchronous>, transform_indices = @transform_3, window_bounds = array<i64: 1, 128>}, {pipeline_mode = #tpu.pipeline_mode<synchronous>, transform_indices = @transform_4, window_bounds = array<i64: 1, 128>}, {pipeline_mode = #tpu.pipeline_mode<synchronous>, transform_indices = @transform_5, window_bounds = array<i64: 128, 128>}]} {
    %c0 = arith.constant 0 : index
    %c0_0 = arith.constant 0 : index
    %0 = vector.load %arg1[%c0, %c0_0] : memref<128x128xf32, #tpu.memory_space<vmem>>, vector<128x128xf32>
    %c0_1 = arith.constant 0 : index
    %c0_2 = arith.constant 0 : index
    %1 = vector.load %arg2[%c0_1, %c0_2] : memref<128x128xf32, #tpu.memory_space<vmem>>, vector<128x128xf32>
    %cst = arith.constant dense<0.000000e+00> : vector<128x128xf32>
    %2 = tpu.matmul %0, %1, %cst {dimension_numbers = #tpu.dot_dimension_numbers<[1], [0], [0], [1], [0, 0, 1, 1], [], []>} : vector<128x128xf32>, vector<128x128xf32>, vector<128x128xf32> -> vector<128x128xf32>
    %c0_3 = arith.constant 0 : index
    %c0_4 = arith.constant 0 : index
    %3 = vector.load %arg5[%c0_3, %c0_4] : memref<1x128xf32, #tpu.memory_space<vmem>>, vector<1x128xf32>
    %4 = tpu.iota {dimensions = array<i32: 0>} : vector<128x128xi32>
    %5 = arith.sitofp %4 : vector<128x128xi32> to vector<128x128xf32>
    %6 = vector.broadcast %3 : vector<1x128xf32> to vector<128x128xf32>
    %7 = arith.cmpf olt, %5, %6 : vector<128x128xf32>
    %8 = arith.extui %7 : vector<128x128xi1> to vector<128x128xi32>
    %9 = arith.sitofp %8 : vector<128x128xi32> to vector<128x128xf32>
    %10 = arith.mulf %2, %9 : vector<128x128xf32>
    %cst_5 = arith.constant dense<0.000000e+00> : vector<128xf32>
    %11 = vector.multi_reduction <add>, %10, %cst_5 [0] : vector<128x128xf32> to vector<128xf32>
    %12 = vector.shape_cast %11 : vector<128xf32> to vector<1x128xf32>
    %13 = arith.divf %12, %3 : vector<1x128xf32>
    %14 = vector.broadcast %13 : vector<1x128xf32> to vector<128x128xf32>
    %15 = arith.subf %2, %14 : vector<128x128xf32>
    %16 = arith.mulf %15, %15 : vector<128x128xf32>
    %17 = arith.mulf %16, %9 : vector<128x128xf32>
    %cst_6 = arith.constant dense<0.000000e+00> : vector<128xf32>
    %18 = vector.multi_reduction <add>, %17, %cst_6 [0] : vector<128x128xf32> to vector<128xf32>
    %19 = vector.shape_cast %18 : vector<128xf32> to vector<1x128xf32>
    %20 = arith.divf %19, %3 : vector<1x128xf32>
    %21 = vector.broadcast %13 : vector<1x128xf32> to vector<128x128xf32>
    %22 = arith.subf %2, %21 : vector<128x128xf32>
    %cst_7 = arith.constant 9.99999974E-6 : f32
    %23 = vector.broadcast %cst_7 : f32 to vector<1x128xf32>
    %24 = arith.addf %20, %23 : vector<1x128xf32>
    %25 = math.rsqrt %24 : vector<1x128xf32>
    %26 = vector.broadcast %25 : vector<1x128xf32> to vector<128x128xf32>
    %27 = arith.mulf %22, %26 : vector<128x128xf32>
    %c0_8 = arith.constant 0 : index
    %c0_9 = arith.constant 0 : index
    %28 = vector.load %arg3[%c0_8, %c0_9] : memref<1x128xf32, #tpu.memory_space<vmem>>, vector<1x128xf32>
    %29 = vector.broadcast %28 : vector<1x128xf32> to vector<128x128xf32>
    %30 = arith.mulf %27, %29 : vector<128x128xf32>
    %c0_10 = arith.constant 0 : index
    %c0_11 = arith.constant 0 : index
    %31 = vector.load %arg4[%c0_10, %c0_11] : memref<1x128xf32, #tpu.memory_space<vmem>>, vector<1x128xf32>
    %32 = vector.broadcast %31 : vector<1x128xf32> to vector<128x128xf32>
    %33 = arith.addf %30, %32 : vector<128x128xf32>
    %cst_12 = arith.constant 0.000000e+00 : f32
    %cst_13 = arith.constant 6.000000e+00 : f32
    %34 = vector.broadcast %cst_12 : f32 to vector<128x128xf32>
    %35 = arith.maximumf %34, %33 : vector<128x128xf32>
    %36 = vector.broadcast %cst_13 : f32 to vector<128x128xf32>
    %37 = arith.minimumf %36, %35 : vector<128x128xf32>
    %c0_14 = arith.constant 0 : index
    %c0_15 = arith.constant 0 : index
    %38 = vector.load %arg6[%c0_14, %c0_15] : memref<128x128xf32, #tpu.memory_space<vmem>>, vector<128x128xf32>
    tpu.vector_store %arg6[%c0_14, %c0_15], %37 {strides = array<i32>} : memref<128x128xf32, #tpu.memory_space<vmem>>, vector<128x128xf32>,
    return
  }
  func.func @transform_0(%arg0: i32) -> (i32, i32) {
    %c0_i32 = arith.constant 0 : i32
    %c0_i32_0 = arith.constant 0 : i32
    %c0_i32_1 = arith.constant 0 : i32
    return %c0_i32, %c0_i32_0 : i32, i32
  }
  func.func @transform_1(%arg0: i32) -> (i32, i32) {
    %c0_i32 = arith.constant 0 : i32
    %c0_i32_0 = arith.constant 0 : i32
    %c0_i32_1 = arith.constant 0 : i32
    return %c0_i32, %c0_i32_0 : i32, i32
  }
  func.func @transform_2(%arg0: i32) -> (i32, i32) {
    %c0_i32 = arith.constant 0 : i32
    %c0_i32_0 = arith.constant 0 : i32
    %c0_i32_1 = arith.constant 0 : i32
    return %c0_i32, %c0_i32_0 : i32, i32
  }
  func.func @transform_3(%arg0: i32) -> (i32, i32) {
    %c0_i32 = arith.constant 0 : i32
    %c0_i32_0 = arith.constant 0 : i32
    %c0_i32_1 = arith.constant 0 : i32
    return %c0_i32, %c0_i32_0 : i32, i32
  }
  func.func @transform_4(%arg0: i32) -> (i32, i32) {
    %c0_i32 = arith.constant 0 : i32
    %c0_i32_0 = arith.constant 0 : i32
    %c0_i32_1 = arith.constant 0 : i32
    return %c0_i32, %c0_i32_0 : i32, i32
  }
  func.func @transform_5(%arg0: i32) -> (i32, i32) {
    %c0_i32 = arith.constant 0 : i32
    %c0_i32_0 = arith.constant 0 : i32
    %c0_i32_1 = arith.constant 0 : i32
    return %c0_i32, %c0_i32_0 : i32, i32
  }
}

module attributes {stable_mosaic.version = 11 : i64} {
  func.func @_mamba_fused_kernel(%arg0: i32, %arg1: memref<1x64x160xf32, #tpu.memory_space<vmem>>, %arg2: memref<160x320xf32, #tpu.memory_space<vmem>>, %arg3: memref<160x320xf32, #tpu.memory_space<vmem>>, %arg4: memref<4x320xf32, #tpu.memory_space<vmem>>, %arg5: memref<1x320xf32, #tpu.memory_space<vmem>>, %arg6: memref<320x10xf32, #tpu.memory_space<vmem>>, %arg7: memref<320x8xf32, #tpu.memory_space<vmem>>, %arg8: memref<320x8xf32, #tpu.memory_space<vmem>>, %arg9: memref<10x320xf32, #tpu.memory_space<vmem>>, %arg10: memref<1x320xf32, #tpu.memory_space<vmem>>, %arg11: memref<8x320xf32, #tpu.memory_space<vmem>>, %arg12: memref<1x320xf32, #tpu.memory_space<vmem>>, %arg13: memref<320x160xf32, #tpu.memory_space<vmem>>, %arg14: memref<1x64x160xf32, #tpu.memory_space<vmem>>, %arg15: memref<67x320xf32, #tpu.memory_space<vmem>>, %arg16: memref<64x8x320xf32, #tpu.memory_space<vmem>>, %arg17: memref<64x8x320xf32, #tpu.memory_space<vmem>>, %arg18: memref<64x8x320xf32, #tpu.memory_space<vmem>>) attributes {dimension_semantics = [#tpu.dimension_semantics<parallel>], iteration_bounds = array<i64: 2>, scalar_prefetch = 0 : i64, scratch_operands = 4 : i64, tpu.core_type = #tpu.core_type<tc>, window_params = [{transform_indices = @transform_0, window_bounds = array<i64: 1, 64, 160>}, {pipeline_mode = #tpu.pipeline_mode<synchronous>, transform_indices = @transform_1, window_bounds = array<i64: 160, 320>}, {pipeline_mode = #tpu.pipeline_mode<synchronous>, transform_indices = @transform_2, window_bounds = array<i64: 160, 320>}, {pipeline_mode = #tpu.pipeline_mode<synchronous>, transform_indices = @transform_3, window_bounds = array<i64: 4, 320>}, {pipeline_mode = #tpu.pipeline_mode<synchronous>, transform_indices = @transform_4, window_bounds = array<i64: 1, 320>}, {pipeline_mode = #tpu.pipeline_mode<synchronous>, transform_indices = @transform_5, window_bounds = array<i64: 320, 10>}, {pipeline_mode = #tpu.pipeline_mode<synchronous>, transform_indices = @transform_6, window_bounds = array<i64: 320, 8>}, {pipeline_mode = #tpu.pipeline_mode<synchronous>, transform_indices = @transform_7, window_bounds = array<i64: 320, 8>}, {pipeline_mode = #tpu.pipeline_mode<synchronous>, transform_indices = @transform_8, window_bounds = array<i64: 10, 320>}, {pipeline_mode = #tpu.pipeline_mode<synchronous>, transform_indices = @transform_9, window_bounds = array<i64: 1, 320>}, {pipeline_mode = #tpu.pipeline_mode<synchronous>, transform_indices = @transform_10, window_bounds = array<i64: 8, 320>}, {pipeline_mode = #tpu.pipeline_mode<synchronous>, transform_indices = @transform_11, window_bounds = array<i64: 1, 320>}, {pipeline_mode = #tpu.pipeline_mode<synchronous>, transform_indices = @transform_12, window_bounds = array<i64: 320, 160>}, {transform_indices = @transform_13, window_bounds = array<i64: 1, 64, 160>}]} {
    %c0 = arith.constant 0 : index
    %c0_0 = arith.constant 0 : index
    %c0_1 = arith.constant 0 : index
    %0 = vector.load %arg1[%c0, %c0_0, %c0_1] : memref<1x64x160xf32, #tpu.memory_space<vmem>>, vector<1x64x160xf32>
    %1 = vector.shape_cast %0 : vector<1x64x160xf32> to vector<64x160xf32>
    %c0_2 = arith.constant 0 : index
    %c0_3 = arith.constant 0 : index
    %2 = vector.load %arg2[%c0_2, %c0_3] : memref<160x320xf32, #tpu.memory_space<vmem>>, vector<160x320xf32>
    %cst = arith.constant dense<0.000000e+00> : vector<64x320xf32>
    %3 = tpu.matmul %1, %2, %cst {dimension_numbers = #tpu.dot_dimension_numbers<[1], [0], [0], [1], [0, 0, 1, 1], [], []>} : vector<64x160xf32>, vector<160x320xf32>, vector<64x320xf32> -> vector<64x320xf32>
    %c0_4 = arith.constant 0 : index
    %c0_5 = arith.constant 0 : index
    %4 = vector.load %arg3[%c0_4, %c0_5] : memref<160x320xf32, #tpu.memory_space<vmem>>, vector<160x320xf32>
    %cst_6 = arith.constant dense<0.000000e+00> : vector<64x320xf32>
    %5 = tpu.matmul %1, %4, %cst_6 {dimension_numbers = #tpu.dot_dimension_numbers<[1], [0], [0], [1], [0, 0, 1, 1], [], []>} : vector<64x160xf32>, vector<160x320xf32>, vector<64x320xf32> -> vector<64x320xf32>
    %cst_7 = arith.constant 0.000000e+00 : f32
    %6 = vector.broadcast %cst_7 : f32 to vector<3x320xf32>
    %c0_8 = arith.constant 0 : index
    %c0_9 = arith.constant 0 : index
    %7 = vector.load %arg15[%c0_8, %c0_9] : memref<67x320xf32, #tpu.memory_space<vmem>>, vector<3x320xf32>
    tpu.vector_store %arg15[%c0_8, %c0_9], %6 {strides = array<i32>} : memref<67x320xf32, #tpu.memory_space<vmem>>, vector<3x320xf32>,
    %c3 = arith.constant 3 : index
    %c0_10 = arith.constant 0 : index
    %8 = vector.load %arg15[%c3, %c0_10] : memref<67x320xf32, #tpu.memory_space<vmem>>, vector<64x320xf32>
    tpu.vector_store %arg15[%c3, %c0_10], %3 {strides = array<i32>} : memref<67x320xf32, #tpu.memory_space<vmem>>, vector<64x320xf32>,
    %c0_11 = arith.constant 0 : index
    %c0_12 = arith.constant 0 : index
    %9 = vector.load %arg4[%c0_11, %c0_12] : memref<4x320xf32, #tpu.memory_space<vmem>>, vector<4x320xf32>
    %c0_13 = arith.constant 0 : index
    %c0_14 = arith.constant 0 : index
    %10 = vector.load %arg15[%c0_13, %c0_14] : memref<67x320xf32, #tpu.memory_space<vmem>>, vector<64x320xf32>
    %11 = vector.extract_strided_slice %9 {offsets = [0, 0], sizes = [1, 320], strides = [1, 1]} : vector<4x320xf32> to vector<1x320xf32>
    %12 = vector.broadcast %11 : vector<1x320xf32> to vector<64x320xf32>
    %13 = arith.mulf %10, %12 : vector<64x320xf32>
    %c1 = arith.constant 1 : index
    %c0_15 = arith.constant 0 : index
    %14 = vector.load %arg15[%c1, %c0_15] : memref<67x320xf32, #tpu.memory_space<vmem>>, vector<64x320xf32>
    %15 = vector.extract_strided_slice %9 {offsets = [1, 0], sizes = [1, 320], strides = [1, 1]} : vector<4x320xf32> to vector<1x320xf32>
    %16 = vector.broadcast %15 : vector<1x320xf32> to vector<64x320xf32>
    %17 = arith.mulf %14, %16 : vector<64x320xf32>
    %18 = arith.addf %13, %17 : vector<64x320xf32>
    %c2 = arith.constant 2 : index
    %c0_16 = arith.constant 0 : index
    %19 = vector.load %arg15[%c2, %c0_16] : memref<67x320xf32, #tpu.memory_space<vmem>>, vector<64x320xf32>
    %20 = vector.extract_strided_slice %9 {offsets = [2, 0], sizes = [1, 320], strides = [1, 1]} : vector<4x320xf32> to vector<1x320xf32>
    %21 = vector.broadcast %20 : vector<1x320xf32> to vector<64x320xf32>
    %22 = arith.mulf %19, %21 : vector<64x320xf32>
    %23 = arith.addf %18, %22 : vector<64x320xf32>
    %c3_17 = arith.constant 3 : index
    %c0_18 = arith.constant 0 : index
    %24 = vector.load %arg15[%c3_17, %c0_18] : memref<67x320xf32, #tpu.memory_space<vmem>>, vector<64x320xf32>
    %25 = vector.extract_strided_slice %9 {offsets = [3, 0], sizes = [1, 320], strides = [1, 1]} : vector<4x320xf32> to vector<1x320xf32>
    %26 = vector.broadcast %25 : vector<1x320xf32> to vector<64x320xf32>
    %27 = arith.mulf %24, %26 : vector<64x320xf32>
    %28 = arith.addf %23, %27 : vector<64x320xf32>
    %c0_19 = arith.constant 0 : index
    %c0_20 = arith.constant 0 : index
    %29 = vector.load %arg5[%c0_19, %c0_20] : memref<1x320xf32, #tpu.memory_space<vmem>>, vector<1x320xf32>
    %30 = vector.broadcast %29 : vector<1x320xf32> to vector<64x320xf32>
    %31 = arith.addf %28, %30 : vector<64x320xf32>
    %32 = arith.negf %31 : vector<64x320xf32>
    %33 = math.exp %32 : vector<64x320xf32>
    %cst_21 = arith.constant 1.000000e+00 : f32
    %34 = vector.broadcast %cst_21 : f32 to vector<64x320xf32>
    %35 = arith.addf %34, %33 : vector<64x320xf32>
    %36 = arith.divf %34, %35 : vector<64x320xf32>
    %37 = arith.mulf %31, %36 : vector<64x320xf32>
    %c0_22 = arith.constant 0 : index
    %c0_23 = arith.constant 0 : index
    %38 = vector.load %arg6[%c0_22, %c0_23] : memref<320x10xf32, #tpu.memory_space<vmem>>, vector<320x10xf32>
    %cst_24 = arith.constant dense<0.000000e+00> : vector<64x10xf32>
    %39 = tpu.matmul %37, %38, %cst_24 {dimension_numbers = #tpu.dot_dimension_numbers<[1], [0], [0], [1], [0, 0, 1, 1], [], []>} : vector<64x320xf32>, vector<320x10xf32>, vector<64x10xf32> -> vector<64x10xf32>
    %c0_25 = arith.constant 0 : index
    %c0_26 = arith.constant 0 : index
    %40 = vector.load %arg7[%c0_25, %c0_26] : memref<320x8xf32, #tpu.memory_space<vmem>>, vector<320x8xf32>
    %cst_27 = arith.constant dense<0.000000e+00> : vector<64x8xf32>
    %41 = tpu.matmul %37, %40, %cst_27 {dimension_numbers = #tpu.dot_dimension_numbers<[1], [0], [0], [1], [0, 0, 1, 1], [], []>} : vector<64x320xf32>, vector<320x8xf32>, vector<64x8xf32> -> vector<64x8xf32>
    %c0_28 = arith.constant 0 : index
    %c0_29 = arith.constant 0 : index
    %42 = vector.load %arg8[%c0_28, %c0_29] : memref<320x8xf32, #tpu.memory_space<vmem>>, vector<320x8xf32>
    %cst_30 = arith.constant dense<0.000000e+00> : vector<64x8xf32>
    %43 = tpu.matmul %37, %42, %cst_30 {dimension_numbers = #tpu.dot_dimension_numbers<[1], [0], [0], [1], [0, 0, 1, 1], [], []>} : vector<64x320xf32>, vector<320x8xf32>, vector<64x8xf32> -> vector<64x8xf32>
    %c0_31 = arith.constant 0 : index
    %c0_32 = arith.constant 0 : index
    %44 = vector.load %arg9[%c0_31, %c0_32] : memref<10x320xf32, #tpu.memory_space<vmem>>, vector<10x320xf32>
    %cst_33 = arith.constant dense<0.000000e+00> : vector<64x320xf32>
    %45 = tpu.matmul %39, %44, %cst_33 {dimension_numbers = #tpu.dot_dimension_numbers<[1], [0], [0], [1], [0, 0, 1, 1], [], []>} : vector<64x10xf32>, vector<10x320xf32>, vector<64x320xf32> -> vector<64x320xf32>
    %c0_34 = arith.constant 0 : index
    %c0_35 = arith.constant 0 : index
    %46 = vector.load %arg10[%c0_34, %c0_35] : memref<1x320xf32, #tpu.memory_space<vmem>>, vector<1x320xf32>
    %47 = vector.broadcast %46 : vector<1x320xf32> to vector<64x320xf32>
    %48 = arith.addf %45, %47 : vector<64x320xf32>
    %cst_36 = arith.constant 0.000000e+00 : f32
    %49 = vector.broadcast %cst_36 : f32 to vector<64x320xf32>
    %50 = arith.maximumf %48, %49 : vector<64x320xf32>
    %51 = vector.broadcast %cst_36 : f32 to vector<64x320xf32>
    %52 = arith.subf %48, %51 : vector<64x320xf32>
    %53 = arith.cmpf one, %52, %52 : vector<64x320xf32>
    %54 = vector.broadcast %cst_36 : f32 to vector<64x320xf32>
    %55 = arith.addf %48, %54 : vector<64x320xf32>
    %56 = math.absf %52 : vector<64x320xf32>
    %cst_37 = arith.constant 0.000000e+00 : f32
    %57 = vector.broadcast %cst_37 : f32 to vector<64x320xf32>
    %58 = arith.subf %57, %56 : vector<64x320xf32>
    %59 = math.exp %58 : vector<64x320xf32>
    %60 = math.log1p %59 : vector<64x320xf32>
    %61 = arith.addf %50, %60 : vector<64x320xf32>
    %62 = arith.select %53, %55, %61 : vector<64x320xi1>, vector<64x320xf32>
    %c0_38 = arith.constant 0 : index
    %c0_39 = arith.constant 0 : index
    %63 = vector.load %arg11[%c0_38, %c0_39] : memref<8x320xf32, #tpu.memory_space<vmem>>, vector<8x320xf32>
    %64 = vector.shape_cast %62 : vector<64x320xf32> to vector<64x1x320xf32>
    %65 = vector.shape_cast %63 : vector<8x320xf32> to vector<1x8x320xf32>
    %66 = vector.broadcast %64 : vector<64x1x320xf32> to vector<64x8x320xf32>
    %67 = vector.broadcast %65 : vector<1x8x320xf32> to vector<64x8x320xf32>
    %68 = arith.mulf %66, %67 : vector<64x8x320xf32>
    %69 = math.exp %68 : vector<64x8x320xf32>
    %c0_40 = arith.constant 0 : index
    %c0_41 = arith.constant 0 : index
    %c0_42 = arith.constant 0 : index
    %70 = vector.load %arg16[%c0_40, %c0_41, %c0_42] : memref<64x8x320xf32, #tpu.memory_space<vmem>>, vector<64x8x320xf32>
    tpu.vector_store %arg16[%c0_40, %c0_41, %c0_42], %69 {strides = array<i32>} : memref<64x8x320xf32, #tpu.memory_space<vmem>>, vector<64x8x320xf32>,
    %71 = arith.mulf %62, %37 : vector<64x320xf32>
    %72 = vector.shape_cast %71 : vector<64x320xf32> to vector<64x1x320xf32>
    %73 = vector.shape_cast %41 : vector<64x8xf32> to vector<64x8x1xf32>
    %74 = vector.broadcast %72 : vector<64x1x320xf32> to vector<64x8x320xf32>
    %75 = vector.broadcast %73 : vector<64x8x1xf32> to vector<64x8x320xf32>
    %76 = arith.mulf %74, %75 : vector<64x8x320xf32>
    %c0_43 = arith.constant 0 : index
    %c0_44 = arith.constant 0 : index
    %c0_45 = arith.constant 0 : index
    %77 = vector.load %arg17[%c0_43, %c0_44, %c0_45] : memref<64x8x320xf32, #tpu.memory_space<vmem>>, vector<64x8x320xf32>
    tpu.vector_store %arg17[%c0_43, %c0_44, %c0_45], %76 {strides = array<i32>} : memref<64x8x320xf32, #tpu.memory_space<vmem>>, vector<64x8x320xf32>,
    %cst_46 = arith.constant 0.000000e+00 : f32
    %78 = vector.broadcast %cst_46 : f32 to vector<8x320xf32>
    %c0_i32 = arith.constant 0 : i32
    %c64_i32 = arith.constant 64 : i32
    %79 = arith.addi %c0_i32, %c64_i32 : i32
    %c1_i32 = arith.constant 1 : i32
    %80 = scf.for %arg19 = %c0_i32 to %79 step %c1_i32 iter_args(%arg20 = %78) -> (vector<8x320xf32>)  : i32 {
      %102 = arith.index_cast %arg19 : i32 to index
      %c0_61 = arith.constant 0 : index
      %c0_62 = arith.constant 0 : index
      %103 = vector.load %arg16[%102, %c0_61, %c0_62] : memref<64x8x320xf32, #tpu.memory_space<vmem>>, vector<1x8x320xf32>
      %104 = vector.shape_cast %103 : vector<1x8x320xf32> to vector<8x320xf32>
      %105 = arith.mulf %104, %arg20 : vector<8x320xf32>
      %106 = arith.index_cast %arg19 : i32 to index
      %c0_63 = arith.constant 0 : index
      %c0_64 = arith.constant 0 : index
      %107 = vector.load %arg17[%106, %c0_63, %c0_64] : memref<64x8x320xf32, #tpu.memory_space<vmem>>, vector<1x8x320xf32>
      %108 = vector.shape_cast %107 : vector<1x8x320xf32> to vector<8x320xf32>
      %109 = arith.addf %105, %108 : vector<8x320xf32>
      %110 = arith.index_cast %arg19 : i32 to index
      %c0_65 = arith.constant 0 : index
      %c0_66 = arith.constant 0 : index
      %111 = vector.load %arg18[%110, %c0_65, %c0_66] : memref<64x8x320xf32, #tpu.memory_space<vmem>>, vector<1x8x320xf32>
      %112 = vector.shape_cast %111 : vector<1x8x320xf32> to vector<8x320xf32>
      %113 = vector.shape_cast %109 : vector<8x320xf32> to vector<1x8x320xf32>
      tpu.vector_store %arg18[%110, %c0_65, %c0_66], %113 {strides = array<i32>} : memref<64x8x320xf32, #tpu.memory_space<vmem>>, vector<1x8x320xf32>,
      scf.yield %109 : vector<8x320xf32>
    }
    %c64_i32_47 = arith.constant 64 : i32
    %c0_48 = arith.constant 0 : index
    %c0_49 = arith.constant 0 : index
    %c0_50 = arith.constant 0 : index
    %81 = vector.load %arg18[%c0_48, %c0_49, %c0_50] : memref<64x8x320xf32, #tpu.memory_space<vmem>>, vector<64x8x320xf32>
    %82 = vector.shape_cast %43 : vector<64x8xf32> to vector<64x8x1xf32>
    %83 = vector.broadcast %82 : vector<64x8x1xf32> to vector<64x8x320xf32>
    %84 = arith.mulf %81, %83 : vector<64x8x320xf32>
    %cst_51 = arith.constant dense<0.000000e+00> : vector<64x320xf32>
    %85 = vector.multi_reduction <add>, %84, %cst_51 [1] : vector<64x8x320xf32> to vector<64x320xf32>
    %c0_52 = arith.constant 0 : index
    %c0_53 = arith.constant 0 : index
    %86 = vector.load %arg12[%c0_52, %c0_53] : memref<1x320xf32, #tpu.memory_space<vmem>>, vector<1x320xf32>
    %87 = vector.broadcast %86 : vector<1x320xf32> to vector<64x320xf32>
    %88 = arith.mulf %37, %87 : vector<64x320xf32>
    %89 = arith.addf %85, %88 : vector<64x320xf32>
    %90 = arith.negf %5 : vector<64x320xf32>
    %91 = math.exp %90 : vector<64x320xf32>
    %cst_54 = arith.constant 1.000000e+00 : f32
    %92 = vector.broadcast %cst_54 : f32 to vector<64x320xf32>
    %93 = arith.addf %92, %91 : vector<64x320xf32>
    %94 = arith.divf %92, %93 : vector<64x320xf32>
    %95 = arith.mulf %5, %94 : vector<64x320xf32>
    %96 = arith.mulf %89, %95 : vector<64x320xf32>
    %c0_55 = arith.constant 0 : index
    %c0_56 = arith.constant 0 : index
    %97 = vector.load %arg13[%c0_55, %c0_56] : memref<320x160xf32, #tpu.memory_space<vmem>>, vector<320x160xf32>
    %cst_57 = arith.constant dense<0.000000e+00> : vector<64x160xf32>
    %98 = tpu.matmul %96, %97, %cst_57 {dimension_numbers = #tpu.dot_dimension_numbers<[1], [0], [0], [1], [0, 0, 1, 1], [], []>} : vector<64x320xf32>, vector<320x160xf32>, vector<64x160xf32> -> vector<64x160xf32>
    %c0_58 = arith.constant 0 : index
    %c0_59 = arith.constant 0 : index
    %c0_60 = arith.constant 0 : index
    %99 = vector.load %arg14[%c0_58, %c0_59, %c0_60] : memref<1x64x160xf32, #tpu.memory_space<vmem>>, vector<1x64x160xf32>
    %100 = vector.shape_cast %99 : vector<1x64x160xf32> to vector<64x160xf32>
    %101 = vector.shape_cast %98 : vector<64x160xf32> to vector<1x64x160xf32>
    tpu.vector_store %arg14[%c0_58, %c0_59, %c0_60], %101 {strides = array<i32>} : memref<1x64x160xf32, #tpu.memory_space<vmem>>, vector<1x64x160xf32>,
    return
  }
  func.func @transform_0(%arg0: i32) -> (i32, i32, i32) {
    %c0_i32 = arith.constant 0 : i32
    %c0_i32_0 = arith.constant 0 : i32
    %c0_i32_1 = arith.constant 0 : i32
    return %arg0, %c0_i32, %c0_i32_0 : i32, i32, i32
  }
  func.func @transform_1(%arg0: i32) -> (i32, i32) {
    %c0_i32 = arith.constant 0 : i32
    %c0_i32_0 = arith.constant 0 : i32
    %c0_i32_1 = arith.constant 0 : i32
    return %c0_i32, %c0_i32_0 : i32, i32
  }
  func.func @transform_2(%arg0: i32) -> (i32, i32) {
    %c0_i32 = arith.constant 0 : i32
    %c0_i32_0 = arith.constant 0 : i32
    %c0_i32_1 = arith.constant 0 : i32
    return %c0_i32, %c0_i32_0 : i32, i32
  }
  func.func @transform_3(%arg0: i32) -> (i32, i32) {
    %c0_i32 = arith.constant 0 : i32
    %c0_i32_0 = arith.constant 0 : i32
    %c0_i32_1 = arith.constant 0 : i32
    return %c0_i32, %c0_i32_0 : i32, i32
  }
  func.func @transform_4(%arg0: i32) -> (i32, i32) {
    %c0_i32 = arith.constant 0 : i32
    %c0_i32_0 = arith.constant 0 : i32
    %c0_i32_1 = arith.constant 0 : i32
    return %c0_i32, %c0_i32_0 : i32, i32
  }
  func.func @transform_5(%arg0: i32) -> (i32, i32) {
    %c0_i32 = arith.constant 0 : i32
    %c0_i32_0 = arith.constant 0 : i32
    %c0_i32_1 = arith.constant 0 : i32
    return %c0_i32, %c0_i32_0 : i32, i32
  }
  func.func @transform_6(%arg0: i32) -> (i32, i32) {
    %c0_i32 = arith.constant 0 : i32
    %c0_i32_0 = arith.constant 0 : i32
    %c0_i32_1 = arith.constant 0 : i32
    return %c0_i32, %c0_i32_0 : i32, i32
  }
  func.func @transform_7(%arg0: i32) -> (i32, i32) {
    %c0_i32 = arith.constant 0 : i32
    %c0_i32_0 = arith.constant 0 : i32
    %c0_i32_1 = arith.constant 0 : i32
    return %c0_i32, %c0_i32_0 : i32, i32
  }
  func.func @transform_8(%arg0: i32) -> (i32, i32) {
    %c0_i32 = arith.constant 0 : i32
    %c0_i32_0 = arith.constant 0 : i32
    %c0_i32_1 = arith.constant 0 : i32
    return %c0_i32, %c0_i32_0 : i32, i32
  }
  func.func @transform_9(%arg0: i32) -> (i32, i32) {
    %c0_i32 = arith.constant 0 : i32
    %c0_i32_0 = arith.constant 0 : i32
    %c0_i32_1 = arith.constant 0 : i32
    return %c0_i32, %c0_i32_0 : i32, i32
  }
  func.func @transform_10(%arg0: i32) -> (i32, i32) {
    %c0_i32 = arith.constant 0 : i32
    %c0_i32_0 = arith.constant 0 : i32
    %c0_i32_1 = arith.constant 0 : i32
    return %c0_i32, %c0_i32_0 : i32, i32
  }
  func.func @transform_11(%arg0: i32) -> (i32, i32) {
    %c0_i32 = arith.constant 0 : i32
    %c0_i32_0 = arith.constant 0 : i32
    %c0_i32_1 = arith.constant 0 : i32
    return %c0_i32, %c0_i32_0 : i32, i32
  }
  func.func @transform_12(%arg0: i32) -> (i32, i32) {
    %c0_i32 = arith.constant 0 : i32
    %c0_i32_0 = arith.constant 0 : i32
    %c0_i32_1 = arith.constant 0 : i32
    return %c0_i32, %c0_i32_0 : i32, i32
  }
  func.func @transform_13(%arg0: i32) -> (i32, i32, i32) {
    %c0_i32 = arith.constant 0 : i32
    %c0_i32_0 = arith.constant 0 : i32
    %c0_i32_1 = arith.constant 0 : i32
    return %arg0, %c0_i32, %c0_i32_0 : i32, i32, i32
  }
}

</mosaic_0001>

<llo_original>
// kernel: mamba_layer_forward.2
$region0: #{mamba_layer_forward.2}
  #allocation0 [shape = 'u32[]', space=smem, size = 0x4, offset = 0x4, fixed_abs, tag = 'smem constant byte address 0x4 - core index']
  #allocation1 [shape = 'u32[72,128]{1,0:T(1,128)}', space=vmem, size = 0x9000, scoped, tag = 'internal scratch']
  %s0 = inlined_call_operand.vmem [shape: f32[128,128], index: 0, kind: input, shape index: {}]
  %s1 = inlined_call_operand.vmem [shape: f32[128,128], index: 1, kind: input, shape index: {}]
  %s2 = inlined_call_operand.vmem [shape: f32[1,128], index: 2, kind: input, shape index: {}]
  %s3 = inlined_call_operand.vmem [shape: f32[1,128], index: 3, kind: input, shape index: {}]
  %s4 = inlined_call_operand.vmem [shape: f32[1,128], index: 4, kind: input, shape index: {}]
  %s5 = inlined_call_operand.vmem [shape: f32[128,128], index: 5, kind: output, shape index: {}]
  %s6 = sld [smem:[#allocation0]]
  $region30: #{mamba_layer_forward.2} parent=0
    _
  %s8 = ssub.s32 1, %s6
  %s9 = scalar_select 0, %s8, %s6
  // Predicated region
  $region2: #{mamba_layer_forward.2} parent=0 // pred_check
    _
  $region3: #{mamba_layer_forward.2} parent=0 // pred_check_branch
    %11 = sbr.rel (0) target = $region5
  $region4: #{mamba_layer_forward.2} parent=0 // pred_region
    _
  $region5: #{mamba_layer_forward.2} parent=0 // pred_fallthru
    _
  // Predicated region
  $region6: #{mamba_layer_forward.2} parent=0 // pred_check
    _
  $region7: #{mamba_layer_forward.2} parent=0 // pred_check_branch
    %13 = sbr.rel (0) target = $region9
  $region8: #{mamba_layer_forward.2} parent=0 // pred_region
    _
  $region9: #{mamba_layer_forward.2} parent=0 // pred_fallthru
    _
  // Predicated region
  $region10: #{mamba_layer_forward.2} parent=0 // pred_check
    _
  $region11: #{mamba_layer_forward.2} parent=0 // pred_check_branch
    %15 = sbr.rel (0) target = $region13
  $region12: #{mamba_layer_forward.2} parent=0 // pred_region
    _
  $region13: #{mamba_layer_forward.2} parent=0 // pred_fallthru
    _
  // Predicated region
  $region14: #{mamba_layer_forward.2} parent=0 // pred_check
    _
  $region15: #{mamba_layer_forward.2} parent=0 // pred_check_branch
    %17 = sbr.rel (0) target = $region17
  $region16: #{mamba_layer_forward.2} parent=0 // pred_region
    _
  $region17: #{mamba_layer_forward.2} parent=0 // pred_fallthru
    _
  // Predicated region
  $region18: #{mamba_layer_forward.2} parent=0 // pred_check
    _
  $region19: #{mamba_layer_forward.2} parent=0 // pred_check_branch
    %19 = sbr.rel (0) target = $region21
  $region20: #{mamba_layer_forward.2} parent=0 // pred_region
    _
  $region21: #{mamba_layer_forward.2} parent=0 // pred_fallthru
    _
  %v20 = vld [vmem:[%s0] sm:$0xff]
  %v21 = vld [vmem:[%s0 + $0x8] sm:$0xff]
  %v22 = vld [vmem:[%s0 + $0x10] sm:$0xff]
  %v23 = vld [vmem:[%s0 + $0x18] sm:$0xff]
  %v24 = vld [vmem:[%s0 + $0x20] sm:$0xff]
  %v25 = vld [vmem:[%s0 + $0x28] sm:$0xff]
  %v26 = vld [vmem:[%s0 + $0x30] sm:$0xff]
  %v27 = vld [vmem:[%s0 + $0x38] sm:$0xff]
  %v28 = vld [vmem:[%s0 + $0x40] sm:$0xff]
  %v29 = vld [vmem:[%s0 + $0x48] sm:$0xff]
  %v30 = vld [vmem:[%s0 + $0x50] sm:$0xff]
  %v31 = vld [vmem:[%s0 + $0x58] sm:$0xff]
  %v32 = vld [vmem:[%s0 + $0x60] sm:$0xff]
  %v33 = vld [vmem:[%s0 + $0x68] sm:$0xff]
  %v34 = vld [vmem:[%s0 + $0x70] sm:$0xff]
  %v35 = vld [vmem:[%s0 + $0x78] sm:$0xff]
  %v36 = vld [vmem:[%s1] sm:$0xff]
  %v37 = vld [vmem:[%s1 + $0x8] sm:$0xff]
  %v38 = vld [vmem:[%s1 + $0x10] sm:$0xff]
  %v39 = vld [vmem:[%s1 + $0x18] sm:$0xff]
  %v40 = vld [vmem:[%s1 + $0x20] sm:$0xff]
  %v41 = vld [vmem:[%s1 + $0x28] sm:$0xff]
  %v42 = vld [vmem:[%s1 + $0x30] sm:$0xff]
  %v43 = vld [vmem:[%s1 + $0x38] sm:$0xff]
  %v44 = vld [vmem:[%s1 + $0x40] sm:$0xff]
  %v45 = vld [vmem:[%s1 + $0x48] sm:$0xff]
  %v46 = vld [vmem:[%s1 + $0x50] sm:$0xff]
  %v47 = vld [vmem:[%s1 + $0x58] sm:$0xff]
  %v48 = vld [vmem:[%s1 + $0x60] sm:$0xff]
  %v49 = vld [vmem:[%s1 + $0x68] sm:$0xff]
  %v50 = vld [vmem:[%s1 + $0x70] sm:$0xff]
  %v51 = vld [vmem:[%s1 + $0x78] sm:$0xff]
  %52 = vmatpush.msra.mxu0 %v51
  %53 = vmatpush.msra.mxu0 %v50
  %54 = vmatpush.msra.mxu0 %v49
  %55 = vmatpush.msra.mxu0 %v48
  %56 = vmatpush.msra.mxu0 %v47
  %57 = vmatpush.msra.mxu0 %v46
  %58 = vmatpush.msra.mxu0 %v45
  %59 = vmatpush.msra.mxu0 %v44
  %60 = vmatpush.msra.mxu0 %v43
  %61 = vmatpush.msra.mxu0 %v42
  %62 = vmatpush.msra.mxu0 %v41
  %63 = vmatpush.msra.mxu0 %v40
  %64 = vmatpush.msra.mxu0 %v39
  %65 = vmatpush.msra.mxu0 %v38
  %66 = vmatpush.msra.mxu0 %v37
  %67 = vmatpush.msra.mxu0 %v36
  %68 = vmatmul.f32.gmra.mxu0 %v20
  %v69 = vpop.f32.mrf.mxu0
  %v70 = vadd.f32 0.0, %v69
  %71 = vmatmul.f32.gmra.mxu0 %v21
  %v72 = vpop.f32.mrf.mxu0
  %v73 = vadd.f32 0.0, %v72
  %74 = vmatmul.f32.gmra.mxu0 %v22
  %v75 = vpop.f32.mrf.mxu0
  %v76 = vadd.f32 0.0, %v75
  %77 = vmatmul.f32.gmra.mxu0 %v23
  %v78 = vpop.f32.mrf.mxu0
  %v79 = vadd.f32 0.0, %v78
  %80 = vmatmul.f32.gmra.mxu0 %v24
  %v81 = vpop.f32.mrf.mxu0
  %v82 = vadd.f32 0.0, %v81
  %83 = vmatmul.f32.gmra.mxu0 %v25
  %v84 = vpop.f32.mrf.mxu0
  %v85 = vadd.f32 0.0, %v84
  %86 = vmatmul.f32.gmra.mxu0 %v26
  %v87 = vpop.f32.mrf.mxu0
  %v88 = vadd.f32 0.0, %v87
  %89 = vmatmul.f32.gmra.mxu0 %v27
  %v90 = vpop.f32.mrf.mxu0
  %v91 = vadd.f32 0.0, %v90
  %92 = vmatmul.f32.gmra.mxu0 %v28
  %v93 = vpop.f32.mrf.mxu0
  %v94 = vadd.f32 0.0, %v93
  %95 = vmatmul.f32.gmra.mxu0 %v29
  %v96 = vpop.f32.mrf.mxu0
  %v97 = vadd.f32 0.0, %v96
  %98 = vmatmul.f32.gmra.mxu0 %v30
  %v99 = vpop.f32.mrf.mxu0
  %v100 = vadd.f32 0.0, %v99
  %101 = vmatmul.f32.gmra.mxu0 %v31
  %v102 = vpop.f32.mrf.mxu0
  %v103 = vadd.f32 0.0, %v102
  %104 = vmatmul.f32.gmra.mxu0 %v32
  %v105 = vpop.f32.mrf.mxu0
  %v106 = vadd.f32 0.0, %v105
  %107 = vmatmul.f32.gmra.mxu0 %v33
  %v108 = vpop.f32.mrf.mxu0
  %v109 = vadd.f32 0.0, %v108
  %110 = vmatmul.f32.gmra.mxu0 %v34
  %v111 = vpop.f32.mrf.mxu0
  %v112 = vadd.f32 0.0, %v111
  %113 = vmatmul.f32.gmra.mxu0 %v35
  %v114 = vpop.f32.mrf.mxu0
  %v115 = vadd.f32 0.0, %v114
  %116 = vdwg.mxu0
  %v117 = vld [vmem:[%s4] sm:$0x1]
  %v118 = vlaneseq
  %v119 = vshrl.u32 %v118, 7
  %v120 = vadd.s32 %v119, 8
  %v121 = vadd.s32 %v119, 16
  %v122 = vadd.s32 %v119, 24
  %v123 = vadd.s32 %v119, 32
  %v124 = vadd.s32 %v119, 40
  %v125 = vadd.s32 %v119, 48
  %v126 = vadd.s32 %v119, 56
  %v127 = vadd.s32 %v119, 64
  %v128 = vadd.s32 %v119, 72
  %v129 = vadd.s32 %v119, 80
  %v130 = vadd.s32 %v119, 88
  %v131 = vadd.s32 %v119, 96
  %v132 = vadd.s32 %v119, 104
  %v133 = vadd.s32 %v119, 112
  %v134 = vadd.s32 %v119, 120
  %v135 = vcvt.s32.f32 %v119
  %v136 = vcvt.s32.f32 %v120
  %v137 = vcvt.s32.f32 %v121
  %v138 = vcvt.s32.f32 %v122
  %v139 = vcvt.s32.f32 %v123
  %v140 = vcvt.s32.f32 %v124
  %v141 = vcvt.s32.f32 %v125
  %v142 = vcvt.s32.f32 %v126
  %v143 = vcvt.s32.f32 %v127
  %v144 = vcvt.s32.f32 %v128
  %v145 = vcvt.s32.f32 %v129
  %v146 = vcvt.s32.f32 %v130
  %v147 = vcvt.s32.f32 %v131
  %v148 = vcvt.s32.f32 %v132
  %v149 = vcvt.s32.f32 %v133
  %v150 = vcvt.s32.f32 %v134
  %v152 = vperm.slane %v117, 0
  %vm154 = vcmp.lt.f32.partialorder %v135, %v152
  %vm155 = vcmp.lt.f32.partialorder %v136, %v152
  %vm156 = vcmp.lt.f32.partialorder %v137, %v152
  %vm157 = vcmp.lt.f32.partialorder %v138, %v152
  %vm158 = vcmp.lt.f32.partialorder %v139, %v152
  %vm159 = vcmp.lt.f32.partialorder %v140, %v152
  %vm160 = vcmp.lt.f32.partialorder %v141, %v152
  %vm161 = vcmp.lt.f32.partialorder %v142, %v152
  %vm162 = vcmp.lt.f32.partialorder %v143, %v152
  %vm163 = vcmp.lt.f32.partialorder %v144, %v152
  %vm164 = vcmp.lt.f32.partialorder %v145, %v152
  %vm165 = vcmp.lt.f32.partialorder %v146, %v152
  %vm166 = vcmp.lt.f32.partialorder %v147, %v152
  %vm167 = vcmp.lt.f32.partialorder %v148, %v152
  %vm168 = vcmp.lt.f32.partialorder %v149, %v152
  %vm169 = vcmp.lt.f32.partialorder %v150, %v152
  %v170 = vsel %vm154, 1, 0
  %v171 = vsel %vm155, 1, 0
  %v172 = vsel %vm156, 1, 0
  %v173 = vsel %vm157, 1, 0
  %v174 = vsel %vm158, 1, 0
  %v175 = vsel %vm159, 1, 0
  %v176 = vsel %vm160, 1, 0
  %v177 = vsel %vm161, 1, 0
  %v178 = vsel %vm162, 1, 0
  %v179 = vsel %vm163, 1, 0
  %v180 = vsel %vm164, 1, 0
  %v181 = vsel %vm165, 1, 0
  %v182 = vsel %vm166, 1, 0
  %v183 = vsel %vm167, 1, 0
  %v184 = vsel %vm168, 1, 0
  %v185 = vsel %vm169, 1, 0
  %v186 = vcvt.s32.f32 %v170
  %v187 = vcvt.s32.f32 %v171
  %v188 = vcvt.s32.f32 %v172
  %v189 = vcvt.s32.f32 %v173
  %v190 = vcvt.s32.f32 %v174
  %v191 = vcvt.s32.f32 %v175
  %v192 = vcvt.s32.f32 %v176
  %v193 = vcvt.s32.f32 %v177
  %v194 = vcvt.s32.f32 %v178
  %v195 = vcvt.s32.f32 %v179
  %v196 = vcvt.s32.f32 %v180
  %v197 = vcvt.s32.f32 %v181
  %v198 = vcvt.s32.f32 %v182
  %v199 = vcvt.s32.f32 %v183
  %v200 = vcvt.s32.f32 %v184
  %v201 = vcvt.s32.f32 %v185
  %v202 = vmul.f32 %v70, %v186
  %v203 = vmul.f32 %v73, %v187
  %v204 = vmul.f32 %v76, %v188
  %v205 = vmul.f32 %v79, %v189
  %v206 = vmul.f32 %v82, %v190
  %v207 = vmul.f32 %v85, %v191
  %v208 = vmul.f32 %v88, %v192
  %v209 = vmul.f32 %v91, %v193
  %v210 = vmul.f32 %v94, %v194
  %v211 = vmul.f32 %v97, %v195
  %v212 = vmul.f32 %v100, %v196
  %v213 = vmul.f32 %v103, %v197
  %v214 = vmul.f32 %v106, %v198
  %v215 = vmul.f32 %v109, %v199
  %v216 = vmul.f32 %v112, %v200
  %v217 = vmul.f32 %v115, %v201
  %v218 = vadd.f32 %v202, %v203
  %v219 = vadd.f32 %v218, %v204
  %v220 = vadd.f32 %v219, %v205
  %v221 = vadd.f32 %v220, %v206
  %v222 = vadd.f32 %v221, %v207
  %v223 = vadd.f32 %v222, %v208
  %v224 = vadd.f32 %v223, %v209
  %v225 = vadd.f32 %v224, %v210
  %v226 = vadd.f32 %v225, %v211
  %v227 = vadd.f32 %v226, %v212
  %v228 = vadd.f32 %v227, %v213
  %v229 = vadd.f32 %v228, %v214
  %v230 = vadd.f32 %v229, %v215
  %v231 = vadd.f32 %v230, %v216
  %v232 = vadd.f32 %v231, %v217
  %v233 = vrot.slane %v232, 4
  %v234 = vadd.f32 %v232, %v233
  %v235 = vrot.slane %v234, 2
  %v236 = vadd.f32 %v234, %v235
  %v237 = vrot.slane %v236, 1
  %v238 = vadd.f32 %v236, %v237
  %v239 = vrcp.pop %v117
  %v240 = vmul.f32 %v117, %v239
  %v241 = vsub.f32 1.0, %v240
  %v242 = vmul.f32 %v239, %v241
  %v243 = vadd.f32 %v239, %v242
  %vm244 = vweird.f32 %v117
  %vm245 = vweird.f32 %v239
  %vm246 = vmor %vm244, %vm245
  %v247 = vsel %vm246, %v239, %v243
  %v248 = vand.u32 2147483647, %v117
  %vm249 = vcmp.eq.f32.partialorder %v248, 8.507059e+37
  %v250 = vand.u32 %v117, 2147483648
  %v251 = vor.u32 1.1754944e-38, %v250
  %v252 = vsel %vm249, %v251, %v247
  %v253 = vmul.f32 %v238, %v252
  %v254 = vperm.slane %v253, 0
  %v255 = vsub.f32 %v70, %v254
  %v256 = vsub.f32 %v73, %v254
  %v257 = vsub.f32 %v76, %v254
  %v258 = vsub.f32 %v79, %v254
  %v259 = vsub.f32 %v82, %v254
  %v260 = vsub.f32 %v85, %v254
  %v261 = vsub.f32 %v88, %v254
  %v262 = vsub.f32 %v91, %v254
  %v263 = vsub.f32 %v94, %v254
  %v264 = vsub.f32 %v97, %v254
  %v265 = vsub.f32 %v100, %v254
  %v266 = vsub.f32 %v103, %v254
  %v267 = vsub.f32 %v106, %v254
  %v268 = vsub.f32 %v109, %v254
  %v269 = vsub.f32 %v112, %v254
  %v270 = vsub.f32 %v115, %v254
  %v271 = vmul.f32 %v255, %v255
  %v272 = vmul.f32 %v256, %v256
  %v273 = vmul.f32 %v257, %v257
  %v274 = vmul.f32 %v258, %v258
  %v275 = vmul.f32 %v259, %v259
  %v276 = vmul.f32 %v260, %v260
  %v277 = vmul.f32 %v261, %v261
  %v278 = vmul.f32 %v262, %v262
  %v279 = vmul.f32 %v263, %v263
  %v280 = vmul.f32 %v264, %v264
  %v281 = vmul.f32 %v265, %v265
  %v282 = vmul.f32 %v266, %v266
  %v283 = vmul.f32 %v267, %v267
  %v284 = vmul.f32 %v268, %v268
  %v285 = vmul.f32 %v269, %v269
  %v286 = vmul.f32 %v270, %v270
  %v287 = vmul.f32 %v271, %v186
  %v288 = vmul.f32 %v272, %v187
  %v289 = vmul.f32 %v273, %v188
  %v290 = vmul.f32 %v274, %v189
  %v291 = vmul.f32 %v275, %v190
  %v292 = vmul.f32 %v276, %v191
  %v293 = vmul.f32 %v277, %v192
  %v294 = vmul.f32 %v278, %v193
  %v295 = vmul.f32 %v279, %v194
  %v296 = vmul.f32 %v280, %v195
  %v297 = vmul.f32 %v281, %v196
  %v298 = vmul.f32 %v282, %v197
  %v299 = vmul.f32 %v283, %v198
  %v300 = vmul.f32 %v284, %v199
  %v301 = vmul.f32 %v285, %v200
  %v302 = vmul.f32 %v286, %v201
  %v303 = vadd.f32 %v287, %v288
  %v304 = vadd.f32 %v303, %v289
  %v305 = vadd.f32 %v304, %v290
  %v306 = vadd.f32 %v305, %v291
  %v307 = vadd.f32 %v306, %v292
  %v308 = vadd.f32 %v307, %v293
  %v309 = vadd.f32 %v308, %v294
  %v310 = vadd.f32 %v309, %v295
  %v311 = vadd.f32 %v310, %v296
  %v312 = vadd.f32 %v311, %v297
  %v313 = vadd.f32 %v312, %v298
  %v314 = vadd.f32 %v313, %v299
  %v315 = vadd.f32 %v314, %v300
  %v316 = vadd.f32 %v315, %v301
  %v317 = vadd.f32 %v316, %v302
  %v318 = vrot.slane %v317, 4
  %v319 = vadd.f32 %v317, %v318
  %v320 = vrot.slane %v319, 2
  %v321 = vadd.f32 %v319, %v320
  %v322 = vrot.slane %v321, 1
  %v323 = vadd.f32 %v321, %v322
  %v324 = vmul.f32 %v323, %v252
  %v325 = vadd.f32 %v324, 1e-05
  %v326 = vrsqrt.pop %v325
  %v327 = vmul.f32 %v326, %v325
  %v328 = vmul.f32 %v327, %v326
  %v329 = vmul.f32 0.5, %v328
  %v330 = vsub.f32 1.5, %v329
  %v331 = vmul.f32 %v326, %v330
  %vm332 = vweird.f32 %v325
  %vm333 = vweird.f32 %v326
  %vm334 = vmor %vm332, %vm333
  %v335 = vsel %vm334, %v326, %v331
  %v336 = vperm.slane %v335, 0
  %v337 = vmul.f32 %v255, %v336
  %v338 = vmul.f32 %v256, %v336
  %v339 = vmul.f32 %v257, %v336
  %v340 = vmul.f32 %v258, %v336
  %v341 = vmul.f32 %v259, %v336
  %v342 = vmul.f32 %v260, %v336
  %v343 = vmul.f32 %v261, %v336
  %v344 = vmul.f32 %v262, %v336
  %v345 = vmul.f32 %v263, %v336
  %v346 = vmul.f32 %v264, %v336
  %v347 = vmul.f32 %v265, %v336
  %v348 = vmul.f32 %v266, %v336
  %v349 = vmul.f32 %v267, %v336
  %v350 = vmul.f32 %v268, %v336
  %v351 = vmul.f32 %v269, %v336
  %v352 = vmul.f32 %v270, %v336
  %v353 = vld [vmem:[%s2] sm:$0x1]
  %v355 = vperm.slane %v353, 0
  %v357 = vmul.f32 %v337, %v355
  %v358 = vmul.f32 %v338, %v355
  %v359 = vmul.f32 %v339, %v355
  %v360 = vmul.f32 %v340, %v355
  %v361 = vmul.f32 %v341, %v355
  %v362 = vmul.f32 %v342, %v355
  %v363 = vmul.f32 %v343, %v355
  %v364 = vmul.f32 %v344, %v355
  %v365 = vmul.f32 %v345, %v355
  %v366 = vmul.f32 %v346, %v355
  %v367 = vmul.f32 %v347, %v355
  %v368 = vmul.f32 %v348, %v355
  %v369 = vmul.f32 %v349, %v355
  %v370 = vmul.f32 %v350, %v355
  %v371 = vmul.f32 %v351, %v355
  %v372 = vmul.f32 %v352, %v355
  %v373 = vld [vmem:[%s3] sm:$0x1]
  %v375 = vperm.slane %v373, 0
  %v377 = vadd.f32 %v357, %v375
  %v378 = vadd.f32 %v358, %v375
  %v379 = vadd.f32 %v359, %v375
  %v380 = vadd.f32 %v360, %v375
  %v381 = vadd.f32 %v361, %v375
  %v382 = vadd.f32 %v362, %v375
  %v383 = vadd.f32 %v363, %v375
  %v384 = vadd.f32 %v364, %v375
  %v385 = vadd.f32 %v365, %v375
  %v386 = vadd.f32 %v366, %v375
  %v387 = vadd.f32 %v367, %v375
  %v388 = vadd.f32 %v368, %v375
  %v389 = vadd.f32 %v369, %v375
  %v390 = vadd.f32 %v370, %v375
  %v391 = vadd.f32 %v371, %v375
  %v392 = vadd.f32 %v372, %v375
  %v393 = vmax.f32 %v377, 0.0
  %v394 = vmax.f32 %v378, 0.0
  %v395 = vmax.f32 %v379, 0.0
  %v396 = vmax.f32 %v380, 0.0
  %v397 = vmax.f32 %v381, 0.0
  %v398 = vmax.f32 %v382, 0.0
  %v399 = vmax.f32 %v383, 0.0
  %v400 = vmax.f32 %v384, 0.0
  %v401 = vmax.f32 %v385, 0.0
  %v402 = vmax.f32 %v386, 0.0
  %v403 = vmax.f32 %v387, 0.0
  %v404 = vmax.f32 %v388, 0.0
  %v405 = vmax.f32 %v389, 0.0
  %v406 = vmax.f32 %v390, 0.0
  %v407 = vmax.f32 %v391, 0.0
  %v408 = vmax.f32 %v392, 0.0
  %v409 = vmin.f32 %v393, 6.0
  %v410 = vmin.f32 %v394, 6.0
  %v411 = vmin.f32 %v395, 6.0
  %v412 = vmin.f32 %v396, 6.0
  %v413 = vmin.f32 %v397, 6.0
  %v414 = vmin.f32 %v398, 6.0
  %v415 = vmin.f32 %v399, 6.0
  %v416 = vmin.f32 %v400, 6.0
  %v417 = vmin.f32 %v401, 6.0
  %v418 = vmin.f32 %v402, 6.0
  %v419 = vmin.f32 %v403, 6.0
  %v420 = vmin.f32 %v404, 6.0
  %v421 = vmin.f32 %v405, 6.0
  %v422 = vmin.f32 %v406, 6.0
  %v423 = vmin.f32 %v407, 6.0
  %v424 = vmin.f32 %v408, 6.0
  %425 = vst [vmem:[%s5] sm:$0xff] %v409
  %426 = vst [vmem:[%s5 + $0x8] sm:$0xff] %v410
  %427 = vst [vmem:[%s5 + $0x10] sm:$0xff] %v411
  %428 = vst [vmem:[%s5 + $0x18] sm:$0xff] %v412
  %429 = vst [vmem:[%s5 + $0x20] sm:$0xff] %v413
  %430 = vst [vmem:[%s5 + $0x28] sm:$0xff] %v414
  %431 = vst [vmem:[%s5 + $0x30] sm:$0xff] %v415
  %432 = vst [vmem:[%s5 + $0x38] sm:$0xff] %v416
  %433 = vst [vmem:[%s5 + $0x40] sm:$0xff] %v417
  %434 = vst [vmem:[%s5 + $0x48] sm:$0xff] %v418
  %435 = vst [vmem:[%s5 + $0x50] sm:$0xff] %v419
  %436 = vst [vmem:[%s5 + $0x58] sm:$0xff] %v420
  %437 = vst [vmem:[%s5 + $0x60] sm:$0xff] %v421
  %438 = vst [vmem:[%s5 + $0x68] sm:$0xff] %v422
  %439 = vst [vmem:[%s5 + $0x70] sm:$0xff] %v423
  %440 = vst [vmem:[%s5 + $0x78] sm:$0xff] %v424
  // Predicated region
  $region22: #{mamba_layer_forward.2} parent=0 // pred_check
    _
  $region23: #{mamba_layer_forward.2} parent=0 // pred_check_branch
    %442 = sbr.rel (0) target = $region25
  $region24: #{mamba_layer_forward.2} parent=0 // pred_region
    _
  $region25: #{mamba_layer_forward.2} parent=0 // pred_fallthru
    _
  // Predicated region
  $region26: #{mamba_layer_forward.2} parent=0 // pred_check
    _
  $region27: #{mamba_layer_forward.2} parent=0 // pred_check_branch
    %444 = sbr.rel (0) target = $region29
  $region28: #{mamba_layer_forward.2} parent=0 // pred_region
    _
  $region29: #{mamba_layer_forward.2} parent=0 // pred_fallthru
    _

// kernel: mamba_layer_forward.3
$region0: #{mamba_layer_forward.3}
  #allocation0 [shape = 'u32[]', space=smem, size = 0x4, offset = 0x4, fixed_abs, tag = 'smem constant byte address 0x4 - core index']
  #allocation1 [shape = 'u32[72,128]{1,0:T(1,128)}', space=vmem, size = 0x9000, scoped, tag = 'internal scratch']
  #allocation2 [shape = 'f32[67,320]{1,0:T(8,128)}', space=vmem, size = 0x1b000, scoped, tag = 'scratch operand']
  #allocation3 [shape = 'f32[64,8,320]{2,1,0:T(8,128)}', space=vmem, size = 0xc0000, scoped, tag = 'scratch operand']
  #allocation4 [shape = 'f32[64,8,320]{2,1,0:T(8,128)}', space=vmem, size = 0xc0000, scoped, tag = 'scratch operand']
  #allocation5 [shape = 'f32[64,8,320]{2,1,0:T(8,128)}', space=vmem, size = 0xc0000, scoped, tag = 'scratch operand']
  %s0 = inlined_call_operand.vmem [shape: f32[2,64,160], index: 0, kind: input, shape index: {}]
  %s1 = inlined_call_operand.vmem [shape: f32[160,320], index: 1, kind: input, shape index: {}]
  %s2 = inlined_call_operand.vmem [shape: f32[160,320], index: 2, kind: input, shape index: {}]
  %s3 = inlined_call_operand.vmem [shape: f32[4,320], index: 3, kind: input, shape index: {}]
  %s4 = inlined_call_operand.vmem [shape: f32[1,320], index: 4, kind: input, shape index: {}]
  %s5 = inlined_call_operand.vmem [shape: f32[320,10], index: 5, kind: input, shape index: {}]
  %s6 = inlined_call_operand.vmem [shape: f32[320,8], index: 6, kind: input, shape index: {}]
  %s7 = inlined_call_operand.vmem [shape: f32[320,8], index: 7, kind: input, shape index: {}]
  %s8 = inlined_call_operand.vmem [shape: f32[10,320], index: 8, kind: input, shape index: {}]
  %s9 = inlined_call_operand.vmem [shape: f32[1,320], index: 9, kind: input, shape index: {}]
  %s10 = inlined_call_operand.vmem [shape: f32[8,320], index: 10, kind: input, shape index: {}]
  %s11 = inlined_call_operand.vmem [shape: f32[1,320], index: 11, kind: input, shape index: {}]
  %s12 = inlined_call_operand.vmem [shape: f32[320,160], index: 12, kind: input, shape index: {}]
  %s13 = inlined_call_operand.hbm [shape: f32[2,64,160], index: 13, kind: output, shape index: {}]
  %s14 = sld [smem:[#allocation0]]
  $region92: #{mamba_layer_forward.3} parent=0
    _
  %s16 = ssub.s32 1, %s14
  %s17 = scalar_select 0, %s16, %s14
  $region1: #{mamba_layer_forward.3} parent=0
    #allocation6 [shape = 'u8[131072]{0}', space=vmem, size = 0x20000, scoped, tag = 'output window, operand 0']
    #allocation7 [shape = 's32[2]{0}', space=sflag, size = 0x8, scoped, tag = 'scoped memory for mamba_layer_forward.3']
    %18 = vsyncpa [#allocation7], 0
    %s19 = scalar_lea.sflag [#allocation7], 1
    %20 = vsyncpa %s19, 0
    loop: start=0, step=1, limit=4
    $region2: #{mamba_layer_forward.3} parent=1 // loop_pre_header
      _
    $region3: #{mamba_layer_forward.3} parent=1 // loop_header
      %s22 = sphi 0, %s26
      %p23 = scmp.ge.s32.totalorder %s22, 4
      %s32 = sphi 0, %s34
      %s35 = sphi 0, %s32
      %s36 = sphi 0, %s35
      %s52 = sphi 0, %s36
      %s56 = sphi 0, %s56
      %s58 = sphi 0, %s56
      %s59 = sphi 0, %s58
      %s73 = sphi 0, %s59
      %s77 = sphi 0, %s77
      %s79 = sphi 0, %s77
      %s80 = sphi 0, %s79
      %s94 = sphi 0, %s80
      %s98 = sphi 0, %s98
      %s100 = sphi 0, %s98
      %s101 = sphi 0, %s100
      %s115 = sphi 0, %s101
      %s119 = sphi 0, %s119
      %s121 = sphi 0, %s119
      %s122 = sphi 0, %s121
      %s136 = sphi 0, %s122
      %s140 = sphi 0, %s140
      %s142 = sphi 0, %s140
      %s143 = sphi 0, %s142
      %s157 = sphi 0, %s143
      %s161 = sphi 0, %s161
      %s163 = sphi 0, %s161
      %s164 = sphi 0, %s163
      %s178 = sphi 0, %s164
      %s182 = sphi 0, %s182
      %s184 = sphi 0, %s182
      %s185 = sphi 0, %s184
      %s199 = sphi 0, %s185
      %s203 = sphi 0, %s203
      %s205 = sphi 0, %s203
      %s206 = sphi 0, %s205
      %s220 = sphi 0, %s206
      %s224 = sphi 0, %s224
      %s226 = sphi 0, %s224
      %s227 = sphi 0, %s226
      %s241 = sphi 0, %s227
      %s245 = sphi 0, %s245
      %s247 = sphi 0, %s245
      %s248 = sphi 0, %s247
      %s262 = sphi 0, %s248
      %s266 = sphi 0, %s266
      %s268 = sphi 0, %s266
      %s269 = sphi 0, %s268
      %s283 = sphi 0, %s269
      %s287 = sphi 0, %s287
      %s289 = sphi 0, %s287
      %s290 = sphi 0, %s289
      %s304 = sphi 0, %s290
      %s310 = sphi 0, %s312
      %s313 = sphi 0, %s310
      %s314 = sphi 0, %s313
      %s330 = sphi 0, %s314
    $region4: #{mamba_layer_forward.3} parent=1 // loop_header_branch
      %25 = sbr.rel (%p23) target = $region8
    $region5: #{mamba_layer_forward.3} parent=1 // loop_body
      %s27 = ssub.s32 %s22, 1
      %s28 = ssub.s32 %s22, 2
      %s29 = sadd.s32 %s22, 1
      %s30 = ssub.s32 %s22, %s29
      %p31 = scmp.eq.s32.totalorder %s30, 0
      %s33 = sadd.s32 %s32, 1
      %s34 = scalar_select %p31, %s32, %s33
      %p37 = pneg %p31
      %p38 = scmp.eq.s32.totalorder %s22, 1
      %p39 = por %p37, %p38
      %p40 = scmp.ne.s32.totalorder %s32, %s35
      %p41 = scmp.eq.s32.totalorder %s22, 0
      %p42 = por %p40, %p41
      %p43 = scmp.ne.s32.totalorder %s32, %s35
      %p44 = scmp.eq.s32.totalorder %s27, 1
      %p45 = por %p43, %p44
      %p46 = scmp.ne.s32.totalorder %s35, %s36
      %p47 = scmp.eq.s32.totalorder %s27, 0
      %p48 = por %p46, %p47
      %p49 = scmp.ne.s32.totalorder %s35, %s36
      %p50 = scmp.eq.s32.totalorder %s28, 1
      %p51 = por %p49, %p50
      %p53 = scmp.ne.s32.totalorder %s36, %s52
      %p54 = scmp.eq.s32.totalorder %s28, 0
      %p55 = por %p53, %p54
      %s57 = sadd.s32 %s56, 1
      %p60 = scmp.eq.s32.totalorder %s22, 1
      %p61 = scmp.ne.s32.totalorder %s56, %s58
      %p62 = scmp.eq.s32.totalorder %s22, 0
      %p63 = por %p61, %p62
      %p64 = scmp.ne.s32.totalorder %s56, %s58
      %p65 = scmp.eq.s32.totalorder %s27, 1
      %p66 = por %p64, %p65
      %p67 = scmp.ne.s32.totalorder %s58, %s59
      %p68 = scmp.eq.s32.totalorder %s27, 0
      %p69 = por %p67, %p68
      %p70 = scmp.ne.s32.totalorder %s58, %s59
      %p71 = scmp.eq.s32.totalorder %s28, 1
      %p72 = por %p70, %p71
      %p74 = scmp.ne.s32.totalorder %s59, %s73
      %p75 = scmp.eq.s32.totalorder %s28, 0
      %p76 = por %p74, %p75
      %s78 = sadd.s32 %s77, 1
      %p81 = scmp.eq.s32.totalorder %s22, 1
      %p82 = scmp.ne.s32.totalorder %s77, %s79
      %p83 = scmp.eq.s32.totalorder %s22, 0
      %p84 = por %p82, %p83
      %p85 = scmp.ne.s32.totalorder %s77, %s79
      %p86 = scmp.eq.s32.totalorder %s27, 1
      %p87 = por %p85, %p86
      %p88 = scmp.ne.s32.totalorder %s79, %s80
      %p89 = scmp.eq.s32.totalorder %s27, 0
      %p90 = por %p88, %p89
      %p91 = scmp.ne.s32.totalorder %s79, %s80
      %p92 = scmp.eq.s32.totalorder %s28, 1
      %p93 = por %p91, %p92
      %p95 = scmp.ne.s32.totalorder %s80, %s94
      %p96 = scmp.eq.s32.totalorder %s28, 0
      %p97 = por %p95, %p96
      %s99 = sadd.s32 %s98, 1
      %p102 = scmp.eq.s32.totalorder %s22, 1
      %p103 = scmp.ne.s32.totalorder %s98, %s100
      %p104 = scmp.eq.s32.totalorder %s22, 0
      %p105 = por %p103, %p104
      %p106 = scmp.ne.s32.totalorder %s98, %s100
      %p107 = scmp.eq.s32.totalorder %s27, 1
      %p108 = por %p106, %p107
      %p109 = scmp.ne.s32.totalorder %s100, %s101
      %p110 = scmp.eq.s32.totalorder %s27, 0
      %p111 = por %p109, %p110
      %p112 = scmp.ne.s32.totalorder %s100, %s101
      %p113 = scmp.eq.s32.totalorder %s28, 1
      %p114 = por %p112, %p113
      %p116 = scmp.ne.s32.totalorder %s101, %s115
      %p117 = scmp.eq.s32.totalorder %s28, 0
      %p118 = por %p116, %p117
      %s120 = sadd.s32 %s119, 1
      %p123 = scmp.eq.s32.totalorder %s22, 1
      %p124 = scmp.ne.s32.totalorder %s119, %s121
      %p125 = scmp.eq.s32.totalorder %s22, 0
      %p126 = por %p124, %p125
      %p127 = scmp.ne.s32.totalorder %s119, %s121
      %p128 = scmp.eq.s32.totalorder %s27, 1
      %p129 = por %p127, %p128
      %p130 = scmp.ne.s32.totalorder %s121, %s122
      %p131 = scmp.eq.s32.totalorder %s27, 0
      %p132 = por %p130, %p131
      %p133 = scmp.ne.s32.totalorder %s121, %s122
      %p134 = scmp.eq.s32.totalorder %s28, 1
      %p135 = por %p133, %p134
      %p137 = scmp.ne.s32.totalorder %s122, %s136
      %p138 = scmp.eq.s32.totalorder %s28, 0
      %p139 = por %p137, %p138
      %s141 = sadd.s32 %s140, 1
      %p144 = scmp.eq.s32.totalorder %s22, 1
      %p145 = scmp.ne.s32.totalorder %s140, %s142
      %p146 = scmp.eq.s32.totalorder %s22, 0
      %p147 = por %p145, %p146
      %p148 = scmp.ne.s32.totalorder %s140, %s142
      %p149 = scmp.eq.s32.totalorder %s27, 1
      %p150 = por %p148, %p149
      %p151 = scmp.ne.s32.totalorder %s142, %s143
      %p152 = scmp.eq.s32.totalorder %s27, 0
      %p153 = por %p151, %p152
      %p154 = scmp.ne.s32.totalorder %s142, %s143
      %p155 = scmp.eq.s32.totalorder %s28, 1
      %p156 = por %p154, %p155
      %p158 = scmp.ne.s32.totalorder %s143, %s157
      %p159 = scmp.eq.s32.totalorder %s28, 0
      %p160 = por %p158, %p159
      %s162 = sadd.s32 %s161, 1
      %p165 = scmp.eq.s32.totalorder %s22, 1
      %p166 = scmp.ne.s32.totalorder %s161, %s163
      %p167 = scmp.eq.s32.totalorder %s22, 0
      %p168 = por %p166, %p167
      %p169 = scmp.ne.s32.totalorder %s161, %s163
      %p170 = scmp.eq.s32.totalorder %s27, 1
      %p171 = por %p169, %p170
      %p172 = scmp.ne.s32.totalorder %s163, %s164
      %p173 = scmp.eq.s32.totalorder %s27, 0
      %p174 = por %p172, %p173
      %p175 = scmp.ne.s32.totalorder %s163, %s164
      %p176 = scmp.eq.s32.totalorder %s28, 1
      %p177 = por %p175, %p176
      %p179 = scmp.ne.s32.totalorder %s164, %s178
      %p180 = scmp.eq.s32.totalorder %s28, 0
      %p181 = por %p179, %p180
      %s183 = sadd.s32 %s182, 1
      %p186 = scmp.eq.s32.totalorder %s22, 1
      %p187 = scmp.ne.s32.totalorder %s182, %s184
      %p188 = scmp.eq.s32.totalorder %s22, 0
      %p189 = por %p187, %p188
      %p190 = scmp.ne.s32.totalorder %s182, %s184
      %p191 = scmp.eq.s32.totalorder %s27, 1
      %p192 = por %p190, %p191
      %p193 = scmp.ne.s32.totalorder %s184, %s185
      %p194 = scmp.eq.s32.totalorder %s27, 0
      %p195 = por %p193, %p194
      %p196 = scmp.ne.s32.totalorder %s184, %s185
      %p197 = scmp.eq.s32.totalorder %s28, 1
      %p198 = por %p196, %p197
      %p200 = scmp.ne.s32.totalorder %s185, %s199
      %p201 = scmp.eq.s32.totalorder %s28, 0
      %p202 = por %p200, %p201
      %s204 = sadd.s32 %s203, 1
      %p207 = scmp.eq.s32.totalorder %s22, 1
      %p208 = scmp.ne.s32.totalorder %s203, %s205
      %p209 = scmp.eq.s32.totalorder %s22, 0
      %p210 = por %p208, %p209
      %p211 = scmp.ne.s32.totalorder %s203, %s205
      %p212 = scmp.eq.s32.totalorder %s27, 1
      %p213 = por %p211, %p212
      %p214 = scmp.ne.s32.totalorder %s205, %s206
      %p215 = scmp.eq.s32.totalorder %s27, 0
      %p216 = por %p214, %p215
      %p217 = scmp.ne.s32.totalorder %s205, %s206
      %p218 = scmp.eq.s32.totalorder %s28, 1
      %p219 = por %p217, %p218
      %p221 = scmp.ne.s32.totalorder %s206, %s220
      %p222 = scmp.eq.s32.totalorder %s28, 0
      %p223 = por %p221, %p222
      %s225 = sadd.s32 %s224, 1
      %p228 = scmp.eq.s32.totalorder %s22, 1
      %p229 = scmp.ne.s32.totalorder %s224, %s226
      %p230 = scmp.eq.s32.totalorder %s22, 0
      %p231 = por %p229, %p230
      %p232 = scmp.ne.s32.totalorder %s224, %s226
      %p233 = scmp.eq.s32.totalorder %s27, 1
      %p234 = por %p232, %p233
      %p235 = scmp.ne.s32.totalorder %s226, %s227
      %p236 = scmp.eq.s32.totalorder %s27, 0
      %p237 = por %p235, %p236
      %p238 = scmp.ne.s32.totalorder %s226, %s227
      %p239 = scmp.eq.s32.totalorder %s28, 1
      %p240 = por %p238, %p239
      %p242 = scmp.ne.s32.totalorder %s227, %s241
      %p243 = scmp.eq.s32.totalorder %s28, 0
      %p244 = por %p242, %p243
      %s246 = sadd.s32 %s245, 1
      %p249 = scmp.eq.s32.totalorder %s22, 1
      %p250 = scmp.ne.s32.totalorder %s245, %s247
      %p251 = scmp.eq.s32.totalorder %s22, 0
      %p252 = por %p250, %p251
      %p253 = scmp.ne.s32.totalorder %s245, %s247
      %p254 = scmp.eq.s32.totalorder %s27, 1
      %p255 = por %p253, %p254
      %p256 = scmp.ne.s32.totalorder %s247, %s248
      %p257 = scmp.eq.s32.totalorder %s27, 0
      %p258 = por %p256, %p257
      %p259 = scmp.ne.s32.totalorder %s247, %s248
      %p260 = scmp.eq.s32.totalorder %s28, 1
      %p261 = por %p259, %p260
      %p263 = scmp.ne.s32.totalorder %s248, %s262
      %p264 = scmp.eq.s32.totalorder %s28, 0
      %p265 = por %p263, %p264
      %s267 = sadd.s32 %s266, 1
      %p270 = scmp.eq.s32.totalorder %s22, 1
      %p271 = scmp.ne.s32.totalorder %s266, %s268
      %p272 = scmp.eq.s32.totalorder %s22, 0
      %p273 = por %p271, %p272
      %p274 = scmp.ne.s32.totalorder %s266, %s268
      %p275 = scmp.eq.s32.totalorder %s27, 1
      %p276 = por %p274, %p275
      %p277 = scmp.ne.s32.totalorder %s268, %s269
      %p278 = scmp.eq.s32.totalorder %s27, 0
      %p279 = por %p277, %p278
      %p280 = scmp.ne.s32.totalorder %s268, %s269
      %p281 = scmp.eq.s32.totalorder %s28, 1
      %p282 = por %p280, %p281
      %p284 = scmp.ne.s32.totalorder %s269, %s283
      %p285 = scmp.eq.s32.totalorder %s28, 0
      %p286 = por %p284, %p285
      %s288 = sadd.s32 %s287, 1
      %p291 = scmp.eq.s32.totalorder %s22, 1
      %p292 = scmp.ne.s32.totalorder %s287, %s289
      %p293 = scmp.eq.s32.totalorder %s22, 0
      %p294 = por %p292, %p293
      %p295 = scmp.ne.s32.totalorder %s287, %s289
      %p296 = scmp.eq.s32.totalorder %s27, 1
      %p297 = por %p295, %p296
      %p298 = scmp.ne.s32.totalorder %s289, %s290
      %p299 = scmp.eq.s32.totalorder %s27, 0
      %p300 = por %p298, %p299
      %p301 = scmp.ne.s32.totalorder %s289, %s290
      %p302 = scmp.eq.s32.totalorder %s28, 1
      %p303 = por %p301, %p302
      %p305 = scmp.ne.s32.totalorder %s290, %s304
      %p306 = scmp.eq.s32.totalorder %s28, 0
      %p307 = por %p305, %p306
      %s308 = ssub.s32 %s22, %s29
      %p309 = scmp.eq.s32.totalorder %s308, 0
      %s311 = sadd.s32 %s310, 1
      %s312 = scalar_select %p309, %s310, %s311
      %p315 = pneg %p309
      %p316 = scmp.eq.s32.totalorder %s22, 1
      %p317 = por %p315, %p316
      %p318 = scmp.ne.s32.totalorder %s310, %s313
      %p319 = scmp.eq.s32.totalorder %s22, 0
      %p320 = por %p318, %p319
      %p321 = scmp.ne.s32.totalorder %s310, %s313
      %p322 = scmp.eq.s32.totalorder %s27, 1
      %p323 = por %p321, %p322
      %p324 = scmp.ne.s32.totalorder %s313, %s314
      %p325 = scmp.eq.s32.totalorder %s27, 0
      %p326 = por %p324, %p325
      %p327 = scmp.ne.s32.totalorder %s313, %s314
      %p328 = scmp.eq.s32.totalorder %s28, 1
      %p329 = por %p327, %p328
      %p331 = scmp.ne.s32.totalorder %s314, %s330
      %p332 = scmp.eq.s32.totalorder %s28, 0
      %p333 = por %p331, %p332
      %p334 = scmp.le.s32.totalorder 1, %s22
      %p335 = scmp.lt.s32.totalorder %s22, 3
      %p336 = pnand %p334, %p335
      %p337 = pneg %p336
      // Predicated region
      $region9: #{mamba_layer_forward.3} parent=5 // pred_check
        _
      $region10: #{mamba_layer_forward.3} parent=5 // pred_check_branch
        %339 = sbr.rel (%p336) target = $region12
      $region11: #{mamba_layer_forward.3} parent=5 // pred_region
        %s340 = ssub.s32 %s22, 1
        // Predicated region
        $region13: #{mamba_layer_forward.3} parent=11 // pred_check
          %p341 = pneg %p69
        $region14: #{mamba_layer_forward.3} parent=11 // pred_check_branch
          %343 = sbr.rel (%p341) target = $region16
        $region15: #{mamba_layer_forward.3} parent=11 // pred_region
          _
        $region16: #{mamba_layer_forward.3} parent=11 // pred_fallthru
          _
        // Predicated region
        $region17: #{mamba_layer_forward.3} parent=11 // pred_check
          %p344 = pneg %p90
        $region18: #{mamba_layer_forward.3} parent=11 // pred_check_branch
          %346 = sbr.rel (%p344) target = $region20
        $region19: #{mamba_layer_forward.3} parent=11 // pred_region
          _
        $region20: #{mamba_layer_forward.3} parent=11 // pred_fallthru
          _
        // Predicated region
        $region21: #{mamba_layer_forward.3} parent=11 // pred_check
          %p347 = pneg %p111
        $region22: #{mamba_layer_forward.3} parent=11 // pred_check_branch
          %349 = sbr.rel (%p347) target = $region24
        $region23: #{mamba_layer_forward.3} parent=11 // pred_region
          _
        $region24: #{mamba_layer_forward.3} parent=11 // pred_fallthru
          _
        // Predicated region
        $region25: #{mamba_layer_forward.3} parent=11 // pred_check
          %p350 = pneg %p132
        $region26: #{mamba_layer_forward.3} parent=11 // pred_check_branch
          %352 = sbr.rel (%p350) target = $region28
        $region27: #{mamba_layer_forward.3} parent=11 // pred_region
          _
        $region28: #{mamba_layer_forward.3} parent=11 // pred_fallthru
          _
        // Predicated region
        $region29: #{mamba_layer_forward.3} parent=11 // pred_check
          %p353 = pneg %p153
        $region30: #{mamba_layer_forward.3} parent=11 // pred_check_branch
          %355 = sbr.rel (%p353) target = $region32
        $region31: #{mamba_layer_forward.3} parent=11 // pred_region
          _
        $region32: #{mamba_layer_forward.3} parent=11 // pred_fallthru
          _
        // Predicated region
        $region33: #{mamba_layer_forward.3} parent=11 // pred_check
          %p356 = pneg %p174
        $region34: #{mamba_layer_forward.3} parent=11 // pred_check_branch
          %358 = sbr.rel (%p356) target = $region36
        $region35: #{mamba_layer_forward.3} parent=11 // pred_region
          _
        $region36: #{mamba_layer_forward.3} parent=11 // pred_fallthru
          _
        // Predicated region
        $region37: #{mamba_layer_forward.3} parent=11 // pred_check
          %p359 = pneg %p195
        $region38: #{mamba_layer_forward.3} parent=11 // pred_check_branch
          %361 = sbr.rel (%p359) target = $region40
        $region39: #{mamba_layer_forward.3} parent=11 // pred_region
          _
        $region40: #{mamba_layer_forward.3} parent=11 // pred_fallthru
          _
        // Predicated region
        $region41: #{mamba_layer_forward.3} parent=11 // pred_check
          %p362 = pneg %p216
        $region42: #{mamba_layer_forward.3} parent=11 // pred_check_branch
          %364 = sbr.rel (%p362) target = $region44
        $region43: #{mamba_layer_forward.3} parent=11 // pred_region
          _
        $region44: #{mamba_layer_forward.3} parent=11 // pred_fallthru
          _
        // Predicated region
        $region45: #{mamba_layer_forward.3} parent=11 // pred_check
          %p365 = pneg %p237
        $region46: #{mamba_layer_forward.3} parent=11 // pred_check_branch
          %367 = sbr.rel (%p365) target = $region48
        $region47: #{mamba_layer_forward.3} parent=11 // pred_region
          _
        $region48: #{mamba_layer_forward.3} parent=11 // pred_fallthru
          _
        // Predicated region
        $region49: #{mamba_layer_forward.3} parent=11 // pred_check
          %p368 = pneg %p258
        $region50: #{mamba_layer_forward.3} parent=11 // pred_check_branch
          %370 = sbr.rel (%p368) target = $region52
        $region51: #{mamba_layer_forward.3} parent=11 // pred_region
          _
        $region52: #{mamba_layer_forward.3} parent=11 // pred_fallthru
          _
        // Predicated region
        $region53: #{mamba_layer_forward.3} parent=11 // pred_check
          %p371 = pneg %p279
        $region54: #{mamba_layer_forward.3} parent=11 // pred_check_branch
          %373 = sbr.rel (%p371) target = $region56
        $region55: #{mamba_layer_forward.3} parent=11 // pred_region
          _
        $region56: #{mamba_layer_forward.3} parent=11 // pred_fallthru
          _
        // Predicated region
        $region57: #{mamba_layer_forward.3} parent=11 // pred_check
          %p374 = pneg %p300
        $region58: #{mamba_layer_forward.3} parent=11 // pred_check_branch
          %376 = sbr.rel (%p374) target = $region60
        $region59: #{mamba_layer_forward.3} parent=11 // pred_region
          _
        $region60: #{mamba_layer_forward.3} parent=11 // pred_fallthru
          _
      $region12: #{mamba_layer_forward.3} parent=5 // pred_fallthru
        _
      %p377 = scmp.lt.s32.totalorder %s22, 2
      // Predicated region
      $region61: #{mamba_layer_forward.3} parent=5 // pred_check
        %p378 = pneg %p377
      $region62: #{mamba_layer_forward.3} parent=5 // pred_check_branch
        %380 = sbr.rel (%p378) target = $region64
      $region63: #{mamba_layer_forward.3} parent=5 // pred_region
        // Predicated region
        $region65: #{mamba_layer_forward.3} parent=63 // pred_check
          %p381 = pneg %p42
        $region66: #{mamba_layer_forward.3} parent=63 // pred_check_branch
          %383 = sbr.rel (%p381) target = $region68
        $region67: #{mamba_layer_forward.3} parent=63 // pred_region
          %p384 = scmp.lt.s32.totalorder %s22, 1
          %s385 = scalar_select %p384, %s22, 1
          %s386 = smul.addr %s385, 16
          %s387 = smul.addr %s386, 8
          %s388 = scalar_lea.vmem %s0, %s387
        $region68: #{mamba_layer_forward.3} parent=63 // pred_fallthru
          _
      $region64: #{mamba_layer_forward.3} parent=5 // pred_fallthru
        _
      %p389 = scmp.le.s32.totalorder 1, %s22
      %p390 = scmp.lt.s32.totalorder %s22, 3
      %p391 = pnand %p389, %p390
      %p392 = pneg %p391
      // Predicated region
      $region69: #{mamba_layer_forward.3} parent=5 // pred_check
        _
      $region70: #{mamba_layer_forward.3} parent=5 // pred_check_branch
        %394 = sbr.rel (%p391) target = $region72
      $region71: #{mamba_layer_forward.3} parent=5 // pred_region
        %s395 = ssub.s32 %s22, 1
        %p396 = scmp.lt.s32.totalorder %s27, 1
        %s397 = scalar_select %p396, %s27, 1
        %s398 = smul.addr %s397, 16
        %s399 = smul.addr %s398, 8
        %s400 = scalar_lea.vmem %s0, %s399
        %p401 = pneg %p48
        %p402 = pneg %p45
        %p403 = pneg %p69
        %p404 = pneg %p66
        %p405 = pneg %p90
        %p406 = pneg %p87
        %p407 = pneg %p111
        %p408 = pneg %p108
        %p409 = pneg %p132
        %p410 = pneg %p129
        %p411 = pneg %p153
        %p412 = pneg %p150
        %p413 = pneg %p174
        %p414 = pneg %p171
        %p415 = pneg %p195
        %p416 = pneg %p192
        %p417 = pneg %p216
        %p418 = pneg %p213
        %p419 = pneg %p237
        %p420 = pneg %p234
        %p421 = pneg %p258
        %p422 = pneg %p255
        %p423 = pneg %p279
        %p424 = pneg %p276
        %p425 = pneg %p300
        %p426 = pneg %p297
        %p427 = pneg %p326
        %p428 = pneg %p323
        %s429 = sand.u32 %s313, 1
        %s430 = scalar_lea.sflag [#allocation7], %s429
        %s431 = sand.u32 %s313, 1
        %s432 = smul.addr %s431, 128
        %s433 = scalar_lea.vmem [#allocation6], %s432
        %p434 = scmp.lt.s32.totalorder %s27, 1
        %s435 = scalar_select %p434, %s27, 1
        %s436 = smul.addr %s435, 16
        %s437 = smul.addr %s436, 8
        %s438 = scalar_lea.vmem %s0, %s437
        %v439 = vld [vmem:[%s438] sm:$0xff]
        %v440 = vld [vmem:[%s438 + $0x8] sm:$0xff]
        %v441 = vld [vmem:[%s438 + $0x10] sm:$0xff]
        %v442 = vld [vmem:[%s438 + $0x18] sm:$0xff]
        %v443 = vld [vmem:[%s438 + $0x20] sm:$0xff]
        %v444 = vld [vmem:[%s438 + $0x28] sm:$0xff]
        %v445 = vld [vmem:[%s438 + $0x30] sm:$0xff]
        %v446 = vld [vmem:[%s438 + $0x38] sm:$0xff]
        %v447 = vld [vmem:[%s438 + $0x40] sm:$0xff]
        %v448 = vld [vmem:[%s438 + $0x48] sm:$0xff]
        %v449 = vld [vmem:[%s438 + $0x50] sm:$0xff]
        %v450 = vld [vmem:[%s438 + $0x58] sm:$0xff]
        %v451 = vld [vmem:[%s438 + $0x60] sm:$0xff]
        %v452 = vld [vmem:[%s438 + $0x68] sm:$0xff]
        %v453 = vld [vmem:[%s438 + $0x70] sm:$0xff]
        %v454 = vld [vmem:[%s438 + $0x78] sm:$0xff]
        %v455 = vld [vmem:[%s1] sm:$0xff]
        %v456 = vld [vmem:[%s1 + $0x8] sm:$0xff]
        %v457 = vld [vmem:[%s1 + $0x10] sm:$0xff]
        %v458 = vld [vmem:[%s1 + $0x18] sm:$0xff]
        %v459 = vld [vmem:[%s1 + $0x20] sm:$0xff]
        %v460 = vld [vmem:[%s1 + $0x28] sm:$0xff]
        %v461 = vld [vmem:[%s1 + $0x30] sm:$0xff]
        %v462 = vld [vmem:[%s1 + $0x38] sm:$0xff]
        %v463 = vld [vmem:[%s1 + $0x40] sm:$0xff]
        %v464 = vld [vmem:[%s1 + $0x48] sm:$0xff]
        %v465 = vld [vmem:[%s1 + $0x50] sm:$0xff]
        %v466 = vld [vmem:[%s1 + $0x58] sm:$0xff]
        %v467 = vld [vmem:[%s1 + $0x60] sm:$0xff]
        %v468 = vld [vmem:[%s1 + $0x68] sm:$0xff]
        %v469 = vld [vmem:[%s1 + $0x70] sm:$0xff]
        %v470 = vld [vmem:[%s1 + $0x78] sm:$0xff]
        %v471 = vld [vmem:[%s1 + $0x80] sm:$0xff]
        %v472 = vld [vmem:[%s1 + $0x88] sm:$0xff]
        %v473 = vld [vmem:[%s1 + $0x90] sm:$0xff]
        %v474 = vld [vmem:[%s1 + $0x98] sm:$0xff]
        %v475 = vld [vmem:[%s1 + $0xa0] sm:$0xff]
        %v476 = vld [vmem:[%s1 + $0xa8] sm:$0xff]
        %v477 = vld [vmem:[%s1 + $0xb0] sm:$0xff]
        %v478 = vld [vmem:[%s1 + $0xb8] sm:$0xff]
        %v479 = vld [vmem:[%s1 + $0xc0] sm:$0xff]
        %v480 = vld [vmem:[%s1 + $0xc8] sm:$0xff]
        %v481 = vld [vmem:[%s1 + $0xd0] sm:$0xff]
        %v482 = vld [vmem:[%s1 + $0xd8] sm:$0xff]
        %v483 = vld [vmem:[%s1 + $0xe0] sm:$0xff]
        %v484 = vld [vmem:[%s1 + $0xe8] sm:$0xff]
        %v485 = vld [vmem:[%s1 + $0xf0] sm:$0xff]
        %v486 = vld [vmem:[%s1 + $0xf8] sm:$0xff]
        %v487 = vld [vmem:[%s1 + $0x100] sm:$0xff]
        %v488 = vld [vmem:[%s1 + $0x108] sm:$0xff]
        %v489 = vld [vmem:[%s1 + $0x110] sm:$0xff]
        %v490 = vld [vmem:[%s1 + $0x118] sm:$0xff]
        %v491 = vld [vmem:[%s1 + $0x120] sm:$0xff]
        %v492 = vld [vmem:[%s1 + $0x128] sm:$0xff]
        %v493 = vld [vmem:[%s1 + $0x130] sm:$0xff]
        %v494 = vld [vmem:[%s1 + $0x138] sm:$0xff]
        %v495 = vld [vmem:[%s1 + $0x140] sm:$0xff]
        %v496 = vld [vmem:[%s1 + $0x148] sm:$0xff]
        %v497 = vld [vmem:[%s1 + $0x150] sm:$0xff]
        %v498 = vld [vmem:[%s1 + $0x158] sm:$0xff]
        %v499 = vld [vmem:[%s1 + $0x160] sm:$0xff]
        %v500 = vld [vmem:[%s1 + $0x168] sm:$0xff]
        %v501 = vld [vmem:[%s1 + $0x170] sm:$0xff]
        %v502 = vld [vmem:[%s1 + $0x178] sm:$0xff]
        %v503 = vld [vmem:[%s1 + $0x180] sm:$0xff]
        %v504 = vld [vmem:[%s1 + $0x188] sm:$0xff]
        %v505 = vld [vmem:[%s1 + $0x190] sm:$0xff]
        %v506 = vld [vmem:[%s1 + $0x198] sm:$0xff]
        %v507 = vld [vmem:[%s1 + $0x1a0] sm:$0xff]
        %v508 = vld [vmem:[%s1 + $0x1a8] sm:$0xff]
        %v509 = vld [vmem:[%s1 + $0x1b0] sm:$0xff]
        %v510 = vld [vmem:[%s1 + $0x1b8] sm:$0xff]
        %v511 = vld [vmem:[%s1 + $0x1c0] sm:$0xff]
        %v512 = vld [vmem:[%s1 + $0x1c8] sm:$0xff]
        %v513 = vld [vmem:[%s1 + $0x1d0] sm:$0xff]
        %v514 = vld [vmem:[%s1 + $0x1d8] sm:$0xff]
        %vm515 = vcmask 261120
        %v517 = vsel %vm515, %v440, 0
        %v520 = vsel %vm515, %v442, 0
        %v523 = vsel %vm515, %v444, 0
        %v526 = vsel %vm515, %v446, 0
        %v529 = vsel %vm515, %v448, 0
        %v532 = vsel %vm515, %v450, 0
        %v535 = vsel %vm515, %v452, 0
        %v538 = vsel %vm515, %v454, 0
        %540 = vmatpush.msra.mxu0 %v500
        %541 = vmatpush.msra.mxu0 %v497
        %542 = vmatpush.msra.mxu0 %v494
        %543 = vmatpush.msra.mxu0 %v491
        %544 = vmatpush.msra.mxu0 %v488
        %545 = vmatpush.msra.mxu0 %v485
        %546 = vmatpush.msra.mxu0 %v482
        %547 = vmatpush.msra.mxu0 %v479
        %548 = vmatpush.msra.mxu0 %v476
        %549 = vmatpush.msra.mxu0 %v473
        %550 = vmatpush.msra.mxu0 %v470
        %551 = vmatpush.msra.mxu0 %v467
        %552 = vmatpush.msra.mxu0 %v464
        %553 = vmatpush.msra.mxu0 %v461
        %554 = vmatpush.msra.mxu0 %v458
        %555 = vmatpush.msra.mxu0 %v455
        %556 = vmatmul.f32.gmra.mxu0 %v439
        %v557 = vpop.f32.mrf.mxu0
        %v558 = vadd.f32 0.0, %v557
        %559 = vmatmul.f32.gmra.mxu0 %v441
        %v560 = vpop.f32.mrf.mxu0
        %v561 = vadd.f32 0.0, %v560
        %562 = vmatmul.f32.gmra.mxu0 %v443
        %v563 = vpop.f32.mrf.mxu0
        %v564 = vadd.f32 0.0, %v563
        %565 = vmatmul.f32.gmra.mxu0 %v445
        %v566 = vpop.f32.mrf.mxu0
        %v567 = vadd.f32 0.0, %v566
        %568 = vmatmul.f32.gmra.mxu0 %v447
        %v569 = vpop.f32.mrf.mxu0
        %v570 = vadd.f32 0.0, %v569
        %571 = vmatmul.f32.gmra.mxu0 %v449
        %v572 = vpop.f32.mrf.mxu0
        %v573 = vadd.f32 0.0, %v572
        %574 = vmatmul.f32.gmra.mxu0 %v451
        %v575 = vpop.f32.mrf.mxu0
        %v576 = vadd.f32 0.0, %v575
        %577 = vmatmul.f32.gmra.mxu0 %v453
        %v578 = vpop.f32.mrf.mxu0
        %v579 = vadd.f32 0.0, %v578
        %580 = vdwg.mxu0
        %581 = vmatpush.msra.mxu0 0.0
        %582 = vmatpush.msra.mxu0 0.0
        %583 = vmatpush.msra.mxu0 0.0
        %584 = vmatpush.msra.mxu0 0.0
        %585 = vmatpush.msra.mxu0 0.0
        %586 = vmatpush.msra.mxu0 0.0
        %587 = vmatpush.msra.mxu0 0.0
        %588 = vmatpush.msra.mxu0 0.0
        %589 = vmatpush.msra.mxu0 0.0
        %590 = vmatpush.msra.mxu0 0.0
        %591 = vmatpush.msra.mxu0 0.0
        %592 = vmatpush.msra.mxu0 0.0
        %593 = vmatpush.msra.mxu0 %v512
        %594 = vmatpush.msra.mxu0 %v509
        %595 = vmatpush.msra.mxu0 %v506
        %596 = vmatpush.msra.mxu0 %v503
        %597 = vmatmul.f32.gmra.mxu0 %v517
        %v598 = vpop.f32.mrf.mxu0
        %v599 = vadd.f32 %v558, %v598
        %600 = vmatmul.f32.gmra.mxu0 %v520
        %v601 = vpop.f32.mrf.mxu0
        %v602 = vadd.f32 %v561, %v601
        %603 = vmatmul.f32.gmra.mxu0 %v523
        %v604 = vpop.f32.mrf.mxu0
        %v605 = vadd.f32 %v564, %v604
        %606 = vmatmul.f32.gmra.mxu0 %v526
        %v607 = vpop.f32.mrf.mxu0
        %v608 = vadd.f32 %v567, %v607
        %609 = vmatmul.f32.gmra.mxu0 %v529
        %v610 = vpop.f32.mrf.mxu0
        %v611 = vadd.f32 %v570, %v610
        %612 = vmatmul.f32.gmra.mxu0 %v532
        %v613 = vpop.f32.mrf.mxu0
        %v614 = vadd.f32 %v573, %v613
        %615 = vmatmul.f32.gmra.mxu0 %v535
        %v616 = vpop.f32.mrf.mxu0
        %v617 = vadd.f32 %v576, %v616
        %618 = vmatmul.f32.gmra.mxu0 %v538
        %v619 = vpop.f32.mrf.mxu0
        %v620 = vadd.f32 %v579, %v619
        %621 = vdwg.mxu0
        %622 = vmatpush.msra.mxu0 %v501
        %623 = vmatpush.msra.mxu0 %v498
        %624 = vmatpush.msra.mxu0 %v495
        %625 = vmatpush.msra.mxu0 %v492
        %626 = vmatpush.msra.mxu0 %v489
        %627 = vmatpush.msra.mxu0 %v486
        %628 = vmatpush.msra.mxu0 %v483
        %629 = vmatpush.msra.mxu0 %v480
        %630 = vmatpush.msra.mxu0 %v477
        %631 = vmatpush.msra.mxu0 %v474
        %632 = vmatpush.msra.mxu0 %v471
        %633 = vmatpush.msra.mxu0 %v468
        %634 = vmatpush.msra.mxu0 %v465
        %635 = vmatpush.msra.mxu0 %v462
        %636 = vmatpush.msra.mxu0 %v459
        %637 = vmatpush.msra.mxu0 %v456
        %638 = vmatmul.f32.gmra.mxu0 %v439
        %v639 = vpop.f32.mrf.mxu0
        %v640 = vadd.f32 0.0, %v639
        %641 = vmatmul.f32.gmra.mxu0 %v441
        %v642 = vpop.f32.mrf.mxu0
        %v643 = vadd.f32 0.0, %v642
        %644 = vmatmul.f32.gmra.mxu0 %v443
        %v645 = vpop.f32.mrf.mxu0
        %v646 = vadd.f32 0.0, %v645
        %647 = vmatmul.f32.gmra.mxu0 %v445
        %v648 = vpop.f32.mrf.mxu0
        %v649 = vadd.f32 0.0, %v648
        %650 = vmatmul.f32.gmra.mxu0 %v447
        %v651 = vpop.f32.mrf.mxu0
        %v652 = vadd.f32 0.0, %v651
        %653 = vmatmul.f32.gmra.mxu0 %v449
        %v654 = vpop.f32.mrf.mxu0
        %v655 = vadd.f32 0.0, %v654
        %656 = vmatmul.f32.gmra.mxu0 %v451
        %v657 = vpop.f32.mrf.mxu0
        %v658 = vadd.f32 0.0, %v657
        %659 = vmatmul.f32.gmra.mxu0 %v453
        %v660 = vpop.f32.mrf.mxu0
        %v661 = vadd.f32 0.0, %v660
        %662 = vdwg.mxu0
        %663 = vmatpush.msra.mxu0 0.0
        %664 = vmatpush.msra.mxu0 0.0
        %665 = vmatpush.msra.mxu0 0.0
        %666 = vmatpush.msra.mxu0 0.0
        %667 = vmatpush.msra.mxu0 0.0
        %668 = vmatpush.msra.mxu0 0.0
        %669 = vmatpush.msra.mxu0 0.0
        %670 = vmatpush.msra.mxu0 0.0
        %671 = vmatpush.msra.mxu0 0.0
        %672 = vmatpush.msra.mxu0 0.0
        %673 = vmatpush.msra.mxu0 0.0
        %674 = vmatpush.msra.mxu0 0.0
        %675 = vmatpush.msra.mxu0 %v513
        %676 = vmatpush.msra.mxu0 %v510
        %677 = vmatpush.msra.mxu0 %v507
        %678 = vmatpush.msra.mxu0 %v504
        %679 = vmatmul.f32.gmra.mxu0 %v517
        %v680 = vpop.f32.mrf.mxu0
        %v681 = vadd.f32 %v640, %v680
        %682 = vmatmul.f32.gmra.mxu0 %v520
        %v683 = vpop.f32.mrf.mxu0
        %v684 = vadd.f32 %v643, %v683
        %685 = vmatmul.f32.gmra.mxu0 %v523
        %v686 = vpop.f32.mrf.mxu0
        %v687 = vadd.f32 %v646, %v686
        %688 = vmatmul.f32.gmra.mxu0 %v526
        %v689 = vpop.f32.mrf.mxu0
        %v690 = vadd.f32 %v649, %v689
        %691 = vmatmul.f32.gmra.mxu0 %v529
        %v692 = vpop.f32.mrf.mxu0
        %v693 = vadd.f32 %v652, %v692
        %694 = vmatmul.f32.gmra.mxu0 %v532
        %v695 = vpop.f32.mrf.mxu0
        %v696 = vadd.f32 %v655, %v695
        %697 = vmatmul.f32.gmra.mxu0 %v535
        %v698 = vpop.f32.mrf.mxu0
        %v699 = vadd.f32 %v658, %v698
        %700 = vmatmul.f32.gmra.mxu0 %v538
        %v701 = vpop.f32.mrf.mxu0
        %v702 = vadd.f32 %v661, %v701
        %703 = vdwg.mxu0
        %704 = vmatpush.msra.mxu0 %v502
        %705 = vmatpush.msra.mxu0 %v499
        %706 = vmatpush.msra.mxu0 %v496
        %707 = vmatpush.msra.mxu0 %v493
        %708 = vmatpush.msra.mxu0 %v490
        %709 = vmatpush.msra.mxu0 %v487
        %710 = vmatpush.msra.mxu0 %v484
        %711 = vmatpush.msra.mxu0 %v481
        %712 = vmatpush.msra.mxu0 %v478
        %713 = vmatpush.msra.mxu0 %v475
        %714 = vmatpush.msra.mxu0 %v472
        %715 = vmatpush.msra.mxu0 %v469
        %716 = vmatpush.msra.mxu0 %v466
        %717 = vmatpush.msra.mxu0 %v463
        %718 = vmatpush.msra.mxu0 %v460
        %719 = vmatpush.msra.mxu0 %v457
        %720 = vmatmul.f32.gmra.mxu0 %v439
        %v721 = vpop.f32.mrf.mxu0
        %v722 = vadd.f32 0.0, %v721
        %723 = vmatmul.f32.gmra.mxu0 %v441
        %v724 = vpop.f32.mrf.mxu0
        %v725 = vadd.f32 0.0, %v724
        %726 = vmatmul.f32.gmra.mxu0 %v443
        %v727 = vpop.f32.mrf.mxu0
        %v728 = vadd.f32 0.0, %v727
        %729 = vmatmul.f32.gmra.mxu0 %v445
        %v730 = vpop.f32.mrf.mxu0
        %v731 = vadd.f32 0.0, %v730
        %732 = vmatmul.f32.gmra.mxu0 %v447
        %v733 = vpop.f32.mrf.mxu0
        %v734 = vadd.f32 0.0, %v733
        %735 = vmatmul.f32.gmra.mxu0 %v449
        %v736 = vpop.f32.mrf.mxu0
        %v737 = vadd.f32 0.0, %v736
        %738 = vmatmul.f32.gmra.mxu0 %v451
        %v739 = vpop.f32.mrf.mxu0
        %v740 = vadd.f32 0.0, %v739
        %741 = vmatmul.f32.gmra.mxu0 %v453
        %v742 = vpop.f32.mrf.mxu0
        %v743 = vadd.f32 0.0, %v742
        %744 = vdwg.mxu0
        %745 = vmatpush.msra.mxu0 0.0
        %746 = vmatpush.msra.mxu0 0.0
        %747 = vmatpush.msra.mxu0 0.0
        %748 = vmatpush.msra.mxu0 0.0
        %749 = vmatpush.msra.mxu0 0.0
        %750 = vmatpush.msra.mxu0 0.0
        %751 = vmatpush.msra.mxu0 0.0
        %752 = vmatpush.msra.mxu0 0.0
        %753 = vmatpush.msra.mxu0 0.0
        %754 = vmatpush.msra.mxu0 0.0
        %755 = vmatpush.msra.mxu0 0.0
        %756 = vmatpush.msra.mxu0 0.0
        %757 = vmatpush.msra.mxu0 %v514
        %758 = vmatpush.msra.mxu0 %v511
        %759 = vmatpush.msra.mxu0 %v508
        %760 = vmatpush.msra.mxu0 %v505
        %761 = vmatmul.f32.gmra.mxu0 %v517
        %v762 = vpop.f32.mrf.mxu0
        %v763 = vadd.f32 %v722, %v762
        %764 = vmatmul.f32.gmra.mxu0 %v520
        %v765 = vpop.f32.mrf.mxu0
        %v766 = vadd.f32 %v725, %v765
        %767 = vmatmul.f32.gmra.mxu0 %v523
        %v768 = vpop.f32.mrf.mxu0
        %v769 = vadd.f32 %v728, %v768
        %770 = vmatmul.f32.gmra.mxu0 %v526
        %v771 = vpop.f32.mrf.mxu0
        %v772 = vadd.f32 %v731, %v771
        %773 = vmatmul.f32.gmra.mxu0 %v529
        %v774 = vpop.f32.mrf.mxu0
        %v775 = vadd.f32 %v734, %v774
        %776 = vmatmul.f32.gmra.mxu0 %v532
        %v777 = vpop.f32.mrf.mxu0
        %v778 = vadd.f32 %v737, %v777
        %779 = vmatmul.f32.gmra.mxu0 %v535
        %v780 = vpop.f32.mrf.mxu0
        %v781 = vadd.f32 %v740, %v780
        %782 = vmatmul.f32.gmra.mxu0 %v538
        %v783 = vpop.f32.mrf.mxu0
        %v784 = vadd.f32 %v743, %v783
        %785 = vdwg.mxu0
        %v786 = vld [vmem:[%s2] sm:$0xff]
        %v787 = vld [vmem:[%s2 + $0x8] sm:$0xff]
        %v788 = vld [vmem:[%s2 + $0x10] sm:$0xff]
        %v789 = vld [vmem:[%s2 + $0x18] sm:$0xff]
        %v790 = vld [vmem:[%s2 + $0x20] sm:$0xff]
        %v791 = vld [vmem:[%s2 + $0x28] sm:$0xff]
        %v792 = vld [vmem:[%s2 + $0x30] sm:$0xff]
        %v793 = vld [vmem:[%s2 + $0x38] sm:$0xff]
        %v794 = vld [vmem:[%s2 + $0x40] sm:$0xff]
        %v795 = vld [vmem:[%s2 + $0x48] sm:$0xff]
        %v796 = vld [vmem:[%s2 + $0x50] sm:$0xff]
        %v797 = vld [vmem:[%s2 + $0x58] sm:$0xff]
        %v798 = vld [vmem:[%s2 + $0x60] sm:$0xff]
        %v799 = vld [vmem:[%s2 + $0x68] sm:$0xff]
        %v800 = vld [vmem:[%s2 + $0x70] sm:$0xff]
        %v801 = vld [vmem:[%s2 + $0x78] sm:$0xff]
        %v802 = vld [vmem:[%s2 + $0x80] sm:$0xff]
        %v803 = vld [vmem:[%s2 + $0x88] sm:$0xff]
        %v804 = vld [vmem:[%s2 + $0x90] sm:$0xff]
        %v805 = vld [vmem:[%s2 + $0x98] sm:$0xff]
        %v806 = vld [vmem:[%s2 + $0xa0] sm:$0xff]
        %v807 = vld [vmem:[%s2 + $0xa8] sm:$0xff]
        %v808 = vld [vmem:[%s2 + $0xb0] sm:$0xff]
        %v809 = vld [vmem:[%s2 + $0xb8] sm:$0xff]
        %v810 = vld [vmem:[%s2 + $0xc0] sm:$0xff]
        %v811 = vld [vmem:[%s2 + $0xc8] sm:$0xff]
        %v812 = vld [vmem:[%s2 + $0xd0] sm:$0xff]
        %v813 = vld [vmem:[%s2 + $0xd8] sm:$0xff]
        %v814 = vld [vmem:[%s2 + $0xe0] sm:$0xff]
        %v815 = vld [vmem:[%s2 + $0xe8] sm:$0xff]
        %v816 = vld [vmem:[%s2 + $0xf0] sm:$0xff]
        %v817 = vld [vmem:[%s2 + $0xf8] sm:$0xff]
        %v818 = vld [vmem:[%s2 + $0x100] sm:$0xff]
        %v819 = vld [vmem:[%s2 + $0x108] sm:$0xff]
        %v820 = vld [vmem:[%s2 + $0x110] sm:$0xff]
        %v821 = vld [vmem:[%s2 + $0x118] sm:$0xff]
        %v822 = vld [vmem:[%s2 + $0x120] sm:$0xff]
        %v823 = vld [vmem:[%s2 + $0x128] sm:$0xff]
        %v824 = vld [vmem:[%s2 + $0x130] sm:$0xff]
        %v825 = vld [vmem:[%s2 + $0x138] sm:$0xff]
        %v826 = vld [vmem:[%s2 + $0x140] sm:$0xff]
        %v827 = vld [vmem:[%s2 + $0x148] sm:$0xff]
        %v828 = vld [vmem:[%s2 + $0x150] sm:$0xff]
        %v829 = vld [vmem:[%s2 + $0x158] sm:$0xff]
        %v830 = vld [vmem:[%s2 + $0x160] sm:$0xff]
        %v831 = vld [vmem:[%s2 + $0x168] sm:$0xff]
        %v832 = vld [vmem:[%s2 + $0x170] sm:$0xff]
        %v833 = vld [vmem:[%s2 + $0x178] sm:$0xff]
        %v834 = vld [vmem:[%s2 + $0x180] sm:$0xff]
        %v835 = vld [vmem:[%s2 + $0x188] sm:$0xff]
        %v836 = vld [vmem:[%s2 + $0x190] sm:$0xff]
        %v837 = vld [vmem:[%s2 + $0x198] sm:$0xff]
        %v838 = vld [vmem:[%s2 + $0x1a0] sm:$0xff]
        %v839 = vld [vmem:[%s2 + $0x1a8] sm:$0xff]
        %v840 = vld [vmem:[%s2 + $0x1b0] sm:$0xff]
        %v841 = vld [vmem:[%s2 + $0x1b8] sm:$0xff]
        %v842 = vld [vmem:[%s2 + $0x1c0] sm:$0xff]
        %v843 = vld [vmem:[%s2 + $0x1c8] sm:$0xff]
        %v844 = vld [vmem:[%s2 + $0x1d0] sm:$0xff]
        %v845 = vld [vmem:[%s2 + $0x1d8] sm:$0xff]
        %846 = vmatpush.msra.mxu0 %v831
        %847 = vmatpush.msra.mxu0 %v828
        %848 = vmatpush.msra.mxu0 %v825
        %849 = vmatpush.msra.mxu0 %v822
        %850 = vmatpush.msra.mxu0 %v819
        %851 = vmatpush.msra.mxu0 %v816
        %852 = vmatpush.msra.mxu0 %v813
        %853 = vmatpush.msra.mxu0 %v810
        %854 = vmatpush.msra.mxu0 %v807
        %855 = vmatpush.msra.mxu0 %v804
        %856 = vmatpush.msra.mxu0 %v801
        %857 = vmatpush.msra.mxu0 %v798
        %858 = vmatpush.msra.mxu0 %v795
        %859 = vmatpush.msra.mxu0 %v792
        %860 = vmatpush.msra.mxu0 %v789
        %861 = vmatpush.msra.mxu0 %v786
        %862 = vmatmul.f32.gmra.mxu0 %v439
        %v863 = vpop.f32.mrf.mxu0
        %v864 = vadd.f32 0.0, %v863
        %865 = vmatmul.f32.gmra.mxu0 %v441
        %v866 = vpop.f32.mrf.mxu0
        %v867 = vadd.f32 0.0, %v866
        %868 = vmatmul.f32.gmra.mxu0 %v443
        %v869 = vpop.f32.mrf.mxu0
        %v870 = vadd.f32 0.0, %v869
        %871 = vmatmul.f32.gmra.mxu0 %v445
        %v872 = vpop.f32.mrf.mxu0
        %v873 = vadd.f32 0.0, %v872
        %874 = vmatmul.f32.gmra.mxu0 %v447
        %v875 = vpop.f32.mrf.mxu0
        %v876 = vadd.f32 0.0, %v875
        %877 = vmatmul.f32.gmra.mxu0 %v449
        %v878 = vpop.f32.mrf.mxu0
        %v879 = vadd.f32 0.0, %v878
        %880 = vmatmul.f32.gmra.mxu0 %v451
        %v881 = vpop.f32.mrf.mxu0
        %v882 = vadd.f32 0.0, %v881
        %883 = vmatmul.f32.gmra.mxu0 %v453
        %v884 = vpop.f32.mrf.mxu0
        %v885 = vadd.f32 0.0, %v884
        %886 = vdwg.mxu0
        %887 = vmatpush.msra.mxu0 0.0
        %888 = vmatpush.msra.mxu0 0.0
        %889 = vmatpush.msra.mxu0 0.0
        %890 = vmatpush.msra.mxu0 0.0
        %891 = vmatpush.msra.mxu0 0.0
        %892 = vmatpush.msra.mxu0 0.0
        %893 = vmatpush.msra.mxu0 0.0
        %894 = vmatpush.msra.mxu0 0.0
        %895 = vmatpush.msra.mxu0 0.0
        %896 = vmatpush.msra.mxu0 0.0
        %897 = vmatpush.msra.mxu0 0.0
        %898 = vmatpush.msra.mxu0 0.0
        %899 = vmatpush.msra.mxu0 %v843
        %900 = vmatpush.msra.mxu0 %v840
        %901 = vmatpush.msra.mxu0 %v837
        %902 = vmatpush.msra.mxu0 %v834
        %903 = vmatmul.f32.gmra.mxu0 %v517
        %v904 = vpop.f32.mrf.mxu0
        %v905 = vadd.f32 %v864, %v904
        %906 = vmatmul.f32.gmra.mxu0 %v520
        %v907 = vpop.f32.mrf.mxu0
        %v908 = vadd.f32 %v867, %v907
        %909 = vmatmul.f32.gmra.mxu0 %v523
        %v910 = vpop.f32.mrf.mxu0
        %v911 = vadd.f32 %v870, %v910
        %912 = vmatmul.f32.gmra.mxu0 %v526
        %v913 = vpop.f32.mrf.mxu0
        %v914 = vadd.f32 %v873, %v913
        %915 = vmatmul.f32.gmra.mxu0 %v529
        %v916 = vpop.f32.mrf.mxu0
        %v917 = vadd.f32 %v876, %v916
        %918 = vmatmul.f32.gmra.mxu0 %v532
        %v919 = vpop.f32.mrf.mxu0
        %v920 = vadd.f32 %v879, %v919
        %921 = vmatmul.f32.gmra.mxu0 %v535
        %v922 = vpop.f32.mrf.mxu0
        %v923 = vadd.f32 %v882, %v922
        %924 = vmatmul.f32.gmra.mxu0 %v538
        %v925 = vpop.f32.mrf.mxu0
        %v926 = vadd.f32 %v885, %v925
        %927 = vdwg.mxu0
        %928 = vmatpush.msra.mxu0 %v832
        %929 = vmatpush.msra.mxu0 %v829
        %930 = vmatpush.msra.mxu0 %v826
        %931 = vmatpush.msra.mxu0 %v823
        %932 = vmatpush.msra.mxu0 %v820
        %933 = vmatpush.msra.mxu0 %v817
        %934 = vmatpush.msra.mxu0 %v814
        %935 = vmatpush.msra.mxu0 %v811
        %936 = vmatpush.msra.mxu0 %v808
        %937 = vmatpush.msra.mxu0 %v805
        %938 = vmatpush.msra.mxu0 %v802
        %939 = vmatpush.msra.mxu0 %v799
        %940 = vmatpush.msra.mxu0 %v796
        %941 = vmatpush.msra.mxu0 %v793
        %942 = vmatpush.msra.mxu0 %v790
        %943 = vmatpush.msra.mxu0 %v787
        %944 = vmatmul.f32.gmra.mxu0 %v439
        %v945 = vpop.f32.mrf.mxu0
        %v946 = vadd.f32 0.0, %v945
        %947 = vmatmul.f32.gmra.mxu0 %v441
        %v948 = vpop.f32.mrf.mxu0
        %v949 = vadd.f32 0.0, %v948
        %950 = vmatmul.f32.gmra.mxu0 %v443
        %v951 = vpop.f32.mrf.mxu0
        %v952 = vadd.f32 0.0, %v951
        %953 = vmatmul.f32.gmra.mxu0 %v445
        %v954 = vpop.f32.mrf.mxu0
        %v955 = vadd.f32 0.0, %v954
        %956 = vmatmul.f32.gmra.mxu0 %v447
        %v957 = vpop.f32.mrf.mxu0
        %v958 = vadd.f32 0.0, %v957
        %959 = vmatmul.f32.gmra.mxu0 %v449
        %v960 = vpop.f32.mrf.mxu0
        %v961 = vadd.f32 0.0, %v960
        %962 = vmatmul.f32.gmra.mxu0 %v451
        %v963 = vpop.f32.mrf.mxu0
        %v964 = vadd.f32 0.0, %v963
        %965 = vmatmul.f32.gmra.mxu0 %v453
        %v966 = vpop.f32.mrf.mxu0
        %v967 = vadd.f32 0.0, %v966
        %968 = vdwg.mxu0
        %969 = vmatpush.msra.mxu0 0.0
        %970 = vmatpush.msra.mxu0 0.0
        %971 = vmatpush.msra.mxu0 0.0
        %972 = vmatpush.msra.mxu0 0.0
        %973 = vmatpush.msra.mxu0 0.0
        %974 = vmatpush.msra.mxu0 0.0
        %975 = vmatpush.msra.mxu0 0.0
        %976 = vmatpush.msra.mxu0 0.0
        %977 = vmatpush.msra.mxu0 0.0
        %978 = vmatpush.msra.mxu0 0.0
        %979 = vmatpush.msra.mxu0 0.0
        %980 = vmatpush.msra.mxu0 0.0
        %981 = vmatpush.msra.mxu0 %v844
        %982 = vmatpush.msra.mxu0 %v841
        %983 = vmatpush.msra.mxu0 %v838
        %984 = vmatpush.msra.mxu0 %v835
        %985 = vmatmul.f32.gmra.mxu0 %v517
        %v986 = vpop.f32.mrf.mxu0
        %v987 = vadd.f32 %v946, %v986
        %988 = vmatmul.f32.gmra.mxu0 %v520
        %v989 = vpop.f32.mrf.mxu0
        %v990 = vadd.f32 %v949, %v989
        %991 = vmatmul.f32.gmra.mxu0 %v523
        %v992 = vpop.f32.mrf.mxu0
        %v993 = vadd.f32 %v952, %v992
        %994 = vmatmul.f32.gmra.mxu0 %v526
        %v995 = vpop.f32.mrf.mxu0
        %v996 = vadd.f32 %v955, %v995
        %997 = vmatmul.f32.gmra.mxu0 %v529
        %v998 = vpop.f32.mrf.mxu0
        %v999 = vadd.f32 %v958, %v998
        %1000 = vmatmul.f32.gmra.mxu0 %v532
        %v1001 = vpop.f32.mrf.mxu0
        %v1002 = vadd.f32 %v961, %v1001
        %1003 = vmatmul.f32.gmra.mxu0 %v535
        %v1004 = vpop.f32.mrf.mxu0
        %v1005 = vadd.f32 %v964, %v1004
        %1006 = vmatmul.f32.gmra.mxu0 %v538
        %v1007 = vpop.f32.mrf.mxu0
        %v1008 = vadd.f32 %v967, %v1007
        %1009 = vdwg.mxu0
        %1010 = vmatpush.msra.mxu0 %v833
        %1011 = vmatpush.msra.mxu0 %v830
        %1012 = vmatpush.msra.mxu0 %v827
        %1013 = vmatpush.msra.mxu0 %v824
        %1014 = vmatpush.msra.mxu0 %v821
        %1015 = vmatpush.msra.mxu0 %v818
        %1016 = vmatpush.msra.mxu0 %v815
        %1017 = vmatpush.msra.mxu0 %v812
        %1018 = vmatpush.msra.mxu0 %v809
        %1019 = vmatpush.msra.mxu0 %v806
        %1020 = vmatpush.msra.mxu0 %v803
        %1021 = vmatpush.msra.mxu0 %v800
        %1022 = vmatpush.msra.mxu0 %v797
        %1023 = vmatpush.msra.mxu0 %v794
        %1024 = vmatpush.msra.mxu0 %v791
        %1025 = vmatpush.msra.mxu0 %v788
        %1026 = vmatmul.f32.gmra.mxu0 %v439
        %v1027 = vpop.f32.mrf.mxu0
        %v1028 = vadd.f32 0.0, %v1027
        %1029 = vmatmul.f32.gmra.mxu0 %v441
        %v1030 = vpop.f32.mrf.mxu0
        %v1031 = vadd.f32 0.0, %v1030
        %1032 = vmatmul.f32.gmra.mxu0 %v443
        %v1033 = vpop.f32.mrf.mxu0
        %v1034 = vadd.f32 0.0, %v1033
        %1035 = vmatmul.f32.gmra.mxu0 %v445
        %v1036 = vpop.f32.mrf.mxu0
        %v1037 = vadd.f32 0.0, %v1036
        %1038 = vmatmul.f32.gmra.mxu0 %v447
        %v1039 = vpop.f32.mrf.mxu0
        %v1040 = vadd.f32 0.0, %v1039
        %1041 = vmatmul.f32.gmra.mxu0 %v449
        %v1042 = vpop.f32.mrf.mxu0
        %v1043 = vadd.f32 0.0, %v1042
        %1044 = vmatmul.f32.gmra.mxu0 %v451
        %v1045 = vpop.f32.mrf.mxu0
        %v1046 = vadd.f32 0.0, %v1045
        %1047 = vmatmul.f32.gmra.mxu0 %v453
        %v1048 = vpop.f32.mrf.mxu0
        %v1049 = vadd.f32 0.0, %v1048
        %1050 = vdwg.mxu0
        %1051 = vmatpush.msra.mxu0 0.0
        %1052 = vmatpush.msra.mxu0 0.0
        %1053 = vmatpush.msra.mxu0 0.0
        %1054 = vmatpush.msra.mxu0 0.0
        %1055 = vmatpush.msra.mxu0 0.0
        %1056 = vmatpush.msra.mxu0 0.0
        %1057 = vmatpush.msra.mxu0 0.0
        %1058 = vmatpush.msra.mxu0 0.0
        %1059 = vmatpush.msra.mxu0 0.0
        %1060 = vmatpush.msra.mxu0 0.0
        %1061 = vmatpush.msra.mxu0 0.0
        %1062 = vmatpush.msra.mxu0 0.0
        %1063 = vmatpush.msra.mxu0 %v845
        %1064 = vmatpush.msra.mxu0 %v842
        %1065 = vmatpush.msra.mxu0 %v839
        %1066 = vmatpush.msra.mxu0 %v836
        %1067 = vmatmul.f32.gmra.mxu0 %v517
        %v1068 = vpop.f32.mrf.mxu0
        %v1069 = vadd.f32 %v1028, %v1068
        %1070 = vmatmul.f32.gmra.mxu0 %v520
        %v1071 = vpop.f32.mrf.mxu0
        %v1072 = vadd.f32 %v1031, %v1071
        %1073 = vmatmul.f32.gmra.mxu0 %v523
        %v1074 = vpop.f32.mrf.mxu0
        %v1075 = vadd.f32 %v1034, %v1074
        %1076 = vmatmul.f32.gmra.mxu0 %v526
        %v1077 = vpop.f32.mrf.mxu0
        %v1078 = vadd.f32 %v1037, %v1077
        %1079 = vmatmul.f32.gmra.mxu0 %v529
        %v1080 = vpop.f32.mrf.mxu0
        %v1081 = vadd.f32 %v1040, %v1080
        %1082 = vmatmul.f32.gmra.mxu0 %v532
        %v1083 = vpop.f32.mrf.mxu0
        %v1084 = vadd.f32 %v1043, %v1083
        %1085 = vmatmul.f32.gmra.mxu0 %v535
        %v1086 = vpop.f32.mrf.mxu0
        %v1087 = vadd.f32 %v1046, %v1086
        %1088 = vmatmul.f32.gmra.mxu0 %v538
        %v1089 = vpop.f32.mrf.mxu0
        %v1090 = vadd.f32 %v1049, %v1089
        %1091 = vdwg.mxu0
        %1092 = vst [vmem:[#allocation2] sm:$0x7] 0.0
        %1093 = vst [vmem:[#allocation2 + $0x8] sm:$0x7] 0.0
        %vm1094 = vcmask 518144
        %1095 = vst.msk [vmem:[#allocation2 + $0x10] sm:$0x7] %vm1094, 0.0
        %vm1120 = vcmask 1042432
        %v1121 = vrot.slane %v599, 5
        %v1122 = vrot.slane %v681, 5
        %v1123 = vrot.slane %v763, 5
        %v1124 = vrot.slane %v602, 5
        %v1125 = vsel %vm1120, %v1121, %v1124
        %v1126 = vrot.slane %v684, 5
        %v1127 = vsel %vm1120, %v1122, %v1126
        %v1128 = vrot.slane %v766, 5
        %v1129 = vsel %vm1120, %v1123, %v1128
        %v1130 = vrot.slane %v605, 5
        %v1131 = vsel %vm1120, %v1124, %v1130
        %v1132 = vrot.slane %v687, 5
        %v1133 = vsel %vm1120, %v1126, %v1132
        %v1134 = vrot.slane %v769, 5
        %v1135 = vsel %vm1120, %v1128, %v1134
        %v1136 = vrot.slane %v608, 5
        %v1137 = vsel %vm1120, %v1130, %v1136
        %v1138 = vrot.slane %v690, 5
        %v1139 = vsel %vm1120, %v1132, %v1138
        %v1140 = vrot.slane %v772, 5
        %v1141 = vsel %vm1120, %v1134, %v1140
        %v1142 = vrot.slane %v611, 5
        %v1143 = vsel %vm1120, %v1136, %v1142
        %v1144 = vrot.slane %v693, 5
        %v1145 = vsel %vm1120, %v1138, %v1144
        %v1146 = vrot.slane %v775, 5
        %v1147 = vsel %vm1120, %v1140, %v1146
        %v1148 = vrot.slane %v614, 5
        %v1149 = vsel %vm1120, %v1142, %v1148
        %v1150 = vrot.slane %v696, 5
        %v1151 = vsel %vm1120, %v1144, %v1150
        %v1152 = vrot.slane %v778, 5
        %v1153 = vsel %vm1120, %v1146, %v1152
        %v1154 = vrot.slane %v617, 5
        %v1155 = vsel %vm1120, %v1148, %v1154
        %v1156 = vrot.slane %v699, 5
        %v1157 = vsel %vm1120, %v1150, %v1156
        %v1158 = vrot.slane %v781, 5
        %v1159 = vsel %vm1120, %v1152, %v1158
        %v1160 = vrot.slane %v620, 5
        %v1161 = vsel %vm1120, %v1154, %v1160
        %v1162 = vrot.slane %v702, 5
        %v1163 = vsel %vm1120, %v1156, %v1162
        %v1164 = vrot.slane %v784, 5
        %v1165 = vsel %vm1120, %v1158, %v1164
        %1193 = vst [vmem:[#allocation2] sm:$0xf8] %v1121
        %1194 = vst [vmem:[#allocation2 + $0x8] sm:$0xf8] %v1122
        %vm1195 = vcmask 523267
        %1196 = vst.msk [vmem:[#allocation2 + $0x10] sm:$0xf8] %vm1195, %v1123
        %1197 = vst [vmem:[#allocation2 + $0x18] sm:$0xff] %v1125
        %1198 = vst [vmem:[#allocation2 + $0x20] sm:$0xff] %v1127
        %vm1199 = vcmask 523264
        %1200 = vst.msk [vmem:[#allocation2 + $0x28] sm:$0xff] %vm1199, %v1129
        %1201 = vst [vmem:[#allocation2 + $0x30] sm:$0xff] %v1131
        %1202 = vst [vmem:[#allocation2 + $0x38] sm:$0xff] %v1133
        %1203 = vst.msk [vmem:[#allocation2 + $0x40] sm:$0xff] %vm1199, %v1135
        %1204 = vst [vmem:[#allocation2 + $0x48] sm:$0xff] %v1137
        %1205 = vst [vmem:[#allocation2 + $0x50] sm:$0xff] %v1139
        %1206 = vst.msk [vmem:[#allocation2 + $0x58] sm:$0xff] %vm1199, %v1141
        %1207 = vst [vmem:[#allocation2 + $0x60] sm:$0xff] %v1143
        %1208 = vst [vmem:[#allocation2 + $0x68] sm:$0xff] %v1145
        %1209 = vst.msk [vmem:[#allocation2 + $0x70] sm:$0xff] %vm1199, %v1147
        %1210 = vst [vmem:[#allocation2 + $0x78] sm:$0xff] %v1149
        %1211 = vst [vmem:[#allocation2 + $0x80] sm:$0xff] %v1151
        %1212 = vst.msk [vmem:[#allocation2 + $0x88] sm:$0xff] %vm1199, %v1153
        %1213 = vst [vmem:[#allocation2 + $0x90] sm:$0xff] %v1155
        %1214 = vst [vmem:[#allocation2 + $0x98] sm:$0xff] %v1157
        %1215 = vst.msk [vmem:[#allocation2 + $0xa0] sm:$0xff] %vm1199, %v1159
        %1216 = vst [vmem:[#allocation2 + $0xa8] sm:$0xff] %v1161
        %1217 = vst [vmem:[#allocation2 + $0xb0] sm:$0xff] %v1163
        %1218 = vst.msk [vmem:[#allocation2 + $0xb8] sm:$0xff] %vm1199, %v1165
        %1219 = vst [vmem:[#allocation2 + $0xc0] sm:$0x7] %v1160
        %1220 = vst [vmem:[#allocation2 + $0xc8] sm:$0x7] %v1162
        %1221 = vst.msk [vmem:[#allocation2 + $0xd0] sm:$0x7] %vm1094, %v1164
        %v1222 = vld [vmem:[%s3] sm:$0xff]
        %v1223 = vld [vmem:[%s3 + $0x8] sm:$0xf]
        %v1224 = vld [vmem:[#allocation2] sm:$0xff]
        %v1225 = vld [vmem:[#allocation2 + $0x8] sm:$0xff]
        %v1226 = vld [vmem:[#allocation2 + $0x10] sm:$0xff]
        %v1227 = vld [vmem:[#allocation2 + $0x18] sm:$0xff]
        %v1228 = vld [vmem:[#allocation2 + $0x20] sm:$0xff]
        %v1229 = vld [vmem:[#allocation2 + $0x28] sm:$0xff]
        %v1230 = vld [vmem:[#allocation2 + $0x30] sm:$0xff]
        %v1231 = vld [vmem:[#allocation2 + $0x38] sm:$0xff]
        %v1232 = vld [vmem:[#allocation2 + $0x40] sm:$0xff]
        %v1233 = vld [vmem:[#allocation2 + $0x48] sm:$0xff]
        %v1234 = vld [vmem:[#allocation2 + $0x50] sm:$0xff]
        %v1235 = vld [vmem:[#allocation2 + $0x58] sm:$0xff]
        %v1236 = vld [vmem:[#allocation2 + $0x60] sm:$0xff]
        %v1237 = vld [vmem:[#allocation2 + $0x68] sm:$0xff]
        %v1238 = vld [vmem:[#allocation2 + $0x70] sm:$0xff]
        %v1239 = vld [vmem:[#allocation2 + $0x78] sm:$0xff]
        %v1240 = vld [vmem:[#allocation2 + $0x80] sm:$0xff]
        %v1241 = vld [vmem:[#allocation2 + $0x88] sm:$0xff]
        %v1242 = vld [vmem:[#allocation2 + $0x90] sm:$0xff]
        %v1243 = vld [vmem:[#allocation2 + $0x98] sm:$0xff]
        %v1244 = vld [vmem:[#allocation2 + $0xa0] sm:$0xff]
        %v1245 = vld [vmem:[#allocation2 + $0xa8] sm:$0xff]
        %v1246 = vld [vmem:[#allocation2 + $0xb0] sm:$0xff]
        %v1247 = vld [vmem:[#allocation2 + $0xb8] sm:$0xff]
        %v1250 = vperm.slane %v1222, 0
        %v1251 = vperm.slane %v1222, 4
        %v1252 = vperm.slane %v1223, 0
        %v1256 = vperm.slane %v1250, 0
        %v1257 = vperm.slane %v1251, 0
        %v1258 = vperm.slane %v1252, 0
        %v1259 = vmul.f32 %v1224, %v1256
        %v1260 = vmul.f32 %v1225, %v1257
        %v1261 = vmul.f32 %v1226, %v1258
        %v1262 = vmul.f32 %v1227, %v1256
        %v1263 = vmul.f32 %v1228, %v1257
        %v1264 = vmul.f32 %v1229, %v1258
        %v1265 = vmul.f32 %v1230, %v1256
        %v1266 = vmul.f32 %v1231, %v1257
        %v1267 = vmul.f32 %v1232, %v1258
        %v1268 = vmul.f32 %v1233, %v1256
        %v1269 = vmul.f32 %v1234, %v1257
        %v1270 = vmul.f32 %v1235, %v1258
        %v1271 = vmul.f32 %v1236, %v1256
        %v1272 = vmul.f32 %v1237, %v1257
        %v1273 = vmul.f32 %v1238, %v1258
        %v1274 = vmul.f32 %v1239, %v1256
        %v1275 = vmul.f32 %v1240, %v1257
        %v1276 = vmul.f32 %v1241, %v1258
        %v1277 = vmul.f32 %v1242, %v1256
        %v1278 = vmul.f32 %v1243, %v1257
        %v1279 = vmul.f32 %v1244, %v1258
        %v1280 = vmul.f32 %v1245, %v1256
        %v1281 = vmul.f32 %v1246, %v1257
        %v1282 = vmul.f32 %v1247, %v1258
        %v1283 = vld [vmem:[#allocation2] sm:$0xfe]
        %v1284 = vld [vmem:[#allocation2 + $0x8] sm:$0xfe]
        %v1285 = vld [vmem:[#allocation2 + $0x10] sm:$0xfe]
        %v1286 = vld [vmem:[#allocation2 + $0xc0] sm:$0x1]
        %v1287 = vld [vmem:[#allocation2 + $0xc8] sm:$0x1]
        %v1288 = vld [vmem:[#allocation2 + $0xd0] sm:$0x1]
        %v1289 = vperm.slane %v1222, 1
        %v1290 = vperm.slane %v1222, 5
        %v1291 = vperm.slane %v1223, 1
        %v1295 = vperm.slane %v1289, 1
        %v1296 = vperm.slane %v1290, 1
        %v1297 = vperm.slane %v1291, 1
        %v1298 = vmul.f32 %v1283, %v1295
        %v1299 = vmul.f32 %v1284, %v1296
        %v1300 = vmul.f32 %v1285, %v1297
        %v1301 = vmul.f32 %v1227, %v1295
        %v1302 = vmul.f32 %v1228, %v1296
        %v1303 = vmul.f32 %v1229, %v1297
        %v1304 = vmul.f32 %v1230, %v1295
        %v1305 = vmul.f32 %v1231, %v1296
        %v1306 = vmul.f32 %v1232, %v1297
        %v1307 = vmul.f32 %v1233, %v1295
        %v1308 = vmul.f32 %v1234, %v1296
        %v1309 = vmul.f32 %v1235, %v1297
        %v1310 = vmul.f32 %v1236, %v1295
        %v1311 = vmul.f32 %v1237, %v1296
        %v1312 = vmul.f32 %v1238, %v1297
        %v1313 = vmul.f32 %v1239, %v1295
        %v1314 = vmul.f32 %v1240, %v1296
        %v1315 = vmul.f32 %v1241, %v1297
        %v1316 = vmul.f32 %v1242, %v1295
        %v1317 = vmul.f32 %v1243, %v1296
        %v1318 = vmul.f32 %v1244, %v1297
        %v1319 = vmul.f32 %v1245, %v1295
        %v1320 = vmul.f32 %v1246, %v1296
        %v1321 = vmul.f32 %v1247, %v1297
        %v1322 = vmul.f32 %v1286, %v1295
        %v1323 = vmul.f32 %v1287, %v1296
        %v1324 = vmul.f32 %v1288, %v1297
        %vm1352 = vcmask 1046528
        %v1353 = vrot.slane %v1298, 1
        %v1354 = vrot.slane %v1301, 1
        %v1355 = vsel %vm1352, %v1353, %v1354
        %v1356 = vrot.slane %v1299, 1
        %v1357 = vrot.slane %v1302, 1
        %v1358 = vsel %vm1352, %v1356, %v1357
        %v1359 = vrot.slane %v1300, 1
        %v1360 = vrot.slane %v1303, 1
        %v1361 = vsel %vm1352, %v1359, %v1360
        %v1362 = vrot.slane %v1304, 1
        %v1363 = vsel %vm1352, %v1354, %v1362
        %v1364 = vrot.slane %v1305, 1
        %v1365 = vsel %vm1352, %v1357, %v1364
        %v1366 = vrot.slane %v1306, 1
        %v1367 = vsel %vm1352, %v1360, %v1366
        %v1368 = vrot.slane %v1307, 1
        %v1369 = vsel %vm1352, %v1362, %v1368
        %v1370 = vrot.slane %v1308, 1
        %v1371 = vsel %vm1352, %v1364, %v1370
        %v1372 = vrot.slane %v1309, 1
        %v1373 = vsel %vm1352, %v1366, %v1372
        %v1374 = vrot.slane %v1310, 1
        %v1375 = vsel %vm1352, %v1368, %v1374
        %v1376 = vrot.slane %v1311, 1
        %v1377 = vsel %vm1352, %v1370, %v1376
        %v1378 = vrot.slane %v1312, 1
        %v1379 = vsel %vm1352, %v1372, %v1378
        %v1380 = vrot.slane %v1313, 1
        %v1381 = vsel %vm1352, %v1374, %v1380
        %v1382 = vrot.slane %v1314, 1
        %v1383 = vsel %vm1352, %v1376, %v1382
        %v1384 = vrot.slane %v1315, 1
        %v1385 = vsel %vm1352, %v1378, %v1384
        %v1386 = vrot.slane %v1316, 1
        %v1387 = vsel %vm1352, %v1380, %v1386
        %v1388 = vrot.slane %v1317, 1
        %v1389 = vsel %vm1352, %v1382, %v1388
        %v1390 = vrot.slane %v1318, 1
        %v1391 = vsel %vm1352, %v1384, %v1390
        %v1392 = vrot.slane %v1319, 1
        %v1393 = vsel %vm1352, %v1386, %v1392
        %v1394 = vrot.slane %v1320, 1
        %v1395 = vsel %vm1352, %v1388, %v1394
        %v1396 = vrot.slane %v1321, 1
        %v1397 = vsel %vm1352, %v1390, %v1396
        %v1398 = vrot.slane %v1322, 1
        %v1399 = vsel %vm1352, %v1392, %v1398
        %v1400 = vrot.slane %v1323, 1
        %v1401 = vsel %vm1352, %v1394, %v1400
        %v1402 = vrot.slane %v1324, 1
        %v1403 = vsel %vm1352, %v1396, %v1402
        %v1428 = vadd.f32 %v1259, %v1355
        %v1429 = vadd.f32 %v1260, %v1358
        %v1430 = vadd.f32 %v1261, %v1361
        %v1431 = vadd.f32 %v1262, %v1363
        %v1432 = vadd.f32 %v1263, %v1365
        %v1433 = vadd.f32 %v1264, %v1367
        %v1434 = vadd.f32 %v1265, %v1369
        %v1435 = vadd.f32 %v1266, %v1371
        %v1436 = vadd.f32 %v1267, %v1373
        %v1437 = vadd.f32 %v1268, %v1375
        %v1438 = vadd.f32 %v1269, %v1377
        %v1439 = vadd.f32 %v1270, %v1379
        %v1440 = vadd.f32 %v1271, %v1381
        %v1441 = vadd.f32 %v1272, %v1383
        %v1442 = vadd.f32 %v1273, %v1385
        %v1443 = vadd.f32 %v1274, %v1387
        %v1444 = vadd.f32 %v1275, %v1389
        %v1445 = vadd.f32 %v1276, %v1391
        %v1446 = vadd.f32 %v1277, %v1393
        %v1447 = vadd.f32 %v1278, %v1395
        %v1448 = vadd.f32 %v1279, %v1397
        %v1449 = vadd.f32 %v1280, %v1399
        %v1450 = vadd.f32 %v1281, %v1401
        %v1451 = vadd.f32 %v1282, %v1403
        %v1452 = vld [vmem:[#allocation2] sm:$0xfc]
        %v1453 = vld [vmem:[#allocation2 + $0x8] sm:$0xfc]
        %v1454 = vld [vmem:[#allocation2 + $0x10] sm:$0xfc]
        %v1455 = vld [vmem:[#allocation2 + $0xc0] sm:$0x3]
        %v1456 = vld [vmem:[#allocation2 + $0xc8] sm:$0x3]
        %v1457 = vld [vmem:[#allocation2 + $0xd0] sm:$0x3]
        %v1458 = vperm.slane %v1222, 2
        %v1459 = vperm.slane %v1222, 6
        %v1460 = vperm.slane %v1223, 2
        %v1464 = vperm.slane %v1458, 2
        %v1465 = vperm.slane %v1459, 2
        %v1466 = vperm.slane %v1460, 2
        %v1467 = vmul.f32 %v1452, %v1464
        %v1468 = vmul.f32 %v1453, %v1465
        %v1469 = vmul.f32 %v1454, %v1466
        %v1470 = vmul.f32 %v1227, %v1464
        %v1471 = vmul.f32 %v1228, %v1465
        %v1472 = vmul.f32 %v1229, %v1466
        %v1473 = vmul.f32 %v1230, %v1464
        %v1474 = vmul.f32 %v1231, %v1465
        %v1475 = vmul.f32 %v1232, %v1466
        %v1476 = vmul.f32 %v1233, %v1464
        %v1477 = vmul.f32 %v1234, %v1465
        %v1478 = vmul.f32 %v1235, %v1466
        %v1479 = vmul.f32 %v1236, %v1464
        %v1480 = vmul.f32 %v1237, %v1465
        %v1481 = vmul.f32 %v1238, %v1466
        %v1482 = vmul.f32 %v1239, %v1464
        %v1483 = vmul.f32 %v1240, %v1465
        %v1484 = vmul.f32 %v1241, %v1466
        %v1485 = vmul.f32 %v1242, %v1464
        %v1486 = vmul.f32 %v1243, %v1465
        %v1487 = vmul.f32 %v1244, %v1466
        %v1488 = vmul.f32 %v1245, %v1464
        %v1489 = vmul.f32 %v1246, %v1465
        %v1490 = vmul.f32 %v1247, %v1466
        %v1491 = vmul.f32 %v1455, %v1464
        %v1492 = vmul.f32 %v1456, %v1465
        %v1493 = vmul.f32 %v1457, %v1466
        %vm1521 = vcmask 1045504
        %v1522 = vrot.slane %v1467, 2
        %v1523 = vrot.slane %v1470, 2
        %v1524 = vsel %vm1521, %v1522, %v1523
        %v1525 = vrot.slane %v1468, 2
        %v1526 = vrot.slane %v1471, 2
        %v1527 = vsel %vm1521, %v1525, %v1526
        %v1528 = vrot.slane %v1469, 2
        %v1529 = vrot.slane %v1472, 2
        %v1530 = vsel %vm1521, %v1528, %v1529
        %v1531 = vrot.slane %v1473, 2
        %v1532 = vsel %vm1521, %v1523, %v1531
        %v1533 = vrot.slane %v1474, 2
        %v1534 = vsel %vm1521, %v1526, %v1533
        %v1535 = vrot.slane %v1475, 2
        %v1536 = vsel %vm1521, %v1529, %v1535
        %v1537 = vrot.slane %v1476, 2
        %v1538 = vsel %vm1521, %v1531, %v1537
        %v1539 = vrot.slane %v1477, 2
        %v1540 = vsel %vm1521, %v1533, %v1539
        %v1541 = vrot.slane %v1478, 2
        %v1542 = vsel %vm1521, %v1535, %v1541
        %v1543 = vrot.slane %v1479, 2
        %v1544 = vsel %vm1521, %v1537, %v1543
        %v1545 = vrot.slane %v1480, 2
        %v1546 = vsel %vm1521, %v1539, %v1545
        %v1547 = vrot.slane %v1481, 2
        %v1548 = vsel %vm1521, %v1541, %v1547
        %v1549 = vrot.slane %v1482, 2
        %v1550 = vsel %vm1521, %v1543, %v1549
        %v1551 = vrot.slane %v1483, 2
        %v1552 = vsel %vm1521, %v1545, %v1551
        %v1553 = vrot.slane %v1484, 2
        %v1554 = vsel %vm1521, %v1547, %v1553
        %v1555 = vrot.slane %v1485, 2
        %v1556 = vsel %vm1521, %v1549, %v1555
        %v1557 = vrot.slane %v1486, 2
        %v1558 = vsel %vm1521, %v1551, %v1557
        %v1559 = vrot.slane %v1487, 2
        %v1560 = vsel %vm1521, %v1553, %v1559
        %v1561 = vrot.slane %v1488, 2
        %v1562 = vsel %vm1521, %v1555, %v1561
        %v1563 = vrot.slane %v1489, 2
        %v1564 = vsel %vm1521, %v1557, %v1563
        %v1565 = vrot.slane %v1490, 2
        %v1566 = vsel %vm1521, %v1559, %v1565
        %v1567 = vrot.slane %v1491, 2
        %v1568 = vsel %vm1521, %v1561, %v1567
        %v1569 = vrot.slane %v1492, 2
        %v1570 = vsel %vm1521, %v1563, %v1569
        %v1571 = vrot.slane %v1493, 2
        %v1572 = vsel %vm1521, %v1565, %v1571
        %v1597 = vadd.f32 %v1428, %v1524
        %v1598 = vadd.f32 %v1429, %v1527
        %v1599 = vadd.f32 %v1430, %v1530
        %v1600 = vadd.f32 %v1431, %v1532
        %v1601 = vadd.f32 %v1432, %v1534
        %v1602 = vadd.f32 %v1433, %v1536
        %v1603 = vadd.f32 %v1434, %v1538
        %v1604 = vadd.f32 %v1435, %v1540
        %v1605 = vadd.f32 %v1436, %v1542
        %v1606 = vadd.f32 %v1437, %v1544
        %v1607 = vadd.f32 %v1438, %v1546
        %v1608 = vadd.f32 %v1439, %v1548
        %v1609 = vadd.f32 %v1440, %v1550
        %v1610 = vadd.f32 %v1441, %v1552
        %v1611 = vadd.f32 %v1442, %v1554
        %v1612 = vadd.f32 %v1443, %v1556
        %v1613 = vadd.f32 %v1444, %v1558
        %v1614 = vadd.f32 %v1445, %v1560
        %v1615 = vadd.f32 %v1446, %v1562
        %v1616 = vadd.f32 %v1447, %v1564
        %v1617 = vadd.f32 %v1448, %v1566
        %v1618 = vadd.f32 %v1449, %v1568
        %v1619 = vadd.f32 %v1450, %v1570
        %v1620 = vadd.f32 %v1451, %v1572
        %v1621 = vld [vmem:[#allocation2] sm:$0xf8]
        %v1622 = vld [vmem:[#allocation2 + $0x8] sm:$0xf8]
        %v1623 = vld [vmem:[#allocation2 + $0x10] sm:$0xf8]
        %v1624 = vld [vmem:[#allocation2 + $0xc0] sm:$0x7]
        %v1625 = vld [vmem:[#allocation2 + $0xc8] sm:$0x7]
        %v1626 = vld [vmem:[#allocation2 + $0xd0] sm:$0x7]
        %v1627 = vperm.slane %v1222, 3
        %v1628 = vperm.slane %v1222, 7
        %v1629 = vperm.slane %v1223, 3
        %v1633 = vperm.slane %v1627, 3
        %v1634 = vperm.slane %v1628, 3
        %v1635 = vperm.slane %v1629, 3
        %v1636 = vmul.f32 %v1621, %v1633
        %v1637 = vmul.f32 %v1622, %v1634
        %v1638 = vmul.f32 %v1623, %v1635
        %v1639 = vmul.f32 %v1227, %v1633
        %v1640 = vmul.f32 %v1228, %v1634
        %v1641 = vmul.f32 %v1229, %v1635
        %v1642 = vmul.f32 %v1230, %v1633
        %v1643 = vmul.f32 %v1231, %v1634
        %v1644 = vmul.f32 %v1232, %v1635
        %v1645 = vmul.f32 %v1233, %v1633
        %v1646 = vmul.f32 %v1234, %v1634
        %v1647 = vmul.f32 %v1235, %v1635
        %v1648 = vmul.f32 %v1236, %v1633
        %v1649 = vmul.f32 %v1237, %v1634
        %v1650 = vmul.f32 %v1238, %v1635
        %v1651 = vmul.f32 %v1239, %v1633
        %v1652 = vmul.f32 %v1240, %v1634
        %v1653 = vmul.f32 %v1241, %v1635
        %v1654 = vmul.f32 %v1242, %v1633
        %v1655 = vmul.f32 %v1243, %v1634
        %v1656 = vmul.f32 %v1244, %v1635
        %v1657 = vmul.f32 %v1245, %v1633
        %v1658 = vmul.f32 %v1246, %v1634
        %v1659 = vmul.f32 %v1247, %v1635
        %v1660 = vmul.f32 %v1624, %v1633
        %v1661 = vmul.f32 %v1625, %v1634
        %v1662 = vmul.f32 %v1626, %v1635
        %vm1690 = vcmask 1044480
        %v1691 = vrot.slane %v1636, 3
        %v1692 = vrot.slane %v1639, 3
        %v1693 = vsel %vm1690, %v1691, %v1692
        %v1694 = vrot.slane %v1637, 3
        %v1695 = vrot.slane %v1640, 3
        %v1696 = vsel %vm1690, %v1694, %v1695
        %v1697 = vrot.slane %v1638, 3
        %v1698 = vrot.slane %v1641, 3
        %v1699 = vsel %vm1690, %v1697, %v1698
        %v1700 = vrot.slane %v1642, 3
        %v1701 = vsel %vm1690, %v1692, %v1700
        %v1702 = vrot.slane %v1643, 3
        %v1703 = vsel %vm1690, %v1695, %v1702
        %v1704 = vrot.slane %v1644, 3
        %v1705 = vsel %vm1690, %v1698, %v1704
        %v1706 = vrot.slane %v1645, 3
        %v1707 = vsel %vm1690, %v1700, %v1706
        %v1708 = vrot.slane %v1646, 3
        %v1709 = vsel %vm1690, %v1702, %v1708
        %v1710 = vrot.slane %v1647, 3
        %v1711 = vsel %vm1690, %v1704, %v1710
        %v1712 = vrot.slane %v1648, 3
        %v1713 = vsel %vm1690, %v1706, %v1712
        %v1714 = vrot.slane %v1649, 3
        %v1715 = vsel %vm1690, %v1708, %v1714
        %v1716 = vrot.slane %v1650, 3
        %v1717 = vsel %vm1690, %v1710, %v1716
        %v1718 = vrot.slane %v1651, 3
        %v1719 = vsel %vm1690, %v1712, %v1718
        %v1720 = vrot.slane %v1652, 3
        %v1721 = vsel %vm1690, %v1714, %v1720
        %v1722 = vrot.slane %v1653, 3
        %v1723 = vsel %vm1690, %v1716, %v1722
        %v1724 = vrot.slane %v1654, 3
        %v1725 = vsel %vm1690, %v1718, %v1724
        %v1726 = vrot.slane %v1655, 3
        %v1727 = vsel %vm1690, %v1720, %v1726
        %v1728 = vrot.slane %v1656, 3
        %v1729 = vsel %vm1690, %v1722, %v1728
        %v1730 = vrot.slane %v1657, 3
        %v1731 = vsel %vm1690, %v1724, %v1730
        %v1732 = vrot.slane %v1658, 3
        %v1733 = vsel %vm1690, %v1726, %v1732
        %v1734 = vrot.slane %v1659, 3
        %v1735 = vsel %vm1690, %v1728, %v1734
        %v1736 = vrot.slane %v1660, 3
        %v1737 = vsel %vm1690, %v1730, %v1736
        %v1738 = vrot.slane %v1661, 3
        %v1739 = vsel %vm1690, %v1732, %v1738
        %v1740 = vrot.slane %v1662, 3
        %v1741 = vsel %vm1690, %v1734, %v1740
        %v1766 = vadd.f32 %v1597, %v1693
        %v1767 = vadd.f32 %v1598, %v1696
        %v1768 = vadd.f32 %v1599, %v1699
        %v1769 = vadd.f32 %v1600, %v1701
        %v1770 = vadd.f32 %v1601, %v1703
        %v1771 = vadd.f32 %v1602, %v1705
        %v1772 = vadd.f32 %v1603, %v1707
        %v1773 = vadd.f32 %v1604, %v1709
        %v1774 = vadd.f32 %v1605, %v1711
        %v1775 = vadd.f32 %v1606, %v1713
        %v1776 = vadd.f32 %v1607, %v1715
        %v1777 = vadd.f32 %v1608, %v1717
        %v1778 = vadd.f32 %v1609, %v1719
        %v1779 = vadd.f32 %v1610, %v1721
        %v1780 = vadd.f32 %v1611, %v1723
        %v1781 = vadd.f32 %v1612, %v1725
        %v1782 = vadd.f32 %v1613, %v1727
        %v1783 = vadd.f32 %v1614, %v1729
        %v1784 = vadd.f32 %v1615, %v1731
        %v1785 = vadd.f32 %v1616, %v1733
        %v1786 = vadd.f32 %v1617, %v1735
        %v1787 = vadd.f32 %v1618, %v1737
        %v1788 = vadd.f32 %v1619, %v1739
        %v1789 = vadd.f32 %v1620, %v1741
        %v1790 = vld [vmem:[%s4] sm:$0x7]
        %v1792 = vperm.slane %v1790, 0
        %v1793 = vperm.slane %v1790, 1
        %v1794 = vperm.slane %v1790, 2
        %v1798 = vadd.f32 %v1766, %v1792
        %v1799 = vadd.f32 %v1767, %v1793
        %v1800 = vadd.f32 %v1768, %v1794
        %v1801 = vadd.f32 %v1769, %v1792
        %v1802 = vadd.f32 %v1770, %v1793
        %v1803 = vadd.f32 %v1771, %v1794
        %v1804 = vadd.f32 %v1772, %v1792
        %v1805 = vadd.f32 %v1773, %v1793
        %v1806 = vadd.f32 %v1774, %v1794
        %v1807 = vadd.f32 %v1775, %v1792
        %v1808 = vadd.f32 %v1776, %v1793
        %v1809 = vadd.f32 %v1777, %v1794
        %v1810 = vadd.f32 %v1778, %v1792
        %v1811 = vadd.f32 %v1779, %v1793
        %v1812 = vadd.f32 %v1780, %v1794
        %v1813 = vadd.f32 %v1781, %v1792
        %v1814 = vadd.f32 %v1782, %v1793
        %v1815 = vadd.f32 %v1783, %v1794
        %v1816 = vadd.f32 %v1784, %v1792
        %v1817 = vadd.f32 %v1785, %v1793
        %v1818 = vadd.f32 %v1786, %v1794
        %v1819 = vadd.f32 %v1787, %v1792
        %v1820 = vadd.f32 %v1788, %v1793
        %v1821 = vadd.f32 %v1789, %v1794
        %v1822 = vxor.u32 %v1798, 2147483648
        %v1823 = vxor.u32 %v1799, 2147483648
        %v1824 = vxor.u32 %v1800, 2147483648
        %v1825 = vxor.u32 %v1801, 2147483648
        %v1826 = vxor.u32 %v1802, 2147483648
        %v1827 = vxor.u32 %v1803, 2147483648
        %v1828 = vxor.u32 %v1804, 2147483648
        %v1829 = vxor.u32 %v1805, 2147483648
        %v1830 = vxor.u32 %v1806, 2147483648
        %v1831 = vxor.u32 %v1807, 2147483648
        %v1832 = vxor.u32 %v1808, 2147483648
        %v1833 = vxor.u32 %v1809, 2147483648
        %v1834 = vxor.u32 %v1810, 2147483648
        %v1835 = vxor.u32 %v1811, 2147483648
        %v1836 = vxor.u32 %v1812, 2147483648
        %v1837 = vxor.u32 %v1813, 2147483648
        %v1838 = vxor.u32 %v1814, 2147483648
        %v1839 = vxor.u32 %v1815, 2147483648
        %v1840 = vxor.u32 %v1816, 2147483648
        %v1841 = vxor.u32 %v1817, 2147483648
        %v1842 = vxor.u32 %v1818, 2147483648
        %v1843 = vxor.u32 %v1819, 2147483648
        %v1844 = vxor.u32 %v1820, 2147483648
        %v1845 = vxor.u32 %v1821, 2147483648
        %v1846 = vmul.f32 %v1822, 1.442695
        %v1847 = vpow.pop %v1846
        %v1848 = vmul.f32 %v1823, 1.442695
        %v1849 = vpow.pop %v1848
        %v1850 = vmul.f32 %v1824, 1.442695
        %v1851 = vpow.pop %v1850
        %v1852 = vmul.f32 %v1825, 1.442695
        %v1853 = vpow.pop %v1852
        %v1854 = vmul.f32 %v1826, 1.442695
        %v1855 = vpow.pop %v1854
        %v1856 = vmul.f32 %v1827, 1.442695
        %v1857 = vpow.pop %v1856
        %v1858 = vmul.f32 %v1828, 1.442695
        %v1859 = vpow.pop %v1858
        %v1860 = vmul.f32 %v1829, 1.442695
        %v1861 = vpow.pop %v1860
        %v1862 = vmul.f32 %v1830, 1.442695
        %v1863 = vpow.pop %v1862
        %v1864 = vmul.f32 %v1831, 1.442695
        %v1865 = vpow.pop %v1864
        %v1866 = vmul.f32 %v1832, 1.442695
        %v1867 = vpow.pop %v1866
        %v1868 = vmul.f32 %v1833, 1.442695
        %v1869 = vpow.pop %v1868
        %v1870 = vmul.f32 %v1834, 1.442695
        %v1871 = vpow.pop %v1870
        %v1872 = vmul.f32 %v1835, 1.442695
        %v1873 = vpow.pop %v1872
        %v1874 = vmul.f32 %v1836, 1.442695
        %v1875 = vpow.pop %v1874
        %v1876 = vmul.f32 %v1837, 1.442695
        %v1877 = vpow.pop %v1876
        %v1878 = vmul.f32 %v1838, 1.442695
        %v1879 = vpow.pop %v1878
        %v1880 = vmul.f32 %v1839, 1.442695
        %v1881 = vpow.pop %v1880
        %v1882 = vmul.f32 %v1840, 1.442695
        %v1883 = vpow.pop %v1882
        %v1884 = vmul.f32 %v1841, 1.442695
        %v1885 = vpow.pop %v1884
        %v1886 = vmul.f32 %v1842, 1.442695
        %v1887 = vpow.pop %v1886
        %v1888 = vmul.f32 %v1843, 1.442695
        %v1889 = vpow.pop %v1888
        %v1890 = vmul.f32 %v1844, 1.442695
        %v1891 = vpow.pop %v1890
        %v1892 = vmul.f32 %v1845, 1.442695
        %v1893 = vpow.pop %v1892
        %v1894 = vadd.f32 %v1847, 1.0
        %v1895 = vadd.f32 %v1849, 1.0
        %v1896 = vadd.f32 %v1851, 1.0
        %v1897 = vadd.f32 %v1853, 1.0
        %v1898 = vadd.f32 %v1855, 1.0
        %v1899 = vadd.f32 %v1857, 1.0
        %v1900 = vadd.f32 %v1859, 1.0
        %v1901 = vadd.f32 %v1861, 1.0
        %v1902 = vadd.f32 %v1863, 1.0
        %v1903 = vadd.f32 %v1865, 1.0
        %v1904 = vadd.f32 %v1867, 1.0
        %v1905 = vadd.f32 %v1869, 1.0
        %v1906 = vadd.f32 %v1871, 1.0
        %v1907 = vadd.f32 %v1873, 1.0
        %v1908 = vadd.f32 %v1875, 1.0
        %v1909 = vadd.f32 %v1877, 1.0
        %v1910 = vadd.f32 %v1879, 1.0
        %v1911 = vadd.f32 %v1881, 1.0
        %v1912 = vadd.f32 %v1883, 1.0
        %v1913 = vadd.f32 %v1885, 1.0
        %v1914 = vadd.f32 %v1887, 1.0
        %v1915 = vadd.f32 %v1889, 1.0
        %v1916 = vadd.f32 %v1891, 1.0
        %v1917 = vadd.f32 %v1893, 1.0
        %v1918 = vrcp.pop %v1894
        %v1919 = vmul.f32 %v1894, %v1918
        %v1920 = vsub.f32 1.0, %v1919
        %v1921 = vmul.f32 %v1918, %v1920
        %v1922 = vadd.f32 %v1918, %v1921
        %vm1923 = vweird.f32 %v1894
        %vm1924 = vweird.f32 %v1918
        %vm1925 = vmor %vm1923, %vm1924
        %v1926 = vsel %vm1925, %v1918, %v1922
        %v1927 = vand.u32 2147483647, %v1894
        %vm1928 = vcmp.eq.f32.partialorder %v1927, 8.507059e+37
        %v1929 = vand.u32 %v1894, 2147483648
        %v1930 = vor.u32 1.1754944e-38, %v1929
        %v1931 = vsel %vm1928, %v1930, %v1926
        %v1932 = vmul.f32 1.0, %v1931
        %v1933 = vrcp.pop %v1895
        %v1934 = vmul.f32 %v1895, %v1933
        %v1935 = vsub.f32 1.0, %v1934
        %v1936 = vmul.f32 %v1933, %v1935
        %v1937 = vadd.f32 %v1933, %v1936
        %vm1938 = vweird.f32 %v1895
        %vm1939 = vweird.f32 %v1933
        %vm1940 = vmor %vm1938, %vm1939
        %v1941 = vsel %vm1940, %v1933, %v1937
        %v1942 = vand.u32 2147483647, %v1895
        %vm1943 = vcmp.eq.f32.partialorder %v1942, 8.507059e+37
        %v1944 = vand.u32 %v1895, 2147483648
        %v1945 = vor.u32 1.1754944e-38, %v1944
        %v1946 = vsel %vm1943, %v1945, %v1941
        %v1947 = vmul.f32 1.0, %v1946
        %v1948 = vrcp.pop %v1896
        %v1949 = vmul.f32 %v1896, %v1948
        %v1950 = vsub.f32 1.0, %v1949
        %v1951 = vmul.f32 %v1948, %v1950
        %v1952 = vadd.f32 %v1948, %v1951
        %vm1953 = vweird.f32 %v1896
        %vm1954 = vweird.f32 %v1948
        %vm1955 = vmor %vm1953, %vm1954
        %v1956 = vsel %vm1955, %v1948, %v1952
        %v1957 = vand.u32 2147483647, %v1896
        %vm1958 = vcmp.eq.f32.partialorder %v1957, 8.507059e+37
        %v1959 = vand.u32 %v1896, 2147483648
        %v1960 = vor.u32 1.1754944e-38, %v1959
        %v1961 = vsel %vm1958, %v1960, %v1956
        %v1962 = vmul.f32 1.0, %v1961
        %v1963 = vrcp.pop %v1897
        %v1964 = vmul.f32 %v1897, %v1963
        %v1965 = vsub.f32 1.0, %v1964
        %v1966 = vmul.f32 %v1963, %v1965
        %v1967 = vadd.f32 %v1963, %v1966
        %vm1968 = vweird.f32 %v1897
        %vm1969 = vweird.f32 %v1963
        %vm1970 = vmor %vm1968, %vm1969
        %v1971 = vsel %vm1970, %v1963, %v1967
        %v1972 = vand.u32 2147483647, %v1897
        %vm1973 = vcmp.eq.f32.partialorder %v1972, 8.507059e+37
        %v1974 = vand.u32 %v1897, 2147483648
        %v1975 = vor.u32 1.1754944e-38, %v1974
        %v1976 = vsel %vm1973, %v1975, %v1971
        %v1977 = vmul.f32 1.0, %v1976
        %v1978 = vrcp.pop %v1898
        %v1979 = vmul.f32 %v1898, %v1978
        %v1980 = vsub.f32 1.0, %v1979
        %v1981 = vmul.f32 %v1978, %v1980
        %v1982 = vadd.f32 %v1978, %v1981
        %vm1983 = vweird.f32 %v1898
        %vm1984 = vweird.f32 %v1978
        %vm1985 = vmor %vm1983, %vm1984
        %v1986 = vsel %vm1985, %v1978, %v1982
        %v1987 = vand.u32 2147483647, %v1898
        %vm1988 = vcmp.eq.f32.partialorder %v1987, 8.507059e+37
        %v1989 = vand.u32 %v1898, 2147483648
        %v1990 = vor.u32 1.1754944e-38, %v1989
        %v1991 = vsel %vm1988, %v1990, %v1986
        %v1992 = vmul.f32 1.0, %v1991
        %v1993 = vrcp.pop %v1899
        %v1994 = vmul.f32 %v1899, %v1993
        %v1995 = vsub.f32 1.0, %v1994
        %v1996 = vmul.f32 %v1993, %v1995
        %v1997 = vadd.f32 %v1993, %v1996
        %vm1998 = vweird.f32 %v1899
        %vm1999 = vweird.f32 %v1993
        %vm2000 = vmor %vm1998, %vm1999
        %v2001 = vsel %vm2000, %v1993, %v1997
        %v2002 = vand.u32 2147483647, %v1899
        %vm2003 = vcmp.eq.f32.partialorder %v2002, 8.507059e+37
        %v2004 = vand.u32 %v1899, 2147483648
        %v2005 = vor.u32 1.1754944e-38, %v2004
        %v2006 = vsel %vm2003, %v2005, %v2001
        %v2007 = vmul.f32 1.0, %v2006
        %v2008 = vrcp.pop %v1900
        %v2009 = vmul.f32 %v1900, %v2008
        %v2010 = vsub.f32 1.0, %v2009
        %v2011 = vmul.f32 %v2008, %v2010
        %v2012 = vadd.f32 %v2008, %v2011
        %vm2013 = vweird.f32 %v1900
        %vm2014 = vweird.f32 %v2008
        %vm2015 = vmor %vm2013, %vm2014
        %v2016 = vsel %vm2015, %v2008, %v2012
        %v2017 = vand.u32 2147483647, %v1900
        %vm2018 = vcmp.eq.f32.partialorder %v2017, 8.507059e+37
        %v2019 = vand.u32 %v1900, 2147483648
        %v2020 = vor.u32 1.1754944e-38, %v2019
        %v2021 = vsel %vm2018, %v2020, %v2016
        %v2022 = vmul.f32 1.0, %v2021
        %v2023 = vrcp.pop %v1901
        %v2024 = vmul.f32 %v1901, %v2023
        %v2025 = vsub.f32 1.0, %v2024
        %v2026 = vmul.f32 %v2023, %v2025
        %v2027 = vadd.f32 %v2023, %v2026
        %vm2028 = vweird.f32 %v1901
        %vm2029 = vweird.f32 %v2023
        %vm2030 = vmor %vm2028, %vm2029
        %v2031 = vsel %vm2030, %v2023, %v2027
        %v2032 = vand.u32 2147483647, %v1901
        %vm2033 = vcmp.eq.f32.partialorder %v2032, 8.507059e+37
        %v2034 = vand.u32 %v1901, 2147483648
        %v2035 = vor.u32 1.1754944e-38, %v2034
        %v2036 = vsel %vm2033, %v2035, %v2031
        %v2037 = vmul.f32 1.0, %v2036
        %v2038 = vrcp.pop %v1902
        %v2039 = vmul.f32 %v1902, %v2038
        %v2040 = vsub.f32 1.0, %v2039
        %v2041 = vmul.f32 %v2038, %v2040
        %v2042 = vadd.f32 %v2038, %v2041
        %vm2043 = vweird.f32 %v1902
        %vm2044 = vweird.f32 %v2038
        %vm2045 = vmor %vm2043, %vm2044
        %v2046 = vsel %vm2045, %v2038, %v2042
        %v2047 = vand.u32 2147483647, %v1902
        %vm2048 = vcmp.eq.f32.partialorder %v2047, 8.507059e+37
        %v2049 = vand.u32 %v1902, 2147483648
        %v2050 = vor.u32 1.1754944e-38, %v2049
        %v2051 = vsel %vm2048, %v2050, %v2046
        %v2052 = vmul.f32 1.0, %v2051
        %v2053 = vrcp.pop %v1903
        %v2054 = vmul.f32 %v1903, %v2053
        %v2055 = vsub.f32 1.0, %v2054
        %v2056 = vmul.f32 %v2053, %v2055
        %v2057 = vadd.f32 %v2053, %v2056
        %vm2058 = vweird.f32 %v1903
        %vm2059 = vweird.f32 %v2053
        %vm2060 = vmor %vm2058, %vm2059
        %v2061 = vsel %vm2060, %v2053, %v2057
        %v2062 = vand.u32 2147483647, %v1903
        %vm2063 = vcmp.eq.f32.partialorder %v2062, 8.507059e+37
        %v2064 = vand.u32 %v1903, 2147483648
        %v2065 = vor.u32 1.1754944e-38, %v2064
        %v2066 = vsel %vm2063, %v2065, %v2061
        %v2067 = vmul.f32 1.0, %v2066
        %v2068 = vrcp.pop %v1904
        %v2069 = vmul.f32 %v1904, %v2068
        %v2070 = vsub.f32 1.0, %v2069
        %v2071 = vmul.f32 %v2068, %v2070
        %v2072 = vadd.f32 %v2068, %v2071
        %vm2073 = vweird.f32 %v1904
        %vm2074 = vweird.f32 %v2068
        %vm2075 = vmor %vm2073, %vm2074
        %v2076 = vsel %vm2075, %v2068, %v2072
        %v2077 = vand.u32 2147483647, %v1904
        %vm2078 = vcmp.eq.f32.partialorder %v2077, 8.507059e+37
        %v2079 = vand.u32 %v1904, 2147483648
        %v2080 = vor.u32 1.1754944e-38, %v2079
        %v2081 = vsel %vm2078, %v2080, %v2076
        %v2082 = vmul.f32 1.0, %v2081
        %v2083 = vrcp.pop %v1905
        %v2084 = vmul.f32 %v1905, %v2083
        %v2085 = vsub.f32 1.0, %v2084
        %v2086 = vmul.f32 %v2083, %v2085
        %v2087 = vadd.f32 %v2083, %v2086
        %vm2088 = vweird.f32 %v1905
        %vm2089 = vweird.f32 %v2083
        %vm2090 = vmor %vm2088, %vm2089
        %v2091 = vsel %vm2090, %v2083, %v2087
        %v2092 = vand.u32 2147483647, %v1905
        %vm2093 = vcmp.eq.f32.partialorder %v2092, 8.507059e+37
        %v2094 = vand.u32 %v1905, 2147483648
        %v2095 = vor.u32 1.1754944e-38, %v2094
        %v2096 = vsel %vm2093, %v2095, %v2091
        %v2097 = vmul.f32 1.0, %v2096
        %v2098 = vrcp.pop %v1906
        %v2099 = vmul.f32 %v1906, %v2098
        %v2100 = vsub.f32 1.0, %v2099
        %v2101 = vmul.f32 %v2098, %v2100
        %v2102 = vadd.f32 %v2098, %v2101
        %vm2103 = vweird.f32 %v1906
        %vm2104 = vweird.f32 %v2098
        %vm2105 = vmor %vm2103, %vm2104
        %v2106 = vsel %vm2105, %v2098, %v2102
        %v2107 = vand.u32 2147483647, %v1906
        %vm2108 = vcmp.eq.f32.partialorder %v2107, 8.507059e+37
        %v2109 = vand.u32 %v1906, 2147483648
        %v2110 = vor.u32 1.1754944e-38, %v2109
        %v2111 = vsel %vm2108, %v2110, %v2106
        %v2112 = vmul.f32 1.0, %v2111
        %v2113 = vrcp.pop %v1907
        %v2114 = vmul.f32 %v1907, %v2113
        %v2115 = vsub.f32 1.0, %v2114
        %v2116 = vmul.f32 %v2113, %v2115
        %v2117 = vadd.f32 %v2113, %v2116
        %vm2118 = vweird.f32 %v1907
        %vm2119 = vweird.f32 %v2113
        %vm2120 = vmor %vm2118, %vm2119
        %v2121 = vsel %vm2120, %v2113, %v2117
        %v2122 = vand.u32 2147483647, %v1907
        %vm2123 = vcmp.eq.f32.partialorder %v2122, 8.507059e+37
        %v2124 = vand.u32 %v1907, 2147483648
        %v2125 = vor.u32 1.1754944e-38, %v2124
        %v2126 = vsel %vm2123, %v2125, %v2121
        %v2127 = vmul.f32 1.0, %v2126
        %v2128 = vrcp.pop %v1908
        %v2129 = vmul.f32 %v1908, %v2128
        %v2130 = vsub.f32 1.0, %v2129
        %v2131 = vmul.f32 %v2128, %v2130
        %v2132 = vadd.f32 %v2128, %v2131
        %vm2133 = vweird.f32 %v1908
        %vm2134 = vweird.f32 %v2128
        %vm2135 = vmor %vm2133, %vm2134
        %v2136 = vsel %vm2135, %v2128, %v2132
        %v2137 = vand.u32 2147483647, %v1908
        %vm2138 = vcmp.eq.f32.partialorder %v2137, 8.507059e+37
        %v2139 = vand.u32 %v1908, 2147483648
        %v2140 = vor.u32 1.1754944e-38, %v2139
        %v2141 = vsel %vm2138, %v2140, %v2136
        %v2142 = vmul.f32 1.0, %v2141
        %v2143 = vrcp.pop %v1909
        %v2144 = vmul.f32 %v1909, %v2143
        %v2145 = vsub.f32 1.0, %v2144
        %v2146 = vmul.f32 %v2143, %v2145
        %v2147 = vadd.f32 %v2143, %v2146
        %vm2148 = vweird.f32 %v1909
        %vm2149 = vweird.f32 %v2143
        %vm2150 = vmor %vm2148, %vm2149
        %v2151 = vsel %vm2150, %v2143, %v2147
        %v2152 = vand.u32 2147483647, %v1909
        %vm2153 = vcmp.eq.f32.partialorder %v2152, 8.507059e+37
        %v2154 = vand.u32 %v1909, 2147483648
        %v2155 = vor.u32 1.1754944e-38, %v2154
        %v2156 = vsel %vm2153, %v2155, %v2151
        %v2157 = vmul.f32 1.0, %v2156
        %v2158 = vrcp.pop %v1910
        %v2159 = vmul.f32 %v1910, %v2158
        %v2160 = vsub.f32 1.0, %v2159
        %v2161 = vmul.f32 %v2158, %v2160
        %v2162 = vadd.f32 %v2158, %v2161
        %vm2163 = vweird.f32 %v1910
        %vm2164 = vweird.f32 %v2158
        %vm2165 = vmor %vm2163, %vm2164
        %v2166 = vsel %vm2165, %v2158, %v2162
        %v2167 = vand.u32 2147483647, %v1910
        %vm2168 = vcmp.eq.f32.partialorder %v2167, 8.507059e+37
        %v2169 = vand.u32 %v1910, 2147483648
        %v2170 = vor.u32 1.1754944e-38, %v2169
        %v2171 = vsel %vm2168, %v2170, %v2166
        %v2172 = vmul.f32 1.0, %v2171
        %v2173 = vrcp.pop %v1911
        %v2174 = vmul.f32 %v1911, %v2173
        %v2175 = vsub.f32 1.0, %v2174
        %v2176 = vmul.f32 %v2173, %v2175
        %v2177 = vadd.f32 %v2173, %v2176
        %vm2178 = vweird.f32 %v1911
        %vm2179 = vweird.f32 %v2173
        %vm2180 = vmor %vm2178, %vm2179
        %v2181 = vsel %vm2180, %v2173, %v2177
        %v2182 = vand.u32 2147483647, %v1911
        %vm2183 = vcmp.eq.f32.partialorder %v2182, 8.507059e+37
        %v2184 = vand.u32 %v1911, 2147483648
        %v2185 = vor.u32 1.1754944e-38, %v2184
        %v2186 = vsel %vm2183, %v2185, %v2181
        %v2187 = vmul.f32 1.0, %v2186
        %v2188 = vrcp.pop %v1912
        %v2189 = vmul.f32 %v1912, %v2188
        %v2190 = vsub.f32 1.0, %v2189
        %v2191 = vmul.f32 %v2188, %v2190
        %v2192 = vadd.f32 %v2188, %v2191
        %vm2193 = vweird.f32 %v1912
        %vm2194 = vweird.f32 %v2188
        %vm2195 = vmor %vm2193, %vm2194
        %v2196 = vsel %vm2195, %v2188, %v2192
        %v2197 = vand.u32 2147483647, %v1912
        %vm2198 = vcmp.eq.f32.partialorder %v2197, 8.507059e+37
        %v2199 = vand.u32 %v1912, 2147483648
        %v2200 = vor.u32 1.1754944e-38, %v2199
        %v2201 = vsel %vm2198, %v2200, %v2196
        %v2202 = vmul.f32 1.0, %v2201
        %v2203 = vrcp.pop %v1913
        %v2204 = vmul.f32 %v1913, %v2203
        %v2205 = vsub.f32 1.0, %v2204
        %v2206 = vmul.f32 %v2203, %v2205
        %v2207 = vadd.f32 %v2203, %v2206
        %vm2208 = vweird.f32 %v1913
        %vm2209 = vweird.f32 %v2203
        %vm2210 = vmor %vm2208, %vm2209
        %v2211 = vsel %vm2210, %v2203, %v2207
        %v2212 = vand.u32 2147483647, %v1913
        %vm2213 = vcmp.eq.f32.partialorder %v2212, 8.507059e+37
        %v2214 = vand.u32 %v1913, 2147483648
        %v2215 = vor.u32 1.1754944e-38, %v2214
        %v2216 = vsel %vm2213, %v2215, %v2211
        %v2217 = vmul.f32 1.0, %v2216
        %v2218 = vrcp.pop %v1914
        %v2219 = vmul.f32 %v1914, %v2218
        %v2220 = vsub.f32 1.0, %v2219
        %v2221 = vmul.f32 %v2218, %v2220
        %v2222 = vadd.f32 %v2218, %v2221
        %vm2223 = vweird.f32 %v1914
        %vm2224 = vweird.f32 %v2218
        %vm2225 = vmor %vm2223, %vm2224
        %v2226 = vsel %vm2225, %v2218, %v2222
        %v2227 = vand.u32 2147483647, %v1914
        %vm2228 = vcmp.eq.f32.partialorder %v2227, 8.507059e+37
        %v2229 = vand.u32 %v1914, 2147483648
        %v2230 = vor.u32 1.1754944e-38, %v2229
        %v2231 = vsel %vm2228, %v2230, %v2226
        %v2232 = vmul.f32 1.0, %v2231
        %v2233 = vrcp.pop %v1915
        %v2234 = vmul.f32 %v1915, %v2233
        %v2235 = vsub.f32 1.0, %v2234
        %v2236 = vmul.f32 %v2233, %v2235
        %v2237 = vadd.f32 %v2233, %v2236
        %vm2238 = vweird.f32 %v1915
        %vm2239 = vweird.f32 %v2233
        %vm2240 = vmor %vm2238, %vm2239
        %v2241 = vsel %vm2240, %v2233, %v2237
        %v2242 = vand.u32 2147483647, %v1915
        %vm2243 = vcmp.eq.f32.partialorder %v2242, 8.507059e+37
        %v2244 = vand.u32 %v1915, 2147483648
        %v2245 = vor.u32 1.1754944e-38, %v2244
        %v2246 = vsel %vm2243, %v2245, %v2241
        %v2247 = vmul.f32 1.0, %v2246
        %v2248 = vrcp.pop %v1916
        %v2249 = vmul.f32 %v1916, %v2248
        %v2250 = vsub.f32 1.0, %v2249
        %v2251 = vmul.f32 %v2248, %v2250
        %v2252 = vadd.f32 %v2248, %v2251
        %vm2253 = vweird.f32 %v1916
        %vm2254 = vweird.f32 %v2248
        %vm2255 = vmor %vm2253, %vm2254
        %v2256 = vsel %vm2255, %v2248, %v2252
        %v2257 = vand.u32 2147483647, %v1916
        %vm2258 = vcmp.eq.f32.partialorder %v2257, 8.507059e+37
        %v2259 = vand.u32 %v1916, 2147483648
        %v2260 = vor.u32 1.1754944e-38, %v2259
        %v2261 = vsel %vm2258, %v2260, %v2256
        %v2262 = vmul.f32 1.0, %v2261
        %v2263 = vrcp.pop %v1917
        %v2264 = vmul.f32 %v1917, %v2263
        %v2265 = vsub.f32 1.0, %v2264
        %v2266 = vmul.f32 %v2263, %v2265
        %v2267 = vadd.f32 %v2263, %v2266
        %vm2268 = vweird.f32 %v1917
        %vm2269 = vweird.f32 %v2263
        %vm2270 = vmor %vm2268, %vm2269
        %v2271 = vsel %vm2270, %v2263, %v2267
        %v2272 = vand.u32 2147483647, %v1917
        %vm2273 = vcmp.eq.f32.partialorder %v2272, 8.507059e+37
        %v2274 = vand.u32 %v1917, 2147483648
        %v2275 = vor.u32 1.1754944e-38, %v2274
        %v2276 = vsel %vm2273, %v2275, %v2271
        %v2277 = vmul.f32 1.0, %v2276
        %v2278 = vmul.f32 %v1798, %v1932
        %v2279 = vmul.f32 %v1799, %v1947
        %v2280 = vmul.f32 %v1800, %v1962
        %v2281 = vmul.f32 %v1801, %v1977
        %v2282 = vmul.f32 %v1802, %v1992
        %v2283 = vmul.f32 %v1803, %v2007
        %v2284 = vmul.f32 %v1804, %v2022
        %v2285 = vmul.f32 %v1805, %v2037
        %v2286 = vmul.f32 %v1806, %v2052
        %v2287 = vmul.f32 %v1807, %v2067
        %v2288 = vmul.f32 %v1808, %v2082
        %v2289 = vmul.f32 %v1809, %v2097
        %v2290 = vmul.f32 %v1810, %v2112
        %v2291 = vmul.f32 %v1811, %v2127
        %v2292 = vmul.f32 %v1812, %v2142
        %v2293 = vmul.f32 %v1813, %v2157
        %v2294 = vmul.f32 %v1814, %v2172
        %v2295 = vmul.f32 %v1815, %v2187
        %v2296 = vmul.f32 %v1816, %v2202
        %v2297 = vmul.f32 %v1817, %v2217
        %v2298 = vmul.f32 %v1818, %v2232
        %v2299 = vmul.f32 %v1819, %v2247
        %v2300 = vmul.f32 %v1820, %v2262
        %v2301 = vmul.f32 %v1821, %v2277
        %v2302 = vld [vmem:[%s5] sm:$0xff]
        %v2303 = vld [vmem:[%s5 + $0x8] sm:$0xff]
        %v2304 = vld [vmem:[%s5 + $0x10] sm:$0xff]
        %v2305 = vld [vmem:[%s5 + $0x18] sm:$0xff]
        %v2306 = vld [vmem:[%s5 + $0x20] sm:$0xff]
        %v2307 = vld [vmem:[%s5 + $0x28] sm:$0xff]
        %v2308 = vld [vmem:[%s5 + $0x30] sm:$0xff]
        %v2309 = vld [vmem:[%s5 + $0x38] sm:$0xff]
        %v2310 = vld [vmem:[%s5 + $0x40] sm:$0xff]
        %v2311 = vld [vmem:[%s5 + $0x48] sm:$0xff]
        %v2312 = vld [vmem:[%s5 + $0x50] sm:$0xff]
        %v2313 = vld [vmem:[%s5 + $0x58] sm:$0xff]
        %v2314 = vld [vmem:[%s5 + $0x60] sm:$0xff]
        %v2315 = vld [vmem:[%s5 + $0x68] sm:$0xff]
        %v2316 = vld [vmem:[%s5 + $0x70] sm:$0xff]
        %v2317 = vld [vmem:[%s5 + $0x78] sm:$0xff]
        %v2318 = vld [vmem:[%s5 + $0x80] sm:$0xff]
        %v2319 = vld [vmem:[%s5 + $0x88] sm:$0xff]
        %v2320 = vld [vmem:[%s5 + $0x90] sm:$0xff]
        %v2321 = vld [vmem:[%s5 + $0x98] sm:$0xff]
        %v2322 = vld [vmem:[%s5 + $0xa0] sm:$0xff]
        %v2323 = vld [vmem:[%s5 + $0xa8] sm:$0xff]
        %v2324 = vld [vmem:[%s5 + $0xb0] sm:$0xff]
        %v2325 = vld [vmem:[%s5 + $0xb8] sm:$0xff]
        %v2326 = vld [vmem:[%s5 + $0xc0] sm:$0xff]
        %v2327 = vld [vmem:[%s5 + $0xc8] sm:$0xff]
        %v2328 = vld [vmem:[%s5 + $0xd0] sm:$0xff]
        %v2329 = vld [vmem:[%s5 + $0xd8] sm:$0xff]
        %v2330 = vld [vmem:[%s5 + $0xe0] sm:$0xff]
        %v2331 = vld [vmem:[%s5 + $0xe8] sm:$0xff]
        %v2332 = vld [vmem:[%s5 + $0xf0] sm:$0xff]
        %v2333 = vld [vmem:[%s5 + $0xf8] sm:$0xff]
        %v2334 = vld [vmem:[%s5 + $0x100] sm:$0xff]
        %v2335 = vld [vmem:[%s5 + $0x108] sm:$0xff]
        %v2336 = vld [vmem:[%s5 + $0x110] sm:$0xff]
        %v2337 = vld [vmem:[%s5 + $0x118] sm:$0xff]
        %v2338 = vld [vmem:[%s5 + $0x120] sm:$0xff]
        %v2339 = vld [vmem:[%s5 + $0x128] sm:$0xff]
        %v2340 = vld [vmem:[%s5 + $0x130] sm:$0xff]
        %v2341 = vld [vmem:[%s5 + $0x138] sm:$0xff]
        %v2343 = vsel %vm1199, %v2280, 0
        %v2346 = vsel %vm1199, %v2283, 0
        %v2349 = vsel %vm1199, %v2286, 0
        %v2352 = vsel %vm1199, %v2289, 0
        %v2355 = vsel %vm1199, %v2292, 0
        %v2358 = vsel %vm1199, %v2295, 0
        %v2361 = vsel %vm1199, %v2298, 0
        %v2364 = vsel %vm1199, %v2301, 0
        %2366 = vmatpush.msra.mxu0 %v2317
        %2367 = vmatpush.msra.mxu0 %v2316
        %2368 = vmatpush.msra.mxu0 %v2315
        %2369 = vmatpush.msra.mxu0 %v2314
        %2370 = vmatpush.msra.mxu0 %v2313
        %2371 = vmatpush.msra.mxu0 %v2312
        %2372 = vmatpush.msra.mxu0 %v2311
        %2373 = vmatpush.msra.mxu0 %v2310
        %2374 = vmatpush.msra.mxu0 %v2309
        %2375 = vmatpush.msra.mxu0 %v2308
        %2376 = vmatpush.msra.mxu0 %v2307
        %2377 = vmatpush.msra.mxu0 %v2306
        %2378 = vmatpush.msra.mxu0 %v2305
        %2379 = vmatpush.msra.mxu0 %v2304
        %2380 = vmatpush.msra.mxu0 %v2303
        %2381 = vmatpush.msra.mxu0 %v2302
        %2382 = vmatmul.f32.gmra.mxu0 %v2278
        %v2383 = vpop.f32.mrf.mxu0
        %v2384 = vadd.f32 0.0, %v2383
        %2385 = vmatmul.f32.gmra.mxu0 %v2281
        %v2386 = vpop.f32.mrf.mxu0
        %v2387 = vadd.f32 0.0, %v2386
        %2388 = vmatmul.f32.gmra.mxu0 %v2284
        %v2389 = vpop.f32.mrf.mxu0
        %v2390 = vadd.f32 0.0, %v2389
        %2391 = vmatmul.f32.gmra.mxu0 %v2287
        %v2392 = vpop.f32.mrf.mxu0
        %v2393 = vadd.f32 0.0, %v2392
        %2394 = vmatmul.f32.gmra.mxu0 %v2290
        %v2395 = vpop.f32.mrf.mxu0
        %v2396 = vadd.f32 0.0, %v2395
        %2397 = vmatmul.f32.gmra.mxu0 %v2293
        %v2398 = vpop.f32.mrf.mxu0
        %v2399 = vadd.f32 0.0, %v2398
        %2400 = vmatmul.f32.gmra.mxu0 %v2296
        %v2401 = vpop.f32.mrf.mxu0
        %v2402 = vadd.f32 0.0, %v2401
        %2403 = vmatmul.f32.gmra.mxu0 %v2299
        %v2404 = vpop.f32.mrf.mxu0
        %v2405 = vadd.f32 0.0, %v2404
        %2406 = vdwg.mxu0
        %2407 = vmatpush.msra.mxu0 %v2333
        %2408 = vmatpush.msra.mxu0 %v2332
        %2409 = vmatpush.msra.mxu0 %v2331
        %2410 = vmatpush.msra.mxu0 %v2330
        %2411 = vmatpush.msra.mxu0 %v2329
        %2412 = vmatpush.msra.mxu0 %v2328
        %2413 = vmatpush.msra.mxu0 %v2327
        %2414 = vmatpush.msra.mxu0 %v2326
        %2415 = vmatpush.msra.mxu0 %v2325
        %2416 = vmatpush.msra.mxu0 %v2324
        %2417 = vmatpush.msra.mxu0 %v2323
        %2418 = vmatpush.msra.mxu0 %v2322
        %2419 = vmatpush.msra.mxu0 %v2321
        %2420 = vmatpush.msra.mxu0 %v2320
        %2421 = vmatpush.msra.mxu0 %v2319
        %2422 = vmatpush.msra.mxu0 %v2318
        %2423 = vmatmul.f32.gmra.mxu0 %v2279
        %v2424 = vpop.f32.mrf.mxu0
        %v2425 = vadd.f32 %v2384, %v2424
        %2426 = vmatmul.f32.gmra.mxu0 %v2282
        %v2427 = vpop.f32.mrf.mxu0
        %v2428 = vadd.f32 %v2387, %v2427
        %2429 = vmatmul.f32.gmra.mxu0 %v2285
        %v2430 = vpop.f32.mrf.mxu0
        %v2431 = vadd.f32 %v2390, %v2430
        %2432 = vmatmul.f32.gmra.mxu0 %v2288
        %v2433 = vpop.f32.mrf.mxu0
        %v2434 = vadd.f32 %v2393, %v2433
        %2435 = vmatmul.f32.gmra.mxu0 %v2291
        %v2436 = vpop.f32.mrf.mxu0
        %v2437 = vadd.f32 %v2396, %v2436
        %2438 = vmatmul.f32.gmra.mxu0 %v2294
        %v2439 = vpop.f32.mrf.mxu0
        %v2440 = vadd.f32 %v2399, %v2439
        %2441 = vmatmul.f32.gmra.mxu0 %v2297
        %v2442 = vpop.f32.mrf.mxu0
        %v2443 = vadd.f32 %v2402, %v2442
        %2444 = vmatmul.f32.gmra.mxu0 %v2300
        %v2445 = vpop.f32.mrf.mxu0
        %v2446 = vadd.f32 %v2405, %v2445
        %2447 = vdwg.mxu0
        %2448 = vmatpush.msra.mxu0 0.0
        %2449 = vmatpush.msra.mxu0 0.0
        %2450 = vmatpush.msra.mxu0 0.0
        %2451 = vmatpush.msra.mxu0 0.0
        %2452 = vmatpush.msra.mxu0 0.0
        %2453 = vmatpush.msra.mxu0 0.0
        %2454 = vmatpush.msra.mxu0 0.0
        %2455 = vmatpush.msra.mxu0 0.0
        %2456 = vmatpush.msra.mxu0 %v2341
        %2457 = vmatpush.msra.mxu0 %v2340
        %2458 = vmatpush.msra.mxu0 %v2339
        %2459 = vmatpush.msra.mxu0 %v2338
        %2460 = vmatpush.msra.mxu0 %v2337
        %2461 = vmatpush.msra.mxu0 %v2336
        %2462 = vmatpush.msra.mxu0 %v2335
        %2463 = vmatpush.msra.mxu0 %v2334
        %2464 = vmatmul.f32.gmra.mxu0 %v2343
        %v2465 = vpop.f32.mrf.mxu0
        %v2466 = vadd.f32 %v2425, %v2465
        %2467 = vmatmul.f32.gmra.mxu0 %v2346
        %v2468 = vpop.f32.mrf.mxu0
        %v2469 = vadd.f32 %v2428, %v2468
        %2470 = vmatmul.f32.gmra.mxu0 %v2349
        %v2471 = vpop.f32.mrf.mxu0
        %v2472 = vadd.f32 %v2431, %v2471
        %2473 = vmatmul.f32.gmra.mxu0 %v2352
        %v2474 = vpop.f32.mrf.mxu0
        %v2475 = vadd.f32 %v2434, %v2474
        %2476 = vmatmul.f32.gmra.mxu0 %v2355
        %v2477 = vpop.f32.mrf.mxu0
        %v2478 = vadd.f32 %v2437, %v2477
        %2479 = vmatmul.f32.gmra.mxu0 %v2358
        %v2480 = vpop.f32.mrf.mxu0
        %v2481 = vadd.f32 %v2440, %v2480
        %2482 = vmatmul.f32.gmra.mxu0 %v2361
        %v2483 = vpop.f32.mrf.mxu0
        %v2484 = vadd.f32 %v2443, %v2483
        %2485 = vmatmul.f32.gmra.mxu0 %v2364
        %v2486 = vpop.f32.mrf.mxu0
        %v2487 = vadd.f32 %v2446, %v2486
        %2488 = vdwg.mxu0
        %v2489 = vld [vmem:[%s6] sm:$0xff]
        %v2490 = vld [vmem:[%s6 + $0x8] sm:$0xff]
        %v2491 = vld [vmem:[%s6 + $0x10] sm:$0xff]
        %v2492 = vld [vmem:[%s6 + $0x18] sm:$0xff]
        %v2493 = vld [vmem:[%s6 + $0x20] sm:$0xff]
        %v2494 = vld [vmem:[%s6 + $0x28] sm:$0xff]
        %v2495 = vld [vmem:[%s6 + $0x30] sm:$0xff]
        %v2496 = vld [vmem:[%s6 + $0x38] sm:$0xff]
        %v2497 = vld [vmem:[%s6 + $0x40] sm:$0xff]
        %v2498 = vld [vmem:[%s6 + $0x48] sm:$0xff]
        %v2499 = vld [vmem:[%s6 + $0x50] sm:$0xff]
        %v2500 = vld [vmem:[%s6 + $0x58] sm:$0xff]
        %v2501 = vld [vmem:[%s6 + $0x60] sm:$0xff]
        %v2502 = vld [vmem:[%s6 + $0x68] sm:$0xff]
        %v2503 = vld [vmem:[%s6 + $0x70] sm:$0xff]
        %v2504 = vld [vmem:[%s6 + $0x78] sm:$0xff]
        %v2505 = vld [vmem:[%s6 + $0x80] sm:$0xff]
        %v2506 = vld [vmem:[%s6 + $0x88] sm:$0xff]
        %v2507 = vld [vmem:[%s6 + $0x90] sm:$0xff]
        %v2508 = vld [vmem:[%s6 + $0x98] sm:$0xff]
        %v2509 = vld [vmem:[%s6 + $0xa0] sm:$0xff]
        %v2510 = vld [vmem:[%s6 + $0xa8] sm:$0xff]
        %v2511 = vld [vmem:[%s6 + $0xb0] sm:$0xff]
        %v2512 = vld [vmem:[%s6 + $0xb8] sm:$0xff]
        %v2513 = vld [vmem:[%s6 + $0xc0] sm:$0xff]
        %v2514 = vld [vmem:[%s6 + $0xc8] sm:$0xff]
        %v2515 = vld [vmem:[%s6 + $0xd0] sm:$0xff]
        %v2516 = vld [vmem:[%s6 + $0xd8] sm:$0xff]
        %v2517 = vld [vmem:[%s6 + $0xe0] sm:$0xff]
        %v2518 = vld [vmem:[%s6 + $0xe8] sm:$0xff]
        %v2519 = vld [vmem:[%s6 + $0xf0] sm:$0xff]
        %v2520 = vld [vmem:[%s6 + $0xf8] sm:$0xff]
        %v2521 = vld [vmem:[%s6 + $0x100] sm:$0xff]
        %v2522 = vld [vmem:[%s6 + $0x108] sm:$0xff]
        %v2523 = vld [vmem:[%s6 + $0x110] sm:$0xff]
        %v2524 = vld [vmem:[%s6 + $0x118] sm:$0xff]
        %v2525 = vld [vmem:[%s6 + $0x120] sm:$0xff]
        %v2526 = vld [vmem:[%s6 + $0x128] sm:$0xff]
        %v2527 = vld [vmem:[%s6 + $0x130] sm:$0xff]
        %v2528 = vld [vmem:[%s6 + $0x138] sm:$0xff]
        %2529 = vmatpush.msra.mxu0 %v2504
        %2530 = vmatpush.msra.mxu0 %v2503
        %2531 = vmatpush.msra.mxu0 %v2502
        %2532 = vmatpush.msra.mxu0 %v2501
        %2533 = vmatpush.msra.mxu0 %v2500
        %2534 = vmatpush.msra.mxu0 %v2499
        %2535 = vmatpush.msra.mxu0 %v2498
        %2536 = vmatpush.msra.mxu0 %v2497
        %2537 = vmatpush.msra.mxu0 %v2496
        %2538 = vmatpush.msra.mxu0 %v2495
        %2539 = vmatpush.msra.mxu0 %v2494
        %2540 = vmatpush.msra.mxu0 %v2493
        %2541 = vmatpush.msra.mxu0 %v2492
        %2542 = vmatpush.msra.mxu0 %v2491
        %2543 = vmatpush.msra.mxu0 %v2490
        %2544 = vmatpush.msra.mxu0 %v2489
        %2545 = vmatmul.f32.gmra.mxu0 %v2278
        %v2546 = vpop.f32.mrf.mxu0
        %v2547 = vadd.f32 0.0, %v2546
        %2548 = vmatmul.f32.gmra.mxu0 %v2281
        %v2549 = vpop.f32.mrf.mxu0
        %v2550 = vadd.f32 0.0, %v2549
        %2551 = vmatmul.f32.gmra.mxu0 %v2284
        %v2552 = vpop.f32.mrf.mxu0
        %v2553 = vadd.f32 0.0, %v2552
        %2554 = vmatmul.f32.gmra.mxu0 %v2287
        %v2555 = vpop.f32.mrf.mxu0
        %v2556 = vadd.f32 0.0, %v2555
        %2557 = vmatmul.f32.gmra.mxu0 %v2290
        %v2558 = vpop.f32.mrf.mxu0
        %v2559 = vadd.f32 0.0, %v2558
        %2560 = vmatmul.f32.gmra.mxu0 %v2293
        %v2561 = vpop.f32.mrf.mxu0
        %v2562 = vadd.f32 0.0, %v2561
        %2563 = vmatmul.f32.gmra.mxu0 %v2296
        %v2564 = vpop.f32.mrf.mxu0
        %v2565 = vadd.f32 0.0, %v2564
        %2566 = vmatmul.f32.gmra.mxu0 %v2299
        %v2567 = vpop.f32.mrf.mxu0
        %v2568 = vadd.f32 0.0, %v2567
        %2569 = vdwg.mxu0
        %2570 = vmatpush.msra.mxu0 %v2520
        %2571 = vmatpush.msra.mxu0 %v2519
        %2572 = vmatpush.msra.mxu0 %v2518
        %2573 = vmatpush.msra.mxu0 %v2517
        %2574 = vmatpush.msra.mxu0 %v2516
        %2575 = vmatpush.msra.mxu0 %v2515
        %2576 = vmatpush.msra.mxu0 %v2514
        %2577 = vmatpush.msra.mxu0 %v2513
        %2578 = vmatpush.msra.mxu0 %v2512
        %2579 = vmatpush.msra.mxu0 %v2511
        %2580 = vmatpush.msra.mxu0 %v2510
        %2581 = vmatpush.msra.mxu0 %v2509
        %2582 = vmatpush.msra.mxu0 %v2508
        %2583 = vmatpush.msra.mxu0 %v2507
        %2584 = vmatpush.msra.mxu0 %v2506
        %2585 = vmatpush.msra.mxu0 %v2505
        %2586 = vmatmul.f32.gmra.mxu0 %v2279
        %v2587 = vpop.f32.mrf.mxu0
        %v2588 = vadd.f32 %v2547, %v2587
        %2589 = vmatmul.f32.gmra.mxu0 %v2282
        %v2590 = vpop.f32.mrf.mxu0
        %v2591 = vadd.f32 %v2550, %v2590
        %2592 = vmatmul.f32.gmra.mxu0 %v2285
        %v2593 = vpop.f32.mrf.mxu0
        %v2594 = vadd.f32 %v2553, %v2593
        %2595 = vmatmul.f32.gmra.mxu0 %v2288
        %v2596 = vpop.f32.mrf.mxu0
        %v2597 = vadd.f32 %v2556, %v2596
        %2598 = vmatmul.f32.gmra.mxu0 %v2291
        %v2599 = vpop.f32.mrf.mxu0
        %v2600 = vadd.f32 %v2559, %v2599
        %2601 = vmatmul.f32.gmra.mxu0 %v2294
        %v2602 = vpop.f32.mrf.mxu0
        %v2603 = vadd.f32 %v2562, %v2602
        %2604 = vmatmul.f32.gmra.mxu0 %v2297
        %v2605 = vpop.f32.mrf.mxu0
        %v2606 = vadd.f32 %v2565, %v2605
        %2607 = vmatmul.f32.gmra.mxu0 %v2300
        %v2608 = vpop.f32.mrf.mxu0
        %v2609 = vadd.f32 %v2568, %v2608
        %2610 = vdwg.mxu0
        %2611 = vmatpush.msra.mxu0 0.0
        %2612 = vmatpush.msra.mxu0 0.0
        %2613 = vmatpush.msra.mxu0 0.0
        %2614 = vmatpush.msra.mxu0 0.0
        %2615 = vmatpush.msra.mxu0 0.0
        %2616 = vmatpush.msra.mxu0 0.0
        %2617 = vmatpush.msra.mxu0 0.0
        %2618 = vmatpush.msra.mxu0 0.0
        %2619 = vmatpush.msra.mxu0 %v2528
        %2620 = vmatpush.msra.mxu0 %v2527
        %2621 = vmatpush.msra.mxu0 %v2526
        %2622 = vmatpush.msra.mxu0 %v2525
        %2623 = vmatpush.msra.mxu0 %v2524
        %2624 = vmatpush.msra.mxu0 %v2523
        %2625 = vmatpush.msra.mxu0 %v2522
        %2626 = vmatpush.msra.mxu0 %v2521
        %2627 = vmatmul.f32.gmra.mxu0 %v2343
        %v2628 = vpop.f32.mrf.mxu0
        %v2629 = vadd.f32 %v2588, %v2628
        %2630 = vmatmul.f32.gmra.mxu0 %v2346
        %v2631 = vpop.f32.mrf.mxu0
        %v2632 = vadd.f32 %v2591, %v2631
        %2633 = vmatmul.f32.gmra.mxu0 %v2349
        %v2634 = vpop.f32.mrf.mxu0
        %v2635 = vadd.f32 %v2594, %v2634
        %2636 = vmatmul.f32.gmra.mxu0 %v2352
        %v2637 = vpop.f32.mrf.mxu0
        %v2638 = vadd.f32 %v2597, %v2637
        %2639 = vmatmul.f32.gmra.mxu0 %v2355
        %v2640 = vpop.f32.mrf.mxu0
        %v2641 = vadd.f32 %v2600, %v2640
        %2642 = vmatmul.f32.gmra.mxu0 %v2358
        %v2643 = vpop.f32.mrf.mxu0
        %v2644 = vadd.f32 %v2603, %v2643
        %2645 = vmatmul.f32.gmra.mxu0 %v2361
        %v2646 = vpop.f32.mrf.mxu0
        %v2647 = vadd.f32 %v2606, %v2646
        %2648 = vmatmul.f32.gmra.mxu0 %v2364
        %v2649 = vpop.f32.mrf.mxu0
        %v2650 = vadd.f32 %v2609, %v2649
        %2651 = vdwg.mxu0
        %v2652 = vld [vmem:[%s7] sm:$0xff]
        %v2653 = vld [vmem:[%s7 + $0x8] sm:$0xff]
        %v2654 = vld [vmem:[%s7 + $0x10] sm:$0xff]
        %v2655 = vld [vmem:[%s7 + $0x18] sm:$0xff]
        %v2656 = vld [vmem:[%s7 + $0x20] sm:$0xff]
        %v2657 = vld [vmem:[%s7 + $0x28] sm:$0xff]
        %v2658 = vld [vmem:[%s7 + $0x30] sm:$0xff]
        %v2659 = vld [vmem:[%s7 + $0x38] sm:$0xff]
        %v2660 = vld [vmem:[%s7 + $0x40] sm:$0xff]
        %v2661 = vld [vmem:[%s7 + $0x48] sm:$0xff]
        %v2662 = vld [vmem:[%s7 + $0x50] sm:$0xff]
        %v2663 = vld [vmem:[%s7 + $0x58] sm:$0xff]
        %v2664 = vld [vmem:[%s7 + $0x60] sm:$0xff]
        %v2665 = vld [vmem:[%s7 + $0x68] sm:$0xff]
        %v2666 = vld [vmem:[%s7 + $0x70] sm:$0xff]
        %v2667 = vld [vmem:[%s7 + $0x78] sm:$0xff]
        %v2668 = vld [vmem:[%s7 + $0x80] sm:$0xff]
        %v2669 = vld [vmem:[%s7 + $0x88] sm:$0xff]
        %v2670 = vld [vmem:[%s7 + $0x90] sm:$0xff]
        %v2671 = vld [vmem:[%s7 + $0x98] sm:$0xff]
        %v2672 = vld [vmem:[%s7 + $0xa0] sm:$0xff]
        %v2673 = vld [vmem:[%s7 + $0xa8] sm:$0xff]
        %v2674 = vld [vmem:[%s7 + $0xb0] sm:$0xff]
        %v2675 = vld [vmem:[%s7 + $0xb8] sm:$0xff]
        %v2676 = vld [vmem:[%s7 + $0xc0] sm:$0xff]
        %v2677 = vld [vmem:[%s7 + $0xc8] sm:$0xff]
        %v2678 = vld [vmem:[%s7 + $0xd0] sm:$0xff]
        %v2679 = vld [vmem:[%s7 + $0xd8] sm:$0xff]
        %v2680 = vld [vmem:[%s7 + $0xe0] sm:$0xff]
        %v2681 = vld [vmem:[%s7 + $0xe8] sm:$0xff]
        %v2682 = vld [vmem:[%s7 + $0xf0] sm:$0xff]
        %v2683 = vld [vmem:[%s7 + $0xf8] sm:$0xff]
        %v2684 = vld [vmem:[%s7 + $0x100] sm:$0xff]
        %v2685 = vld [vmem:[%s7 + $0x108] sm:$0xff]
        %v2686 = vld [vmem:[%s7 + $0x110] sm:$0xff]
        %v2687 = vld [vmem:[%s7 + $0x118] sm:$0xff]
        %v2688 = vld [vmem:[%s7 + $0x120] sm:$0xff]
        %v2689 = vld [vmem:[%s7 + $0x128] sm:$0xff]
        %v2690 = vld [vmem:[%s7 + $0x130] sm:$0xff]
        %v2691 = vld [vmem:[%s7 + $0x138] sm:$0xff]
        %2692 = vmatpush.msra.mxu0 %v2667
        %2693 = vmatpush.msra.mxu0 %v2666
        %2694 = vmatpush.msra.mxu0 %v2665
        %2695 = vmatpush.msra.mxu0 %v2664
        %2696 = vmatpush.msra.mxu0 %v2663
        %2697 = vmatpush.msra.mxu0 %v2662
        %2698 = vmatpush.msra.mxu0 %v2661
        %2699 = vmatpush.msra.mxu0 %v2660
        %2700 = vmatpush.msra.mxu0 %v2659
        %2701 = vmatpush.msra.mxu0 %v2658
        %2702 = vmatpush.msra.mxu0 %v2657
        %2703 = vmatpush.msra.mxu0 %v2656
        %2704 = vmatpush.msra.mxu0 %v2655
        %2705 = vmatpush.msra.mxu0 %v2654
        %2706 = vmatpush.msra.mxu0 %v2653
        %2707 = vmatpush.msra.mxu0 %v2652
        %2708 = vmatmul.f32.gmra.mxu0 %v2278
        %v2709 = vpop.f32.mrf.mxu0
        %v2710 = vadd.f32 0.0, %v2709
        %2711 = vmatmul.f32.gmra.mxu0 %v2281
        %v2712 = vpop.f32.mrf.mxu0
        %v2713 = vadd.f32 0.0, %v2712
        %2714 = vmatmul.f32.gmra.mxu0 %v2284
        %v2715 = vpop.f32.mrf.mxu0
        %v2716 = vadd.f32 0.0, %v2715
        %2717 = vmatmul.f32.gmra.mxu0 %v2287
        %v2718 = vpop.f32.mrf.mxu0
        %v2719 = vadd.f32 0.0, %v2718
        %2720 = vmatmul.f32.gmra.mxu0 %v2290
        %v2721 = vpop.f32.mrf.mxu0
        %v2722 = vadd.f32 0.0, %v2721
        %2723 = vmatmul.f32.gmra.mxu0 %v2293
        %v2724 = vpop.f32.mrf.mxu0
        %v2725 = vadd.f32 0.0, %v2724
        %2726 = vmatmul.f32.gmra.mxu0 %v2296
        %v2727 = vpop.f32.mrf.mxu0
        %v2728 = vadd.f32 0.0, %v2727
        %2729 = vmatmul.f32.gmra.mxu0 %v2299
        %v2730 = vpop.f32.mrf.mxu0
        %v2731 = vadd.f32 0.0, %v2730
        %2732 = vdwg.mxu0
        %2733 = vmatpush.msra.mxu0 %v2683
        %2734 = vmatpush.msra.mxu0 %v2682
        %2735 = vmatpush.msra.mxu0 %v2681
        %2736 = vmatpush.msra.mxu0 %v2680
        %2737 = vmatpush.msra.mxu0 %v2679
        %2738 = vmatpush.msra.mxu0 %v2678
        %2739 = vmatpush.msra.mxu0 %v2677
        %2740 = vmatpush.msra.mxu0 %v2676
        %2741 = vmatpush.msra.mxu0 %v2675
        %2742 = vmatpush.msra.mxu0 %v2674
        %2743 = vmatpush.msra.mxu0 %v2673
        %2744 = vmatpush.msra.mxu0 %v2672
        %2745 = vmatpush.msra.mxu0 %v2671
        %2746 = vmatpush.msra.mxu0 %v2670
        %2747 = vmatpush.msra.mxu0 %v2669
        %2748 = vmatpush.msra.mxu0 %v2668
        %2749 = vmatmul.f32.gmra.mxu0 %v2279
        %v2750 = vpop.f32.mrf.mxu0
        %v2751 = vadd.f32 %v2710, %v2750
        %2752 = vmatmul.f32.gmra.mxu0 %v2282
        %v2753 = vpop.f32.mrf.mxu0
        %v2754 = vadd.f32 %v2713, %v2753
        %2755 = vmatmul.f32.gmra.mxu0 %v2285
        %v2756 = vpop.f32.mrf.mxu0
        %v2757 = vadd.f32 %v2716, %v2756
        %2758 = vmatmul.f32.gmra.mxu0 %v2288
        %v2759 = vpop.f32.mrf.mxu0
        %v2760 = vadd.f32 %v2719, %v2759
        %2761 = vmatmul.f32.gmra.mxu0 %v2291
        %v2762 = vpop.f32.mrf.mxu0
        %v2763 = vadd.f32 %v2722, %v2762
        %2764 = vmatmul.f32.gmra.mxu0 %v2294
        %v2765 = vpop.f32.mrf.mxu0
        %v2766 = vadd.f32 %v2725, %v2765
        %2767 = vmatmul.f32.gmra.mxu0 %v2297
        %v2768 = vpop.f32.mrf.mxu0
        %v2769 = vadd.f32 %v2728, %v2768
        %2770 = vmatmul.f32.gmra.mxu0 %v2300
        %v2771 = vpop.f32.mrf.mxu0
        %v2772 = vadd.f32 %v2731, %v2771
        %2773 = vdwg.mxu0
        %2774 = vmatpush.msra.mxu0 0.0
        %2775 = vmatpush.msra.mxu0 0.0
        %2776 = vmatpush.msra.mxu0 0.0
        %2777 = vmatpush.msra.mxu0 0.0
        %2778 = vmatpush.msra.mxu0 0.0
        %2779 = vmatpush.msra.mxu0 0.0
        %2780 = vmatpush.msra.mxu0 0.0
        %2781 = vmatpush.msra.mxu0 0.0
        %2782 = vmatpush.msra.mxu0 %v2691
        %2783 = vmatpush.msra.mxu0 %v2690
        %2784 = vmatpush.msra.mxu0 %v2689
        %2785 = vmatpush.msra.mxu0 %v2688
        %2786 = vmatpush.msra.mxu0 %v2687
        %2787 = vmatpush.msra.mxu0 %v2686
        %2788 = vmatpush.msra.mxu0 %v2685
        %2789 = vmatpush.msra.mxu0 %v2684
        %2790 = vmatmul.f32.gmra.mxu0 %v2343
        %v2791 = vpop.f32.mrf.mxu0
        %v2792 = vadd.f32 %v2751, %v2791
        %2793 = vmatmul.f32.gmra.mxu0 %v2346
        %v2794 = vpop.f32.mrf.mxu0
        %v2795 = vadd.f32 %v2754, %v2794
        %2796 = vmatmul.f32.gmra.mxu0 %v2349
        %v2797 = vpop.f32.mrf.mxu0
        %v2798 = vadd.f32 %v2757, %v2797
        %2799 = vmatmul.f32.gmra.mxu0 %v2352
        %v2800 = vpop.f32.mrf.mxu0
        %v2801 = vadd.f32 %v2760, %v2800
        %2802 = vmatmul.f32.gmra.mxu0 %v2355
        %v2803 = vpop.f32.mrf.mxu0
        %v2804 = vadd.f32 %v2763, %v2803
        %2805 = vmatmul.f32.gmra.mxu0 %v2358
        %v2806 = vpop.f32.mrf.mxu0
        %v2807 = vadd.f32 %v2766, %v2806
        %2808 = vmatmul.f32.gmra.mxu0 %v2361
        %v2809 = vpop.f32.mrf.mxu0
        %v2810 = vadd.f32 %v2769, %v2809
        %2811 = vmatmul.f32.gmra.mxu0 %v2364
        %v2812 = vpop.f32.mrf.mxu0
        %v2813 = vadd.f32 %v2772, %v2812
        %2814 = vdwg.mxu0
        %v2815 = vld [vmem:[%s8] sm:$0xff]
        %v2816 = vld [vmem:[%s8 + $0x8] sm:$0xff]
        %v2817 = vld [vmem:[%s8 + $0x10] sm:$0xff]
        %v2818 = vld [vmem:[%s8 + $0x18] sm:$0x3]
        %v2819 = vld [vmem:[%s8 + $0x20] sm:$0x3]
        %v2820 = vld [vmem:[%s8 + $0x28] sm:$0x3]
        %v2821 = vld [vmem:[%s9] sm:$0x7]
        %v2823 = vperm.slane %v2821, 0
        %v2824 = vperm.slane %v2821, 1
        %v2825 = vperm.slane %v2821, 2
        %vm2829 = vcmask 80896
        %v2831 = vsel %vm2829, %v2466, 0
        %v2834 = vsel %vm2829, %v2469, 0
        %v2837 = vsel %vm2829, %v2472, 0
        %v2840 = vsel %vm2829, %v2475, 0
        %v2843 = vsel %vm2829, %v2478, 0
        %v2846 = vsel %vm2829, %v2481, 0
        %v2849 = vsel %vm2829, %v2484, 0
        %v2852 = vsel %vm2829, %v2487, 0
        %vm2854 = vcmask 1041408
        %v2856 = vsel %vm2854, %v2818, 0
        %v2859 = vsel %vm2854, %v2819, 0
        %v2862 = vsel %vm2854, %v2820, 0
        %2864 = vmatpush.msra.mxu0 0.0
        %2865 = vmatpush.msra.mxu0 0.0
        %2866 = vmatpush.msra.mxu0 0.0
        %2867 = vmatpush.msra.mxu0 0.0
        %2868 = vmatpush.msra.mxu0 0.0
        %2869 = vmatpush.msra.mxu0 0.0
        %2870 = vmatpush.msra.mxu0 0.0
        %2871 = vmatpush.msra.mxu0 0.0
        %2872 = vmatpush.msra.mxu0 0.0
        %2873 = vmatpush.msra.mxu0 0.0
        %2874 = vmatpush.msra.mxu0 0.0
        %2875 = vmatpush.msra.mxu0 0.0
        %2876 = vmatpush.msra.mxu0 0.0
        %2877 = vmatpush.msra.mxu0 0.0
        %2878 = vmatpush.msra.mxu0 %v2856
        %2879 = vmatpush.msra.mxu0 %v2815
        %2880 = vmatmul.f32.gmra.mxu0 %v2831
        %v2881 = vpop.f32.mrf.mxu0
        %v2882 = vadd.f32 %v2823, %v2881
        %2883 = vmatmul.f32.gmra.mxu0 %v2834
        %v2884 = vpop.f32.mrf.mxu0
        %v2885 = vadd.f32 %v2823, %v2884
        %2886 = vmatmul.f32.gmra.mxu0 %v2837
        %v2887 = vpop.f32.mrf.mxu0
        %v2888 = vadd.f32 %v2823, %v2887
        %2889 = vmatmul.f32.gmra.mxu0 %v2840
        %v2890 = vpop.f32.mrf.mxu0
        %v2891 = vadd.f32 %v2823, %v2890
        %2892 = vmatmul.f32.gmra.mxu0 %v2843
        %v2893 = vpop.f32.mrf.mxu0
        %v2894 = vadd.f32 %v2823, %v2893
        %2895 = vmatmul.f32.gmra.mxu0 %v2846
        %v2896 = vpop.f32.mrf.mxu0
        %v2897 = vadd.f32 %v2823, %v2896
        %2898 = vmatmul.f32.gmra.mxu0 %v2849
        %v2899 = vpop.f32.mrf.mxu0
        %v2900 = vadd.f32 %v2823, %v2899
        %2901 = vmatmul.f32.gmra.mxu0 %v2852
        %v2902 = vpop.f32.mrf.mxu0
        %v2903 = vadd.f32 %v2823, %v2902
        %2904 = vdwg.mxu0
        %2905 = vmatpush.msra.mxu0 0.0
        %2906 = vmatpush.msra.mxu0 0.0
        %2907 = vmatpush.msra.mxu0 0.0
        %2908 = vmatpush.msra.mxu0 0.0
        %2909 = vmatpush.msra.mxu0 0.0
        %2910 = vmatpush.msra.mxu0 0.0
        %2911 = vmatpush.msra.mxu0 0.0
        %2912 = vmatpush.msra.mxu0 0.0
        %2913 = vmatpush.msra.mxu0 0.0
        %2914 = vmatpush.msra.mxu0 0.0
        %2915 = vmatpush.msra.mxu0 0.0
        %2916 = vmatpush.msra.mxu0 0.0
        %2917 = vmatpush.msra.mxu0 0.0
        %2918 = vmatpush.msra.mxu0 0.0
        %2919 = vmatpush.msra.mxu0 %v2859
        %2920 = vmatpush.msra.mxu0 %v2816
        %2921 = vmatmul.f32.gmra.mxu0 %v2831
        %v2922 = vpop.f32.mrf.mxu0
        %v2923 = vadd.f32 %v2824, %v2922
        %2924 = vmatmul.f32.gmra.mxu0 %v2834
        %v2925 = vpop.f32.mrf.mxu0
        %v2926 = vadd.f32 %v2824, %v2925
        %2927 = vmatmul.f32.gmra.mxu0 %v2837
        %v2928 = vpop.f32.mrf.mxu0
        %v2929 = vadd.f32 %v2824, %v2928
        %2930 = vmatmul.f32.gmra.mxu0 %v2840
        %v2931 = vpop.f32.mrf.mxu0
        %v2932 = vadd.f32 %v2824, %v2931
        %2933 = vmatmul.f32.gmra.mxu0 %v2843
        %v2934 = vpop.f32.mrf.mxu0
        %v2935 = vadd.f32 %v2824, %v2934
        %2936 = vmatmul.f32.gmra.mxu0 %v2846
        %v2937 = vpop.f32.mrf.mxu0
        %v2938 = vadd.f32 %v2824, %v2937
        %2939 = vmatmul.f32.gmra.mxu0 %v2849
        %v2940 = vpop.f32.mrf.mxu0
        %v2941 = vadd.f32 %v2824, %v2940
        %2942 = vmatmul.f32.gmra.mxu0 %v2852
        %v2943 = vpop.f32.mrf.mxu0
        %v2944 = vadd.f32 %v2824, %v2943
        %2945 = vdwg.mxu0
        %2946 = vmatpush.msra.mxu0 0.0
        %2947 = vmatpush.msra.mxu0 0.0
        %2948 = vmatpush.msra.mxu0 0.0
        %2949 = vmatpush.msra.mxu0 0.0
        %2950 = vmatpush.msra.mxu0 0.0
        %2951 = vmatpush.msra.mxu0 0.0
        %2952 = vmatpush.msra.mxu0 0.0
        %2953 = vmatpush.msra.mxu0 0.0
        %2954 = vmatpush.msra.mxu0 0.0
        %2955 = vmatpush.msra.mxu0 0.0
        %2956 = vmatpush.msra.mxu0 0.0
        %2957 = vmatpush.msra.mxu0 0.0
        %2958 = vmatpush.msra.mxu0 0.0
        %2959 = vmatpush.msra.mxu0 0.0
        %2960 = vmatpush.msra.mxu0 %v2862
        %2961 = vmatpush.msra.mxu0 %v2817
        %2962 = vmatmul.f32.gmra.mxu0 %v2831
        %v2963 = vpop.f32.mrf.mxu0
        %v2964 = vadd.f32 %v2825, %v2963
        %2965 = vmatmul.f32.gmra.mxu0 %v2834
        %v2966 = vpop.f32.mrf.mxu0
        %v2967 = vadd.f32 %v2825, %v2966
        %2968 = vmatmul.f32.gmra.mxu0 %v2837
        %v2969 = vpop.f32.mrf.mxu0
        %v2970 = vadd.f32 %v2825, %v2969
        %2971 = vmatmul.f32.gmra.mxu0 %v2840
        %v2972 = vpop.f32.mrf.mxu0
        %v2973 = vadd.f32 %v2825, %v2972
        %2974 = vmatmul.f32.gmra.mxu0 %v2843
        %v2975 = vpop.f32.mrf.mxu0
        %v2976 = vadd.f32 %v2825, %v2975
        %2977 = vmatmul.f32.gmra.mxu0 %v2846
        %v2978 = vpop.f32.mrf.mxu0
        %v2979 = vadd.f32 %v2825, %v2978
        %2980 = vmatmul.f32.gmra.mxu0 %v2849
        %v2981 = vpop.f32.mrf.mxu0
        %v2982 = vadd.f32 %v2825, %v2981
        %2983 = vmatmul.f32.gmra.mxu0 %v2852
        %v2984 = vpop.f32.mrf.mxu0
        %v2985 = vadd.f32 %v2825, %v2984
        %2986 = vdwg.mxu0
        %v2987 = vmax.f32 %v2882, 0.0
        %v2988 = vmax.f32 %v2923, 0.0
        %v2989 = vmax.f32 %v2964, 0.0
        %v2990 = vmax.f32 %v2885, 0.0
        %v2991 = vmax.f32 %v2926, 0.0
        %v2992 = vmax.f32 %v2967, 0.0
        %v2993 = vmax.f32 %v2888, 0.0
        %v2994 = vmax.f32 %v2929, 0.0
        %v2995 = vmax.f32 %v2970, 0.0
        %v2996 = vmax.f32 %v2891, 0.0
        %v2997 = vmax.f32 %v2932, 0.0
        %v2998 = vmax.f32 %v2973, 0.0
        %v2999 = vmax.f32 %v2894, 0.0
        %v3000 = vmax.f32 %v2935, 0.0
        %v3001 = vmax.f32 %v2976, 0.0
        %v3002 = vmax.f32 %v2897, 0.0
        %v3003 = vmax.f32 %v2938, 0.0
        %v3004 = vmax.f32 %v2979, 0.0
        %v3005 = vmax.f32 %v2900, 0.0
        %v3006 = vmax.f32 %v2941, 0.0
        %v3007 = vmax.f32 %v2982, 0.0
        %v3008 = vmax.f32 %v2903, 0.0
        %v3009 = vmax.f32 %v2944, 0.0
        %v3010 = vmax.f32 %v2985, 0.0
        %vm3011 = vcmp.ne.f32.partialorder %v2882, %v2882
        %vm3012 = vcmp.ne.f32.partialorder %v2923, %v2923
        %vm3013 = vcmp.ne.f32.partialorder %v2964, %v2964
        %vm3014 = vcmp.ne.f32.partialorder %v2885, %v2885
        %vm3015 = vcmp.ne.f32.partialorder %v2926, %v2926
        %vm3016 = vcmp.ne.f32.partialorder %v2967, %v2967
        %vm3017 = vcmp.ne.f32.partialorder %v2888, %v2888
        %vm3018 = vcmp.ne.f32.partialorder %v2929, %v2929
        %vm3019 = vcmp.ne.f32.partialorder %v2970, %v2970
        %vm3020 = vcmp.ne.f32.partialorder %v2891, %v2891
        %vm3021 = vcmp.ne.f32.partialorder %v2932, %v2932
        %vm3022 = vcmp.ne.f32.partialorder %v2973, %v2973
        %vm3023 = vcmp.ne.f32.partialorder %v2894, %v2894
        %vm3024 = vcmp.ne.f32.partialorder %v2935, %v2935
        %vm3025 = vcmp.ne.f32.partialorder %v2976, %v2976
        %vm3026 = vcmp.ne.f32.partialorder %v2897, %v2897
        %vm3027 = vcmp.ne.f32.partialorder %v2938, %v2938
        %vm3028 = vcmp.ne.f32.partialorder %v2979, %v2979
        %vm3029 = vcmp.ne.f32.partialorder %v2900, %v2900
        %vm3030 = vcmp.ne.f32.partialorder %v2941, %v2941
        %vm3031 = vcmp.ne.f32.partialorder %v2982, %v2982
        %vm3032 = vcmp.ne.f32.partialorder %v2903, %v2903
        %vm3033 = vcmp.ne.f32.partialorder %v2944, %v2944
        %vm3034 = vcmp.ne.f32.partialorder %v2985, %v2985
        %v3035 = vadd.f32 %v2882, 0.0
        %v3036 = vadd.f32 %v2923, 0.0
        %v3037 = vadd.f32 %v2964, 0.0
        %v3038 = vadd.f32 %v2885, 0.0
        %v3039 = vadd.f32 %v2926, 0.0
        %v3040 = vadd.f32 %v2967, 0.0
        %v3041 = vadd.f32 %v2888, 0.0
        %v3042 = vadd.f32 %v2929, 0.0
        %v3043 = vadd.f32 %v2970, 0.0
        %v3044 = vadd.f32 %v2891, 0.0
        %v3045 = vadd.f32 %v2932, 0.0
        %v3046 = vadd.f32 %v2973, 0.0
        %v3047 = vadd.f32 %v2894, 0.0
        %v3048 = vadd.f32 %v2935, 0.0
        %v3049 = vadd.f32 %v2976, 0.0
        %v3050 = vadd.f32 %v2897, 0.0
        %v3051 = vadd.f32 %v2938, 0.0
        %v3052 = vadd.f32 %v2979, 0.0
        %v3053 = vadd.f32 %v2900, 0.0
        %v3054 = vadd.f32 %v2941, 0.0
        %v3055 = vadd.f32 %v2982, 0.0
        %v3056 = vadd.f32 %v2903, 0.0
        %v3057 = vadd.f32 %v2944, 0.0
        %v3058 = vadd.f32 %v2985, 0.0
        %v3059 = vand.u32 2147483647, %v2882
        %v3060 = vand.u32 2147483647, %v2923
        %v3061 = vand.u32 2147483647, %v2964
        %v3062 = vand.u32 2147483647, %v2885
        %v3063 = vand.u32 2147483647, %v2926
        %v3064 = vand.u32 2147483647, %v2967
        %v3065 = vand.u32 2147483647, %v2888
        %v3066 = vand.u32 2147483647, %v2929
        %v3067 = vand.u32 2147483647, %v2970
        %v3068 = vand.u32 2147483647, %v2891
        %v3069 = vand.u32 2147483647, %v2932
        %v3070 = vand.u32 2147483647, %v2973
        %v3071 = vand.u32 2147483647, %v2894
        %v3072 = vand.u32 2147483647, %v2935
        %v3073 = vand.u32 2147483647, %v2976
        %v3074 = vand.u32 2147483647, %v2897
        %v3075 = vand.u32 2147483647, %v2938
        %v3076 = vand.u32 2147483647, %v2979
        %v3077 = vand.u32 2147483647, %v2900
        %v3078 = vand.u32 2147483647, %v2941
        %v3079 = vand.u32 2147483647, %v2982
        %v3080 = vand.u32 2147483647, %v2903
        %v3081 = vand.u32 2147483647, %v2944
        %v3082 = vand.u32 2147483647, %v2985
        %v3083 = vsub.f32 0.0, %v3059
        %v3084 = vsub.f32 0.0, %v3060
        %v3085 = vsub.f32 0.0, %v3061
        %v3086 = vsub.f32 0.0, %v3062
        %v3087 = vsub.f32 0.0, %v3063
        %v3088 = vsub.f32 0.0, %v3064
        %v3089 = vsub.f32 0.0, %v3065
        %v3090 = vsub.f32 0.0, %v3066
        %v3091 = vsub.f32 0.0, %v3067
        %v3092 = vsub.f32 0.0, %v3068
        %v3093 = vsub.f32 0.0, %v3069
        %v3094 = vsub.f32 0.0, %v3070
        %v3095 = vsub.f32 0.0, %v3071
        %v3096 = vsub.f32 0.0, %v3072
        %v3097 = vsub.f32 0.0, %v3073
        %v3098 = vsub.f32 0.0, %v3074
        %v3099 = vsub.f32 0.0, %v3075
        %v3100 = vsub.f32 0.0, %v3076
        %v3101 = vsub.f32 0.0, %v3077
        %v3102 = vsub.f32 0.0, %v3078
        %v3103 = vsub.f32 0.0, %v3079
        %v3104 = vsub.f32 0.0, %v3080
        %v3105 = vsub.f32 0.0, %v3081
        %v3106 = vsub.f32 0.0, %v3082
        %v3107 = vmul.f32 %v3083, 1.442695
        %v3108 = vpow.pop %v3107
        %v3109 = vmul.f32 %v3084, 1.442695
        %v3110 = vpow.pop %v3109
        %v3111 = vmul.f32 %v3085, 1.442695
        %v3112 = vpow.pop %v3111
        %v3113 = vmul.f32 %v3086, 1.442695
        %v3114 = vpow.pop %v3113
        %v3115 = vmul.f32 %v3087, 1.442695
        %v3116 = vpow.pop %v3115
        %v3117 = vmul.f32 %v3088, 1.442695
        %v3118 = vpow.pop %v3117
        %v3119 = vmul.f32 %v3089, 1.442695
        %v3120 = vpow.pop %v3119
        %v3121 = vmul.f32 %v3090, 1.442695
        %v3122 = vpow.pop %v3121
        %v3123 = vmul.f32 %v3091, 1.442695
        %v3124 = vpow.pop %v3123
        %v3125 = vmul.f32 %v3092, 1.442695
        %v3126 = vpow.pop %v3125
        %v3127 = vmul.f32 %v3093, 1.442695
        %v3128 = vpow.pop %v3127
        %v3129 = vmul.f32 %v3094, 1.442695
        %v3130 = vpow.pop %v3129
        %v3131 = vmul.f32 %v3095, 1.442695
        %v3132 = vpow.pop %v3131
        %v3133 = vmul.f32 %v3096, 1.442695
        %v3134 = vpow.pop %v3133
        %v3135 = vmul.f32 %v3097, 1.442695
        %v3136 = vpow.pop %v3135
        %v3137 = vmul.f32 %v3098, 1.442695
        %v3138 = vpow.pop %v3137
        %v3139 = vmul.f32 %v3099, 1.442695
        %v3140 = vpow.pop %v3139
        %v3141 = vmul.f32 %v3100, 1.442695
        %v3142 = vpow.pop %v3141
        %v3143 = vmul.f32 %v3101, 1.442695
        %v3144 = vpow.pop %v3143
        %v3145 = vmul.f32 %v3102, 1.442695
        %v3146 = vpow.pop %v3145
        %v3147 = vmul.f32 %v3103, 1.442695
        %v3148 = vpow.pop %v3147
        %v3149 = vmul.f32 %v3104, 1.442695
        %v3150 = vpow.pop %v3149
        %v3151 = vmul.f32 %v3105, 1.442695
        %v3152 = vpow.pop %v3151
        %v3153 = vmul.f32 %v3106, 1.442695
        %v3154 = vpow.pop %v3153
        %v3155 = vadd.f32 %v3108, 1.0
        %v3156 = vlog2.pop %v3155
        %v3157 = vmul.f32 %v3156, 0.6931472
        %v3158 = vmul.f32 -0.5, %v3108
        %v3159 = vadd.f32 %v3158, 1.0
        %v3160 = vmul.f32 %v3159, %v3108
        %v3161 = vand.u32 2147483647, %v3108
        %vm3162 = vcmp.lt.f32.partialorder %v3161, 0.0004427343
        %v3163 = vsel %vm3162, %v3160, %v3157
        %v3164 = vadd.f32 %v3110, 1.0
        %v3165 = vlog2.pop %v3164
        %v3166 = vmul.f32 %v3165, 0.6931472
        %v3167 = vmul.f32 -0.5, %v3110
        %v3168 = vadd.f32 %v3167, 1.0
        %v3169 = vmul.f32 %v3168, %v3110
        %v3170 = vand.u32 2147483647, %v3110
        %vm3171 = vcmp.lt.f32.partialorder %v3170, 0.0004427343
        %v3172 = vsel %vm3171, %v3169, %v3166
        %v3173 = vadd.f32 %v3112, 1.0
        %v3174 = vlog2.pop %v3173
        %v3175 = vmul.f32 %v3174, 0.6931472
        %v3176 = vmul.f32 -0.5, %v3112
        %v3177 = vadd.f32 %v3176, 1.0
        %v3178 = vmul.f32 %v3177, %v3112
        %v3179 = vand.u32 2147483647, %v3112
        %vm3180 = vcmp.lt.f32.partialorder %v3179, 0.0004427343
        %v3181 = vsel %vm3180, %v3178, %v3175
        %v3182 = vadd.f32 %v3114, 1.0
        %v3183 = vlog2.pop %v3182
        %v3184 = vmul.f32 %v3183, 0.6931472
        %v3185 = vmul.f32 -0.5, %v3114
        %v3186 = vadd.f32 %v3185, 1.0
        %v3187 = vmul.f32 %v3186, %v3114
        %v3188 = vand.u32 2147483647, %v3114
        %vm3189 = vcmp.lt.f32.partialorder %v3188, 0.0004427343
        %v3190 = vsel %vm3189, %v3187, %v3184
        %v3191 = vadd.f32 %v3116, 1.0
        %v3192 = vlog2.pop %v3191
        %v3193 = vmul.f32 %v3192, 0.6931472
        %v3194 = vmul.f32 -0.5, %v3116
        %v3195 = vadd.f32 %v3194, 1.0
        %v3196 = vmul.f32 %v3195, %v3116
        %v3197 = vand.u32 2147483647, %v3116
        %vm3198 = vcmp.lt.f32.partialorder %v3197, 0.0004427343
        %v3199 = vsel %vm3198, %v3196, %v3193
        %v3200 = vadd.f32 %v3118, 1.0
        %v3201 = vlog2.pop %v3200
        %v3202 = vmul.f32 %v3201, 0.6931472
        %v3203 = vmul.f32 -0.5, %v3118
        %v3204 = vadd.f32 %v3203, 1.0
        %v3205 = vmul.f32 %v3204, %v3118
        %v3206 = vand.u32 2147483647, %v3118
        %vm3207 = vcmp.lt.f32.partialorder %v3206, 0.0004427343
        %v3208 = vsel %vm3207, %v3205, %v3202
        %v3209 = vadd.f32 %v3120, 1.0
        %v3210 = vlog2.pop %v3209
        %v3211 = vmul.f32 %v3210, 0.6931472
        %v3212 = vmul.f32 -0.5, %v3120
        %v3213 = vadd.f32 %v3212, 1.0
        %v3214 = vmul.f32 %v3213, %v3120
        %v3215 = vand.u32 2147483647, %v3120
        %vm3216 = vcmp.lt.f32.partialorder %v3215, 0.0004427343
        %v3217 = vsel %vm3216, %v3214, %v3211
        %v3218 = vadd.f32 %v3122, 1.0
        %v3219 = vlog2.pop %v3218
        %v3220 = vmul.f32 %v3219, 0.6931472
        %v3221 = vmul.f32 -0.5, %v3122
        %v3222 = vadd.f32 %v3221, 1.0
        %v3223 = vmul.f32 %v3222, %v3122
        %v3224 = vand.u32 2147483647, %v3122
        %vm3225 = vcmp.lt.f32.partialorder %v3224, 0.0004427343
        %v3226 = vsel %vm3225, %v3223, %v3220
        %v3227 = vadd.f32 %v3124, 1.0
        %v3228 = vlog2.pop %v3227
        %v3229 = vmul.f32 %v3228, 0.6931472
        %v3230 = vmul.f32 -0.5, %v3124
        %v3231 = vadd.f32 %v3230, 1.0
        %v3232 = vmul.f32 %v3231, %v3124
        %v3233 = vand.u32 2147483647, %v3124
        %vm3234 = vcmp.lt.f32.partialorder %v3233, 0.0004427343
        %v3235 = vsel %vm3234, %v3232, %v3229
        %v3236 = vadd.f32 %v3126, 1.0
        %v3237 = vlog2.pop %v3236
        %v3238 = vmul.f32 %v3237, 0.6931472
        %v3239 = vmul.f32 -0.5, %v3126
        %v3240 = vadd.f32 %v3239, 1.0
        %v3241 = vmul.f32 %v3240, %v3126
        %v3242 = vand.u32 2147483647, %v3126
        %vm3243 = vcmp.lt.f32.partialorder %v3242, 0.0004427343
        %v3244 = vsel %vm3243, %v3241, %v3238
        %v3245 = vadd.f32 %v3128, 1.0
        %v3246 = vlog2.pop %v3245
        %v3247 = vmul.f32 %v3246, 0.6931472
        %v3248 = vmul.f32 -0.5, %v3128
        %v3249 = vadd.f32 %v3248, 1.0
        %v3250 = vmul.f32 %v3249, %v3128
        %v3251 = vand.u32 2147483647, %v3128
        %vm3252 = vcmp.lt.f32.partialorder %v3251, 0.0004427343
        %v3253 = vsel %vm3252, %v3250, %v3247
        %v3254 = vadd.f32 %v3130, 1.0
        %v3255 = vlog2.pop %v3254
        %v3256 = vmul.f32 %v3255, 0.6931472
        %v3257 = vmul.f32 -0.5, %v3130
        %v3258 = vadd.f32 %v3257, 1.0
        %v3259 = vmul.f32 %v3258, %v3130
        %v3260 = vand.u32 2147483647, %v3130
        %vm3261 = vcmp.lt.f32.partialorder %v3260, 0.0004427343
        %v3262 = vsel %vm3261, %v3259, %v3256
        %v3263 = vadd.f32 %v3132, 1.0
        %v3264 = vlog2.pop %v3263
        %v3265 = vmul.f32 %v3264, 0.6931472
        %v3266 = vmul.f32 -0.5, %v3132
        %v3267 = vadd.f32 %v3266, 1.0
        %v3268 = vmul.f32 %v3267, %v3132
        %v3269 = vand.u32 2147483647, %v3132
        %vm3270 = vcmp.lt.f32.partialorder %v3269, 0.0004427343
        %v3271 = vsel %vm3270, %v3268, %v3265
        %v3272 = vadd.f32 %v3134, 1.0
        %v3273 = vlog2.pop %v3272
        %v3274 = vmul.f32 %v3273, 0.6931472
        %v3275 = vmul.f32 -0.5, %v3134
        %v3276 = vadd.f32 %v3275, 1.0
        %v3277 = vmul.f32 %v3276, %v3134
        %v3278 = vand.u32 2147483647, %v3134
        %vm3279 = vcmp.lt.f32.partialorder %v3278, 0.0004427343
        %v3280 = vsel %vm3279, %v3277, %v3274
        %v3281 = vadd.f32 %v3136, 1.0
        %v3282 = vlog2.pop %v3281
        %v3283 = vmul.f32 %v3282, 0.6931472
        %v3284 = vmul.f32 -0.5, %v3136
        %v3285 = vadd.f32 %v3284, 1.0
        %v3286 = vmul.f32 %v3285, %v3136
        %v3287 = vand.u32 2147483647, %v3136
        %vm3288 = vcmp.lt.f32.partialorder %v3287, 0.0004427343
        %v3289 = vsel %vm3288, %v3286, %v3283
        %v3290 = vadd.f32 %v3138, 1.0
        %v3291 = vlog2.pop %v3290
        %v3292 = vmul.f32 %v3291, 0.6931472
        %v3293 = vmul.f32 -0.5, %v3138
        %v3294 = vadd.f32 %v3293, 1.0
        %v3295 = vmul.f32 %v3294, %v3138
        %v3296 = vand.u32 2147483647, %v3138
        %vm3297 = vcmp.lt.f32.partialorder %v3296, 0.0004427343
        %v3298 = vsel %vm3297, %v3295, %v3292
        %v3299 = vadd.f32 %v3140, 1.0
        %v3300 = vlog2.pop %v3299
        %v3301 = vmul.f32 %v3300, 0.6931472
        %v3302 = vmul.f32 -0.5, %v3140
        %v3303 = vadd.f32 %v3302, 1.0
        %v3304 = vmul.f32 %v3303, %v3140
        %v3305 = vand.u32 2147483647, %v3140
        %vm3306 = vcmp.lt.f32.partialorder %v3305, 0.0004427343
        %v3307 = vsel %vm3306, %v3304, %v3301
        %v3308 = vadd.f32 %v3142, 1.0
        %v3309 = vlog2.pop %v3308
        %v3310 = vmul.f32 %v3309, 0.6931472
        %v3311 = vmul.f32 -0.5, %v3142
        %v3312 = vadd.f32 %v3311, 1.0
        %v3313 = vmul.f32 %v3312, %v3142
        %v3314 = vand.u32 2147483647, %v3142
        %vm3315 = vcmp.lt.f32.partialorder %v3314, 0.0004427343
        %v3316 = vsel %vm3315, %v3313, %v3310
        %v3317 = vadd.f32 %v3144, 1.0
        %v3318 = vlog2.pop %v3317
        %v3319 = vmul.f32 %v3318, 0.6931472
        %v3320 = vmul.f32 -0.5, %v3144
        %v3321 = vadd.f32 %v3320, 1.0
        %v3322 = vmul.f32 %v3321, %v3144
        %v3323 = vand.u32 2147483647, %v3144
        %vm3324 = vcmp.lt.f32.partialorder %v3323, 0.0004427343
        %v3325 = vsel %vm3324, %v3322, %v3319
        %v3326 = vadd.f32 %v3146, 1.0
        %v3327 = vlog2.pop %v3326
        %v3328 = vmul.f32 %v3327, 0.6931472
        %v3329 = vmul.f32 -0.5, %v3146
        %v3330 = vadd.f32 %v3329, 1.0
        %v3331 = vmul.f32 %v3330, %v3146
        %v3332 = vand.u32 2147483647, %v3146
        %vm3333 = vcmp.lt.f32.partialorder %v3332, 0.0004427343
        %v3334 = vsel %vm3333, %v3331, %v3328
        %v3335 = vadd.f32 %v3148, 1.0
        %v3336 = vlog2.pop %v3335
        %v3337 = vmul.f32 %v3336, 0.6931472
        %v3338 = vmul.f32 -0.5, %v3148
        %v3339 = vadd.f32 %v3338, 1.0
        %v3340 = vmul.f32 %v3339, %v3148
        %v3341 = vand.u32 2147483647, %v3148
        %vm3342 = vcmp.lt.f32.partialorder %v3341, 0.0004427343
        %v3343 = vsel %vm3342, %v3340, %v3337
        %v3344 = vadd.f32 %v3150, 1.0
        %v3345 = vlog2.pop %v3344
        %v3346 = vmul.f32 %v3345, 0.6931472
        %v3347 = vmul.f32 -0.5, %v3150
        %v3348 = vadd.f32 %v3347, 1.0
        %v3349 = vmul.f32 %v3348, %v3150
        %v3350 = vand.u32 2147483647, %v3150
        %vm3351 = vcmp.lt.f32.partialorder %v3350, 0.0004427343
        %v3352 = vsel %vm3351, %v3349, %v3346
        %v3353 = vadd.f32 %v3152, 1.0
        %v3354 = vlog2.pop %v3353
        %v3355 = vmul.f32 %v3354, 0.6931472
        %v3356 = vmul.f32 -0.5, %v3152
        %v3357 = vadd.f32 %v3356, 1.0
        %v3358 = vmul.f32 %v3357, %v3152
        %v3359 = vand.u32 2147483647, %v3152
        %vm3360 = vcmp.lt.f32.partialorder %v3359, 0.0004427343
        %v3361 = vsel %vm3360, %v3358, %v3355
        %v3362 = vadd.f32 %v3154, 1.0
        %v3363 = vlog2.pop %v3362
        %v3364 = vmul.f32 %v3363, 0.6931472
        %v3365 = vmul.f32 -0.5, %v3154
        %v3366 = vadd.f32 %v3365, 1.0
        %v3367 = vmul.f32 %v3366, %v3154
        %v3368 = vand.u32 2147483647, %v3154
        %vm3369 = vcmp.lt.f32.partialorder %v3368, 0.0004427343
        %v3370 = vsel %vm3369, %v3367, %v3364
        %v3371 = vadd.f32 %v2987, %v3163
        %v3372 = vadd.f32 %v2988, %v3172
        %v3373 = vadd.f32 %v2989, %v3181
        %v3374 = vadd.f32 %v2990, %v3190
        %v3375 = vadd.f32 %v2991, %v3199
        %v3376 = vadd.f32 %v2992, %v3208
        %v3377 = vadd.f32 %v2993, %v3217
        %v3378 = vadd.f32 %v2994, %v3226
        %v3379 = vadd.f32 %v2995, %v3235
        %v3380 = vadd.f32 %v2996, %v3244
        %v3381 = vadd.f32 %v2997, %v3253
        %v3382 = vadd.f32 %v2998, %v3262
        %v3383 = vadd.f32 %v2999, %v3271
        %v3384 = vadd.f32 %v3000, %v3280
        %v3385 = vadd.f32 %v3001, %v3289
        %v3386 = vadd.f32 %v3002, %v3298
        %v3387 = vadd.f32 %v3003, %v3307
        %v3388 = vadd.f32 %v3004, %v3316
        %v3389 = vadd.f32 %v3005, %v3325
        %v3390 = vadd.f32 %v3006, %v3334
        %v3391 = vadd.f32 %v3007, %v3343
        %v3392 = vadd.f32 %v3008, %v3352
        %v3393 = vadd.f32 %v3009, %v3361
        %v3394 = vadd.f32 %v3010, %v3370
        %v3395 = vsel %vm3011, %v3035, %v3371
        %v3396 = vsel %vm3012, %v3036, %v3372
        %v3397 = vsel %vm3013, %v3037, %v3373
        %v3398 = vsel %vm3014, %v3038, %v3374
        %v3399 = vsel %vm3015, %v3039, %v3375
        %v3400 = vsel %vm3016, %v3040, %v3376
        %v3401 = vsel %vm3017, %v3041, %v3377
        %v3402 = vsel %vm3018, %v3042, %v3378
        %v3403 = vsel %vm3019, %v3043, %v3379
        %v3404 = vsel %vm3020, %v3044, %v3380
        %v3405 = vsel %vm3021, %v3045, %v3381
        %v3406 = vsel %vm3022, %v3046, %v3382
        %v3407 = vsel %vm3023, %v3047, %v3383
        %v3408 = vsel %vm3024, %v3048, %v3384
        %v3409 = vsel %vm3025, %v3049, %v3385
        %v3410 = vsel %vm3026, %v3050, %v3386
        %v3411 = vsel %vm3027, %v3051, %v3387
        %v3412 = vsel %vm3028, %v3052, %v3388
        %v3413 = vsel %vm3029, %v3053, %v3389
        %v3414 = vsel %vm3030, %v3054, %v3390
        %v3415 = vsel %vm3031, %v3055, %v3391
        %v3416 = vsel %vm3032, %v3056, %v3392
        %v3417 = vsel %vm3033, %v3057, %v3393
        %v3418 = vsel %vm3034, %v3058, %v3394
        %v3419 = vld [vmem:[%s10] sm:$0xff]
        %v3420 = vld [vmem:[%s10 + $0x8] sm:$0xff]
        %v3421 = vld [vmem:[%s10 + $0x10] sm:$0xff]
        %v3446 = vrot.slane %v3396, 7
        %v3447 = vrot.slane %v3397, 6
        %v3448 = vrot.slane %v3399, 7
        %v3449 = vrot.slane %v3400, 6
        %v3450 = vrot.slane %v3402, 7
        %v3451 = vrot.slane %v3403, 6
        %v3452 = vrot.slane %v3405, 7
        %v3453 = vrot.slane %v3406, 6
        %v3454 = vrot.slane %v3408, 7
        %v3455 = vrot.slane %v3409, 6
        %v3456 = vrot.slane %v3411, 7
        %v3457 = vrot.slane %v3412, 6
        %v3458 = vrot.slane %v3414, 7
        %v3459 = vrot.slane %v3415, 6
        %v3460 = vrot.slane %v3417, 7
        %v3461 = vrot.slane %v3418, 6
        %vm3462 = vcmask 1040384
        %v3463 = vsel %vm3462, %v3395, %v3446
        %v3464 = vsel %vm2854, %v3463, %v3447
        %vm3465 = vcmask 1041409
        %v3466 = vsel %vm3465, %v3395, %v3446
        %vm3467 = vcmask 1042433
        %v3468 = vsel %vm3467, %v3466, %v3447
        %v3469 = vrot.slane %v3468, 1
        %vm3470 = vcmask 1042434
        %v3471 = vsel %vm3470, %v3395, %v3446
        %vm3472 = vcmask 1043458
        %v3473 = vsel %vm3472, %v3471, %v3447
        %v3474 = vrot.slane %v3473, 2
        %vm3475 = vcmask 1043459
        %v3476 = vsel %vm3475, %v3395, %v3446
        %vm3477 = vcmask 1044483
        %v3478 = vsel %vm3477, %v3476, %v3447
        %v3479 = vrot.slane %v3478, 3
        %vm3480 = vcmask 1044484
        %v3481 = vsel %vm3480, %v3395, %v3446
        %vm3482 = vcmask 1045508
        %v3483 = vsel %vm3482, %v3481, %v3447
        %v3484 = vrot.slane %v3483, 4
        %vm3485 = vcmask 1045509
        %v3486 = vsel %vm3485, %v3395, %v3446
        %vm3487 = vcmask 1046533
        %v3488 = vsel %vm3487, %v3486, %v3447
        %v3489 = vrot.slane %v3488, 5
        %vm3490 = vcmask 1046534
        %v3491 = vsel %vm3490, %v3395, %v3446
        %v3492 = vsel %vm1521, %v3447, %v3491
        %v3493 = vrot.slane %v3492, 6
        %v3494 = vsel %vm1352, %v3446, %v3395
        %vm3495 = vcmask 1046529
        %v3496 = vsel %vm3495, %v3447, %v3494
        %v3497 = vrot.slane %v3496, 7
        %v3498 = vsel %vm3462, %v3398, %v3448
        %v3499 = vsel %vm2854, %v3498, %v3449
        %v3500 = vsel %vm3465, %v3398, %v3448
        %v3501 = vsel %vm3467, %v3500, %v3449
        %v3502 = vrot.slane %v3501, 1
        %v3503 = vsel %vm3470, %v3398, %v3448
        %v3504 = vsel %vm3472, %v3503, %v3449
        %v3505 = vrot.slane %v3504, 2
        %v3506 = vsel %vm3475, %v3398, %v3448
        %v3507 = vsel %vm3477, %v3506, %v3449
        %v3508 = vrot.slane %v3507, 3
        %v3509 = vsel %vm3480, %v3398, %v3448
        %v3510 = vsel %vm3482, %v3509, %v3449
        %v3511 = vrot.slane %v3510, 4
        %v3512 = vsel %vm3485, %v3398, %v3448
        %v3513 = vsel %vm3487, %v3512, %v3449
        %v3514 = vrot.slane %v3513, 5
        %v3515 = vsel %vm3490, %v3398, %v3448
        %v3516 = vsel %vm1521, %v3449, %v3515
        %v3517 = vrot.slane %v3516, 6
        %v3518 = vsel %vm1352, %v3448, %v3398
        %v3519 = vsel %vm3495, %v3449, %v3518
        %v3520 = vrot.slane %v3519, 7
        %v3521 = vsel %vm3462, %v3401, %v3450
        %v3522 = vsel %vm2854, %v3521, %v3451
        %v3523 = vsel %vm3465, %v3401, %v3450
        %v3524 = vsel %vm3467, %v3523, %v3451
        %v3525 = vrot.slane %v3524, 1
        %v3526 = vsel %vm3470, %v3401, %v3450
        %v3527 = vsel %vm3472, %v3526, %v3451
        %v3528 = vrot.slane %v3527, 2
        %v3529 = vsel %vm3475, %v3401, %v3450
        %v3530 = vsel %vm3477, %v3529, %v3451
        %v3531 = vrot.slane %v3530, 3
        %v3532 = vsel %vm3480, %v3401, %v3450
        %v3533 = vsel %vm3482, %v3532, %v3451
        %v3534 = vrot.slane %v3533, 4
        %v3535 = vsel %vm3485, %v3401, %v3450
        %v3536 = vsel %vm3487, %v3535, %v3451
        %v3537 = vrot.slane %v3536, 5
        %v3538 = vsel %vm3490, %v3401, %v3450
        %v3539 = vsel %vm1521, %v3451, %v3538
        %v3540 = vrot.slane %v3539, 6
        %v3541 = vsel %vm1352, %v3450, %v3401
        %v3542 = vsel %vm3495, %v3451, %v3541
        %v3543 = vrot.slane %v3542, 7
        %v3544 = vsel %vm3462, %v3404, %v3452
        %v3545 = vsel %vm2854, %v3544, %v3453
        %v3546 = vsel %vm3465, %v3404, %v3452
        %v3547 = vsel %vm3467, %v3546, %v3453
        %v3548 = vrot.slane %v3547, 1
        %v3549 = vsel %vm3470, %v3404, %v3452
        %v3550 = vsel %vm3472, %v3549, %v3453
        %v3551 = vrot.slane %v3550, 2
        %v3552 = vsel %vm3475, %v3404, %v3452
        %v3553 = vsel %vm3477, %v3552, %v3453
        %v3554 = vrot.slane %v3553, 3
        %v3555 = vsel %vm3480, %v3404, %v3452
        %v3556 = vsel %vm3482, %v3555, %v3453
        %v3557 = vrot.slane %v3556, 4
        %v3558 = vsel %vm3485, %v3404, %v3452
        %v3559 = vsel %vm3487, %v3558, %v3453
        %v3560 = vrot.slane %v3559, 5
        %v3561 = vsel %vm3490, %v3404, %v3452
        %v3562 = vsel %vm1521, %v3453, %v3561
        %v3563 = vrot.slane %v3562, 6
        %v3564 = vsel %vm1352, %v3452, %v3404
        %v3565 = vsel %vm3495, %v3453, %v3564
        %v3566 = vrot.slane %v3565, 7
        %v3567 = vsel %vm3462, %v3407, %v3454
        %v3568 = vsel %vm2854, %v3567, %v3455
        %v3569 = vsel %vm3465, %v3407, %v3454
        %v3570 = vsel %vm3467, %v3569, %v3455
        %v3571 = vrot.slane %v3570, 1
        %v3572 = vsel %vm3470, %v3407, %v3454
        %v3573 = vsel %vm3472, %v3572, %v3455
        %v3574 = vrot.slane %v3573, 2
        %v3575 = vsel %vm3475, %v3407, %v3454
        %v3576 = vsel %vm3477, %v3575, %v3455
        %v3577 = vrot.slane %v3576, 3
        %v3578 = vsel %vm3480, %v3407, %v3454
        %v3579 = vsel %vm3482, %v3578, %v3455
        %v3580 = vrot.slane %v3579, 4
        %v3581 = vsel %vm3485, %v3407, %v3454
        %v3582 = vsel %vm3487, %v3581, %v3455
        %v3583 = vrot.slane %v3582, 5
        %v3584 = vsel %vm3490, %v3407, %v3454
        %v3585 = vsel %vm1521, %v3455, %v3584
        %v3586 = vrot.slane %v3585, 6
        %v3587 = vsel %vm1352, %v3454, %v3407
        %v3588 = vsel %vm3495, %v3455, %v3587
        %v3589 = vrot.slane %v3588, 7
        %v3590 = vsel %vm3462, %v3410, %v3456
        %v3591 = vsel %vm2854, %v3590, %v3457
        %v3592 = vsel %vm3465, %v3410, %v3456
        %v3593 = vsel %vm3467, %v3592, %v3457
        %v3594 = vrot.slane %v3593, 1
        %v3595 = vsel %vm3470, %v3410, %v3456
        %v3596 = vsel %vm3472, %v3595, %v3457
        %v3597 = vrot.slane %v3596, 2
        %v3598 = vsel %vm3475, %v3410, %v3456
        %v3599 = vsel %vm3477, %v3598, %v3457
        %v3600 = vrot.slane %v3599, 3
        %v3601 = vsel %vm3480, %v3410, %v3456
        %v3602 = vsel %vm3482, %v3601, %v3457
        %v3603 = vrot.slane %v3602, 4
        %v3604 = vsel %vm3485, %v3410, %v3456
        %v3605 = vsel %vm3487, %v3604, %v3457
        %v3606 = vrot.slane %v3605, 5
        %v3607 = vsel %vm3490, %v3410, %v3456
        %v3608 = vsel %vm1521, %v3457, %v3607
        %v3609 = vrot.slane %v3608, 6
        %v3610 = vsel %vm1352, %v3456, %v3410
        %v3611 = vsel %vm3495, %v3457, %v3610
        %v3612 = vrot.slane %v3611, 7
        %v3613 = vsel %vm3462, %v3413, %v3458
        %v3614 = vsel %vm2854, %v3613, %v3459
        %v3615 = vsel %vm3465, %v3413, %v3458
        %v3616 = vsel %vm3467, %v3615, %v3459
        %v3617 = vrot.slane %v3616, 1
        %v3618 = vsel %vm3470, %v3413, %v3458
        %v3619 = vsel %vm3472, %v3618, %v3459
        %v3620 = vrot.slane %v3619, 2
        %v3621 = vsel %vm3475, %v3413, %v3458
        %v3622 = vsel %vm3477, %v3621, %v3459
        %v3623 = vrot.slane %v3622, 3
        %v3624 = vsel %vm3480, %v3413, %v3458
        %v3625 = vsel %vm3482, %v3624, %v3459
        %v3626 = vrot.slane %v3625, 4
        %v3627 = vsel %vm3485, %v3413, %v3458
        %v3628 = vsel %vm3487, %v3627, %v3459
        %v3629 = vrot.slane %v3628, 5
        %v3630 = vsel %vm3490, %v3413, %v3458
        %v3631 = vsel %vm1521, %v3459, %v3630
        %v3632 = vrot.slane %v3631, 6
        %v3633 = vsel %vm1352, %v3458, %v3413
        %v3634 = vsel %vm3495, %v3459, %v3633
        %v3635 = vrot.slane %v3634, 7
        %v3636 = vsel %vm3462, %v3416, %v3460
        %v3637 = vsel %vm2854, %v3636, %v3461
        %v3638 = vsel %vm3465, %v3416, %v3460
        %v3639 = vsel %vm3467, %v3638, %v3461
        %v3640 = vrot.slane %v3639, 1
        %v3641 = vsel %vm3470, %v3416, %v3460
        %v3642 = vsel %vm3472, %v3641, %v3461
        %v3643 = vrot.slane %v3642, 2
        %v3644 = vsel %vm3475, %v3416, %v3460
        %v3645 = vsel %vm3477, %v3644, %v3461
        %v3646 = vrot.slane %v3645, 3
        %v3647 = vsel %vm3480, %v3416, %v3460
        %v3648 = vsel %vm3482, %v3647, %v3461
        %v3649 = vrot.slane %v3648, 4
        %v3650 = vsel %vm3485, %v3416, %v3460
        %v3651 = vsel %vm3487, %v3650, %v3461
        %v3652 = vrot.slane %v3651, 5
        %v3653 = vsel %vm3490, %v3416, %v3460
        %v3654 = vsel %vm1521, %v3461, %v3653
        %v3655 = vrot.slane %v3654, 6
        %v3656 = vsel %vm1352, %v3460, %v3416
        %v3657 = vsel %vm3495, %v3461, %v3656
        %v3658 = vrot.slane %v3657, 7
        %v3659 = vperm.slane %v3464, 0
        %v3660 = vperm.slane %v3464, 1
        %v3661 = vperm.slane %v3464, 2
        %v3662 = vperm.slane %v3469, 0
        %v3663 = vperm.slane %v3469, 1
        %v3664 = vperm.slane %v3469, 2
        %v3665 = vperm.slane %v3474, 0
        %v3666 = vperm.slane %v3474, 1
        %v3667 = vperm.slane %v3474, 2
        %v3668 = vperm.slane %v3479, 0
        %v3669 = vperm.slane %v3479, 1
        %v3670 = vperm.slane %v3479, 2
        %v3671 = vperm.slane %v3484, 0
        %v3672 = vperm.slane %v3484, 1
        %v3673 = vperm.slane %v3484, 2
        %v3674 = vperm.slane %v3489, 0
        %v3675 = vperm.slane %v3489, 1
        %v3676 = vperm.slane %v3489, 2
        %v3677 = vperm.slane %v3493, 0
        %v3678 = vperm.slane %v3493, 1
        %v3679 = vperm.slane %v3493, 2
        %v3680 = vperm.slane %v3497, 0
        %v3681 = vperm.slane %v3497, 1
        %v3682 = vperm.slane %v3497, 2
        %v3683 = vperm.slane %v3499, 0
        %v3684 = vperm.slane %v3499, 1
        %v3685 = vperm.slane %v3499, 2
        %v3686 = vperm.slane %v3502, 0
        %v3687 = vperm.slane %v3502, 1
        %v3688 = vperm.slane %v3502, 2
        %v3689 = vperm.slane %v3505, 0
        %v3690 = vperm.slane %v3505, 1
        %v3691 = vperm.slane %v3505, 2
        %v3692 = vperm.slane %v3508, 0
        %v3693 = vperm.slane %v3508, 1
        %v3694 = vperm.slane %v3508, 2
        %v3695 = vperm.slane %v3511, 0
        %v3696 = vperm.slane %v3511, 1
        %v3697 = vperm.slane %v3511, 2
        %v3698 = vperm.slane %v3514, 0
        %v3699 = vperm.slane %v3514, 1
        %v3700 = vperm.slane %v3514, 2
        %v3701 = vperm.slane %v3517, 0
        %v3702 = vperm.slane %v3517, 1
        %v3703 = vperm.slane %v3517, 2
        %v3704 = vperm.slane %v3520, 0
        %v3705 = vperm.slane %v3520, 1
        %v3706 = vperm.slane %v3520, 2
        %v3707 = vperm.slane %v3522, 0
        %v3708 = vperm.slane %v3522, 1
        %v3709 = vperm.slane %v3522, 2
        %v3710 = vperm.slane %v3525, 0
        %v3711 = vperm.slane %v3525, 1
        %v3712 = vperm.slane %v3525, 2
        %v3713 = vperm.slane %v3528, 0
        %v3714 = vperm.slane %v3528, 1
        %v3715 = vperm.slane %v3528, 2
        %v3716 = vperm.slane %v3531, 0
        %v3717 = vperm.slane %v3531, 1
        %v3718 = vperm.slane %v3531, 2
        %v3719 = vperm.slane %v3534, 0
        %v3720 = vperm.slane %v3534, 1
        %v3721 = vperm.slane %v3534, 2
        %v3722 = vperm.slane %v3537, 0
        %v3723 = vperm.slane %v3537, 1
        %v3724 = vperm.slane %v3537, 2
        %v3725 = vperm.slane %v3540, 0
        %v3726 = vperm.slane %v3540, 1
        %v3727 = vperm.slane %v3540, 2
        %v3728 = vperm.slane %v3543, 0
        %v3729 = vperm.slane %v3543, 1
        %v3730 = vperm.slane %v3543, 2
        %v3731 = vperm.slane %v3545, 0
        %v3732 = vperm.slane %v3545, 1
        %v3733 = vperm.slane %v3545, 2
        %v3734 = vperm.slane %v3548, 0
        %v3735 = vperm.slane %v3548, 1
        %v3736 = vperm.slane %v3548, 2
        %v3737 = vperm.slane %v3551, 0
        %v3738 = vperm.slane %v3551, 1
        %v3739 = vperm.slane %v3551, 2
        %v3740 = vperm.slane %v3554, 0
        %v3741 = vperm.slane %v3554, 1
        %v3742 = vperm.slane %v3554, 2
        %v3743 = vperm.slane %v3557, 0
        %v3744 = vperm.slane %v3557, 1
        %v3745 = vperm.slane %v3557, 2
        %v3746 = vperm.slane %v3560, 0
        %v3747 = vperm.slane %v3560, 1
        %v3748 = vperm.slane %v3560, 2
        %v3749 = vperm.slane %v3563, 0
        %v3750 = vperm.slane %v3563, 1
        %v3751 = vperm.slane %v3563, 2
        %v3752 = vperm.slane %v3566, 0
        %v3753 = vperm.slane %v3566, 1
        %v3754 = vperm.slane %v3566, 2
        %v3755 = vperm.slane %v3568, 0
        %v3756 = vperm.slane %v3568, 1
        %v3757 = vperm.slane %v3568, 2
        %v3758 = vperm.slane %v3571, 0
        %v3759 = vperm.slane %v3571, 1
        %v3760 = vperm.slane %v3571, 2
        %v3761 = vperm.slane %v3574, 0
        %v3762 = vperm.slane %v3574, 1
        %v3763 = vperm.slane %v3574, 2
        %v3764 = vperm.slane %v3577, 0
        %v3765 = vperm.slane %v3577, 1
        %v3766 = vperm.slane %v3577, 2
        %v3767 = vperm.slane %v3580, 0
        %v3768 = vperm.slane %v3580, 1
        %v3769 = vperm.slane %v3580, 2
        %v3770 = vperm.slane %v3583, 0
        %v3771 = vperm.slane %v3583, 1
        %v3772 = vperm.slane %v3583, 2
        %v3773 = vperm.slane %v3586, 0
        %v3774 = vperm.slane %v3586, 1
        %v3775 = vperm.slane %v3586, 2
        %v3776 = vperm.slane %v3589, 0
        %v3777 = vperm.slane %v3589, 1
        %v3778 = vperm.slane %v3589, 2
        %v3779 = vperm.slane %v3591, 0
        %v3780 = vperm.slane %v3591, 1
        %v3781 = vperm.slane %v3591, 2
        %v3782 = vperm.slane %v3594, 0
        %v3783 = vperm.slane %v3594, 1
        %v3784 = vperm.slane %v3594, 2
        %v3785 = vperm.slane %v3597, 0
        %v3786 = vperm.slane %v3597, 1
        %v3787 = vperm.slane %v3597, 2
        %v3788 = vperm.slane %v3600, 0
        %v3789 = vperm.slane %v3600, 1
        %v3790 = vperm.slane %v3600, 2
        %v3791 = vperm.slane %v3603, 0
        %v3792 = vperm.slane %v3603, 1
        %v3793 = vperm.slane %v3603, 2
        %v3794 = vperm.slane %v3606, 0
        %v3795 = vperm.slane %v3606, 1
        %v3796 = vperm.slane %v3606, 2
        %v3797 = vperm.slane %v3609, 0
        %v3798 = vperm.slane %v3609, 1
        %v3799 = vperm.slane %v3609, 2
        %v3800 = vperm.slane %v3612, 0
        %v3801 = vperm.slane %v3612, 1
        %v3802 = vperm.slane %v3612, 2
        %v3803 = vperm.slane %v3614, 0
        %v3804 = vperm.slane %v3614, 1
        %v3805 = vperm.slane %v3614, 2
        %v3806 = vperm.slane %v3617, 0
        %v3807 = vperm.slane %v3617, 1
        %v3808 = vperm.slane %v3617, 2
        %v3809 = vperm.slane %v3620, 0
        %v3810 = vperm.slane %v3620, 1
        %v3811 = vperm.slane %v3620, 2
        %v3812 = vperm.slane %v3623, 0
        %v3813 = vperm.slane %v3623, 1
        %v3814 = vperm.slane %v3623, 2
        %v3815 = vperm.slane %v3626, 0
        %v3816 = vperm.slane %v3626, 1
        %v3817 = vperm.slane %v3626, 2
        %v3818 = vperm.slane %v3629, 0
        %v3819 = vperm.slane %v3629, 1
        %v3820 = vperm.slane %v3629, 2
        %v3821 = vperm.slane %v3632, 0
        %v3822 = vperm.slane %v3632, 1
        %v3823 = vperm.slane %v3632, 2
        %v3824 = vperm.slane %v3635, 0
        %v3825 = vperm.slane %v3635, 1
        %v3826 = vperm.slane %v3635, 2
        %v3827 = vperm.slane %v3637, 0
        %v3828 = vperm.slane %v3637, 1
        %v3829 = vperm.slane %v3637, 2
        %v3830 = vperm.slane %v3640, 0
        %v3831 = vperm.slane %v3640, 1
        %v3832 = vperm.slane %v3640, 2
        %v3833 = vperm.slane %v3643, 0
        %v3834 = vperm.slane %v3643, 1
        %v3835 = vperm.slane %v3643, 2
        %v3836 = vperm.slane %v3646, 0
        %v3837 = vperm.slane %v3646, 1
        %v3838 = vperm.slane %v3646, 2
        %v3839 = vperm.slane %v3649, 0
        %v3840 = vperm.slane %v3649, 1
        %v3841 = vperm.slane %v3649, 2
        %v3842 = vperm.slane %v3652, 0
        %v3843 = vperm.slane %v3652, 1
        %v3844 = vperm.slane %v3652, 2
        %v3845 = vperm.slane %v3655, 0
        %v3846 = vperm.slane %v3655, 1
        %v3847 = vperm.slane %v3655, 2
        %v3848 = vperm.slane %v3658, 0
        %v3849 = vperm.slane %v3658, 1
        %v3850 = vperm.slane %v3658, 2
        %v4043 = vmul.f32 %v3659, %v3419
        %v4044 = vmul.f32 %v3660, %v3420
        %v4045 = vmul.f32 %v3661, %v3421
        %v4046 = vmul.f32 %v3662, %v3419
        %v4047 = vmul.f32 %v3663, %v3420
        %v4048 = vmul.f32 %v3664, %v3421
        %v4049 = vmul.f32 %v3665, %v3419
        %v4050 = vmul.f32 %v3666, %v3420
        %v4051 = vmul.f32 %v3667, %v3421
        %v4052 = vmul.f32 %v3668, %v3419
        %v4053 = vmul.f32 %v3669, %v3420
        %v4054 = vmul.f32 %v3670, %v3421
        %v4055 = vmul.f32 %v3671, %v3419
        %v4056 = vmul.f32 %v3672, %v3420
        %v4057 = vmul.f32 %v3673, %v3421
        %v4058 = vmul.f32 %v3674, %v3419
        %v4059 = vmul.f32 %v3675, %v3420
        %v4060 = vmul.f32 %v3676, %v3421
        %v4061 = vmul.f32 %v3677, %v3419
        %v4062 = vmul.f32 %v3678, %v3420
        %v4063 = vmul.f32 %v3679, %v3421
        %v4064 = vmul.f32 %v3680, %v3419
        %v4065 = vmul.f32 %v3681, %v3420
        %v4066 = vmul.f32 %v3682, %v3421
        %v4067 = vmul.f32 %v3683, %v3419
        %v4068 = vmul.f32 %v3684, %v3420
        %v4069 = vmul.f32 %v3685, %v3421
        %v4070 = vmul.f32 %v3686, %v3419
        %v4071 = vmul.f32 %v3687, %v3420
        %v4072 = vmul.f32 %v3688, %v3421
        %v4073 = vmul.f32 %v3689, %v3419
        %v4074 = vmul.f32 %v3690, %v3420
        %v4075 = vmul.f32 %v3691, %v3421
        %v4076 = vmul.f32 %v3692, %v3419
        %v4077 = vmul.f32 %v3693, %v3420
        %v4078 = vmul.f32 %v3694, %v3421
        %v4079 = vmul.f32 %v3695, %v3419
        %v4080 = vmul.f32 %v3696, %v3420
        %v4081 = vmul.f32 %v3697, %v3421
        %v4082 = vmul.f32 %v3698, %v3419
        %v4083 = vmul.f32 %v3699, %v3420
        %v4084 = vmul.f32 %v3700, %v3421
        %v4085 = vmul.f32 %v3701, %v3419
        %v4086 = vmul.f32 %v3702, %v3420
        %v4087 = vmul.f32 %v3703, %v3421
        %v4088 = vmul.f32 %v3704, %v3419
        %v4089 = vmul.f32 %v3705, %v3420
        %v4090 = vmul.f32 %v3706, %v3421
        %v4091 = vmul.f32 %v3707, %v3419
        %v4092 = vmul.f32 %v3708, %v3420
        %v4093 = vmul.f32 %v3709, %v3421
        %v4094 = vmul.f32 %v3710, %v3419
        %v4095 = vmul.f32 %v3711, %v3420
        %v4096 = vmul.f32 %v3712, %v3421
        %v4097 = vmul.f32 %v3713, %v3419
        %v4098 = vmul.f32 %v3714, %v3420
        %v4099 = vmul.f32 %v3715, %v3421
        %v4100 = vmul.f32 %v3716, %v3419
        %v4101 = vmul.f32 %v3717, %v3420
        %v4102 = vmul.f32 %v3718, %v3421
        %v4103 = vmul.f32 %v3719, %v3419
        %v4104 = vmul.f32 %v3720, %v3420
        %v4105 = vmul.f32 %v3721, %v3421
        %v4106 = vmul.f32 %v3722, %v3419
        %v4107 = vmul.f32 %v3723, %v3420
        %v4108 = vmul.f32 %v3724, %v3421
        %v4109 = vmul.f32 %v3725, %v3419
        %v4110 = vmul.f32 %v3726, %v3420
        %v4111 = vmul.f32 %v3727, %v3421
        %v4112 = vmul.f32 %v3728, %v3419
        %v4113 = vmul.f32 %v3729, %v3420
        %v4114 = vmul.f32 %v3730, %v3421
        %v4115 = vmul.f32 %v3731, %v3419
        %v4116 = vmul.f32 %v3732, %v3420
        %v4117 = vmul.f32 %v3733, %v3421
        %v4118 = vmul.f32 %v3734, %v3419
        %v4119 = vmul.f32 %v3735, %v3420
        %v4120 = vmul.f32 %v3736, %v3421
        %v4121 = vmul.f32 %v3737, %v3419
        %v4122 = vmul.f32 %v3738, %v3420
        %v4123 = vmul.f32 %v3739, %v3421
        %v4124 = vmul.f32 %v3740, %v3419
        %v4125 = vmul.f32 %v3741, %v3420
        %v4126 = vmul.f32 %v3742, %v3421
        %v4127 = vmul.f32 %v3743, %v3419
        %v4128 = vmul.f32 %v3744, %v3420
        %v4129 = vmul.f32 %v3745, %v3421
        %v4130 = vmul.f32 %v3746, %v3419
        %v4131 = vmul.f32 %v3747, %v3420
        %v4132 = vmul.f32 %v3748, %v3421
        %v4133 = vmul.f32 %v3749, %v3419
        %v4134 = vmul.f32 %v3750, %v3420
        %v4135 = vmul.f32 %v3751, %v3421
        %v4136 = vmul.f32 %v3752, %v3419
        %v4137 = vmul.f32 %v3753, %v3420
        %v4138 = vmul.f32 %v3754, %v3421
        %v4139 = vmul.f32 %v3755, %v3419
        %v4140 = vmul.f32 %v3756, %v3420
        %v4141 = vmul.f32 %v3757, %v3421
        %v4142 = vmul.f32 %v3758, %v3419
        %v4143 = vmul.f32 %v3759, %v3420
        %v4144 = vmul.f32 %v3760, %v3421
        %v4145 = vmul.f32 %v3761, %v3419
        %v4146 = vmul.f32 %v3762, %v3420
        %v4147 = vmul.f32 %v3763, %v3421
        %v4148 = vmul.f32 %v3764, %v3419
        %v4149 = vmul.f32 %v3765, %v3420
        %v4150 = vmul.f32 %v3766, %v3421
        %v4151 = vmul.f32 %v3767, %v3419
        %v4152 = vmul.f32 %v3768, %v3420
        %v4153 = vmul.f32 %v3769, %v3421
        %v4154 = vmul.f32 %v3770, %v3419
        %v4155 = vmul.f32 %v3771, %v3420
        %v4156 = vmul.f32 %v3772, %v3421
        %v4157 = vmul.f32 %v3773, %v3419
        %v4158 = vmul.f32 %v3774, %v3420
        %v4159 = vmul.f32 %v3775, %v3421
        %v4160 = vmul.f32 %v3776, %v3419
        %v4161 = vmul.f32 %v3777, %v3420
        %v4162 = vmul.f32 %v3778, %v3421
        %v4163 = vmul.f32 %v3779, %v3419
        %v4164 = vmul.f32 %v3780, %v3420
        %v4165 = vmul.f32 %v3781, %v3421
        %v4166 = vmul.f32 %v3782, %v3419
        %v4167 = vmul.f32 %v3783, %v3420
        %v4168 = vmul.f32 %v3784, %v3421
        %v4169 = vmul.f32 %v3785, %v3419
        %v4170 = vmul.f32 %v3786, %v3420
        %v4171 = vmul.f32 %v3787, %v3421
        %v4172 = vmul.f32 %v3788, %v3419
        %v4173 = vmul.f32 %v3789, %v3420
        %v4174 = vmul.f32 %v3790, %v3421
        %v4175 = vmul.f32 %v3791, %v3419
        %v4176 = vmul.f32 %v3792, %v3420
        %v4177 = vmul.f32 %v3793, %v3421
        %v4178 = vmul.f32 %v3794, %v3419
        %v4179 = vmul.f32 %v3795, %v3420
        %v4180 = vmul.f32 %v3796, %v3421
        %v4181 = vmul.f32 %v3797, %v3419
        %v4182 = vmul.f32 %v3798, %v3420
        %v4183 = vmul.f32 %v3799, %v3421
        %v4184 = vmul.f32 %v3800, %v3419
        %v4185 = vmul.f32 %v3801, %v3420
        %v4186 = vmul.f32 %v3802, %v3421
        %v4187 = vmul.f32 %v3803, %v3419
        %v4188 = vmul.f32 %v3804, %v3420
        %v4189 = vmul.f32 %v3805, %v3421
        %v4190 = vmul.f32 %v3806, %v3419
        %v4191 = vmul.f32 %v3807, %v3420
        %v4192 = vmul.f32 %v3808, %v3421
        %v4193 = vmul.f32 %v3809, %v3419
        %v4194 = vmul.f32 %v3810, %v3420
        %v4195 = vmul.f32 %v3811, %v3421
        %v4196 = vmul.f32 %v3812, %v3419
        %v4197 = vmul.f32 %v3813, %v3420
        %v4198 = vmul.f32 %v3814, %v3421
        %v4199 = vmul.f32 %v3815, %v3419
        %v4200 = vmul.f32 %v3816, %v3420
        %v4201 = vmul.f32 %v3817, %v3421
        %v4202 = vmul.f32 %v3818, %v3419
        %v4203 = vmul.f32 %v3819, %v3420
        %v4204 = vmul.f32 %v3820, %v3421
        %v4205 = vmul.f32 %v3821, %v3419
        %v4206 = vmul.f32 %v3822, %v3420
        %v4207 = vmul.f32 %v3823, %v3421
        %v4208 = vmul.f32 %v3824, %v3419
        %v4209 = vmul.f32 %v3825, %v3420
        %v4210 = vmul.f32 %v3826, %v3421
        %v4211 = vmul.f32 %v3827, %v3419
        %v4212 = vmul.f32 %v3828, %v3420
        %v4213 = vmul.f32 %v3829, %v3421
        %v4214 = vmul.f32 %v3830, %v3419
        %v4215 = vmul.f32 %v3831, %v3420
        %v4216 = vmul.f32 %v3832, %v3421
        %v4217 = vmul.f32 %v3833, %v3419
        %v4218 = vmul.f32 %v3834, %v3420
        %v4219 = vmul.f32 %v3835, %v3421
        %v4220 = vmul.f32 %v3836, %v3419
        %v4221 = vmul.f32 %v3837, %v3420
        %v4222 = vmul.f32 %v3838, %v3421
        %v4223 = vmul.f32 %v3839, %v3419
        %v4224 = vmul.f32 %v3840, %v3420
        %v4225 = vmul.f32 %v3841, %v3421
        %v4226 = vmul.f32 %v3842, %v3419
        %v4227 = vmul.f32 %v3843, %v3420
        %v4228 = vmul.f32 %v3844, %v3421
        %v4229 = vmul.f32 %v3845, %v3419
        %v4230 = vmul.f32 %v3846, %v3420
        %v4231 = vmul.f32 %v3847, %v3421
        %v4232 = vmul.f32 %v3848, %v3419
        %v4233 = vmul.f32 %v3849, %v3420
        %v4234 = vmul.f32 %v3850, %v3421
        %v4235 = vmul.f32 %v4043, 1.442695
        %v4236 = vpow.pop %v4235
        %v4237 = vmul.f32 %v4044, 1.442695
        %v4238 = vpow.pop %v4237
        %v4239 = vmul.f32 %v4045, 1.442695
        %v4240 = vpow.pop %v4239
        %v4241 = vmul.f32 %v4046, 1.442695
        %v4242 = vpow.pop %v4241
        %v4243 = vmul.f32 %v4047, 1.442695
        %v4244 = vpow.pop %v4243
        %v4245 = vmul.f32 %v4048, 1.442695
        %v4246 = vpow.pop %v4245
        %v4247 = vmul.f32 %v4049, 1.442695
        %v4248 = vpow.pop %v4247
        %v4249 = vmul.f32 %v4050, 1.442695
        %v4250 = vpow.pop %v4249
        %v4251 = vmul.f32 %v4051, 1.442695
        %v4252 = vpow.pop %v4251
        %v4253 = vmul.f32 %v4052, 1.442695
        %v4254 = vpow.pop %v4253
        %v4255 = vmul.f32 %v4053, 1.442695
        %v4256 = vpow.pop %v4255
        %v4257 = vmul.f32 %v4054, 1.442695
        %v4258 = vpow.pop %v4257
        %v4259 = vmul.f32 %v4055, 1.442695
        %v4260 = vpow.pop %v4259
        %v4261 = vmul.f32 %v4056, 1.442695
        %v4262 = vpow.pop %v4261
        %v4263 = vmul.f32 %v4057, 1.442695
        %v4264 = vpow.pop %v4263
        %v4265 = vmul.f32 %v4058, 1.442695
        %v4266 = vpow.pop %v4265
        %v4267 = vmul.f32 %v4059, 1.442695
        %v4268 = vpow.pop %v4267
        %v4269 = vmul.f32 %v4060, 1.442695
        %v4270 = vpow.pop %v4269
        %v4271 = vmul.f32 %v4061, 1.442695
        %v4272 = vpow.pop %v4271
        %v4273 = vmul.f32 %v4062, 1.442695
        %v4274 = vpow.pop %v4273
        %v4275 = vmul.f32 %v4063, 1.442695
        %v4276 = vpow.pop %v4275
        %v4277 = vmul.f32 %v4064, 1.442695
        %v4278 = vpow.pop %v4277
        %v4279 = vmul.f32 %v4065, 1.442695
        %v4280 = vpow.pop %v4279
        %v4281 = vmul.f32 %v4066, 1.442695
        %v4282 = vpow.pop %v4281
        %v4283 = vmul.f32 %v4067, 1.442695
        %v4284 = vpow.pop %v4283
        %v4285 = vmul.f32 %v4068, 1.442695
        %v4286 = vpow.pop %v4285
        %v4287 = vmul.f32 %v4069, 1.442695
        %v4288 = vpow.pop %v4287
        %v4289 = vmul.f32 %v4070, 1.442695
        %v4290 = vpow.pop %v4289
        %v4291 = vmul.f32 %v4071, 1.442695
        %v4292 = vpow.pop %v4291
        %v4293 = vmul.f32 %v4072, 1.442695
        %v4294 = vpow.pop %v4293
        %v4295 = vmul.f32 %v4073, 1.442695
        %v4296 = vpow.pop %v4295
        %v4297 = vmul.f32 %v4074, 1.442695
        %v4298 = vpow.pop %v4297
        %v4299 = vmul.f32 %v4075, 1.442695
        %v4300 = vpow.pop %v4299
        %v4301 = vmul.f32 %v4076, 1.442695
        %v4302 = vpow.pop %v4301
        %v4303 = vmul.f32 %v4077, 1.442695
        %v4304 = vpow.pop %v4303
        %v4305 = vmul.f32 %v4078, 1.442695
        %v4306 = vpow.pop %v4305
        %v4307 = vmul.f32 %v4079, 1.442695
        %v4308 = vpow.pop %v4307
        %v4309 = vmul.f32 %v4080, 1.442695
        %v4310 = vpow.pop %v4309
        %v4311 = vmul.f32 %v4081, 1.442695
        %v4312 = vpow.pop %v4311
        %v4313 = vmul.f32 %v4082, 1.442695
        %v4314 = vpow.pop %v4313
        %v4315 = vmul.f32 %v4083, 1.442695
        %v4316 = vpow.pop %v4315
        %v4317 = vmul.f32 %v4084, 1.442695
        %v4318 = vpow.pop %v4317
        %v4319 = vmul.f32 %v4085, 1.442695
        %v4320 = vpow.pop %v4319
        %v4321 = vmul.f32 %v4086, 1.442695
        %v4322 = vpow.pop %v4321
        %v4323 = vmul.f32 %v4087, 1.442695
        %v4324 = vpow.pop %v4323
        %v4325 = vmul.f32 %v4088, 1.442695
        %v4326 = vpow.pop %v4325
        %v4327 = vmul.f32 %v4089, 1.442695
        %v4328 = vpow.pop %v4327
        %v4329 = vmul.f32 %v4090, 1.442695
        %v4330 = vpow.pop %v4329
        %v4331 = vmul.f32 %v4091, 1.442695
        %v4332 = vpow.pop %v4331
        %v4333 = vmul.f32 %v4092, 1.442695
        %v4334 = vpow.pop %v4333
        %v4335 = vmul.f32 %v4093, 1.442695
        %v4336 = vpow.pop %v4335
        %v4337 = vmul.f32 %v4094, 1.442695
        %v4338 = vpow.pop %v4337
        %v4339 = vmul.f32 %v4095, 1.442695
        %v4340 = vpow.pop %v4339
        %v4341 = vmul.f32 %v4096, 1.442695
        %v4342 = vpow.pop %v4341
        %v4343 = vmul.f32 %v4097, 1.442695
        %v4344 = vpow.pop %v4343
        %v4345 = vmul.f32 %v4098, 1.442695
        %v4346 = vpow.pop %v4345
        %v4347 = vmul.f32 %v4099, 1.442695
        %v4348 = vpow.pop %v4347
        %v4349 = vmul.f32 %v4100, 1.442695
        %v4350 = vpow.pop %v4349
        %v4351 = vmul.f32 %v4101, 1.442695
        %v4352 = vpow.pop %v4351
        %v4353 = vmul.f32 %v4102, 1.442695
        %v4354 = vpow.pop %v4353
        %v4355 = vmul.f32 %v4103, 1.442695
        %v4356 = vpow.pop %v4355
        %v4357 = vmul.f32 %v4104, 1.442695
        %v4358 = vpow.pop %v4357
        %v4359 = vmul.f32 %v4105, 1.442695
        %v4360 = vpow.pop %v4359
        %v4361 = vmul.f32 %v4106, 1.442695
        %v4362 = vpow.pop %v4361
        %v4363 = vmul.f32 %v4107, 1.442695
        %v4364 = vpow.pop %v4363
        %v4365 = vmul.f32 %v4108, 1.442695
        %v4366 = vpow.pop %v4365
        %v4367 = vmul.f32 %v4109, 1.442695
        %v4368 = vpow.pop %v4367
        %v4369 = vmul.f32 %v4110, 1.442695
        %v4370 = vpow.pop %v4369
        %v4371 = vmul.f32 %v4111, 1.442695
        %v4372 = vpow.pop %v4371
        %v4373 = vmul.f32 %v4112, 1.442695
        %v4374 = vpow.pop %v4373
        %v4375 = vmul.f32 %v4113, 1.442695
        %v4376 = vpow.pop %v4375
        %v4377 = vmul.f32 %v4114, 1.442695
        %v4378 = vpow.pop %v4377
        %v4379 = vmul.f32 %v4115, 1.442695
        %v4380 = vpow.pop %v4379
        %v4381 = vmul.f32 %v4116, 1.442695
        %v4382 = vpow.pop %v4381
        %v4383 = vmul.f32 %v4117, 1.442695
        %v4384 = vpow.pop %v4383
        %v4385 = vmul.f32 %v4118, 1.442695
        %v4386 = vpow.pop %v4385
        %v4387 = vmul.f32 %v4119, 1.442695
        %v4388 = vpow.pop %v4387
        %v4389 = vmul.f32 %v4120, 1.442695
        %v4390 = vpow.pop %v4389
        %v4391 = vmul.f32 %v4121, 1.442695
        %v4392 = vpow.pop %v4391
        %v4393 = vmul.f32 %v4122, 1.442695
        %v4394 = vpow.pop %v4393
        %v4395 = vmul.f32 %v4123, 1.442695
        %v4396 = vpow.pop %v4395
        %v4397 = vmul.f32 %v4124, 1.442695
        %v4398 = vpow.pop %v4397
        %v4399 = vmul.f32 %v4125, 1.442695
        %v4400 = vpow.pop %v4399
        %v4401 = vmul.f32 %v4126, 1.442695
        %v4402 = vpow.pop %v4401
        %v4403 = vmul.f32 %v4127, 1.442695
        %v4404 = vpow.pop %v4403
        %v4405 = vmul.f32 %v4128, 1.442695
        %v4406 = vpow.pop %v4405
        %v4407 = vmul.f32 %v4129, 1.442695
        %v4408 = vpow.pop %v4407
        %v4409 = vmul.f32 %v4130, 1.442695
        %v4410 = vpow.pop %v4409
        %v4411 = vmul.f32 %v4131, 1.442695
        %v4412 = vpow.pop %v4411
        %v4413 = vmul.f32 %v4132, 1.442695
        %v4414 = vpow.pop %v4413
        %v4415 = vmul.f32 %v4133, 1.442695
        %v4416 = vpow.pop %v4415
        %v4417 = vmul.f32 %v4134, 1.442695
        %v4418 = vpow.pop %v4417
        %v4419 = vmul.f32 %v4135, 1.442695
        %v4420 = vpow.pop %v4419
        %v4421 = vmul.f32 %v4136, 1.442695
        %v4422 = vpow.pop %v4421
        %v4423 = vmul.f32 %v4137, 1.442695
        %v4424 = vpow.pop %v4423
        %v4425 = vmul.f32 %v4138, 1.442695
        %v4426 = vpow.pop %v4425
        %v4427 = vmul.f32 %v4139, 1.442695
        %v4428 = vpow.pop %v4427
        %v4429 = vmul.f32 %v4140, 1.442695
        %v4430 = vpow.pop %v4429
        %v4431 = vmul.f32 %v4141, 1.442695
        %v4432 = vpow.pop %v4431
        %v4433 = vmul.f32 %v4142, 1.442695
        %v4434 = vpow.pop %v4433
        %v4435 = vmul.f32 %v4143, 1.442695
        %v4436 = vpow.pop %v4435
        %v4437 = vmul.f32 %v4144, 1.442695
        %v4438 = vpow.pop %v4437
        %v4439 = vmul.f32 %v4145, 1.442695
        %v4440 = vpow.pop %v4439
        %v4441 = vmul.f32 %v4146, 1.442695
        %v4442 = vpow.pop %v4441
        %v4443 = vmul.f32 %v4147, 1.442695
        %v4444 = vpow.pop %v4443
        %v4445 = vmul.f32 %v4148, 1.442695
        %v4446 = vpow.pop %v4445
        %v4447 = vmul.f32 %v4149, 1.442695
        %v4448 = vpow.pop %v4447
        %v4449 = vmul.f32 %v4150, 1.442695
        %v4450 = vpow.pop %v4449
        %v4451 = vmul.f32 %v4151, 1.442695
        %v4452 = vpow.pop %v4451
        %v4453 = vmul.f32 %v4152, 1.442695
        %v4454 = vpow.pop %v4453
        %v4455 = vmul.f32 %v4153, 1.442695
        %v4456 = vpow.pop %v4455
        %v4457 = vmul.f32 %v4154, 1.442695
        %v4458 = vpow.pop %v4457
        %v4459 = vmul.f32 %v4155, 1.442695
        %v4460 = vpow.pop %v4459
        %v4461 = vmul.f32 %v4156, 1.442695
        %v4462 = vpow.pop %v4461
        %v4463 = vmul.f32 %v4157, 1.442695
        %v4464 = vpow.pop %v4463
        %v4465 = vmul.f32 %v4158, 1.442695
        %v4466 = vpow.pop %v4465
        %v4467 = vmul.f32 %v4159, 1.442695
        %v4468 = vpow.pop %v4467
        %v4469 = vmul.f32 %v4160, 1.442695
        %v4470 = vpow.pop %v4469
        %v4471 = vmul.f32 %v4161, 1.442695
        %v4472 = vpow.pop %v4471
        %v4473 = vmul.f32 %v4162, 1.442695
        %v4474 = vpow.pop %v4473
        %v4475 = vmul.f32 %v4163, 1.442695
        %v4476 = vpow.pop %v4475
        %v4477 = vmul.f32 %v4164, 1.442695
        %v4478 = vpow.pop %v4477
        %v4479 = vmul.f32 %v4165, 1.442695
        %v4480 = vpow.pop %v4479
        %v4481 = vmul.f32 %v4166, 1.442695
        %v4482 = vpow.pop %v4481
        %v4483 = vmul.f32 %v4167, 1.442695
        %v4484 = vpow.pop %v4483
        %v4485 = vmul.f32 %v4168, 1.442695
        %v4486 = vpow.pop %v4485
        %v4487 = vmul.f32 %v4169, 1.442695
        %v4488 = vpow.pop %v4487
        %v4489 = vmul.f32 %v4170, 1.442695
        %v4490 = vpow.pop %v4489
        %v4491 = vmul.f32 %v4171, 1.442695
        %v4492 = vpow.pop %v4491
        %v4493 = vmul.f32 %v4172, 1.442695
        %v4494 = vpow.pop %v4493
        %v4495 = vmul.f32 %v4173, 1.442695
        %v4496 = vpow.pop %v4495
        %v4497 = vmul.f32 %v4174, 1.442695
        %v4498 = vpow.pop %v4497
        %v4499 = vmul.f32 %v4175, 1.442695
        %v4500 = vpow.pop %v4499
        %v4501 = vmul.f32 %v4176, 1.442695
        %v4502 = vpow.pop %v4501
        %v4503 = vmul.f32 %v4177, 1.442695
        %v4504 = vpow.pop %v4503
        %v4505 = vmul.f32 %v4178, 1.442695
        %v4506 = vpow.pop %v4505
        %v4507 = vmul.f32 %v4179, 1.442695
        %v4508 = vpow.pop %v4507
        %v4509 = vmul.f32 %v4180, 1.442695
        %v4510 = vpow.pop %v4509
        %v4511 = vmul.f32 %v4181, 1.442695
        %v4512 = vpow.pop %v4511
        %v4513 = vmul.f32 %v4182, 1.442695
        %v4514 = vpow.pop %v4513
        %v4515 = vmul.f32 %v4183, 1.442695
        %v4516 = vpow.pop %v4515
        %v4517 = vmul.f32 %v4184, 1.442695
        %v4518 = vpow.pop %v4517
        %v4519 = vmul.f32 %v4185, 1.442695
        %v4520 = vpow.pop %v4519
        %v4521 = vmul.f32 %v4186, 1.442695
        %v4522 = vpow.pop %v4521
        %v4523 = vmul.f32 %v4187, 1.442695
        %v4524 = vpow.pop %v4523
        %v4525 = vmul.f32 %v4188, 1.442695
        %v4526 = vpow.pop %v4525
        %v4527 = vmul.f32 %v4189, 1.442695
        %v4528 = vpow.pop %v4527
        %v4529 = vmul.f32 %v4190, 1.442695
        %v4530 = vpow.pop %v4529
        %v4531 = vmul.f32 %v4191, 1.442695
        %v4532 = vpow.pop %v4531
        %v4533 = vmul.f32 %v4192, 1.442695
        %v4534 = vpow.pop %v4533
        %v4535 = vmul.f32 %v4193, 1.442695
        %v4536 = vpow.pop %v4535
        %v4537 = vmul.f32 %v4194, 1.442695
        %v4538 = vpow.pop %v4537
        %v4539 = vmul.f32 %v4195, 1.442695
        %v4540 = vpow.pop %v4539
        %v4541 = vmul.f32 %v4196, 1.442695
        %v4542 = vpow.pop %v4541
        %v4543 = vmul.f32 %v4197, 1.442695
        %v4544 = vpow.pop %v4543
        %v4545 = vmul.f32 %v4198, 1.442695
        %v4546 = vpow.pop %v4545
        %v4547 = vmul.f32 %v4199, 1.442695
        %v4548 = vpow.pop %v4547
        %v4549 = vmul.f32 %v4200, 1.442695
        %v4550 = vpow.pop %v4549
        %v4551 = vmul.f32 %v4201, 1.442695
        %v4552 = vpow.pop %v4551
        %v4553 = vmul.f32 %v4202, 1.442695
        %v4554 = vpow.pop %v4553
        %v4555 = vmul.f32 %v4203, 1.442695
        %v4556 = vpow.pop %v4555
        %v4557 = vmul.f32 %v4204, 1.442695
        %v4558 = vpow.pop %v4557
        %v4559 = vmul.f32 %v4205, 1.442695
        %v4560 = vpow.pop %v4559
        %v4561 = vmul.f32 %v4206, 1.442695
        %v4562 = vpow.pop %v4561
        %v4563 = vmul.f32 %v4207, 1.442695
        %v4564 = vpow.pop %v4563
        %v4565 = vmul.f32 %v4208, 1.442695
        %v4566 = vpow.pop %v4565
        %v4567 = vmul.f32 %v4209, 1.442695
        %v4568 = vpow.pop %v4567
        %v4569 = vmul.f32 %v4210, 1.442695
        %v4570 = vpow.pop %v4569
        %v4571 = vmul.f32 %v4211, 1.442695
        %v4572 = vpow.pop %v4571
        %v4573 = vmul.f32 %v4212, 1.442695
        %v4574 = vpow.pop %v4573
        %v4575 = vmul.f32 %v4213, 1.442695
        %v4576 = vpow.pop %v4575
        %v4577 = vmul.f32 %v4214, 1.442695
        %v4578 = vpow.pop %v4577
        %v4579 = vmul.f32 %v4215, 1.442695
        %v4580 = vpow.pop %v4579
        %v4581 = vmul.f32 %v4216, 1.442695
        %v4582 = vpow.pop %v4581
        %v4583 = vmul.f32 %v4217, 1.442695
        %v4584 = vpow.pop %v4583
        %v4585 = vmul.f32 %v4218, 1.442695
        %v4586 = vpow.pop %v4585
        %v4587 = vmul.f32 %v4219, 1.442695
        %v4588 = vpow.pop %v4587
        %v4589 = vmul.f32 %v4220, 1.442695
        %v4590 = vpow.pop %v4589
        %v4591 = vmul.f32 %v4221, 1.442695
        %v4592 = vpow.pop %v4591
        %v4593 = vmul.f32 %v4222, 1.442695
        %v4594 = vpow.pop %v4593
        %v4595 = vmul.f32 %v4223, 1.442695
        %v4596 = vpow.pop %v4595
        %v4597 = vmul.f32 %v4224, 1.442695
        %v4598 = vpow.pop %v4597
        %v4599 = vmul.f32 %v4225, 1.442695
        %v4600 = vpow.pop %v4599
        %v4601 = vmul.f32 %v4226, 1.442695
        %v4602 = vpow.pop %v4601
        %v4603 = vmul.f32 %v4227, 1.442695
        %v4604 = vpow.pop %v4603
        %v4605 = vmul.f32 %v4228, 1.442695
        %v4606 = vpow.pop %v4605
        %v4607 = vmul.f32 %v4229, 1.442695
        %v4608 = vpow.pop %v4607
        %v4609 = vmul.f32 %v4230, 1.442695
        %v4610 = vpow.pop %v4609
        %v4611 = vmul.f32 %v4231, 1.442695
        %v4612 = vpow.pop %v4611
        %v4613 = vmul.f32 %v4232, 1.442695
        %v4614 = vpow.pop %v4613
        %v4615 = vmul.f32 %v4233, 1.442695
        %v4616 = vpow.pop %v4615
        %v4617 = vmul.f32 %v4234, 1.442695
        %v4618 = vpow.pop %v4617
        %4619 = vst [vmem:[#allocation3] sm:$0xff] %v4236
        %4620 = vst [vmem:[#allocation3 + $0x8] sm:$0xff] %v4238
        %4621 = vst.msk [vmem:[#allocation3 + $0x10] sm:$0xff] %vm1199, %v4240
        %4622 = vst [vmem:[#allocation3 + $0x18] sm:$0xff] %v4242
        %4623 = vst [vmem:[#allocation3 + $0x20] sm:$0xff] %v4244
        %4624 = vst.msk [vmem:[#allocation3 + $0x28] sm:$0xff] %vm1199, %v4246
        %4625 = vst [vmem:[#allocation3 + $0x30] sm:$0xff] %v4248
        %4626 = vst [vmem:[#allocation3 + $0x38] sm:$0xff] %v4250
        %4627 = vst.msk [vmem:[#allocation3 + $0x40] sm:$0xff] %vm1199, %v4252
        %4628 = vst [vmem:[#allocation3 + $0x48] sm:$0xff] %v4254
        %4629 = vst [vmem:[#allocation3 + $0x50] sm:$0xff] %v4256
        %4630 = vst.msk [vmem:[#allocation3 + $0x58] sm:$0xff] %vm1199, %v4258
        %4631 = vst [vmem:[#allocation3 + $0x60] sm:$0xff] %v4260
        %4632 = vst [vmem:[#allocation3 + $0x68] sm:$0xff] %v4262
        %4633 = vst.msk [vmem:[#allocation3 + $0x70] sm:$0xff] %vm1199, %v4264
        %4634 = vst [vmem:[#allocation3 + $0x78] sm:$0xff] %v4266
        %4635 = vst [vmem:[#allocation3 + $0x80] sm:$0xff] %v4268
        %4636 = vst.msk [vmem:[#allocation3 + $0x88] sm:$0xff] %vm1199, %v4270
        %4637 = vst [vmem:[#allocation3 + $0x90] sm:$0xff] %v4272
        %4638 = vst [vmem:[#allocation3 + $0x98] sm:$0xff] %v4274
        %4639 = vst.msk [vmem:[#allocation3 + $0xa0] sm:$0xff] %vm1199, %v4276
        %4640 = vst [vmem:[#allocation3 + $0xa8] sm:$0xff] %v4278
        %4641 = vst [vmem:[#allocation3 + $0xb0] sm:$0xff] %v4280
        %4642 = vst.msk [vmem:[#allocation3 + $0xb8] sm:$0xff] %vm1199, %v4282
        %4643 = vst [vmem:[#allocation3 + $0xc0] sm:$0xff] %v4284
        %4644 = vst [vmem:[#allocation3 + $0xc8] sm:$0xff] %v4286
        %4645 = vst.msk [vmem:[#allocation3 + $0xd0] sm:$0xff] %vm1199, %v4288
        %4646 = vst [vmem:[#allocation3 + $0xd8] sm:$0xff] %v4290
        %4647 = vst [vmem:[#allocation3 + $0xe0] sm:$0xff] %v4292
        %4648 = vst.msk [vmem:[#allocation3 + $0xe8] sm:$0xff] %vm1199, %v4294
        %4649 = vst [vmem:[#allocation3 + $0xf0] sm:$0xff] %v4296
        %4650 = vst [vmem:[#allocation3 + $0xf8] sm:$0xff] %v4298
        %4651 = vst.msk [vmem:[#allocation3 + $0x100] sm:$0xff] %vm1199, %v4300
        %4652 = vst [vmem:[#allocation3 + $0x108] sm:$0xff] %v4302
        %4653 = vst [vmem:[#allocation3 + $0x110] sm:$0xff] %v4304
        %4654 = vst.msk [vmem:[#allocation3 + $0x118] sm:$0xff] %vm1199, %v4306
        %4655 = vst [vmem:[#allocation3 + $0x120] sm:$0xff] %v4308
        %4656 = vst [vmem:[#allocation3 + $0x128] sm:$0xff] %v4310
        %4657 = vst.msk [vmem:[#allocation3 + $0x130] sm:$0xff] %vm1199, %v4312
        %4658 = vst [vmem:[#allocation3 + $0x138] sm:$0xff] %v4314
        %4659 = vst [vmem:[#allocation3 + $0x140] sm:$0xff] %v4316
        %4660 = vst.msk [vmem:[#allocation3 + $0x148] sm:$0xff] %vm1199, %v4318
        %4661 = vst [vmem:[#allocation3 + $0x150] sm:$0xff] %v4320
        %4662 = vst [vmem:[#allocation3 + $0x158] sm:$0xff] %v4322
        %4663 = vst.msk [vmem:[#allocation3 + $0x160] sm:$0xff] %vm1199, %v4324
        %4664 = vst [vmem:[#allocation3 + $0x168] sm:$0xff] %v4326
        %4665 = vst [vmem:[#allocation3 + $0x170] sm:$0xff] %v4328
        %4666 = vst.msk [vmem:[#allocation3 + $0x178] sm:$0xff] %vm1199, %v4330
        %4667 = vst [vmem:[#allocation3 + $0x180] sm:$0xff] %v4332
        %4668 = vst [vmem:[#allocation3 + $0x188] sm:$0xff] %v4334
        %4669 = vst.msk [vmem:[#allocation3 + $0x190] sm:$0xff] %vm1199, %v4336
        %4670 = vst [vmem:[#allocation3 + $0x198] sm:$0xff] %v4338
        %4671 = vst [vmem:[#allocation3 + $0x1a0] sm:$0xff] %v4340
        %4672 = vst.msk [vmem:[#allocation3 + $0x1a8] sm:$0xff] %vm1199, %v4342
        %4673 = vst [vmem:[#allocation3 + $0x1b0] sm:$0xff] %v4344
        %4674 = vst [vmem:[#allocation3 + $0x1b8] sm:$0xff] %v4346
        %4675 = vst.msk [vmem:[#allocation3 + $0x1c0] sm:$0xff] %vm1199, %v4348
        %4676 = vst [vmem:[#allocation3 + $0x1c8] sm:$0xff] %v4350
        %4677 = vst [vmem:[#allocation3 + $0x1d0] sm:$0xff] %v4352
        %4678 = vst.msk [vmem:[#allocation3 + $0x1d8] sm:$0xff] %vm1199, %v4354
        %4679 = vst [vmem:[#allocation3 + $0x1e0] sm:$0xff] %v4356
        %4680 = vst [vmem:[#allocation3 + $0x1e8] sm:$0xff] %v4358
        %4681 = vst.msk [vmem:[#allocation3 + $0x1f0] sm:$0xff] %vm1199, %v4360
        %4682 = vst [vmem:[#allocation3 + $0x1f8] sm:$0xff] %v4362
        %4683 = vst [vmem:[#allocation3 + $0x200] sm:$0xff] %v4364
        %4684 = vst.msk [vmem:[#allocation3 + $0x208] sm:$0xff] %vm1199, %v4366
        %4685 = vst [vmem:[#allocation3 + $0x210] sm:$0xff] %v4368
        %4686 = vst [vmem:[#allocation3 + $0x218] sm:$0xff] %v4370
        %4687 = vst.msk [vmem:[#allocation3 + $0x220] sm:$0xff] %vm1199, %v4372
        %4688 = vst [vmem:[#allocation3 + $0x228] sm:$0xff] %v4374
        %4689 = vst [vmem:[#allocation3 + $0x230] sm:$0xff] %v4376
        %4690 = vst.msk [vmem:[#allocation3 + $0x238] sm:$0xff] %vm1199, %v4378
        %4691 = vst [vmem:[#allocation3 + $0x240] sm:$0xff] %v4380
        %4692 = vst [vmem:[#allocation3 + $0x248] sm:$0xff] %v4382
        %4693 = vst.msk [vmem:[#allocation3 + $0x250] sm:$0xff] %vm1199, %v4384
        %4694 = vst [vmem:[#allocation3 + $0x258] sm:$0xff] %v4386
        %4695 = vst [vmem:[#allocation3 + $0x260] sm:$0xff] %v4388
        %4696 = vst.msk [vmem:[#allocation3 + $0x268] sm:$0xff] %vm1199, %v4390
        %4697 = vst [vmem:[#allocation3 + $0x270] sm:$0xff] %v4392
        %4698 = vst [vmem:[#allocation3 + $0x278] sm:$0xff] %v4394
        %4699 = vst.msk [vmem:[#allocation3 + $0x280] sm:$0xff] %vm1199, %v4396
        %4700 = vst [vmem:[#allocation3 + $0x288] sm:$0xff] %v4398
        %4701 = vst [vmem:[#allocation3 + $0x290] sm:$0xff] %v4400
        %4702 = vst.msk [vmem:[#allocation3 + $0x298] sm:$0xff] %vm1199, %v4402
        %4703 = vst [vmem:[#allocation3 + $0x2a0] sm:$0xff] %v4404
        %4704 = vst [vmem:[#allocation3 + $0x2a8] sm:$0xff] %v4406
        %4705 = vst.msk [vmem:[#allocation3 + $0x2b0] sm:$0xff] %vm1199, %v4408
        %4706 = vst [vmem:[#allocation3 + $0x2b8] sm:$0xff] %v4410
        %4707 = vst [vmem:[#allocation3 + $0x2c0] sm:$0xff] %v4412
        %4708 = vst.msk [vmem:[#allocation3 + $0x2c8] sm:$0xff] %vm1199, %v4414
        %4709 = vst [vmem:[#allocation3 + $0x2d0] sm:$0xff] %v4416
        %4710 = vst [vmem:[#allocation3 + $0x2d8] sm:$0xff] %v4418
        %4711 = vst.msk [vmem:[#allocation3 + $0x2e0] sm:$0xff] %vm1199, %v4420
        %4712 = vst [vmem:[#allocation3 + $0x2e8] sm:$0xff] %v4422
        %4713 = vst [vmem:[#allocation3 + $0x2f0] sm:$0xff] %v4424
        %4714 = vst.msk [vmem:[#allocation3 + $0x2f8] sm:$0xff] %vm1199, %v4426
        %4715 = vst [vmem:[#allocation3 + $0x300] sm:$0xff] %v4428
        %4716 = vst [vmem:[#allocation3 + $0x308] sm:$0xff] %v4430
        %4717 = vst.msk [vmem:[#allocation3 + $0x310] sm:$0xff] %vm1199, %v4432
        %4718 = vst [vmem:[#allocation3 + $0x318] sm:$0xff] %v4434
        %4719 = vst [vmem:[#allocation3 + $0x320] sm:$0xff] %v4436
        %4720 = vst.msk [vmem:[#allocation3 + $0x328] sm:$0xff] %vm1199, %v4438
        %4721 = vst [vmem:[#allocation3 + $0x330] sm:$0xff] %v4440
        %4722 = vst [vmem:[#allocation3 + $0x338] sm:$0xff] %v4442
        %4723 = vst.msk [vmem:[#allocation3 + $0x340] sm:$0xff] %vm1199, %v4444
        %4724 = vst [vmem:[#allocation3 + $0x348] sm:$0xff] %v4446
        %4725 = vst [vmem:[#allocation3 + $0x350] sm:$0xff] %v4448
        %4726 = vst.msk [vmem:[#allocation3 + $0x358] sm:$0xff] %vm1199, %v4450
        %4727 = vst [vmem:[#allocation3 + $0x360] sm:$0xff] %v4452
        %4728 = vst [vmem:[#allocation3 + $0x368] sm:$0xff] %v4454
        %4729 = vst.msk [vmem:[#allocation3 + $0x370] sm:$0xff] %vm1199, %v4456
        %4730 = vst [vmem:[#allocation3 + $0x378] sm:$0xff] %v4458
        %4731 = vst [vmem:[#allocation3 + $0x380] sm:$0xff] %v4460
        %4732 = vst.msk [vmem:[#allocation3 + $0x388] sm:$0xff] %vm1199, %v4462
        %4733 = vst [vmem:[#allocation3 + $0x390] sm:$0xff] %v4464
        %4734 = vst [vmem:[#allocation3 + $0x398] sm:$0xff] %v4466
        %4735 = vst.msk [vmem:[#allocation3 + $0x3a0] sm:$0xff] %vm1199, %v4468
        %4736 = vst [vmem:[#allocation3 + $0x3a8] sm:$0xff] %v4470
        %4737 = vst [vmem:[#allocation3 + $0x3b0] sm:$0xff] %v4472
        %4738 = vst.msk [vmem:[#allocation3 + $0x3b8] sm:$0xff] %vm1199, %v4474
        %4739 = vst [vmem:[#allocation3 + $0x3c0] sm:$0xff] %v4476
        %4740 = vst [vmem:[#allocation3 + $0x3c8] sm:$0xff] %v4478
        %4741 = vst.msk [vmem:[#allocation3 + $0x3d0] sm:$0xff] %vm1199, %v4480
        %4742 = vst [vmem:[#allocation3 + $0x3d8] sm:$0xff] %v4482
        %4743 = vst [vmem:[#allocation3 + $0x3e0] sm:$0xff] %v4484
        %4744 = vst.msk [vmem:[#allocation3 + $0x3e8] sm:$0xff] %vm1199, %v4486
        %4745 = vst [vmem:[#allocation3 + $0x3f0] sm:$0xff] %v4488
        %4746 = vst [vmem:[#allocation3 + $0x3f8] sm:$0xff] %v4490
        %4747 = vst.msk [vmem:[#allocation3 + $0x400] sm:$0xff] %vm1199, %v4492
        %4748 = vst [vmem:[#allocation3 + $0x408] sm:$0xff] %v4494
        %4749 = vst [vmem:[#allocation3 + $0x410] sm:$0xff] %v4496
        %4750 = vst.msk [vmem:[#allocation3 + $0x418] sm:$0xff] %vm1199, %v4498
        %4751 = vst [vmem:[#allocation3 + $0x420] sm:$0xff] %v4500
        %4752 = vst [vmem:[#allocation3 + $0x428] sm:$0xff] %v4502
        %4753 = vst.msk [vmem:[#allocation3 + $0x430] sm:$0xff] %vm1199, %v4504
        %4754 = vst [vmem:[#allocation3 + $0x438] sm:$0xff] %v4506
        %4755 = vst [vmem:[#allocation3 + $0x440] sm:$0xff] %v4508
        %4756 = vst.msk [vmem:[#allocation3 + $0x448] sm:$0xff] %vm1199, %v4510
        %4757 = vst [vmem:[#allocation3 + $0x450] sm:$0xff] %v4512
        %4758 = vst [vmem:[#allocation3 + $0x458] sm:$0xff] %v4514
        %4759 = vst.msk [vmem:[#allocation3 + $0x460] sm:$0xff] %vm1199, %v4516
        %4760 = vst [vmem:[#allocation3 + $0x468] sm:$0xff] %v4518
        %4761 = vst [vmem:[#allocation3 + $0x470] sm:$0xff] %v4520
        %4762 = vst.msk [vmem:[#allocation3 + $0x478] sm:$0xff] %vm1199, %v4522
        %4763 = vst [vmem:[#allocation3 + $0x480] sm:$0xff] %v4524
        %4764 = vst [vmem:[#allocation3 + $0x488] sm:$0xff] %v4526
        %4765 = vst.msk [vmem:[#allocation3 + $0x490] sm:$0xff] %vm1199, %v4528
        %4766 = vst [vmem:[#allocation3 + $0x498] sm:$0xff] %v4530
        %4767 = vst [vmem:[#allocation3 + $0x4a0] sm:$0xff] %v4532
        %4768 = vst.msk [vmem:[#allocation3 + $0x4a8] sm:$0xff] %vm1199, %v4534
        %4769 = vst [vmem:[#allocation3 + $0x4b0] sm:$0xff] %v4536
        %4770 = vst [vmem:[#allocation3 + $0x4b8] sm:$0xff] %v4538
        %4771 = vst.msk [vmem:[#allocation3 + $0x4c0] sm:$0xff] %vm1199, %v4540
        %4772 = vst [vmem:[#allocation3 + $0x4c8] sm:$0xff] %v4542
        %4773 = vst [vmem:[#allocation3 + $0x4d0] sm:$0xff] %v4544
        %4774 = vst.msk [vmem:[#allocation3 + $0x4d8] sm:$0xff] %vm1199, %v4546
        %4775 = vst [vmem:[#allocation3 + $0x4e0] sm:$0xff] %v4548
        %4776 = vst [vmem:[#allocation3 + $0x4e8] sm:$0xff] %v4550
        %4777 = vst.msk [vmem:[#allocation3 + $0x4f0] sm:$0xff] %vm1199, %v4552
        %4778 = vst [vmem:[#allocation3 + $0x4f8] sm:$0xff] %v4554
        %4779 = vst [vmem:[#allocation3 + $0x500] sm:$0xff] %v4556
        %4780 = vst.msk [vmem:[#allocation3 + $0x508] sm:$0xff] %vm1199, %v4558
        %4781 = vst [vmem:[#allocation3 + $0x510] sm:$0xff] %v4560
        %4782 = vst [vmem:[#allocation3 + $0x518] sm:$0xff] %v4562
        %4783 = vst.msk [vmem:[#allocation3 + $0x520] sm:$0xff] %vm1199, %v4564
        %4784 = vst [vmem:[#allocation3 + $0x528] sm:$0xff] %v4566
        %4785 = vst [vmem:[#allocation3 + $0x530] sm:$0xff] %v4568
        %4786 = vst.msk [vmem:[#allocation3 + $0x538] sm:$0xff] %vm1199, %v4570
        %4787 = vst [vmem:[#allocation3 + $0x540] sm:$0xff] %v4572
        %4788 = vst [vmem:[#allocation3 + $0x548] sm:$0xff] %v4574
        %4789 = vst.msk [vmem:[#allocation3 + $0x550] sm:$0xff] %vm1199, %v4576
        %4790 = vst [vmem:[#allocation3 + $0x558] sm:$0xff] %v4578
        %4791 = vst [vmem:[#allocation3 + $0x560] sm:$0xff] %v4580
        %4792 = vst.msk [vmem:[#allocation3 + $0x568] sm:$0xff] %vm1199, %v4582
        %4793 = vst [vmem:[#allocation3 + $0x570] sm:$0xff] %v4584
        %4794 = vst [vmem:[#allocation3 + $0x578] sm:$0xff] %v4586
        %4795 = vst.msk [vmem:[#allocation3 + $0x580] sm:$0xff] %vm1199, %v4588
        %4796 = vst [vmem:[#allocation3 + $0x588] sm:$0xff] %v4590
        %4797 = vst [vmem:[#allocation3 + $0x590] sm:$0xff] %v4592
        %4798 = vst.msk [vmem:[#allocation3 + $0x598] sm:$0xff] %vm1199, %v4594
        %4799 = vst [vmem:[#allocation3 + $0x5a0] sm:$0xff] %v4596
        %4800 = vst [vmem:[#allocation3 + $0x5a8] sm:$0xff] %v4598
        %4801 = vst.msk [vmem:[#allocation3 + $0x5b0] sm:$0xff] %vm1199, %v4600
        %4802 = vst [vmem:[#allocation3 + $0x5b8] sm:$0xff] %v4602
        %4803 = vst [vmem:[#allocation3 + $0x5c0] sm:$0xff] %v4604
        %4804 = vst.msk [vmem:[#allocation3 + $0x5c8] sm:$0xff] %vm1199, %v4606
        %4805 = vst [vmem:[#allocation3 + $0x5d0] sm:$0xff] %v4608
        %4806 = vst [vmem:[#allocation3 + $0x5d8] sm:$0xff] %v4610
        %4807 = vst.msk [vmem:[#allocation3 + $0x5e0] sm:$0xff] %vm1199, %v4612
        %4808 = vst [vmem:[#allocation3 + $0x5e8] sm:$0xff] %v4614
        %4809 = vst [vmem:[#allocation3 + $0x5f0] sm:$0xff] %v4616
        %4810 = vst.msk [vmem:[#allocation3 + $0x5f8] sm:$0xff] %vm1199, %v4618
        %v4811 = vmul.f32 %v3395, %v2278
        %v4812 = vmul.f32 %v3396, %v2279
        %v4813 = vmul.f32 %v3397, %v2280
        %v4814 = vmul.f32 %v3398, %v2281
        %v4815 = vmul.f32 %v3399, %v2282
        %v4816 = vmul.f32 %v3400, %v2283
        %v4817 = vmul.f32 %v3401, %v2284
        %v4818 = vmul.f32 %v3402, %v2285
        %v4819 = vmul.f32 %v3403, %v2286
        %v4820 = vmul.f32 %v3404, %v2287
        %v4821 = vmul.f32 %v3405, %v2288
        %v4822 = vmul.f32 %v3406, %v2289
        %v4823 = vmul.f32 %v3407, %v2290
        %v4824 = vmul.f32 %v3408, %v2291
        %v4825 = vmul.f32 %v3409, %v2292
        %v4826 = vmul.f32 %v3410, %v2293
        %v4827 = vmul.f32 %v3411, %v2294
        %v4828 = vmul.f32 %v3412, %v2295
        %v4829 = vmul.f32 %v3413, %v2296
        %v4830 = vmul.f32 %v3414, %v2297
        %v4831 = vmul.f32 %v3415, %v2298
        %v4832 = vmul.f32 %v3416, %v2299
        %v4833 = vmul.f32 %v3417, %v2300
        %v4834 = vmul.f32 %v3418, %v2301
        %v4859 = vrot.slane %v4812, 7
        %v4860 = vrot.slane %v4813, 6
        %v4861 = vrot.slane %v4815, 7
        %v4862 = vrot.slane %v4816, 6
        %v4863 = vrot.slane %v4818, 7
        %v4864 = vrot.slane %v4819, 6
        %v4865 = vrot.slane %v4821, 7
        %v4866 = vrot.slane %v4822, 6
        %v4867 = vrot.slane %v4824, 7
        %v4868 = vrot.slane %v4825, 6
        %v4869 = vrot.slane %v4827, 7
        %v4870 = vrot.slane %v4828, 6
        %v4871 = vrot.slane %v4830, 7
        %v4872 = vrot.slane %v4831, 6
        %v4873 = vrot.slane %v4833, 7
        %v4874 = vrot.slane %v4834, 6
        %v4875 = vsel %vm3462, %v4811, %v4859
        %v4876 = vsel %vm2854, %v4875, %v4860
        %v4877 = vsel %vm3465, %v4811, %v4859
        %v4878 = vsel %vm3467, %v4877, %v4860
        %v4879 = vrot.slane %v4878, 1
        %v4880 = vsel %vm3470, %v4811, %v4859
        %v4881 = vsel %vm3472, %v4880, %v4860
        %v4882 = vrot.slane %v4881, 2
        %v4883 = vsel %vm3475, %v4811, %v4859
        %v4884 = vsel %vm3477, %v4883, %v4860
        %v4885 = vrot.slane %v4884, 3
        %v4886 = vsel %vm3480, %v4811, %v4859
        %v4887 = vsel %vm3482, %v4886, %v4860
        %v4888 = vrot.slane %v4887, 4
        %v4889 = vsel %vm3485, %v4811, %v4859
        %v4890 = vsel %vm3487, %v4889, %v4860
        %v4891 = vrot.slane %v4890, 5
        %v4892 = vsel %vm3490, %v4811, %v4859
        %v4893 = vsel %vm1521, %v4860, %v4892
        %v4894 = vrot.slane %v4893, 6
        %v4895 = vsel %vm1352, %v4859, %v4811
        %v4896 = vsel %vm3495, %v4860, %v4895
        %v4897 = vrot.slane %v4896, 7
        %v4898 = vsel %vm3462, %v4814, %v4861
        %v4899 = vsel %vm2854, %v4898, %v4862
        %v4900 = vsel %vm3465, %v4814, %v4861
        %v4901 = vsel %vm3467, %v4900, %v4862
        %v4902 = vrot.slane %v4901, 1
        %v4903 = vsel %vm3470, %v4814, %v4861
        %v4904 = vsel %vm3472, %v4903, %v4862
        %v4905 = vrot.slane %v4904, 2
        %v4906 = vsel %vm3475, %v4814, %v4861
        %v4907 = vsel %vm3477, %v4906, %v4862
        %v4908 = vrot.slane %v4907, 3
        %v4909 = vsel %vm3480, %v4814, %v4861
        %v4910 = vsel %vm3482, %v4909, %v4862
        %v4911 = vrot.slane %v4910, 4
        %v4912 = vsel %vm3485, %v4814, %v4861
        %v4913 = vsel %vm3487, %v4912, %v4862
        %v4914 = vrot.slane %v4913, 5
        %v4915 = vsel %vm3490, %v4814, %v4861
        %v4916 = vsel %vm1521, %v4862, %v4915
        %v4917 = vrot.slane %v4916, 6
        %v4918 = vsel %vm1352, %v4861, %v4814
        %v4919 = vsel %vm3495, %v4862, %v4918
        %v4920 = vrot.slane %v4919, 7
        %v4921 = vsel %vm3462, %v4817, %v4863
        %v4922 = vsel %vm2854, %v4921, %v4864
        %v4923 = vsel %vm3465, %v4817, %v4863
        %v4924 = vsel %vm3467, %v4923, %v4864
        %v4925 = vrot.slane %v4924, 1
        %v4926 = vsel %vm3470, %v4817, %v4863
        %v4927 = vsel %vm3472, %v4926, %v4864
        %v4928 = vrot.slane %v4927, 2
        %v4929 = vsel %vm3475, %v4817, %v4863
        %v4930 = vsel %vm3477, %v4929, %v4864
        %v4931 = vrot.slane %v4930, 3
        %v4932 = vsel %vm3480, %v4817, %v4863
        %v4933 = vsel %vm3482, %v4932, %v4864
        %v4934 = vrot.slane %v4933, 4
        %v4935 = vsel %vm3485, %v4817, %v4863
        %v4936 = vsel %vm3487, %v4935, %v4864
        %v4937 = vrot.slane %v4936, 5
        %v4938 = vsel %vm3490, %v4817, %v4863
        %v4939 = vsel %vm1521, %v4864, %v4938
        %v4940 = vrot.slane %v4939, 6
        %v4941 = vsel %vm1352, %v4863, %v4817
        %v4942 = vsel %vm3495, %v4864, %v4941
        %v4943 = vrot.slane %v4942, 7
        %v4944 = vsel %vm3462, %v4820, %v4865
        %v4945 = vsel %vm2854, %v4944, %v4866
        %v4946 = vsel %vm3465, %v4820, %v4865
        %v4947 = vsel %vm3467, %v4946, %v4866
        %v4948 = vrot.slane %v4947, 1
        %v4949 = vsel %vm3470, %v4820, %v4865
        %v4950 = vsel %vm3472, %v4949, %v4866
        %v4951 = vrot.slane %v4950, 2
        %v4952 = vsel %vm3475, %v4820, %v4865
        %v4953 = vsel %vm3477, %v4952, %v4866
        %v4954 = vrot.slane %v4953, 3
        %v4955 = vsel %vm3480, %v4820, %v4865
        %v4956 = vsel %vm3482, %v4955, %v4866
        %v4957 = vrot.slane %v4956, 4
        %v4958 = vsel %vm3485, %v4820, %v4865
        %v4959 = vsel %vm3487, %v4958, %v4866
        %v4960 = vrot.slane %v4959, 5
        %v4961 = vsel %vm3490, %v4820, %v4865
        %v4962 = vsel %vm1521, %v4866, %v4961
        %v4963 = vrot.slane %v4962, 6
        %v4964 = vsel %vm1352, %v4865, %v4820
        %v4965 = vsel %vm3495, %v4866, %v4964
        %v4966 = vrot.slane %v4965, 7
        %v4967 = vsel %vm3462, %v4823, %v4867
        %v4968 = vsel %vm2854, %v4967, %v4868
        %v4969 = vsel %vm3465, %v4823, %v4867
        %v4970 = vsel %vm3467, %v4969, %v4868
        %v4971 = vrot.slane %v4970, 1
        %v4972 = vsel %vm3470, %v4823, %v4867
        %v4973 = vsel %vm3472, %v4972, %v4868
        %v4974 = vrot.slane %v4973, 2
        %v4975 = vsel %vm3475, %v4823, %v4867
        %v4976 = vsel %vm3477, %v4975, %v4868
        %v4977 = vrot.slane %v4976, 3
        %v4978 = vsel %vm3480, %v4823, %v4867
        %v4979 = vsel %vm3482, %v4978, %v4868
        %v4980 = vrot.slane %v4979, 4
        %v4981 = vsel %vm3485, %v4823, %v4867
        %v4982 = vsel %vm3487, %v4981, %v4868
        %v4983 = vrot.slane %v4982, 5
        %v4984 = vsel %vm3490, %v4823, %v4867
        %v4985 = vsel %vm1521, %v4868, %v4984
        %v4986 = vrot.slane %v4985, 6
        %v4987 = vsel %vm1352, %v4867, %v4823
        %v4988 = vsel %vm3495, %v4868, %v4987
        %v4989 = vrot.slane %v4988, 7
        %v4990 = vsel %vm3462, %v4826, %v4869
        %v4991 = vsel %vm2854, %v4990, %v4870
        %v4992 = vsel %vm3465, %v4826, %v4869
        %v4993 = vsel %vm3467, %v4992, %v4870
        %v4994 = vrot.slane %v4993, 1
        %v4995 = vsel %vm3470, %v4826, %v4869
        %v4996 = vsel %vm3472, %v4995, %v4870
        %v4997 = vrot.slane %v4996, 2
        %v4998 = vsel %vm3475, %v4826, %v4869
        %v4999 = vsel %vm3477, %v4998, %v4870
        %v5000 = vrot.slane %v4999, 3
        %v5001 = vsel %vm3480, %v4826, %v4869
        %v5002 = vsel %vm3482, %v5001, %v4870
        %v5003 = vrot.slane %v5002, 4
        %v5004 = vsel %vm3485, %v4826, %v4869
        %v5005 = vsel %vm3487, %v5004, %v4870
        %v5006 = vrot.slane %v5005, 5
        %v5007 = vsel %vm3490, %v4826, %v4869
        %v5008 = vsel %vm1521, %v4870, %v5007
        %v5009 = vrot.slane %v5008, 6
        %v5010 = vsel %vm1352, %v4869, %v4826
        %v5011 = vsel %vm3495, %v4870, %v5010
        %v5012 = vrot.slane %v5011, 7
        %v5013 = vsel %vm3462, %v4829, %v4871
        %v5014 = vsel %vm2854, %v5013, %v4872
        %v5015 = vsel %vm3465, %v4829, %v4871
        %v5016 = vsel %vm3467, %v5015, %v4872
        %v5017 = vrot.slane %v5016, 1
        %v5018 = vsel %vm3470, %v4829, %v4871
        %v5019 = vsel %vm3472, %v5018, %v4872
        %v5020 = vrot.slane %v5019, 2
        %v5021 = vsel %vm3475, %v4829, %v4871
        %v5022 = vsel %vm3477, %v5021, %v4872
        %v5023 = vrot.slane %v5022, 3
        %v5024 = vsel %vm3480, %v4829, %v4871
        %v5025 = vsel %vm3482, %v5024, %v4872
        %v5026 = vrot.slane %v5025, 4
        %v5027 = vsel %vm3485, %v4829, %v4871
        %v5028 = vsel %vm3487, %v5027, %v4872
        %v5029 = vrot.slane %v5028, 5
        %v5030 = vsel %vm3490, %v4829, %v4871
        %v5031 = vsel %vm1521, %v4872, %v5030
        %v5032 = vrot.slane %v5031, 6
        %v5033 = vsel %vm1352, %v4871, %v4829
        %v5034 = vsel %vm3495, %v4872, %v5033
        %v5035 = vrot.slane %v5034, 7
        %v5036 = vsel %vm3462, %v4832, %v4873
        %v5037 = vsel %vm2854, %v5036, %v4874
        %v5038 = vsel %vm3465, %v4832, %v4873
        %v5039 = vsel %vm3467, %v5038, %v4874
        %v5040 = vrot.slane %v5039, 1
        %v5041 = vsel %vm3470, %v4832, %v4873
        %v5042 = vsel %vm3472, %v5041, %v4874
        %v5043 = vrot.slane %v5042, 2
        %v5044 = vsel %vm3475, %v4832, %v4873
        %v5045 = vsel %vm3477, %v5044, %v4874
        %v5046 = vrot.slane %v5045, 3
        %v5047 = vsel %vm3480, %v4832, %v4873
        %v5048 = vsel %vm3482, %v5047, %v4874
        %v5049 = vrot.slane %v5048, 4
        %v5050 = vsel %vm3485, %v4832, %v4873
        %v5051 = vsel %vm3487, %v5050, %v4874
        %v5052 = vrot.slane %v5051, 5
        %v5053 = vsel %vm3490, %v4832, %v4873
        %v5054 = vsel %vm1521, %v4874, %v5053
        %v5055 = vrot.slane %v5054, 6
        %v5056 = vsel %vm1352, %v4873, %v4832
        %v5057 = vsel %vm3495, %v4874, %v5056
        %v5058 = vrot.slane %v5057, 7
        %v5059 = vperm.slane %v2629, 0
        %v5060 = vlaneseq
        %v5061 = vshrl.u32 %v5060, 7
        %5063 = vset.pattern.permute.xlu0 %v5061
        %5064 = vperm.xlu0 %5063, %v5059
        %v5065 = vpop.permute.xlu0 %5064
        %v5066 = vperm.slane %v2629, 1
        %v5067 = vlaneseq
        %v5068 = vshrl.u32 %v5067, 7
        %5070 = vset.pattern.permute.xlu0 %v5068
        %5071 = vperm.xlu0 %5070, %v5066
        %v5072 = vpop.permute.xlu0 %5071
        %v5073 = vperm.slane %v2629, 2
        %v5074 = vlaneseq
        %v5075 = vshrl.u32 %v5074, 7
        %5077 = vset.pattern.permute.xlu0 %v5075
        %5078 = vperm.xlu0 %5077, %v5073
        %v5079 = vpop.permute.xlu0 %5078
        %v5080 = vperm.slane %v2629, 3
        %v5081 = vlaneseq
        %v5082 = vshrl.u32 %v5081, 7
        %5084 = vset.pattern.permute.xlu0 %v5082
        %5085 = vperm.xlu0 %5084, %v5080
        %v5086 = vpop.permute.xlu0 %5085
        %v5087 = vperm.slane %v2629, 4
        %v5088 = vlaneseq
        %v5089 = vshrl.u32 %v5088, 7
        %5091 = vset.pattern.permute.xlu0 %v5089
        %5092 = vperm.xlu0 %5091, %v5087
        %v5093 = vpop.permute.xlu0 %5092
        %v5094 = vperm.slane %v2629, 5
        %v5095 = vlaneseq
        %v5096 = vshrl.u32 %v5095, 7
        %5098 = vset.pattern.permute.xlu0 %v5096
        %5099 = vperm.xlu0 %5098, %v5094
        %v5100 = vpop.permute.xlu0 %5099
        %v5101 = vperm.slane %v2629, 6
        %v5102 = vlaneseq
        %v5103 = vshrl.u32 %v5102, 7
        %5105 = vset.pattern.permute.xlu0 %v5103
        %5106 = vperm.xlu0 %5105, %v5101
        %v5107 = vpop.permute.xlu0 %5106
        %v5108 = vperm.slane %v2629, 7
        %v5109 = vlaneseq
        %v5110 = vshrl.u32 %v5109, 7
        %5112 = vset.pattern.permute.xlu0 %v5110
        %5113 = vperm.xlu0 %5112, %v5108
        %v5114 = vpop.permute.xlu0 %5113
        %v5115 = vperm.slane %v2632, 0
        %v5116 = vlaneseq
        %v5117 = vshrl.u32 %v5116, 7
        %5119 = vset.pattern.permute.xlu0 %v5117
        %5120 = vperm.xlu0 %5119, %v5115
        %v5121 = vpop.permute.xlu0 %5120
        %v5122 = vperm.slane %v2632, 1
        %v5123 = vlaneseq
        %v5124 = vshrl.u32 %v5123, 7
        %5126 = vset.pattern.permute.xlu0 %v5124
        %5127 = vperm.xlu0 %5126, %v5122
        %v5128 = vpop.permute.xlu0 %5127
        %v5129 = vperm.slane %v2632, 2
        %v5130 = vlaneseq
        %v5131 = vshrl.u32 %v5130, 7
        %5133 = vset.pattern.permute.xlu0 %v5131
        %5134 = vperm.xlu0 %5133, %v5129
        %v5135 = vpop.permute.xlu0 %5134
        %v5136 = vperm.slane %v2632, 3
        %v5137 = vlaneseq
        %v5138 = vshrl.u32 %v5137, 7
        %5140 = vset.pattern.permute.xlu0 %v5138
        %5141 = vperm.xlu0 %5140, %v5136
        %v5142 = vpop.permute.xlu0 %5141
        %v5143 = vperm.slane %v2632, 4
        %v5144 = vlaneseq
        %v5145 = vshrl.u32 %v5144, 7
        %5147 = vset.pattern.permute.xlu0 %v5145
        %5148 = vperm.xlu0 %5147, %v5143
        %v5149 = vpop.permute.xlu0 %5148
        %v5150 = vperm.slane %v2632, 5
        %v5151 = vlaneseq
        %v5152 = vshrl.u32 %v5151, 7
        %5154 = vset.pattern.permute.xlu0 %v5152
        %5155 = vperm.xlu0 %5154, %v5150
        %v5156 = vpop.permute.xlu0 %5155
        %v5157 = vperm.slane %v2632, 6
        %v5158 = vlaneseq
        %v5159 = vshrl.u32 %v5158, 7
        %5161 = vset.pattern.permute.xlu0 %v5159
        %5162 = vperm.xlu0 %5161, %v5157
        %v5163 = vpop.permute.xlu0 %5162
        %v5164 = vperm.slane %v2632, 7
        %v5165 = vlaneseq
        %v5166 = vshrl.u32 %v5165, 7
        %5168 = vset.pattern.permute.xlu0 %v5166
        %5169 = vperm.xlu0 %5168, %v5164
        %v5170 = vpop.permute.xlu0 %5169
        %v5171 = vperm.slane %v2635, 0
        %v5172 = vlaneseq
        %v5173 = vshrl.u32 %v5172, 7
        %5175 = vset.pattern.permute.xlu0 %v5173
        %5176 = vperm.xlu0 %5175, %v5171
        %v5177 = vpop.permute.xlu0 %5176
        %v5178 = vperm.slane %v2635, 1
        %v5179 = vlaneseq
        %v5180 = vshrl.u32 %v5179, 7
        %5182 = vset.pattern.permute.xlu0 %v5180
        %5183 = vperm.xlu0 %5182, %v5178
        %v5184 = vpop.permute.xlu0 %5183
        %v5185 = vperm.slane %v2635, 2
        %v5186 = vlaneseq
        %v5187 = vshrl.u32 %v5186, 7
        %5189 = vset.pattern.permute.xlu0 %v5187
        %5190 = vperm.xlu0 %5189, %v5185
        %v5191 = vpop.permute.xlu0 %5190
        %v5192 = vperm.slane %v2635, 3
        %v5193 = vlaneseq
        %v5194 = vshrl.u32 %v5193, 7
        %5196 = vset.pattern.permute.xlu0 %v5194
        %5197 = vperm.xlu0 %5196, %v5192
        %v5198 = vpop.permute.xlu0 %5197
        %v5199 = vperm.slane %v2635, 4
        %v5200 = vlaneseq
        %v5201 = vshrl.u32 %v5200, 7
        %5203 = vset.pattern.permute.xlu0 %v5201
        %5204 = vperm.xlu0 %5203, %v5199
        %v5205 = vpop.permute.xlu0 %5204
        %v5206 = vperm.slane %v2635, 5
        %v5207 = vlaneseq
        %v5208 = vshrl.u32 %v5207, 7
        %5210 = vset.pattern.permute.xlu0 %v5208
        %5211 = vperm.xlu0 %5210, %v5206
        %v5212 = vpop.permute.xlu0 %5211
        %v5213 = vperm.slane %v2635, 6
        %v5214 = vlaneseq
        %v5215 = vshrl.u32 %v5214, 7
        %5217 = vset.pattern.permute.xlu0 %v5215
        %5218 = vperm.xlu0 %5217, %v5213
        %v5219 = vpop.permute.xlu0 %5218
        %v5220 = vperm.slane %v2635, 7
        %v5221 = vlaneseq
        %v5222 = vshrl.u32 %v5221, 7
        %5224 = vset.pattern.permute.xlu0 %v5222
        %5225 = vperm.xlu0 %5224, %v5220
        %v5226 = vpop.permute.xlu0 %5225
        %v5227 = vperm.slane %v2638, 0
        %v5228 = vlaneseq
        %v5229 = vshrl.u32 %v5228, 7
        %5231 = vset.pattern.permute.xlu0 %v5229
        %5232 = vperm.xlu0 %5231, %v5227
        %v5233 = vpop.permute.xlu0 %5232
        %v5234 = vperm.slane %v2638, 1
        %v5235 = vlaneseq
        %v5236 = vshrl.u32 %v5235, 7
        %5238 = vset.pattern.permute.xlu0 %v5236
        %5239 = vperm.xlu0 %5238, %v5234
        %v5240 = vpop.permute.xlu0 %5239
        %v5241 = vperm.slane %v2638, 2
        %v5242 = vlaneseq
        %v5243 = vshrl.u32 %v5242, 7
        %5245 = vset.pattern.permute.xlu0 %v5243
        %5246 = vperm.xlu0 %5245, %v5241
        %v5247 = vpop.permute.xlu0 %5246
        %v5248 = vperm.slane %v2638, 3
        %v5249 = vlaneseq
        %v5250 = vshrl.u32 %v5249, 7
        %5252 = vset.pattern.permute.xlu0 %v5250
        %5253 = vperm.xlu0 %5252, %v5248
        %v5254 = vpop.permute.xlu0 %5253
        %v5255 = vperm.slane %v2638, 4
        %v5256 = vlaneseq
        %v5257 = vshrl.u32 %v5256, 7
        %5259 = vset.pattern.permute.xlu0 %v5257
        %5260 = vperm.xlu0 %5259, %v5255
        %v5261 = vpop.permute.xlu0 %5260
        %v5262 = vperm.slane %v2638, 5
        %v5263 = vlaneseq
        %v5264 = vshrl.u32 %v5263, 7
        %5266 = vset.pattern.permute.xlu0 %v5264
        %5267 = vperm.xlu0 %5266, %v5262
        %v5268 = vpop.permute.xlu0 %5267
        %v5269 = vperm.slane %v2638, 6
        %v5270 = vlaneseq
        %v5271 = vshrl.u32 %v5270, 7
        %5273 = vset.pattern.permute.xlu0 %v5271
        %5274 = vperm.xlu0 %5273, %v5269
        %v5275 = vpop.permute.xlu0 %5274
        %v5276 = vperm.slane %v2638, 7
        %v5277 = vlaneseq
        %v5278 = vshrl.u32 %v5277, 7
        %5280 = vset.pattern.permute.xlu0 %v5278
        %5281 = vperm.xlu0 %5280, %v5276
        %v5282 = vpop.permute.xlu0 %5281
        %v5283 = vperm.slane %v2641, 0
        %v5284 = vlaneseq
        %v5285 = vshrl.u32 %v5284, 7
        %5287 = vset.pattern.permute.xlu0 %v5285
        %5288 = vperm.xlu0 %5287, %v5283
        %v5289 = vpop.permute.xlu0 %5288
        %v5290 = vperm.slane %v2641, 1
        %v5291 = vlaneseq
        %v5292 = vshrl.u32 %v5291, 7
        %5294 = vset.pattern.permute.xlu0 %v5292
        %5295 = vperm.xlu0 %5294, %v5290
        %v5296 = vpop.permute.xlu0 %5295
        %v5297 = vperm.slane %v2641, 2
        %v5298 = vlaneseq
        %v5299 = vshrl.u32 %v5298, 7
        %5301 = vset.pattern.permute.xlu0 %v5299
        %5302 = vperm.xlu0 %5301, %v5297
        %v5303 = vpop.permute.xlu0 %5302
        %v5304 = vperm.slane %v2641, 3
        %v5305 = vlaneseq
        %v5306 = vshrl.u32 %v5305, 7
        %5308 = vset.pattern.permute.xlu0 %v5306
        %5309 = vperm.xlu0 %5308, %v5304
        %v5310 = vpop.permute.xlu0 %5309
        %v5311 = vperm.slane %v2641, 4
        %v5312 = vlaneseq
        %v5313 = vshrl.u32 %v5312, 7
        %5315 = vset.pattern.permute.xlu0 %v5313
        %5316 = vperm.xlu0 %5315, %v5311
        %v5317 = vpop.permute.xlu0 %5316
        %v5318 = vperm.slane %v2641, 5
        %v5319 = vlaneseq
        %v5320 = vshrl.u32 %v5319, 7
        %5322 = vset.pattern.permute.xlu0 %v5320
        %5323 = vperm.xlu0 %5322, %v5318
        %v5324 = vpop.permute.xlu0 %5323
        %v5325 = vperm.slane %v2641, 6
        %v5326 = vlaneseq
        %v5327 = vshrl.u32 %v5326, 7
        %5329 = vset.pattern.permute.xlu0 %v5327
        %5330 = vperm.xlu0 %5329, %v5325
        %v5331 = vpop.permute.xlu0 %5330
        %v5332 = vperm.slane %v2641, 7
        %v5333 = vlaneseq
        %v5334 = vshrl.u32 %v5333, 7
        %5336 = vset.pattern.permute.xlu0 %v5334
        %5337 = vperm.xlu0 %5336, %v5332
        %v5338 = vpop.permute.xlu0 %5337
        %v5339 = vperm.slane %v2644, 0
        %v5340 = vlaneseq
        %v5341 = vshrl.u32 %v5340, 7
        %5343 = vset.pattern.permute.xlu0 %v5341
        %5344 = vperm.xlu0 %5343, %v5339
        %v5345 = vpop.permute.xlu0 %5344
        %v5346 = vperm.slane %v2644, 1
        %v5347 = vlaneseq
        %v5348 = vshrl.u32 %v5347, 7
        %5350 = vset.pattern.permute.xlu0 %v5348
        %5351 = vperm.xlu0 %5350, %v5346
        %v5352 = vpop.permute.xlu0 %5351
        %v5353 = vperm.slane %v2644, 2
        %v5354 = vlaneseq
        %v5355 = vshrl.u32 %v5354, 7
        %5357 = vset.pattern.permute.xlu0 %v5355
        %5358 = vperm.xlu0 %5357, %v5353
        %v5359 = vpop.permute.xlu0 %5358
        %v5360 = vperm.slane %v2644, 3
        %v5361 = vlaneseq
        %v5362 = vshrl.u32 %v5361, 7
        %5364 = vset.pattern.permute.xlu0 %v5362
        %5365 = vperm.xlu0 %5364, %v5360
        %v5366 = vpop.permute.xlu0 %5365
        %v5367 = vperm.slane %v2644, 4
        %v5368 = vlaneseq
        %v5369 = vshrl.u32 %v5368, 7
        %5371 = vset.pattern.permute.xlu0 %v5369
        %5372 = vperm.xlu0 %5371, %v5367
        %v5373 = vpop.permute.xlu0 %5372
        %v5374 = vperm.slane %v2644, 5
        %v5375 = vlaneseq
        %v5376 = vshrl.u32 %v5375, 7
        %5378 = vset.pattern.permute.xlu0 %v5376
        %5379 = vperm.xlu0 %5378, %v5374
        %v5380 = vpop.permute.xlu0 %5379
        %v5381 = vperm.slane %v2644, 6
        %v5382 = vlaneseq
        %v5383 = vshrl.u32 %v5382, 7
        %5385 = vset.pattern.permute.xlu0 %v5383
        %5386 = vperm.xlu0 %5385, %v5381
        %v5387 = vpop.permute.xlu0 %5386
        %v5388 = vperm.slane %v2644, 7
        %v5389 = vlaneseq
        %v5390 = vshrl.u32 %v5389, 7
        %5392 = vset.pattern.permute.xlu0 %v5390
        %5393 = vperm.xlu0 %5392, %v5388
        %v5394 = vpop.permute.xlu0 %5393
        %v5395 = vperm.slane %v2647, 0
        %v5396 = vlaneseq
        %v5397 = vshrl.u32 %v5396, 7
        %5399 = vset.pattern.permute.xlu0 %v5397
        %5400 = vperm.xlu0 %5399, %v5395
        %v5401 = vpop.permute.xlu0 %5400
        %v5402 = vperm.slane %v2647, 1
        %v5403 = vlaneseq
        %v5404 = vshrl.u32 %v5403, 7
        %5406 = vset.pattern.permute.xlu0 %v5404
        %5407 = vperm.xlu0 %5406, %v5402
        %v5408 = vpop.permute.xlu0 %5407
        %v5409 = vperm.slane %v2647, 2
        %v5410 = vlaneseq
        %v5411 = vshrl.u32 %v5410, 7
        %5413 = vset.pattern.permute.xlu0 %v5411
        %5414 = vperm.xlu0 %5413, %v5409
        %v5415 = vpop.permute.xlu0 %5414
        %v5416 = vperm.slane %v2647, 3
        %v5417 = vlaneseq
        %v5418 = vshrl.u32 %v5417, 7
        %5420 = vset.pattern.permute.xlu0 %v5418
        %5421 = vperm.xlu0 %5420, %v5416
        %v5422 = vpop.permute.xlu0 %5421
        %v5423 = vperm.slane %v2647, 4
        %v5424 = vlaneseq
        %v5425 = vshrl.u32 %v5424, 7
        %5427 = vset.pattern.permute.xlu0 %v5425
        %5428 = vperm.xlu0 %5427, %v5423
        %v5429 = vpop.permute.xlu0 %5428
        %v5430 = vperm.slane %v2647, 5
        %v5431 = vlaneseq
        %v5432 = vshrl.u32 %v5431, 7
        %5434 = vset.pattern.permute.xlu0 %v5432
        %5435 = vperm.xlu0 %5434, %v5430
        %v5436 = vpop.permute.xlu0 %5435
        %v5437 = vperm.slane %v2647, 6
        %v5438 = vlaneseq
        %v5439 = vshrl.u32 %v5438, 7
        %5441 = vset.pattern.permute.xlu0 %v5439
        %5442 = vperm.xlu0 %5441, %v5437
        %v5443 = vpop.permute.xlu0 %5442
        %v5444 = vperm.slane %v2647, 7
        %v5445 = vlaneseq
        %v5446 = vshrl.u32 %v5445, 7
        %5448 = vset.pattern.permute.xlu0 %v5446
        %5449 = vperm.xlu0 %5448, %v5444
        %v5450 = vpop.permute.xlu0 %5449
        %v5451 = vperm.slane %v2650, 0
        %v5452 = vlaneseq
        %v5453 = vshrl.u32 %v5452, 7
        %5455 = vset.pattern.permute.xlu0 %v5453
        %5456 = vperm.xlu0 %5455, %v5451
        %v5457 = vpop.permute.xlu0 %5456
        %v5458 = vperm.slane %v2650, 1
        %v5459 = vlaneseq
        %v5460 = vshrl.u32 %v5459, 7
        %5462 = vset.pattern.permute.xlu0 %v5460
        %5463 = vperm.xlu0 %5462, %v5458
        %v5464 = vpop.permute.xlu0 %5463
        %v5465 = vperm.slane %v2650, 2
        %v5466 = vlaneseq
        %v5467 = vshrl.u32 %v5466, 7
        %5469 = vset.pattern.permute.xlu0 %v5467
        %5470 = vperm.xlu0 %5469, %v5465
        %v5471 = vpop.permute.xlu0 %5470
        %v5472 = vperm.slane %v2650, 3
        %v5473 = vlaneseq
        %v5474 = vshrl.u32 %v5473, 7
        %5476 = vset.pattern.permute.xlu0 %v5474
        %5477 = vperm.xlu0 %5476, %v5472
        %v5478 = vpop.permute.xlu0 %5477
        %v5479 = vperm.slane %v2650, 4
        %v5480 = vlaneseq
        %v5481 = vshrl.u32 %v5480, 7
        %5483 = vset.pattern.permute.xlu0 %v5481
        %5484 = vperm.xlu0 %5483, %v5479
        %v5485 = vpop.permute.xlu0 %5484
        %v5486 = vperm.slane %v2650, 5
        %v5487 = vlaneseq
        %v5488 = vshrl.u32 %v5487, 7
        %5490 = vset.pattern.permute.xlu0 %v5488
        %5491 = vperm.xlu0 %5490, %v5486
        %v5492 = vpop.permute.xlu0 %5491
        %v5493 = vperm.slane %v2650, 6
        %v5494 = vlaneseq
        %v5495 = vshrl.u32 %v5494, 7
        %5497 = vset.pattern.permute.xlu0 %v5495
        %5498 = vperm.xlu0 %5497, %v5493
        %v5499 = vpop.permute.xlu0 %5498
        %v5500 = vperm.slane %v2650, 7
        %v5501 = vlaneseq
        %v5502 = vshrl.u32 %v5501, 7
        %5504 = vset.pattern.permute.xlu0 %v5502
        %5505 = vperm.xlu0 %5504, %v5500
        %v5506 = vpop.permute.xlu0 %5505
        %v5507 = vperm.slane %v4876, 0
        %v5508 = vperm.slane %v4876, 1
        %v5509 = vperm.slane %v4876, 2
        %v5510 = vperm.slane %v4879, 0
        %v5511 = vperm.slane %v4879, 1
        %v5512 = vperm.slane %v4879, 2
        %v5513 = vperm.slane %v4882, 0
        %v5514 = vperm.slane %v4882, 1
        %v5515 = vperm.slane %v4882, 2
        %v5516 = vperm.slane %v4885, 0
        %v5517 = vperm.slane %v4885, 1
        %v5518 = vperm.slane %v4885, 2
        %v5519 = vperm.slane %v4888, 0
        %v5520 = vperm.slane %v4888, 1
        %v5521 = vperm.slane %v4888, 2
        %v5522 = vperm.slane %v4891, 0
        %v5523 = vperm.slane %v4891, 1
        %v5524 = vperm.slane %v4891, 2
        %v5525 = vperm.slane %v4894, 0
        %v5526 = vperm.slane %v4894, 1
        %v5527 = vperm.slane %v4894, 2
        %v5528 = vperm.slane %v4897, 0
        %v5529 = vperm.slane %v4897, 1
        %v5530 = vperm.slane %v4897, 2
        %v5531 = vperm.slane %v4899, 0
        %v5532 = vperm.slane %v4899, 1
        %v5533 = vperm.slane %v4899, 2
        %v5534 = vperm.slane %v4902, 0
        %v5535 = vperm.slane %v4902, 1
        %v5536 = vperm.slane %v4902, 2
        %v5537 = vperm.slane %v4905, 0
        %v5538 = vperm.slane %v4905, 1
        %v5539 = vperm.slane %v4905, 2
        %v5540 = vperm.slane %v4908, 0
        %v5541 = vperm.slane %v4908, 1
        %v5542 = vperm.slane %v4908, 2
        %v5543 = vperm.slane %v4911, 0
        %v5544 = vperm.slane %v4911, 1
        %v5545 = vperm.slane %v4911, 2
        %v5546 = vperm.slane %v4914, 0
        %v5547 = vperm.slane %v4914, 1
        %v5548 = vperm.slane %v4914, 2
        %v5549 = vperm.slane %v4917, 0
        %v5550 = vperm.slane %v4917, 1
        %v5551 = vperm.slane %v4917, 2
        %v5552 = vperm.slane %v4920, 0
        %v5553 = vperm.slane %v4920, 1
        %v5554 = vperm.slane %v4920, 2
        %v5555 = vperm.slane %v4922, 0
        %v5556 = vperm.slane %v4922, 1
        %v5557 = vperm.slane %v4922, 2
        %v5558 = vperm.slane %v4925, 0
        %v5559 = vperm.slane %v4925, 1
        %v5560 = vperm.slane %v4925, 2
        %v5561 = vperm.slane %v4928, 0
        %v5562 = vperm.slane %v4928, 1
        %v5563 = vperm.slane %v4928, 2
        %v5564 = vperm.slane %v4931, 0
        %v5565 = vperm.slane %v4931, 1
        %v5566 = vperm.slane %v4931, 2
        %v5567 = vperm.slane %v4934, 0
        %v5568 = vperm.slane %v4934, 1
        %v5569 = vperm.slane %v4934, 2
        %v5570 = vperm.slane %v4937, 0
        %v5571 = vperm.slane %v4937, 1
        %v5572 = vperm.slane %v4937, 2
        %v5573 = vperm.slane %v4940, 0
        %v5574 = vperm.slane %v4940, 1
        %v5575 = vperm.slane %v4940, 2
        %v5576 = vperm.slane %v4943, 0
        %v5577 = vperm.slane %v4943, 1
        %v5578 = vperm.slane %v4943, 2
        %v5579 = vperm.slane %v4945, 0
        %v5580 = vperm.slane %v4945, 1
        %v5581 = vperm.slane %v4945, 2
        %v5582 = vperm.slane %v4948, 0
        %v5583 = vperm.slane %v4948, 1
        %v5584 = vperm.slane %v4948, 2
        %v5585 = vperm.slane %v4951, 0
        %v5586 = vperm.slane %v4951, 1
        %v5587 = vperm.slane %v4951, 2
        %v5588 = vperm.slane %v4954, 0
        %v5589 = vperm.slane %v4954, 1
        %v5590 = vperm.slane %v4954, 2
        %v5591 = vperm.slane %v4957, 0
        %v5592 = vperm.slane %v4957, 1
        %v5593 = vperm.slane %v4957, 2
        %v5594 = vperm.slane %v4960, 0
        %v5595 = vperm.slane %v4960, 1
        %v5596 = vperm.slane %v4960, 2
        %v5597 = vperm.slane %v4963, 0
        %v5598 = vperm.slane %v4963, 1
        %v5599 = vperm.slane %v4963, 2
        %v5600 = vperm.slane %v4966, 0
        %v5601 = vperm.slane %v4966, 1
        %v5602 = vperm.slane %v4966, 2
        %v5603 = vperm.slane %v4968, 0
        %v5604 = vperm.slane %v4968, 1
        %v5605 = vperm.slane %v4968, 2
        %v5606 = vperm.slane %v4971, 0
        %v5607 = vperm.slane %v4971, 1
        %v5608 = vperm.slane %v4971, 2
        %v5609 = vperm.slane %v4974, 0
        %v5610 = vperm.slane %v4974, 1
        %v5611 = vperm.slane %v4974, 2
        %v5612 = vperm.slane %v4977, 0
        %v5613 = vperm.slane %v4977, 1
        %v5614 = vperm.slane %v4977, 2
        %v5615 = vperm.slane %v4980, 0
        %v5616 = vperm.slane %v4980, 1
        %v5617 = vperm.slane %v4980, 2
        %v5618 = vperm.slane %v4983, 0
        %v5619 = vperm.slane %v4983, 1
        %v5620 = vperm.slane %v4983, 2
        %v5621 = vperm.slane %v4986, 0
        %v5622 = vperm.slane %v4986, 1
        %v5623 = vperm.slane %v4986, 2
        %v5624 = vperm.slane %v4989, 0
        %v5625 = vperm.slane %v4989, 1
        %v5626 = vperm.slane %v4989, 2
        %v5627 = vperm.slane %v4991, 0
        %v5628 = vperm.slane %v4991, 1
        %v5629 = vperm.slane %v4991, 2
        %v5630 = vperm.slane %v4994, 0
        %v5631 = vperm.slane %v4994, 1
        %v5632 = vperm.slane %v4994, 2
        %v5633 = vperm.slane %v4997, 0
        %v5634 = vperm.slane %v4997, 1
        %v5635 = vperm.slane %v4997, 2
        %v5636 = vperm.slane %v5000, 0
        %v5637 = vperm.slane %v5000, 1
        %v5638 = vperm.slane %v5000, 2
        %v5639 = vperm.slane %v5003, 0
        %v5640 = vperm.slane %v5003, 1
        %v5641 = vperm.slane %v5003, 2
        %v5642 = vperm.slane %v5006, 0
        %v5643 = vperm.slane %v5006, 1
        %v5644 = vperm.slane %v5006, 2
        %v5645 = vperm.slane %v5009, 0
        %v5646 = vperm.slane %v5009, 1
        %v5647 = vperm.slane %v5009, 2
        %v5648 = vperm.slane %v5012, 0
        %v5649 = vperm.slane %v5012, 1
        %v5650 = vperm.slane %v5012, 2
        %v5651 = vperm.slane %v5014, 0
        %v5652 = vperm.slane %v5014, 1
        %v5653 = vperm.slane %v5014, 2
        %v5654 = vperm.slane %v5017, 0
        %v5655 = vperm.slane %v5017, 1
        %v5656 = vperm.slane %v5017, 2
        %v5657 = vperm.slane %v5020, 0
        %v5658 = vperm.slane %v5020, 1
        %v5659 = vperm.slane %v5020, 2
        %v5660 = vperm.slane %v5023, 0
        %v5661 = vperm.slane %v5023, 1
        %v5662 = vperm.slane %v5023, 2
        %v5663 = vperm.slane %v5026, 0
        %v5664 = vperm.slane %v5026, 1
        %v5665 = vperm.slane %v5026, 2
        %v5666 = vperm.slane %v5029, 0
        %v5667 = vperm.slane %v5029, 1
        %v5668 = vperm.slane %v5029, 2
        %v5669 = vperm.slane %v5032, 0
        %v5670 = vperm.slane %v5032, 1
        %v5671 = vperm.slane %v5032, 2
        %v5672 = vperm.slane %v5035, 0
        %v5673 = vperm.slane %v5035, 1
        %v5674 = vperm.slane %v5035, 2
        %v5675 = vperm.slane %v5037, 0
        %v5676 = vperm.slane %v5037, 1
        %v5677 = vperm.slane %v5037, 2
        %v5678 = vperm.slane %v5040, 0
        %v5679 = vperm.slane %v5040, 1
        %v5680 = vperm.slane %v5040, 2
        %v5681 = vperm.slane %v5043, 0
        %v5682 = vperm.slane %v5043, 1
        %v5683 = vperm.slane %v5043, 2
        %v5684 = vperm.slane %v5046, 0
        %v5685 = vperm.slane %v5046, 1
        %v5686 = vperm.slane %v5046, 2
        %v5687 = vperm.slane %v5049, 0
        %v5688 = vperm.slane %v5049, 1
        %v5689 = vperm.slane %v5049, 2
        %v5690 = vperm.slane %v5052, 0
        %v5691 = vperm.slane %v5052, 1
        %v5692 = vperm.slane %v5052, 2
        %v5693 = vperm.slane %v5055, 0
        %v5694 = vperm.slane %v5055, 1
        %v5695 = vperm.slane %v5055, 2
        %v5696 = vperm.slane %v5058, 0
        %v5697 = vperm.slane %v5058, 1
        %v5698 = vperm.slane %v5058, 2
        %v5891 = vmul.f32 %v5507, %v5065
        %v5892 = vmul.f32 %v5508, %v5065
        %v5893 = vmul.f32 %v5509, %v5065
        %v5894 = vmul.f32 %v5510, %v5072
        %v5895 = vmul.f32 %v5511, %v5072
        %v5896 = vmul.f32 %v5512, %v5072
        %v5897 = vmul.f32 %v5513, %v5079
        %v5898 = vmul.f32 %v5514, %v5079
        %v5899 = vmul.f32 %v5515, %v5079
        %v5900 = vmul.f32 %v5516, %v5086
        %v5901 = vmul.f32 %v5517, %v5086
        %v5902 = vmul.f32 %v5518, %v5086
        %v5903 = vmul.f32 %v5519, %v5093
        %v5904 = vmul.f32 %v5520, %v5093
        %v5905 = vmul.f32 %v5521, %v5093
        %v5906 = vmul.f32 %v5522, %v5100
        %v5907 = vmul.f32 %v5523, %v5100
        %v5908 = vmul.f32 %v5524, %v5100
        %v5909 = vmul.f32 %v5525, %v5107
        %v5910 = vmul.f32 %v5526, %v5107
        %v5911 = vmul.f32 %v5527, %v5107
        %v5912 = vmul.f32 %v5528, %v5114
        %v5913 = vmul.f32 %v5529, %v5114
        %v5914 = vmul.f32 %v5530, %v5114
        %v5915 = vmul.f32 %v5531, %v5121
        %v5916 = vmul.f32 %v5532, %v5121
        %v5917 = vmul.f32 %v5533, %v5121
        %v5918 = vmul.f32 %v5534, %v5128
        %v5919 = vmul.f32 %v5535, %v5128
        %v5920 = vmul.f32 %v5536, %v5128
        %v5921 = vmul.f32 %v5537, %v5135
        %v5922 = vmul.f32 %v5538, %v5135
        %v5923 = vmul.f32 %v5539, %v5135
        %v5924 = vmul.f32 %v5540, %v5142
        %v5925 = vmul.f32 %v5541, %v5142
        %v5926 = vmul.f32 %v5542, %v5142
        %v5927 = vmul.f32 %v5543, %v5149
        %v5928 = vmul.f32 %v5544, %v5149
        %v5929 = vmul.f32 %v5545, %v5149
        %v5930 = vmul.f32 %v5546, %v5156
        %v5931 = vmul.f32 %v5547, %v5156
        %v5932 = vmul.f32 %v5548, %v5156
        %v5933 = vmul.f32 %v5549, %v5163
        %v5934 = vmul.f32 %v5550, %v5163
        %v5935 = vmul.f32 %v5551, %v5163
        %v5936 = vmul.f32 %v5552, %v5170
        %v5937 = vmul.f32 %v5553, %v5170
        %v5938 = vmul.f32 %v5554, %v5170
        %v5939 = vmul.f32 %v5555, %v5177
        %v5940 = vmul.f32 %v5556, %v5177
        %v5941 = vmul.f32 %v5557, %v5177
        %v5942 = vmul.f32 %v5558, %v5184
        %v5943 = vmul.f32 %v5559, %v5184
        %v5944 = vmul.f32 %v5560, %v5184
        %v5945 = vmul.f32 %v5561, %v5191
        %v5946 = vmul.f32 %v5562, %v5191
        %v5947 = vmul.f32 %v5563, %v5191
        %v5948 = vmul.f32 %v5564, %v5198
        %v5949 = vmul.f32 %v5565, %v5198
        %v5950 = vmul.f32 %v5566, %v5198
        %v5951 = vmul.f32 %v5567, %v5205
        %v5952 = vmul.f32 %v5568, %v5205
        %v5953 = vmul.f32 %v5569, %v5205
        %v5954 = vmul.f32 %v5570, %v5212
        %v5955 = vmul.f32 %v5571, %v5212
        %v5956 = vmul.f32 %v5572, %v5212
        %v5957 = vmul.f32 %v5573, %v5219
        %v5958 = vmul.f32 %v5574, %v5219
        %v5959 = vmul.f32 %v5575, %v5219
        %v5960 = vmul.f32 %v5576, %v5226
        %v5961 = vmul.f32 %v5577, %v5226
        %v5962 = vmul.f32 %v5578, %v5226
        %v5963 = vmul.f32 %v5579, %v5233
        %v5964 = vmul.f32 %v5580, %v5233
        %v5965 = vmul.f32 %v5581, %v5233
        %v5966 = vmul.f32 %v5582, %v5240
        %v5967 = vmul.f32 %v5583, %v5240
        %v5968 = vmul.f32 %v5584, %v5240
        %v5969 = vmul.f32 %v5585, %v5247
        %v5970 = vmul.f32 %v5586, %v5247
        %v5971 = vmul.f32 %v5587, %v5247
        %v5972 = vmul.f32 %v5588, %v5254
        %v5973 = vmul.f32 %v5589, %v5254
        %v5974 = vmul.f32 %v5590, %v5254
        %v5975 = vmul.f32 %v5591, %v5261
        %v5976 = vmul.f32 %v5592, %v5261
        %v5977 = vmul.f32 %v5593, %v5261
        %v5978 = vmul.f32 %v5594, %v5268
        %v5979 = vmul.f32 %v5595, %v5268
        %v5980 = vmul.f32 %v5596, %v5268
        %v5981 = vmul.f32 %v5597, %v5275
        %v5982 = vmul.f32 %v5598, %v5275
        %v5983 = vmul.f32 %v5599, %v5275
        %v5984 = vmul.f32 %v5600, %v5282
        %v5985 = vmul.f32 %v5601, %v5282
        %v5986 = vmul.f32 %v5602, %v5282
        %v5987 = vmul.f32 %v5603, %v5289
        %v5988 = vmul.f32 %v5604, %v5289
        %v5989 = vmul.f32 %v5605, %v5289
        %v5990 = vmul.f32 %v5606, %v5296
        %v5991 = vmul.f32 %v5607, %v5296
        %v5992 = vmul.f32 %v5608, %v5296
        %v5993 = vmul.f32 %v5609, %v5303
        %v5994 = vmul.f32 %v5610, %v5303
        %v5995 = vmul.f32 %v5611, %v5303
        %v5996 = vmul.f32 %v5612, %v5310
        %v5997 = vmul.f32 %v5613, %v5310
        %v5998 = vmul.f32 %v5614, %v5310
        %v5999 = vmul.f32 %v5615, %v5317
        %v6000 = vmul.f32 %v5616, %v5317
        %v6001 = vmul.f32 %v5617, %v5317
        %v6002 = vmul.f32 %v5618, %v5324
        %v6003 = vmul.f32 %v5619, %v5324
        %v6004 = vmul.f32 %v5620, %v5324
        %v6005 = vmul.f32 %v5621, %v5331
        %v6006 = vmul.f32 %v5622, %v5331
        %v6007 = vmul.f32 %v5623, %v5331
        %v6008 = vmul.f32 %v5624, %v5338
        %v6009 = vmul.f32 %v5625, %v5338
        %v6010 = vmul.f32 %v5626, %v5338
        %v6011 = vmul.f32 %v5627, %v5345
        %v6012 = vmul.f32 %v5628, %v5345
        %v6013 = vmul.f32 %v5629, %v5345
        %v6014 = vmul.f32 %v5630, %v5352
        %v6015 = vmul.f32 %v5631, %v5352
        %v6016 = vmul.f32 %v5632, %v5352
        %v6017 = vmul.f32 %v5633, %v5359
        %v6018 = vmul.f32 %v5634, %v5359
        %v6019 = vmul.f32 %v5635, %v5359
        %v6020 = vmul.f32 %v5636, %v5366
        %v6021 = vmul.f32 %v5637, %v5366
        %v6022 = vmul.f32 %v5638, %v5366
        %v6023 = vmul.f32 %v5639, %v5373
        %v6024 = vmul.f32 %v5640, %v5373
        %v6025 = vmul.f32 %v5641, %v5373
        %v6026 = vmul.f32 %v5642, %v5380
        %v6027 = vmul.f32 %v5643, %v5380
        %v6028 = vmul.f32 %v5644, %v5380
        %v6029 = vmul.f32 %v5645, %v5387
        %v6030 = vmul.f32 %v5646, %v5387
        %v6031 = vmul.f32 %v5647, %v5387
        %v6032 = vmul.f32 %v5648, %v5394
        %v6033 = vmul.f32 %v5649, %v5394
        %v6034 = vmul.f32 %v5650, %v5394
        %v6035 = vmul.f32 %v5651, %v5401
        %v6036 = vmul.f32 %v5652, %v5401
        %v6037 = vmul.f32 %v5653, %v5401
        %v6038 = vmul.f32 %v5654, %v5408
        %v6039 = vmul.f32 %v5655, %v5408
        %v6040 = vmul.f32 %v5656, %v5408
        %v6041 = vmul.f32 %v5657, %v5415
        %v6042 = vmul.f32 %v5658, %v5415
        %v6043 = vmul.f32 %v5659, %v5415
        %v6044 = vmul.f32 %v5660, %v5422
        %v6045 = vmul.f32 %v5661, %v5422
        %v6046 = vmul.f32 %v5662, %v5422
        %v6047 = vmul.f32 %v5663, %v5429
        %v6048 = vmul.f32 %v5664, %v5429
        %v6049 = vmul.f32 %v5665, %v5429
        %v6050 = vmul.f32 %v5666, %v5436
        %v6051 = vmul.f32 %v5667, %v5436
        %v6052 = vmul.f32 %v5668, %v5436
        %v6053 = vmul.f32 %v5669, %v5443
        %v6054 = vmul.f32 %v5670, %v5443
        %v6055 = vmul.f32 %v5671, %v5443
        %v6056 = vmul.f32 %v5672, %v5450
        %v6057 = vmul.f32 %v5673, %v5450
        %v6058 = vmul.f32 %v5674, %v5450
        %v6059 = vmul.f32 %v5675, %v5457
        %v6060 = vmul.f32 %v5676, %v5457
        %v6061 = vmul.f32 %v5677, %v5457
        %v6062 = vmul.f32 %v5678, %v5464
        %v6063 = vmul.f32 %v5679, %v5464
        %v6064 = vmul.f32 %v5680, %v5464
        %v6065 = vmul.f32 %v5681, %v5471
        %v6066 = vmul.f32 %v5682, %v5471
        %v6067 = vmul.f32 %v5683, %v5471
        %v6068 = vmul.f32 %v5684, %v5478
        %v6069 = vmul.f32 %v5685, %v5478
        %v6070 = vmul.f32 %v5686, %v5478
        %v6071 = vmul.f32 %v5687, %v5485
        %v6072 = vmul.f32 %v5688, %v5485
        %v6073 = vmul.f32 %v5689, %v5485
        %v6074 = vmul.f32 %v5690, %v5492
        %v6075 = vmul.f32 %v5691, %v5492
        %v6076 = vmul.f32 %v5692, %v5492
        %v6077 = vmul.f32 %v5693, %v5499
        %v6078 = vmul.f32 %v5694, %v5499
        %v6079 = vmul.f32 %v5695, %v5499
        %v6080 = vmul.f32 %v5696, %v5506
        %v6081 = vmul.f32 %v5697, %v5506
        %v6082 = vmul.f32 %v5698, %v5506
        %6083 = vst [vmem:[#allocation4] sm:$0xff] %v5891
        %6084 = vst [vmem:[#allocation4 + $0x8] sm:$0xff] %v5892
        %6085 = vst.msk [vmem:[#allocation4 + $0x10] sm:$0xff] %vm1199, %v5893
        %6086 = vst [vmem:[#allocation4 + $0x18] sm:$0xff] %v5894
        %6087 = vst [vmem:[#allocation4 + $0x20] sm:$0xff] %v5895
        %6088 = vst.msk [vmem:[#allocation4 + $0x28] sm:$0xff] %vm1199, %v5896
        %6089 = vst [vmem:[#allocation4 + $0x30] sm:$0xff] %v5897
        %6090 = vst [vmem:[#allocation4 + $0x38] sm:$0xff] %v5898
        %6091 = vst.msk [vmem:[#allocation4 + $0x40] sm:$0xff] %vm1199, %v5899
        %6092 = vst [vmem:[#allocation4 + $0x48] sm:$0xff] %v5900
        %6093 = vst [vmem:[#allocation4 + $0x50] sm:$0xff] %v5901
        %6094 = vst.msk [vmem:[#allocation4 + $0x58] sm:$0xff] %vm1199, %v5902
        %6095 = vst [vmem:[#allocation4 + $0x60] sm:$0xff] %v5903
        %6096 = vst [vmem:[#allocation4 + $0x68] sm:$0xff] %v5904
        %6097 = vst.msk [vmem:[#allocation4 + $0x70] sm:$0xff] %vm1199, %v5905
        %6098 = vst [vmem:[#allocation4 + $0x78] sm:$0xff] %v5906
        %6099 = vst [vmem:[#allocation4 + $0x80] sm:$0xff] %v5907
        %6100 = vst.msk [vmem:[#allocation4 + $0x88] sm:$0xff] %vm1199, %v5908
        %6101 = vst [vmem:[#allocation4 + $0x90] sm:$0xff] %v5909
        %6102 = vst [vmem:[#allocation4 + $0x98] sm:$0xff] %v5910
        %6103 = vst.msk [vmem:[#allocation4 + $0xa0] sm:$0xff] %vm1199, %v5911
        %6104 = vst [vmem:[#allocation4 + $0xa8] sm:$0xff] %v5912
        %6105 = vst [vmem:[#allocation4 + $0xb0] sm:$0xff] %v5913
        %6106 = vst.msk [vmem:[#allocation4 + $0xb8] sm:$0xff] %vm1199, %v5914
        %6107 = vst [vmem:[#allocation4 + $0xc0] sm:$0xff] %v5915
        %6108 = vst [vmem:[#allocation4 + $0xc8] sm:$0xff] %v5916
        %6109 = vst.msk [vmem:[#allocation4 + $0xd0] sm:$0xff] %vm1199, %v5917
        %6110 = vst [vmem:[#allocation4 + $0xd8] sm:$0xff] %v5918
        %6111 = vst [vmem:[#allocation4 + $0xe0] sm:$0xff] %v5919
        %6112 = vst.msk [vmem:[#allocation4 + $0xe8] sm:$0xff] %vm1199, %v5920
        %6113 = vst [vmem:[#allocation4 + $0xf0] sm:$0xff] %v5921
        %6114 = vst [vmem:[#allocation4 + $0xf8] sm:$0xff] %v5922
        %6115 = vst.msk [vmem:[#allocation4 + $0x100] sm:$0xff] %vm1199, %v5923
        %6116 = vst [vmem:[#allocation4 + $0x108] sm:$0xff] %v5924
        %6117 = vst [vmem:[#allocation4 + $0x110] sm:$0xff] %v5925
        %6118 = vst.msk [vmem:[#allocation4 + $0x118] sm:$0xff] %vm1199, %v5926
        %6119 = vst [vmem:[#allocation4 + $0x120] sm:$0xff] %v5927
        %6120 = vst [vmem:[#allocation4 + $0x128] sm:$0xff] %v5928
        %6121 = vst.msk [vmem:[#allocation4 + $0x130] sm:$0xff] %vm1199, %v5929
        %6122 = vst [vmem:[#allocation4 + $0x138] sm:$0xff] %v5930
        %6123 = vst [vmem:[#allocation4 + $0x140] sm:$0xff] %v5931
        %6124 = vst.msk [vmem:[#allocation4 + $0x148] sm:$0xff] %vm1199, %v5932
        %6125 = vst [vmem:[#allocation4 + $0x150] sm:$0xff] %v5933
        %6126 = vst [vmem:[#allocation4 + $0x158] sm:$0xff] %v5934
        %6127 = vst.msk [vmem:[#allocation4 + $0x160] sm:$0xff] %vm1199, %v5935
        %6128 = vst [vmem:[#allocation4 + $0x168] sm:$0xff] %v5936
        %6129 = vst [vmem:[#allocation4 + $0x170] sm:$0xff] %v5937
        %6130 = vst.msk [vmem:[#allocation4 + $0x178] sm:$0xff] %vm1199, %v5938
        %6131 = vst [vmem:[#allocation4 + $0x180] sm:$0xff] %v5939
        %6132 = vst [vmem:[#allocation4 + $0x188] sm:$0xff] %v5940
        %6133 = vst.msk [vmem:[#allocation4 + $0x190] sm:$0xff] %vm1199, %v5941
        %6134 = vst [vmem:[#allocation4 + $0x198] sm:$0xff] %v5942
        %6135 = vst [vmem:[#allocation4 + $0x1a0] sm:$0xff] %v5943
        %6136 = vst.msk [vmem:[#allocation4 + $0x1a8] sm:$0xff] %vm1199, %v5944
        %6137 = vst [vmem:[#allocation4 + $0x1b0] sm:$0xff] %v5945
        %6138 = vst [vmem:[#allocation4 + $0x1b8] sm:$0xff] %v5946
        %6139 = vst.msk [vmem:[#allocation4 + $0x1c0] sm:$0xff] %vm1199, %v5947
        %6140 = vst [vmem:[#allocation4 + $0x1c8] sm:$0xff] %v5948
        %6141 = vst [vmem:[#allocation4 + $0x1d0] sm:$0xff] %v5949
        %6142 = vst.msk [vmem:[#allocation4 + $0x1d8] sm:$0xff] %vm1199, %v5950
        %6143 = vst [vmem:[#allocation4 + $0x1e0] sm:$0xff] %v5951
        %6144 = vst [vmem:[#allocation4 + $0x1e8] sm:$0xff] %v5952
        %6145 = vst.msk [vmem:[#allocation4 + $0x1f0] sm:$0xff] %vm1199, %v5953
        %6146 = vst [vmem:[#allocation4 + $0x1f8] sm:$0xff] %v5954
        %6147 = vst [vmem:[#allocation4 + $0x200] sm:$0xff] %v5955
        %6148 = vst.msk [vmem:[#allocation4 + $0x208] sm:$0xff] %vm1199, %v5956
        %6149 = vst [vmem:[#allocation4 + $0x210] sm:$0xff] %v5957
        %6150 = vst [vmem:[#allocation4 + $0x218] sm:$0xff] %v5958
        %6151 = vst.msk [vmem:[#allocation4 + $0x220] sm:$0xff] %vm1199, %v5959
        %6152 = vst [vmem:[#allocation4 + $0x228] sm:$0xff] %v5960
        %6153 = vst [vmem:[#allocation4 + $0x230] sm:$0xff] %v5961
        %6154 = vst.msk [vmem:[#allocation4 + $0x238] sm:$0xff] %vm1199, %v5962
        %6155 = vst [vmem:[#allocation4 + $0x240] sm:$0xff] %v5963
        %6156 = vst [vmem:[#allocation4 + $0x248] sm:$0xff] %v5964
        %6157 = vst.msk [vmem:[#allocation4 + $0x250] sm:$0xff] %vm1199, %v5965
        %6158 = vst [vmem:[#allocation4 + $0x258] sm:$0xff] %v5966
        %6159 = vst [vmem:[#allocation4 + $0x260] sm:$0xff] %v5967
        %6160 = vst.msk [vmem:[#allocation4 + $0x268] sm:$0xff] %vm1199, %v5968
        %6161 = vst [vmem:[#allocation4 + $0x270] sm:$0xff] %v5969
        %6162 = vst [vmem:[#allocation4 + $0x278] sm:$0xff] %v5970
        %6163 = vst.msk [vmem:[#allocation4 + $0x280] sm:$0xff] %vm1199, %v5971
        %6164 = vst [vmem:[#allocation4 + $0x288] sm:$0xff] %v5972
        %6165 = vst [vmem:[#allocation4 + $0x290] sm:$0xff] %v5973
        %6166 = vst.msk [vmem:[#allocation4 + $0x298] sm:$0xff] %vm1199, %v5974
        %6167 = vst [vmem:[#allocation4 + $0x2a0] sm:$0xff] %v5975
        %6168 = vst [vmem:[#allocation4 + $0x2a8] sm:$0xff] %v5976
        %6169 = vst.msk [vmem:[#allocation4 + $0x2b0] sm:$0xff] %vm1199, %v5977
        %6170 = vst [vmem:[#allocation4 + $0x2b8] sm:$0xff] %v5978
        %6171 = vst [vmem:[#allocation4 + $0x2c0] sm:$0xff] %v5979
        %6172 = vst.msk [vmem:[#allocation4 + $0x2c8] sm:$0xff] %vm1199, %v5980
        %6173 = vst [vmem:[#allocation4 + $0x2d0] sm:$0xff] %v5981
        %6174 = vst [vmem:[#allocation4 + $0x2d8] sm:$0xff] %v5982
        %6175 = vst.msk [vmem:[#allocation4 + $0x2e0] sm:$0xff] %vm1199, %v5983
        %6176 = vst [vmem:[#allocation4 + $0x2e8] sm:$0xff] %v5984
        %6177 = vst [vmem:[#allocation4 + $0x2f0] sm:$0xff] %v5985
        %6178 = vst.msk [vmem:[#allocation4 + $0x2f8] sm:$0xff] %vm1199, %v5986
        %6179 = vst [vmem:[#allocation4 + $0x300] sm:$0xff] %v5987
        %6180 = vst [vmem:[#allocation4 + $0x308] sm:$0xff] %v5988
        %6181 = vst.msk [vmem:[#allocation4 + $0x310] sm:$0xff] %vm1199, %v5989
        %6182 = vst [vmem:[#allocation4 + $0x318] sm:$0xff] %v5990
        %6183 = vst [vmem:[#allocation4 + $0x320] sm:$0xff] %v5991
        %6184 = vst.msk [vmem:[#allocation4 + $0x328] sm:$0xff] %vm1199, %v5992
        %6185 = vst [vmem:[#allocation4 + $0x330] sm:$0xff] %v5993
        %6186 = vst [vmem:[#allocation4 + $0x338] sm:$0xff] %v5994
        %6187 = vst.msk [vmem:[#allocation4 + $0x340] sm:$0xff] %vm1199, %v5995
        %6188 = vst [vmem:[#allocation4 + $0x348] sm:$0xff] %v5996
        %6189 = vst [vmem:[#allocation4 + $0x350] sm:$0xff] %v5997
        %6190 = vst.msk [vmem:[#allocation4 + $0x358] sm:$0xff] %vm1199, %v5998
        %6191 = vst [vmem:[#allocation4 + $0x360] sm:$0xff] %v5999
        %6192 = vst [vmem:[#allocation4 + $0x368] sm:$0xff] %v6000
        %6193 = vst.msk [vmem:[#allocation4 + $0x370] sm:$0xff] %vm1199, %v6001
        %6194 = vst [vmem:[#allocation4 + $0x378] sm:$0xff] %v6002
        %6195 = vst [vmem:[#allocation4 + $0x380] sm:$0xff] %v6003
        %6196 = vst.msk [vmem:[#allocation4 + $0x388] sm:$0xff] %vm1199, %v6004
        %6197 = vst [vmem:[#allocation4 + $0x390] sm:$0xff] %v6005
        %6198 = vst [vmem:[#allocation4 + $0x398] sm:$0xff] %v6006
        %6199 = vst.msk [vmem:[#allocation4 + $0x3a0] sm:$0xff] %vm1199, %v6007
        %6200 = vst [vmem:[#allocation4 + $0x3a8] sm:$0xff] %v6008
        %6201 = vst [vmem:[#allocation4 + $0x3b0] sm:$0xff] %v6009
        %6202 = vst.msk [vmem:[#allocation4 + $0x3b8] sm:$0xff] %vm1199, %v6010
        %6203 = vst [vmem:[#allocation4 + $0x3c0] sm:$0xff] %v6011
        %6204 = vst [vmem:[#allocation4 + $0x3c8] sm:$0xff] %v6012
        %6205 = vst.msk [vmem:[#allocation4 + $0x3d0] sm:$0xff] %vm1199, %v6013
        %6206 = vst [vmem:[#allocation4 + $0x3d8] sm:$0xff] %v6014
        %6207 = vst [vmem:[#allocation4 + $0x3e0] sm:$0xff] %v6015
        %6208 = vst.msk [vmem:[#allocation4 + $0x3e8] sm:$0xff] %vm1199, %v6016
        %6209 = vst [vmem:[#allocation4 + $0x3f0] sm:$0xff] %v6017
        %6210 = vst [vmem:[#allocation4 + $0x3f8] sm:$0xff] %v6018
        %6211 = vst.msk [vmem:[#allocation4 + $0x400] sm:$0xff] %vm1199, %v6019
        %6212 = vst [vmem:[#allocation4 + $0x408] sm:$0xff] %v6020
        %6213 = vst [vmem:[#allocation4 + $0x410] sm:$0xff] %v6021
        %6214 = vst.msk [vmem:[#allocation4 + $0x418] sm:$0xff] %vm1199, %v6022
        %6215 = vst [vmem:[#allocation4 + $0x420] sm:$0xff] %v6023
        %6216 = vst [vmem:[#allocation4 + $0x428] sm:$0xff] %v6024
        %6217 = vst.msk [vmem:[#allocation4 + $0x430] sm:$0xff] %vm1199, %v6025
        %6218 = vst [vmem:[#allocation4 + $0x438] sm:$0xff] %v6026
        %6219 = vst [vmem:[#allocation4 + $0x440] sm:$0xff] %v6027
        %6220 = vst.msk [vmem:[#allocation4 + $0x448] sm:$0xff] %vm1199, %v6028
        %6221 = vst [vmem:[#allocation4 + $0x450] sm:$0xff] %v6029
        %6222 = vst [vmem:[#allocation4 + $0x458] sm:$0xff] %v6030
        %6223 = vst.msk [vmem:[#allocation4 + $0x460] sm:$0xff] %vm1199, %v6031
        %6224 = vst [vmem:[#allocation4 + $0x468] sm:$0xff] %v6032
        %6225 = vst [vmem:[#allocation4 + $0x470] sm:$0xff] %v6033
        %6226 = vst.msk [vmem:[#allocation4 + $0x478] sm:$0xff] %vm1199, %v6034
        %6227 = vst [vmem:[#allocation4 + $0x480] sm:$0xff] %v6035
        %6228 = vst [vmem:[#allocation4 + $0x488] sm:$0xff] %v6036
        %6229 = vst.msk [vmem:[#allocation4 + $0x490] sm:$0xff] %vm1199, %v6037
        %6230 = vst [vmem:[#allocation4 + $0x498] sm:$0xff] %v6038
        %6231 = vst [vmem:[#allocation4 + $0x4a0] sm:$0xff] %v6039
        %6232 = vst.msk [vmem:[#allocation4 + $0x4a8] sm:$0xff] %vm1199, %v6040
        %6233 = vst [vmem:[#allocation4 + $0x4b0] sm:$0xff] %v6041
        %6234 = vst [vmem:[#allocation4 + $0x4b8] sm:$0xff] %v6042
        %6235 = vst.msk [vmem:[#allocation4 + $0x4c0] sm:$0xff] %vm1199, %v6043
        %6236 = vst [vmem:[#allocation4 + $0x4c8] sm:$0xff] %v6044
        %6237 = vst [vmem:[#allocation4 + $0x4d0] sm:$0xff] %v6045
        %6238 = vst.msk [vmem:[#allocation4 + $0x4d8] sm:$0xff] %vm1199, %v6046
        %6239 = vst [vmem:[#allocation4 + $0x4e0] sm:$0xff] %v6047
        %6240 = vst [vmem:[#allocation4 + $0x4e8] sm:$0xff] %v6048
        %6241 = vst.msk [vmem:[#allocation4 + $0x4f0] sm:$0xff] %vm1199, %v6049
        %6242 = vst [vmem:[#allocation4 + $0x4f8] sm:$0xff] %v6050
        %6243 = vst [vmem:[#allocation4 + $0x500] sm:$0xff] %v6051
        %6244 = vst.msk [vmem:[#allocation4 + $0x508] sm:$0xff] %vm1199, %v6052
        %6245 = vst [vmem:[#allocation4 + $0x510] sm:$0xff] %v6053
        %6246 = vst [vmem:[#allocation4 + $0x518] sm:$0xff] %v6054
        %6247 = vst.msk [vmem:[#allocation4 + $0x520] sm:$0xff] %vm1199, %v6055
        %6248 = vst [vmem:[#allocation4 + $0x528] sm:$0xff] %v6056
        %6249 = vst [vmem:[#allocation4 + $0x530] sm:$0xff] %v6057
        %6250 = vst.msk [vmem:[#allocation4 + $0x538] sm:$0xff] %vm1199, %v6058
        %6251 = vst [vmem:[#allocation4 + $0x540] sm:$0xff] %v6059
        %6252 = vst [vmem:[#allocation4 + $0x548] sm:$0xff] %v6060
        %6253 = vst.msk [vmem:[#allocation4 + $0x550] sm:$0xff] %vm1199, %v6061
        %6254 = vst [vmem:[#allocation4 + $0x558] sm:$0xff] %v6062
        %6255 = vst [vmem:[#allocation4 + $0x560] sm:$0xff] %v6063
        %6256 = vst.msk [vmem:[#allocation4 + $0x568] sm:$0xff] %vm1199, %v6064
        %6257 = vst [vmem:[#allocation4 + $0x570] sm:$0xff] %v6065
        %6258 = vst [vmem:[#allocation4 + $0x578] sm:$0xff] %v6066
        %6259 = vst.msk [vmem:[#allocation4 + $0x580] sm:$0xff] %vm1199, %v6067
        %6260 = vst [vmem:[#allocation4 + $0x588] sm:$0xff] %v6068
        %6261 = vst [vmem:[#allocation4 + $0x590] sm:$0xff] %v6069
        %6262 = vst.msk [vmem:[#allocation4 + $0x598] sm:$0xff] %vm1199, %v6070
        %6263 = vst [vmem:[#allocation4 + $0x5a0] sm:$0xff] %v6071
        %6264 = vst [vmem:[#allocation4 + $0x5a8] sm:$0xff] %v6072
        %6265 = vst.msk [vmem:[#allocation4 + $0x5b0] sm:$0xff] %vm1199, %v6073
        %6266 = vst [vmem:[#allocation4 + $0x5b8] sm:$0xff] %v6074
        %6267 = vst [vmem:[#allocation4 + $0x5c0] sm:$0xff] %v6075
        %6268 = vst.msk [vmem:[#allocation4 + $0x5c8] sm:$0xff] %vm1199, %v6076
        %6269 = vst [vmem:[#allocation4 + $0x5d0] sm:$0xff] %v6077
        %6270 = vst [vmem:[#allocation4 + $0x5d8] sm:$0xff] %v6078
        %6271 = vst.msk [vmem:[#allocation4 + $0x5e0] sm:$0xff] %vm1199, %v6079
        %6272 = vst [vmem:[#allocation4 + $0x5e8] sm:$0xff] %v6080
        %6273 = vst [vmem:[#allocation4 + $0x5f0] sm:$0xff] %v6081
        %6274 = vst.msk [vmem:[#allocation4 + $0x5f8] sm:$0xff] %vm1199, %v6082
        loop: start=0, step=1, limit=64
        $region73: #{mamba_layer_forward.3} parent=71 // loop_pre_header
          _
        $region74: #{mamba_layer_forward.3} parent=71 // loop_header
          %s6276 = sphi 0, %s6280
          %p6277 = scmp.ge.s32.totalorder %s6276, 64
          %v6281 = vphi 0.0, %v6298
          %v6282 = vphi 0.0, %v6299
          %v6283 = vphi 0.0, %v6300
        $region75: #{mamba_layer_forward.3} parent=71 // loop_header_branch
          %6279 = sbr.rel (%p6277) target = $region79
        $region76: #{mamba_layer_forward.3} parent=71 // loop_body
          %s6284 = smul.u32 %s6276, 3
          %s6285 = smul.addr %s6284, 8
          %s6286 = scalar_lea.vmem [#allocation3], %s6285
          %v6287 = vld [vmem:[%s6286] sm:$0xff]
          %v6288 = vld [vmem:[%s6286 + $0x8] sm:$0xff]
          %v6289 = vld [vmem:[%s6286 + $0x10] sm:$0xff]
          %v6290 = vmul.f32 %v6287, %v6281
          %v6291 = vmul.f32 %v6288, %v6282
          %v6292 = vmul.f32 %v6289, %v6283
          %s6293 = smul.addr %s6284, 8
          %s6294 = scalar_lea.vmem [#allocation4], %s6293
          %v6295 = vld [vmem:[%s6294] sm:$0xff]
          %v6296 = vld [vmem:[%s6294 + $0x8] sm:$0xff]
          %v6297 = vld [vmem:[%s6294 + $0x10] sm:$0xff]
          %v6298 = vadd.f32 %v6290, %v6295
          %v6299 = vadd.f32 %v6291, %v6296
          %v6300 = vadd.f32 %v6292, %v6297
          %s6301 = smul.addr %s6284, 8
          %s6302 = scalar_lea.vmem [#allocation5], %s6301
          %6303 = vst [vmem:[%s6302] sm:$0xff] %v6298
          %6304 = vst [vmem:[%s6302 + $0x8] sm:$0xff] %v6299
          %6305 = vst.msk [vmem:[%s6302 + $0x10] sm:$0xff] %vm1199, %v6300
        $region77: #{mamba_layer_forward.3} parent=71 // loop_footer
          %s6280 = sadd.s32 1, %s6276
        $region78: #{mamba_layer_forward.3} parent=71 // loop_footer_branch
          %6275 = sbr.rel target = $region74
        $region79: #{mamba_layer_forward.3} parent=71 // loop_exit
          _
        %v6306 = vld [vmem:[#allocation5] sm:$0xff]
        %v6307 = vld [vmem:[#allocation5 + $0x8] sm:$0xff]
        %v6308 = vld [vmem:[#allocation5 + $0x10] sm:$0xff]
        %v6309 = vld [vmem:[#allocation5 + $0x18] sm:$0xff]
        %v6310 = vld [vmem:[#allocation5 + $0x20] sm:$0xff]
        %v6311 = vld [vmem:[#allocation5 + $0x28] sm:$0xff]
        %v6312 = vld [vmem:[#allocation5 + $0x30] sm:$0xff]
        %v6313 = vld [vmem:[#allocation5 + $0x38] sm:$0xff]
        %v6314 = vld [vmem:[#allocation5 + $0x40] sm:$0xff]
        %v6315 = vld [vmem:[#allocation5 + $0x48] sm:$0xff]
        %v6316 = vld [vmem:[#allocation5 + $0x50] sm:$0xff]
        %v6317 = vld [vmem:[#allocation5 + $0x58] sm:$0xff]
        %v6318 = vld [vmem:[#allocation5 + $0x60] sm:$0xff]
        %v6319 = vld [vmem:[#allocation5 + $0x68] sm:$0xff]
        %v6320 = vld [vmem:[#allocation5 + $0x70] sm:$0xff]
        %v6321 = vld [vmem:[#allocation5 + $0x78] sm:$0xff]
        %v6322 = vld [vmem:[#allocation5 + $0x80] sm:$0xff]
        %v6323 = vld [vmem:[#allocation5 + $0x88] sm:$0xff]
        %v6324 = vld [vmem:[#allocation5 + $0x90] sm:$0xff]
        %v6325 = vld [vmem:[#allocation5 + $0x98] sm:$0xff]
        %v6326 = vld [vmem:[#allocation5 + $0xa0] sm:$0xff]
        %v6327 = vld [vmem:[#allocation5 + $0xa8] sm:$0xff]
        %v6328 = vld [vmem:[#allocation5 + $0xb0] sm:$0xff]
        %v6329 = vld [vmem:[#allocation5 + $0xb8] sm:$0xff]
        %v6330 = vld [vmem:[#allocation5 + $0xc0] sm:$0xff]
        %v6331 = vld [vmem:[#allocation5 + $0xc8] sm:$0xff]
        %v6332 = vld [vmem:[#allocation5 + $0xd0] sm:$0xff]
        %v6333 = vld [vmem:[#allocation5 + $0xd8] sm:$0xff]
        %v6334 = vld [vmem:[#allocation5 + $0xe0] sm:$0xff]
        %v6335 = vld [vmem:[#allocation5 + $0xe8] sm:$0xff]
        %v6336 = vld [vmem:[#allocation5 + $0xf0] sm:$0xff]
        %v6337 = vld [vmem:[#allocation5 + $0xf8] sm:$0xff]
        %v6338 = vld [vmem:[#allocation5 + $0x100] sm:$0xff]
        %v6339 = vld [vmem:[#allocation5 + $0x108] sm:$0xff]
        %v6340 = vld [vmem:[#allocation5 + $0x110] sm:$0xff]
        %v6341 = vld [vmem:[#allocation5 + $0x118] sm:$0xff]
        %v6342 = vld [vmem:[#allocation5 + $0x120] sm:$0xff]
        %v6343 = vld [vmem:[#allocation5 + $0x128] sm:$0xff]
        %v6344 = vld [vmem:[#allocation5 + $0x130] sm:$0xff]
        %v6345 = vld [vmem:[#allocation5 + $0x138] sm:$0xff]
        %v6346 = vld [vmem:[#allocation5 + $0x140] sm:$0xff]
        %v6347 = vld [vmem:[#allocation5 + $0x148] sm:$0xff]
        %v6348 = vld [vmem:[#allocation5 + $0x150] sm:$0xff]
        %v6349 = vld [vmem:[#allocation5 + $0x158] sm:$0xff]
        %v6350 = vld [vmem:[#allocation5 + $0x160] sm:$0xff]
        %v6351 = vld [vmem:[#allocation5 + $0x168] sm:$0xff]
        %v6352 = vld [vmem:[#allocation5 + $0x170] sm:$0xff]
        %v6353 = vld [vmem:[#allocation5 + $0x178] sm:$0xff]
        %v6354 = vld [vmem:[#allocation5 + $0x180] sm:$0xff]
        %v6355 = vld [vmem:[#allocation5 + $0x188] sm:$0xff]
        %v6356 = vld [vmem:[#allocation5 + $0x190] sm:$0xff]
        %v6357 = vld [vmem:[#allocation5 + $0x198] sm:$0xff]
        %v6358 = vld [vmem:[#allocation5 + $0x1a0] sm:$0xff]
        %v6359 = vld [vmem:[#allocation5 + $0x1a8] sm:$0xff]
        %v6360 = vld [vmem:[#allocation5 + $0x1b0] sm:$0xff]
        %v6361 = vld [vmem:[#allocation5 + $0x1b8] sm:$0xff]
        %v6362 = vld [vmem:[#allocation5 + $0x1c0] sm:$0xff]
        %v6363 = vld [vmem:[#allocation5 + $0x1c8] sm:$0xff]
        %v6364 = vld [vmem:[#allocation5 + $0x1d0] sm:$0xff]
        %v6365 = vld [vmem:[#allocation5 + $0x1d8] sm:$0xff]
        %v6366 = vld [vmem:[#allocation5 + $0x1e0] sm:$0xff]
        %v6367 = vld [vmem:[#allocation5 + $0x1e8] sm:$0xff]
        %v6368 = vld [vmem:[#allocation5 + $0x1f0] sm:$0xff]
        %v6369 = vld [vmem:[#allocation5 + $0x1f8] sm:$0xff]
        %v6370 = vld [vmem:[#allocation5 + $0x200] sm:$0xff]
        %v6371 = vld [vmem:[#allocation5 + $0x208] sm:$0xff]
        %v6372 = vld [vmem:[#allocation5 + $0x210] sm:$0xff]
        %v6373 = vld [vmem:[#allocation5 + $0x218] sm:$0xff]
        %v6374 = vld [vmem:[#allocation5 + $0x220] sm:$0xff]
        %v6375 = vld [vmem:[#allocation5 + $0x228] sm:$0xff]
        %v6376 = vld [vmem:[#allocation5 + $0x230] sm:$0xff]
        %v6377 = vld [vmem:[#allocation5 + $0x238] sm:$0xff]
        %v6378 = vld [vmem:[#allocation5 + $0x240] sm:$0xff]
        %v6379 = vld [vmem:[#allocation5 + $0x248] sm:$0xff]
        %v6380 = vld [vmem:[#allocation5 + $0x250] sm:$0xff]
        %v6381 = vld [vmem:[#allocation5 + $0x258] sm:$0xff]
        %v6382 = vld [vmem:[#allocation5 + $0x260] sm:$0xff]
        %v6383 = vld [vmem:[#allocation5 + $0x268] sm:$0xff]
        %v6384 = vld [vmem:[#allocation5 + $0x270] sm:$0xff]
        %v6385 = vld [vmem:[#allocation5 + $0x278] sm:$0xff]
        %v6386 = vld [vmem:[#allocation5 + $0x280] sm:$0xff]
        %v6387 = vld [vmem:[#allocation5 + $0x288] sm:$0xff]
        %v6388 = vld [vmem:[#allocation5 + $0x290] sm:$0xff]
        %v6389 = vld [vmem:[#allocation5 + $0x298] sm:$0xff]
        %v6390 = vld [vmem:[#allocation5 + $0x2a0] sm:$0xff]
        %v6391 = vld [vmem:[#allocation5 + $0x2a8] sm:$0xff]
        %v6392 = vld [vmem:[#allocation5 + $0x2b0] sm:$0xff]
        %v6393 = vld [vmem:[#allocation5 + $0x2b8] sm:$0xff]
        %v6394 = vld [vmem:[#allocation5 + $0x2c0] sm:$0xff]
        %v6395 = vld [vmem:[#allocation5 + $0x2c8] sm:$0xff]
        %v6396 = vld [vmem:[#allocation5 + $0x2d0] sm:$0xff]
        %v6397 = vld [vmem:[#allocation5 + $0x2d8] sm:$0xff]
        %v6398 = vld [vmem:[#allocation5 + $0x2e0] sm:$0xff]
        %v6399 = vld [vmem:[#allocation5 + $0x2e8] sm:$0xff]
        %v6400 = vld [vmem:[#allocation5 + $0x2f0] sm:$0xff]
        %v6401 = vld [vmem:[#allocation5 + $0x2f8] sm:$0xff]
        %v6402 = vld [vmem:[#allocation5 + $0x300] sm:$0xff]
        %v6403 = vld [vmem:[#allocation5 + $0x308] sm:$0xff]
        %v6404 = vld [vmem:[#allocation5 + $0x310] sm:$0xff]
        %v6405 = vld [vmem:[#allocation5 + $0x318] sm:$0xff]
        %v6406 = vld [vmem:[#allocation5 + $0x320] sm:$0xff]
        %v6407 = vld [vmem:[#allocation5 + $0x328] sm:$0xff]
        %v6408 = vld [vmem:[#allocation5 + $0x330] sm:$0xff]
        %v6409 = vld [vmem:[#allocation5 + $0x338] sm:$0xff]
        %v6410 = vld [vmem:[#allocation5 + $0x340] sm:$0xff]
        %v6411 = vld [vmem:[#allocation5 + $0x348] sm:$0xff]
        %v6412 = vld [vmem:[#allocation5 + $0x350] sm:$0xff]
        %v6413 = vld [vmem:[#allocation5 + $0x358] sm:$0xff]
        %v6414 = vld [vmem:[#allocation5 + $0x360] sm:$0xff]
        %v6415 = vld [vmem:[#allocation5 + $0x368] sm:$0xff]
        %v6416 = vld [vmem:[#allocation5 + $0x370] sm:$0xff]
        %v6417 = vld [vmem:[#allocation5 + $0x378] sm:$0xff]
        %v6418 = vld [vmem:[#allocation5 + $0x380] sm:$0xff]
        %v6419 = vld [vmem:[#allocation5 + $0x388] sm:$0xff]
        %v6420 = vld [vmem:[#allocation5 + $0x390] sm:$0xff]
        %v6421 = vld [vmem:[#allocation5 + $0x398] sm:$0xff]
        %v6422 = vld [vmem:[#allocation5 + $0x3a0] sm:$0xff]
        %v6423 = vld [vmem:[#allocation5 + $0x3a8] sm:$0xff]
        %v6424 = vld [vmem:[#allocation5 + $0x3b0] sm:$0xff]
        %v6425 = vld [vmem:[#allocation5 + $0x3b8] sm:$0xff]
        %v6426 = vld [vmem:[#allocation5 + $0x3c0] sm:$0xff]
        %v6427 = vld [vmem:[#allocation5 + $0x3c8] sm:$0xff]
        %v6428 = vld [vmem:[#allocation5 + $0x3d0] sm:$0xff]
        %v6429 = vld [vmem:[#allocation5 + $0x3d8] sm:$0xff]
        %v6430 = vld [vmem:[#allocation5 + $0x3e0] sm:$0xff]
        %v6431 = vld [vmem:[#allocation5 + $0x3e8] sm:$0xff]
        %v6432 = vld [vmem:[#allocation5 + $0x3f0] sm:$0xff]
        %v6433 = vld [vmem:[#allocation5 + $0x3f8] sm:$0xff]
        %v6434 = vld [vmem:[#allocation5 + $0x400] sm:$0xff]
        %v6435 = vld [vmem:[#allocation5 + $0x408] sm:$0xff]
        %v6436 = vld [vmem:[#allocation5 + $0x410] sm:$0xff]
        %v6437 = vld [vmem:[#allocation5 + $0x418] sm:$0xff]
        %v6438 = vld [vmem:[#allocation5 + $0x420] sm:$0xff]
        %v6439 = vld [vmem:[#allocation5 + $0x428] sm:$0xff]
        %v6440 = vld [vmem:[#allocation5 + $0x430] sm:$0xff]
        %v6441 = vld [vmem:[#allocation5 + $0x438] sm:$0xff]
        %v6442 = vld [vmem:[#allocation5 + $0x440] sm:$0xff]
        %v6443 = vld [vmem:[#allocation5 + $0x448] sm:$0xff]
        %v6444 = vld [vmem:[#allocation5 + $0x450] sm:$0xff]
        %v6445 = vld [vmem:[#allocation5 + $0x458] sm:$0xff]
        %v6446 = vld [vmem:[#allocation5 + $0x460] sm:$0xff]
        %v6447 = vld [vmem:[#allocation5 + $0x468] sm:$0xff]
        %v6448 = vld [vmem:[#allocation5 + $0x470] sm:$0xff]
        %v6449 = vld [vmem:[#allocation5 + $0x478] sm:$0xff]
        %v6450 = vld [vmem:[#allocation5 + $0x480] sm:$0xff]
        %v6451 = vld [vmem:[#allocation5 + $0x488] sm:$0xff]
        %v6452 = vld [vmem:[#allocation5 + $0x490] sm:$0xff]
        %v6453 = vld [vmem:[#allocation5 + $0x498] sm:$0xff]
        %v6454 = vld [vmem:[#allocation5 + $0x4a0] sm:$0xff]
        %v6455 = vld [vmem:[#allocation5 + $0x4a8] sm:$0xff]
        %v6456 = vld [vmem:[#allocation5 + $0x4b0] sm:$0xff]
        %v6457 = vld [vmem:[#allocation5 + $0x4b8] sm:$0xff]
        %v6458 = vld [vmem:[#allocation5 + $0x4c0] sm:$0xff]
        %v6459 = vld [vmem:[#allocation5 + $0x4c8] sm:$0xff]
        %v6460 = vld [vmem:[#allocation5 + $0x4d0] sm:$0xff]
        %v6461 = vld [vmem:[#allocation5 + $0x4d8] sm:$0xff]
        %v6462 = vld [vmem:[#allocation5 + $0x4e0] sm:$0xff]
        %v6463 = vld [vmem:[#allocation5 + $0x4e8] sm:$0xff]
        %v6464 = vld [vmem:[#allocation5 + $0x4f0] sm:$0xff]
        %v6465 = vld [vmem:[#allocation5 + $0x4f8] sm:$0xff]
        %v6466 = vld [vmem:[#allocation5 + $0x500] sm:$0xff]
        %v6467 = vld [vmem:[#allocation5 + $0x508] sm:$0xff]
        %v6468 = vld [vmem:[#allocation5 + $0x510] sm:$0xff]
        %v6469 = vld [vmem:[#allocation5 + $0x518] sm:$0xff]
        %v6470 = vld [vmem:[#allocation5 + $0x520] sm:$0xff]
        %v6471 = vld [vmem:[#allocation5 + $0x528] sm:$0xff]
        %v6472 = vld [vmem:[#allocation5 + $0x530] sm:$0xff]
        %v6473 = vld [vmem:[#allocation5 + $0x538] sm:$0xff]
        %v6474 = vld [vmem:[#allocation5 + $0x540] sm:$0xff]
        %v6475 = vld [vmem:[#allocation5 + $0x548] sm:$0xff]
        %v6476 = vld [vmem:[#allocation5 + $0x550] sm:$0xff]
        %v6477 = vld [vmem:[#allocation5 + $0x558] sm:$0xff]
        %v6478 = vld [vmem:[#allocation5 + $0x560] sm:$0xff]
        %v6479 = vld [vmem:[#allocation5 + $0x568] sm:$0xff]
        %v6480 = vld [vmem:[#allocation5 + $0x570] sm:$0xff]
        %v6481 = vld [vmem:[#allocation5 + $0x578] sm:$0xff]
        %v6482 = vld [vmem:[#allocation5 + $0x580] sm:$0xff]
        %v6483 = vld [vmem:[#allocation5 + $0x588] sm:$0xff]
        %v6484 = vld [vmem:[#allocation5 + $0x590] sm:$0xff]
        %v6485 = vld [vmem:[#allocation5 + $0x598] sm:$0xff]
        %v6486 = vld [vmem:[#allocation5 + $0x5a0] sm:$0xff]
        %v6487 = vld [vmem:[#allocation5 + $0x5a8] sm:$0xff]
        %v6488 = vld [vmem:[#allocation5 + $0x5b0] sm:$0xff]
        %v6489 = vld [vmem:[#allocation5 + $0x5b8] sm:$0xff]
        %v6490 = vld [vmem:[#allocation5 + $0x5c0] sm:$0xff]
        %v6491 = vld [vmem:[#allocation5 + $0x5c8] sm:$0xff]
        %v6492 = vld [vmem:[#allocation5 + $0x5d0] sm:$0xff]
        %v6493 = vld [vmem:[#allocation5 + $0x5d8] sm:$0xff]
        %v6494 = vld [vmem:[#allocation5 + $0x5e0] sm:$0xff]
        %v6495 = vld [vmem:[#allocation5 + $0x5e8] sm:$0xff]
        %v6496 = vld [vmem:[#allocation5 + $0x5f0] sm:$0xff]
        %v6497 = vld [vmem:[#allocation5 + $0x5f8] sm:$0xff]
        %v6498 = vperm.slane %v2792, 0
        %v6499 = vlaneseq
        %v6500 = vshrl.u32 %v6499, 7
        %6502 = vset.pattern.permute.xlu0 %v6500
        %6503 = vperm.xlu0 %6502, %v6498
        %v6504 = vpop.permute.xlu0 %6503
        %v6505 = vperm.slane %v2792, 1
        %v6506 = vlaneseq
        %v6507 = vshrl.u32 %v6506, 7
        %6509 = vset.pattern.permute.xlu0 %v6507
        %6510 = vperm.xlu0 %6509, %v6505
        %v6511 = vpop.permute.xlu0 %6510
        %v6512 = vperm.slane %v2792, 2
        %v6513 = vlaneseq
        %v6514 = vshrl.u32 %v6513, 7
        %6516 = vset.pattern.permute.xlu0 %v6514
        %6517 = vperm.xlu0 %6516, %v6512
        %v6518 = vpop.permute.xlu0 %6517
        %v6519 = vperm.slane %v2792, 3
        %v6520 = vlaneseq
        %v6521 = vshrl.u32 %v6520, 7
        %6523 = vset.pattern.permute.xlu0 %v6521
        %6524 = vperm.xlu0 %6523, %v6519
        %v6525 = vpop.permute.xlu0 %6524
        %v6526 = vperm.slane %v2792, 4
        %v6527 = vlaneseq
        %v6528 = vshrl.u32 %v6527, 7
        %6530 = vset.pattern.permute.xlu0 %v6528
        %6531 = vperm.xlu0 %6530, %v6526
        %v6532 = vpop.permute.xlu0 %6531
        %v6533 = vperm.slane %v2792, 5
        %v6534 = vlaneseq
        %v6535 = vshrl.u32 %v6534, 7
        %6537 = vset.pattern.permute.xlu0 %v6535
        %6538 = vperm.xlu0 %6537, %v6533
        %v6539 = vpop.permute.xlu0 %6538
        %v6540 = vperm.slane %v2792, 6
        %v6541 = vlaneseq
        %v6542 = vshrl.u32 %v6541, 7
        %6544 = vset.pattern.permute.xlu0 %v6542
        %6545 = vperm.xlu0 %6544, %v6540
        %v6546 = vpop.permute.xlu0 %6545
        %v6547 = vperm.slane %v2792, 7
        %v6548 = vlaneseq
        %v6549 = vshrl.u32 %v6548, 7
        %6551 = vset.pattern.permute.xlu0 %v6549
        %6552 = vperm.xlu0 %6551, %v6547
        %v6553 = vpop.permute.xlu0 %6552
        %v6554 = vperm.slane %v2795, 0
        %v6555 = vlaneseq
        %v6556 = vshrl.u32 %v6555, 7
        %6558 = vset.pattern.permute.xlu0 %v6556
        %6559 = vperm.xlu0 %6558, %v6554
        %v6560 = vpop.permute.xlu0 %6559
        %v6561 = vperm.slane %v2795, 1
        %v6562 = vlaneseq
        %v6563 = vshrl.u32 %v6562, 7
        %6565 = vset.pattern.permute.xlu0 %v6563
        %6566 = vperm.xlu0 %6565, %v6561
        %v6567 = vpop.permute.xlu0 %6566
        %v6568 = vperm.slane %v2795, 2
        %v6569 = vlaneseq
        %v6570 = vshrl.u32 %v6569, 7
        %6572 = vset.pattern.permute.xlu0 %v6570
        %6573 = vperm.xlu0 %6572, %v6568
        %v6574 = vpop.permute.xlu0 %6573
        %v6575 = vperm.slane %v2795, 3
        %v6576 = vlaneseq
        %v6577 = vshrl.u32 %v6576, 7
        %6579 = vset.pattern.permute.xlu0 %v6577
        %6580 = vperm.xlu0 %6579, %v6575
        %v6581 = vpop.permute.xlu0 %6580
        %v6582 = vperm.slane %v2795, 4
        %v6583 = vlaneseq
        %v6584 = vshrl.u32 %v6583, 7
        %6586 = vset.pattern.permute.xlu0 %v6584
        %6587 = vperm.xlu0 %6586, %v6582
        %v6588 = vpop.permute.xlu0 %6587
        %v6589 = vperm.slane %v2795, 5
        %v6590 = vlaneseq
        %v6591 = vshrl.u32 %v6590, 7
        %6593 = vset.pattern.permute.xlu0 %v6591
        %6594 = vperm.xlu0 %6593, %v6589
        %v6595 = vpop.permute.xlu0 %6594
        %v6596 = vperm.slane %v2795, 6
        %v6597 = vlaneseq
        %v6598 = vshrl.u32 %v6597, 7
        %6600 = vset.pattern.permute.xlu0 %v6598
        %6601 = vperm.xlu0 %6600, %v6596
        %v6602 = vpop.permute.xlu0 %6601
        %v6603 = vperm.slane %v2795, 7
        %v6604 = vlaneseq
        %v6605 = vshrl.u32 %v6604, 7
        %6607 = vset.pattern.permute.xlu0 %v6605
        %6608 = vperm.xlu0 %6607, %v6603
        %v6609 = vpop.permute.xlu0 %6608
        %v6610 = vperm.slane %v2798, 0
        %v6611 = vlaneseq
        %v6612 = vshrl.u32 %v6611, 7
        %6614 = vset.pattern.permute.xlu0 %v6612
        %6615 = vperm.xlu0 %6614, %v6610
        %v6616 = vpop.permute.xlu0 %6615
        %v6617 = vperm.slane %v2798, 1
        %v6618 = vlaneseq
        %v6619 = vshrl.u32 %v6618, 7
        %6621 = vset.pattern.permute.xlu0 %v6619
        %6622 = vperm.xlu0 %6621, %v6617
        %v6623 = vpop.permute.xlu0 %6622
        %v6624 = vperm.slane %v2798, 2
        %v6625 = vlaneseq
        %v6626 = vshrl.u32 %v6625, 7
        %6628 = vset.pattern.permute.xlu0 %v6626
        %6629 = vperm.xlu0 %6628, %v6624
        %v6630 = vpop.permute.xlu0 %6629
        %v6631 = vperm.slane %v2798, 3
        %v6632 = vlaneseq
        %v6633 = vshrl.u32 %v6632, 7
        %6635 = vset.pattern.permute.xlu0 %v6633
        %6636 = vperm.xlu0 %6635, %v6631
        %v6637 = vpop.permute.xlu0 %6636
        %v6638 = vperm.slane %v2798, 4
        %v6639 = vlaneseq
        %v6640 = vshrl.u32 %v6639, 7
        %6642 = vset.pattern.permute.xlu0 %v6640
        %6643 = vperm.xlu0 %6642, %v6638
        %v6644 = vpop.permute.xlu0 %6643
        %v6645 = vperm.slane %v2798, 5
        %v6646 = vlaneseq
        %v6647 = vshrl.u32 %v6646, 7
        %6649 = vset.pattern.permute.xlu0 %v6647
        %6650 = vperm.xlu0 %6649, %v6645
        %v6651 = vpop.permute.xlu0 %6650
        %v6652 = vperm.slane %v2798, 6
        %v6653 = vlaneseq
        %v6654 = vshrl.u32 %v6653, 7
        %6656 = vset.pattern.permute.xlu0 %v6654
        %6657 = vperm.xlu0 %6656, %v6652
        %v6658 = vpop.permute.xlu0 %6657
        %v6659 = vperm.slane %v2798, 7
        %v6660 = vlaneseq
        %v6661 = vshrl.u32 %v6660, 7
        %6663 = vset.pattern.permute.xlu0 %v6661
        %6664 = vperm.xlu0 %6663, %v6659
        %v6665 = vpop.permute.xlu0 %6664
        %v6666 = vperm.slane %v2801, 0
        %v6667 = vlaneseq
        %v6668 = vshrl.u32 %v6667, 7
        %6670 = vset.pattern.permute.xlu0 %v6668
        %6671 = vperm.xlu0 %6670, %v6666
        %v6672 = vpop.permute.xlu0 %6671
        %v6673 = vperm.slane %v2801, 1
        %v6674 = vlaneseq
        %v6675 = vshrl.u32 %v6674, 7
        %6677 = vset.pattern.permute.xlu0 %v6675
        %6678 = vperm.xlu0 %6677, %v6673
        %v6679 = vpop.permute.xlu0 %6678
        %v6680 = vperm.slane %v2801, 2
        %v6681 = vlaneseq
        %v6682 = vshrl.u32 %v6681, 7
        %6684 = vset.pattern.permute.xlu0 %v6682
        %6685 = vperm.xlu0 %6684, %v6680
        %v6686 = vpop.permute.xlu0 %6685
        %v6687 = vperm.slane %v2801, 3
        %v6688 = vlaneseq
        %v6689 = vshrl.u32 %v6688, 7
        %6691 = vset.pattern.permute.xlu0 %v6689
        %6692 = vperm.xlu0 %6691, %v6687
        %v6693 = vpop.permute.xlu0 %6692
        %v6694 = vperm.slane %v2801, 4
        %v6695 = vlaneseq
        %v6696 = vshrl.u32 %v6695, 7
        %6698 = vset.pattern.permute.xlu0 %v6696
        %6699 = vperm.xlu0 %6698, %v6694
        %v6700 = vpop.permute.xlu0 %6699
        %v6701 = vperm.slane %v2801, 5
        %v6702 = vlaneseq
        %v6703 = vshrl.u32 %v6702, 7
        %6705 = vset.pattern.permute.xlu0 %v6703
        %6706 = vperm.xlu0 %6705, %v6701
        %v6707 = vpop.permute.xlu0 %6706
        %v6708 = vperm.slane %v2801, 6
        %v6709 = vlaneseq
        %v6710 = vshrl.u32 %v6709, 7
        %6712 = vset.pattern.permute.xlu0 %v6710
        %6713 = vperm.xlu0 %6712, %v6708
        %v6714 = vpop.permute.xlu0 %6713
        %v6715 = vperm.slane %v2801, 7
        %v6716 = vlaneseq
        %v6717 = vshrl.u32 %v6716, 7
        %6719 = vset.pattern.permute.xlu0 %v6717
        %6720 = vperm.xlu0 %6719, %v6715
        %v6721 = vpop.permute.xlu0 %6720
        %v6722 = vperm.slane %v2804, 0
        %v6723 = vlaneseq
        %v6724 = vshrl.u32 %v6723, 7
        %6726 = vset.pattern.permute.xlu0 %v6724
        %6727 = vperm.xlu0 %6726, %v6722
        %v6728 = vpop.permute.xlu0 %6727
        %v6729 = vperm.slane %v2804, 1
        %v6730 = vlaneseq
        %v6731 = vshrl.u32 %v6730, 7
        %6733 = vset.pattern.permute.xlu0 %v6731
        %6734 = vperm.xlu0 %6733, %v6729
        %v6735 = vpop.permute.xlu0 %6734
        %v6736 = vperm.slane %v2804, 2
        %v6737 = vlaneseq
        %v6738 = vshrl.u32 %v6737, 7
        %6740 = vset.pattern.permute.xlu0 %v6738
        %6741 = vperm.xlu0 %6740, %v6736
        %v6742 = vpop.permute.xlu0 %6741
        %v6743 = vperm.slane %v2804, 3
        %v6744 = vlaneseq
        %v6745 = vshrl.u32 %v6744, 7
        %6747 = vset.pattern.permute.xlu0 %v6745
        %6748 = vperm.xlu0 %6747, %v6743
        %v6749 = vpop.permute.xlu0 %6748
        %v6750 = vperm.slane %v2804, 4
        %v6751 = vlaneseq
        %v6752 = vshrl.u32 %v6751, 7
        %6754 = vset.pattern.permute.xlu0 %v6752
        %6755 = vperm.xlu0 %6754, %v6750
        %v6756 = vpop.permute.xlu0 %6755
        %v6757 = vperm.slane %v2804, 5
        %v6758 = vlaneseq
        %v6759 = vshrl.u32 %v6758, 7
        %6761 = vset.pattern.permute.xlu0 %v6759
        %6762 = vperm.xlu0 %6761, %v6757
        %v6763 = vpop.permute.xlu0 %6762
        %v6764 = vperm.slane %v2804, 6
        %v6765 = vlaneseq
        %v6766 = vshrl.u32 %v6765, 7
        %6768 = vset.pattern.permute.xlu0 %v6766
        %6769 = vperm.xlu0 %6768, %v6764
        %v6770 = vpop.permute.xlu0 %6769
        %v6771 = vperm.slane %v2804, 7
        %v6772 = vlaneseq
        %v6773 = vshrl.u32 %v6772, 7
        %6775 = vset.pattern.permute.xlu0 %v6773
        %6776 = vperm.xlu0 %6775, %v6771
        %v6777 = vpop.permute.xlu0 %6776
        %v6778 = vperm.slane %v2807, 0
        %v6779 = vlaneseq
        %v6780 = vshrl.u32 %v6779, 7
        %6782 = vset.pattern.permute.xlu0 %v6780
        %6783 = vperm.xlu0 %6782, %v6778
        %v6784 = vpop.permute.xlu0 %6783
        %v6785 = vperm.slane %v2807, 1
        %v6786 = vlaneseq
        %v6787 = vshrl.u32 %v6786, 7
        %6789 = vset.pattern.permute.xlu0 %v6787
        %6790 = vperm.xlu0 %6789, %v6785
        %v6791 = vpop.permute.xlu0 %6790
        %v6792 = vperm.slane %v2807, 2
        %v6793 = vlaneseq
        %v6794 = vshrl.u32 %v6793, 7
        %6796 = vset.pattern.permute.xlu0 %v6794
        %6797 = vperm.xlu0 %6796, %v6792
        %v6798 = vpop.permute.xlu0 %6797
        %v6799 = vperm.slane %v2807, 3
        %v6800 = vlaneseq
        %v6801 = vshrl.u32 %v6800, 7
        %6803 = vset.pattern.permute.xlu0 %v6801
        %6804 = vperm.xlu0 %6803, %v6799
        %v6805 = vpop.permute.xlu0 %6804
        %v6806 = vperm.slane %v2807, 4
        %v6807 = vlaneseq
        %v6808 = vshrl.u32 %v6807, 7
        %6810 = vset.pattern.permute.xlu0 %v6808
        %6811 = vperm.xlu0 %6810, %v6806
        %v6812 = vpop.permute.xlu0 %6811
        %v6813 = vperm.slane %v2807, 5
        %v6814 = vlaneseq
        %v6815 = vshrl.u32 %v6814, 7
        %6817 = vset.pattern.permute.xlu0 %v6815
        %6818 = vperm.xlu0 %6817, %v6813
        %v6819 = vpop.permute.xlu0 %6818
        %v6820 = vperm.slane %v2807, 6
        %v6821 = vlaneseq
        %v6822 = vshrl.u32 %v6821, 7
        %6824 = vset.pattern.permute.xlu0 %v6822
        %6825 = vperm.xlu0 %6824, %v6820
        %v6826 = vpop.permute.xlu0 %6825
        %v6827 = vperm.slane %v2807, 7
        %v6828 = vlaneseq
        %v6829 = vshrl.u32 %v6828, 7
        %6831 = vset.pattern.permute.xlu0 %v6829
        %6832 = vperm.xlu0 %6831, %v6827
        %v6833 = vpop.permute.xlu0 %6832
        %v6834 = vperm.slane %v2810, 0
        %v6835 = vlaneseq
        %v6836 = vshrl.u32 %v6835, 7
        %6838 = vset.pattern.permute.xlu0 %v6836
        %6839 = vperm.xlu0 %6838, %v6834
        %v6840 = vpop.permute.xlu0 %6839
        %v6841 = vperm.slane %v2810, 1
        %v6842 = vlaneseq
        %v6843 = vshrl.u32 %v6842, 7
        %6845 = vset.pattern.permute.xlu0 %v6843
        %6846 = vperm.xlu0 %6845, %v6841
        %v6847 = vpop.permute.xlu0 %6846
        %v6848 = vperm.slane %v2810, 2
        %v6849 = vlaneseq
        %v6850 = vshrl.u32 %v6849, 7
        %6852 = vset.pattern.permute.xlu0 %v6850
        %6853 = vperm.xlu0 %6852, %v6848
        %v6854 = vpop.permute.xlu0 %6853
        %v6855 = vperm.slane %v2810, 3
        %v6856 = vlaneseq
        %v6857 = vshrl.u32 %v6856, 7
        %6859 = vset.pattern.permute.xlu0 %v6857
        %6860 = vperm.xlu0 %6859, %v6855
        %v6861 = vpop.permute.xlu0 %6860
        %v6862 = vperm.slane %v2810, 4
        %v6863 = vlaneseq
        %v6864 = vshrl.u32 %v6863, 7
        %6866 = vset.pattern.permute.xlu0 %v6864
        %6867 = vperm.xlu0 %6866, %v6862
        %v6868 = vpop.permute.xlu0 %6867
        %v6869 = vperm.slane %v2810, 5
        %v6870 = vlaneseq
        %v6871 = vshrl.u32 %v6870, 7
        %6873 = vset.pattern.permute.xlu0 %v6871
        %6874 = vperm.xlu0 %6873, %v6869
        %v6875 = vpop.permute.xlu0 %6874
        %v6876 = vperm.slane %v2810, 6
        %v6877 = vlaneseq
        %v6878 = vshrl.u32 %v6877, 7
        %6880 = vset.pattern.permute.xlu0 %v6878
        %6881 = vperm.xlu0 %6880, %v6876
        %v6882 = vpop.permute.xlu0 %6881
        %v6883 = vperm.slane %v2810, 7
        %v6884 = vlaneseq
        %v6885 = vshrl.u32 %v6884, 7
        %6887 = vset.pattern.permute.xlu0 %v6885
        %6888 = vperm.xlu0 %6887, %v6883
        %v6889 = vpop.permute.xlu0 %6888
        %v6890 = vperm.slane %v2813, 0
        %v6891 = vlaneseq
        %v6892 = vshrl.u32 %v6891, 7
        %6894 = vset.pattern.permute.xlu0 %v6892
        %6895 = vperm.xlu0 %6894, %v6890
        %v6896 = vpop.permute.xlu0 %6895
        %v6897 = vperm.slane %v2813, 1
        %v6898 = vlaneseq
        %v6899 = vshrl.u32 %v6898, 7
        %6901 = vset.pattern.permute.xlu0 %v6899
        %6902 = vperm.xlu0 %6901, %v6897
        %v6903 = vpop.permute.xlu0 %6902
        %v6904 = vperm.slane %v2813, 2
        %v6905 = vlaneseq
        %v6906 = vshrl.u32 %v6905, 7
        %6908 = vset.pattern.permute.xlu0 %v6906
        %6909 = vperm.xlu0 %6908, %v6904
        %v6910 = vpop.permute.xlu0 %6909
        %v6911 = vperm.slane %v2813, 3
        %v6912 = vlaneseq
        %v6913 = vshrl.u32 %v6912, 7
        %6915 = vset.pattern.permute.xlu0 %v6913
        %6916 = vperm.xlu0 %6915, %v6911
        %v6917 = vpop.permute.xlu0 %6916
        %v6918 = vperm.slane %v2813, 4
        %v6919 = vlaneseq
        %v6920 = vshrl.u32 %v6919, 7
        %6922 = vset.pattern.permute.xlu0 %v6920
        %6923 = vperm.xlu0 %6922, %v6918
        %v6924 = vpop.permute.xlu0 %6923
        %v6925 = vperm.slane %v2813, 5
        %v6926 = vlaneseq
        %v6927 = vshrl.u32 %v6926, 7
        %6929 = vset.pattern.permute.xlu0 %v6927
        %6930 = vperm.xlu0 %6929, %v6925
        %v6931 = vpop.permute.xlu0 %6930
        %v6932 = vperm.slane %v2813, 6
        %v6933 = vlaneseq
        %v6934 = vshrl.u32 %v6933, 7
        %6936 = vset.pattern.permute.xlu0 %v6934
        %6937 = vperm.xlu0 %6936, %v6932
        %v6938 = vpop.permute.xlu0 %6937
        %v6939 = vperm.slane %v2813, 7
        %v6940 = vlaneseq
        %v6941 = vshrl.u32 %v6940, 7
        %6943 = vset.pattern.permute.xlu0 %v6941
        %6944 = vperm.xlu0 %6943, %v6939
        %v6945 = vpop.permute.xlu0 %6944
        %v6946 = vmul.f32 %v6306, %v6504
        %v6947 = vmul.f32 %v6307, %v6504
        %v6948 = vmul.f32 %v6308, %v6504
        %v6949 = vmul.f32 %v6309, %v6511
        %v6950 = vmul.f32 %v6310, %v6511
        %v6951 = vmul.f32 %v6311, %v6511
        %v6952 = vmul.f32 %v6312, %v6518
        %v6953 = vmul.f32 %v6313, %v6518
        %v6954 = vmul.f32 %v6314, %v6518
        %v6955 = vmul.f32 %v6315, %v6525
        %v6956 = vmul.f32 %v6316, %v6525
        %v6957 = vmul.f32 %v6317, %v6525
        %v6958 = vmul.f32 %v6318, %v6532
        %v6959 = vmul.f32 %v6319, %v6532
        %v6960 = vmul.f32 %v6320, %v6532
        %v6961 = vmul.f32 %v6321, %v6539
        %v6962 = vmul.f32 %v6322, %v6539
        %v6963 = vmul.f32 %v6323, %v6539
        %v6964 = vmul.f32 %v6324, %v6546
        %v6965 = vmul.f32 %v6325, %v6546
        %v6966 = vmul.f32 %v6326, %v6546
        %v6967 = vmul.f32 %v6327, %v6553
        %v6968 = vmul.f32 %v6328, %v6553
        %v6969 = vmul.f32 %v6329, %v6553
        %v6970 = vmul.f32 %v6330, %v6560
        %v6971 = vmul.f32 %v6331, %v6560
        %v6972 = vmul.f32 %v6332, %v6560
        %v6973 = vmul.f32 %v6333, %v6567
        %v6974 = vmul.f32 %v6334, %v6567
        %v6975 = vmul.f32 %v6335, %v6567
        %v6976 = vmul.f32 %v6336, %v6574
        %v6977 = vmul.f32 %v6337, %v6574
        %v6978 = vmul.f32 %v6338, %v6574
        %v6979 = vmul.f32 %v6339, %v6581
        %v6980 = vmul.f32 %v6340, %v6581
        %v6981 = vmul.f32 %v6341, %v6581
        %v6982 = vmul.f32 %v6342, %v6588
        %v6983 = vmul.f32 %v6343, %v6588
        %v6984 = vmul.f32 %v6344, %v6588
        %v6985 = vmul.f32 %v6345, %v6595
        %v6986 = vmul.f32 %v6346, %v6595
        %v6987 = vmul.f32 %v6347, %v6595
        %v6988 = vmul.f32 %v6348, %v6602
        %v6989 = vmul.f32 %v6349, %v6602
        %v6990 = vmul.f32 %v6350, %v6602
        %v6991 = vmul.f32 %v6351, %v6609
        %v6992 = vmul.f32 %v6352, %v6609
        %v6993 = vmul.f32 %v6353, %v6609
        %v6994 = vmul.f32 %v6354, %v6616
        %v6995 = vmul.f32 %v6355, %v6616
        %v6996 = vmul.f32 %v6356, %v6616
        %v6997 = vmul.f32 %v6357, %v6623
        %v6998 = vmul.f32 %v6358, %v6623
        %v6999 = vmul.f32 %v6359, %v6623
        %v7000 = vmul.f32 %v6360, %v6630
        %v7001 = vmul.f32 %v6361, %v6630
        %v7002 = vmul.f32 %v6362, %v6630
        %v7003 = vmul.f32 %v6363, %v6637
        %v7004 = vmul.f32 %v6364, %v6637
        %v7005 = vmul.f32 %v6365, %v6637
        %v7006 = vmul.f32 %v6366, %v6644
        %v7007 = vmul.f32 %v6367, %v6644
        %v7008 = vmul.f32 %v6368, %v6644
        %v7009 = vmul.f32 %v6369, %v6651
        %v7010 = vmul.f32 %v6370, %v6651
        %v7011 = vmul.f32 %v6371, %v6651
        %v7012 = vmul.f32 %v6372, %v6658
        %v7013 = vmul.f32 %v6373, %v6658
        %v7014 = vmul.f32 %v6374, %v6658
        %v7015 = vmul.f32 %v6375, %v6665
        %v7016 = vmul.f32 %v6376, %v6665
        %v7017 = vmul.f32 %v6377, %v6665
        %v7018 = vmul.f32 %v6378, %v6672
        %v7019 = vmul.f32 %v6379, %v6672
        %v7020 = vmul.f32 %v6380, %v6672
        %v7021 = vmul.f32 %v6381, %v6679
        %v7022 = vmul.f32 %v6382, %v6679
        %v7023 = vmul.f32 %v6383, %v6679
        %v7024 = vmul.f32 %v6384, %v6686
        %v7025 = vmul.f32 %v6385, %v6686
        %v7026 = vmul.f32 %v6386, %v6686
        %v7027 = vmul.f32 %v6387, %v6693
        %v7028 = vmul.f32 %v6388, %v6693
        %v7029 = vmul.f32 %v6389, %v6693
        %v7030 = vmul.f32 %v6390, %v6700
        %v7031 = vmul.f32 %v6391, %v6700
        %v7032 = vmul.f32 %v6392, %v6700
        %v7033 = vmul.f32 %v6393, %v6707
        %v7034 = vmul.f32 %v6394, %v6707
        %v7035 = vmul.f32 %v6395, %v6707
        %v7036 = vmul.f32 %v6396, %v6714
        %v7037 = vmul.f32 %v6397, %v6714
        %v7038 = vmul.f32 %v6398, %v6714
        %v7039 = vmul.f32 %v6399, %v6721
        %v7040 = vmul.f32 %v6400, %v6721
        %v7041 = vmul.f32 %v6401, %v6721
        %v7042 = vmul.f32 %v6402, %v6728
        %v7043 = vmul.f32 %v6403, %v6728
        %v7044 = vmul.f32 %v6404, %v6728
        %v7045 = vmul.f32 %v6405, %v6735
        %v7046 = vmul.f32 %v6406, %v6735
        %v7047 = vmul.f32 %v6407, %v6735
        %v7048 = vmul.f32 %v6408, %v6742
        %v7049 = vmul.f32 %v6409, %v6742
        %v7050 = vmul.f32 %v6410, %v6742
        %v7051 = vmul.f32 %v6411, %v6749
        %v7052 = vmul.f32 %v6412, %v6749
        %v7053 = vmul.f32 %v6413, %v6749
        %v7054 = vmul.f32 %v6414, %v6756
        %v7055 = vmul.f32 %v6415, %v6756
        %v7056 = vmul.f32 %v6416, %v6756
        %v7057 = vmul.f32 %v6417, %v6763
        %v7058 = vmul.f32 %v6418, %v6763
        %v7059 = vmul.f32 %v6419, %v6763
        %v7060 = vmul.f32 %v6420, %v6770
        %v7061 = vmul.f32 %v6421, %v6770
        %v7062 = vmul.f32 %v6422, %v6770
        %v7063 = vmul.f32 %v6423, %v6777
        %v7064 = vmul.f32 %v6424, %v6777
        %v7065 = vmul.f32 %v6425, %v6777
        %v7066 = vmul.f32 %v6426, %v6784
        %v7067 = vmul.f32 %v6427, %v6784
        %v7068 = vmul.f32 %v6428, %v6784
        %v7069 = vmul.f32 %v6429, %v6791
        %v7070 = vmul.f32 %v6430, %v6791
        %v7071 = vmul.f32 %v6431, %v6791
        %v7072 = vmul.f32 %v6432, %v6798
        %v7073 = vmul.f32 %v6433, %v6798
        %v7074 = vmul.f32 %v6434, %v6798
        %v7075 = vmul.f32 %v6435, %v6805
        %v7076 = vmul.f32 %v6436, %v6805
        %v7077 = vmul.f32 %v6437, %v6805
        %v7078 = vmul.f32 %v6438, %v6812
        %v7079 = vmul.f32 %v6439, %v6812
        %v7080 = vmul.f32 %v6440, %v6812
        %v7081 = vmul.f32 %v6441, %v6819
        %v7082 = vmul.f32 %v6442, %v6819
        %v7083 = vmul.f32 %v6443, %v6819
        %v7084 = vmul.f32 %v6444, %v6826
        %v7085 = vmul.f32 %v6445, %v6826
        %v7086 = vmul.f32 %v6446, %v6826
        %v7087 = vmul.f32 %v6447, %v6833
        %v7088 = vmul.f32 %v6448, %v6833
        %v7089 = vmul.f32 %v6449, %v6833
        %v7090 = vmul.f32 %v6450, %v6840
        %v7091 = vmul.f32 %v6451, %v6840
        %v7092 = vmul.f32 %v6452, %v6840
        %v7093 = vmul.f32 %v6453, %v6847
        %v7094 = vmul.f32 %v6454, %v6847
        %v7095 = vmul.f32 %v6455, %v6847
        %v7096 = vmul.f32 %v6456, %v6854
        %v7097 = vmul.f32 %v6457, %v6854
        %v7098 = vmul.f32 %v6458, %v6854
        %v7099 = vmul.f32 %v6459, %v6861
        %v7100 = vmul.f32 %v6460, %v6861
        %v7101 = vmul.f32 %v6461, %v6861
        %v7102 = vmul.f32 %v6462, %v6868
        %v7103 = vmul.f32 %v6463, %v6868
        %v7104 = vmul.f32 %v6464, %v6868
        %v7105 = vmul.f32 %v6465, %v6875
        %v7106 = vmul.f32 %v6466, %v6875
        %v7107 = vmul.f32 %v6467, %v6875
        %v7108 = vmul.f32 %v6468, %v6882
        %v7109 = vmul.f32 %v6469, %v6882
        %v7110 = vmul.f32 %v6470, %v6882
        %v7111 = vmul.f32 %v6471, %v6889
        %v7112 = vmul.f32 %v6472, %v6889
        %v7113 = vmul.f32 %v6473, %v6889
        %v7114 = vmul.f32 %v6474, %v6896
        %v7115 = vmul.f32 %v6475, %v6896
        %v7116 = vmul.f32 %v6476, %v6896
        %v7117 = vmul.f32 %v6477, %v6903
        %v7118 = vmul.f32 %v6478, %v6903
        %v7119 = vmul.f32 %v6479, %v6903
        %v7120 = vmul.f32 %v6480, %v6910
        %v7121 = vmul.f32 %v6481, %v6910
        %v7122 = vmul.f32 %v6482, %v6910
        %v7123 = vmul.f32 %v6483, %v6917
        %v7124 = vmul.f32 %v6484, %v6917
        %v7125 = vmul.f32 %v6485, %v6917
        %v7126 = vmul.f32 %v6486, %v6924
        %v7127 = vmul.f32 %v6487, %v6924
        %v7128 = vmul.f32 %v6488, %v6924
        %v7129 = vmul.f32 %v6489, %v6931
        %v7130 = vmul.f32 %v6490, %v6931
        %v7131 = vmul.f32 %v6491, %v6931
        %v7132 = vmul.f32 %v6492, %v6938
        %v7133 = vmul.f32 %v6493, %v6938
        %v7134 = vmul.f32 %v6494, %v6938
        %v7135 = vmul.f32 %v6495, %v6945
        %v7136 = vmul.f32 %v6496, %v6945
        %v7137 = vmul.f32 %v6497, %v6945
        %v7138 = vrot.slane %v6946, 4
        %v7139 = vadd.f32 %v6946, %v7138
        %v7140 = vrot.slane %v7139, 2
        %v7141 = vadd.f32 %v7139, %v7140
        %v7142 = vrot.slane %v7141, 1
        %v7143 = vadd.f32 %v7141, %v7142
        %v7144 = vrot.slane %v6947, 4
        %v7145 = vadd.f32 %v6947, %v7144
        %v7146 = vrot.slane %v7145, 2
        %v7147 = vadd.f32 %v7145, %v7146
        %v7148 = vrot.slane %v7147, 1
        %v7149 = vadd.f32 %v7147, %v7148
        %v7150 = vsel %vm1199, %v6948, 0.0
        %v7151 = vrot.slane %v7150, 4
        %v7152 = vadd.f32 %v7150, %v7151
        %v7153 = vrot.slane %v7152, 2
        %v7154 = vadd.f32 %v7152, %v7153
        %v7155 = vrot.slane %v7154, 1
        %v7156 = vadd.f32 %v7154, %v7155
        %v7157 = vrot.slane %v6949, 4
        %v7158 = vadd.f32 %v6949, %v7157
        %v7159 = vrot.slane %v7158, 2
        %v7160 = vadd.f32 %v7158, %v7159
        %v7161 = vrot.slane %v7160, 1
        %v7162 = vadd.f32 %v7160, %v7161
        %v7163 = vrot.slane %v6950, 4
        %v7164 = vadd.f32 %v6950, %v7163
        %v7165 = vrot.slane %v7164, 2
        %v7166 = vadd.f32 %v7164, %v7165
        %v7167 = vrot.slane %v7166, 1
        %v7168 = vadd.f32 %v7166, %v7167
        %v7169 = vsel %vm1199, %v6951, 0.0
        %v7170 = vrot.slane %v7169, 4
        %v7171 = vadd.f32 %v7169, %v7170
        %v7172 = vrot.slane %v7171, 2
        %v7173 = vadd.f32 %v7171, %v7172
        %v7174 = vrot.slane %v7173, 1
        %v7175 = vadd.f32 %v7173, %v7174
        %v7176 = vrot.slane %v6952, 4
        %v7177 = vadd.f32 %v6952, %v7176
        %v7178 = vrot.slane %v7177, 2
        %v7179 = vadd.f32 %v7177, %v7178
        %v7180 = vrot.slane %v7179, 1
        %v7181 = vadd.f32 %v7179, %v7180
        %v7182 = vrot.slane %v6953, 4
        %v7183 = vadd.f32 %v6953, %v7182
        %v7184 = vrot.slane %v7183, 2
        %v7185 = vadd.f32 %v7183, %v7184
        %v7186 = vrot.slane %v7185, 1
        %v7187 = vadd.f32 %v7185, %v7186
        %v7188 = vsel %vm1199, %v6954, 0.0
        %v7189 = vrot.slane %v7188, 4
        %v7190 = vadd.f32 %v7188, %v7189
        %v7191 = vrot.slane %v7190, 2
        %v7192 = vadd.f32 %v7190, %v7191
        %v7193 = vrot.slane %v7192, 1
        %v7194 = vadd.f32 %v7192, %v7193
        %v7195 = vrot.slane %v6955, 4
        %v7196 = vadd.f32 %v6955, %v7195
        %v7197 = vrot.slane %v7196, 2
        %v7198 = vadd.f32 %v7196, %v7197
        %v7199 = vrot.slane %v7198, 1
        %v7200 = vadd.f32 %v7198, %v7199
        %v7201 = vrot.slane %v6956, 4
        %v7202 = vadd.f32 %v6956, %v7201
        %v7203 = vrot.slane %v7202, 2
        %v7204 = vadd.f32 %v7202, %v7203
        %v7205 = vrot.slane %v7204, 1
        %v7206 = vadd.f32 %v7204, %v7205
        %v7207 = vsel %vm1199, %v6957, 0.0
        %v7208 = vrot.slane %v7207, 4
        %v7209 = vadd.f32 %v7207, %v7208
        %v7210 = vrot.slane %v7209, 2
        %v7211 = vadd.f32 %v7209, %v7210
        %v7212 = vrot.slane %v7211, 1
        %v7213 = vadd.f32 %v7211, %v7212
        %v7214 = vrot.slane %v6958, 4
        %v7215 = vadd.f32 %v6958, %v7214
        %v7216 = vrot.slane %v7215, 2
        %v7217 = vadd.f32 %v7215, %v7216
        %v7218 = vrot.slane %v7217, 1
        %v7219 = vadd.f32 %v7217, %v7218
        %v7220 = vrot.slane %v6959, 4
        %v7221 = vadd.f32 %v6959, %v7220
        %v7222 = vrot.slane %v7221, 2
        %v7223 = vadd.f32 %v7221, %v7222
        %v7224 = vrot.slane %v7223, 1
        %v7225 = vadd.f32 %v7223, %v7224
        %v7226 = vsel %vm1199, %v6960, 0.0
        %v7227 = vrot.slane %v7226, 4
        %v7228 = vadd.f32 %v7226, %v7227
        %v7229 = vrot.slane %v7228, 2
        %v7230 = vadd.f32 %v7228, %v7229
        %v7231 = vrot.slane %v7230, 1
        %v7232 = vadd.f32 %v7230, %v7231
        %v7233 = vrot.slane %v6961, 4
        %v7234 = vadd.f32 %v6961, %v7233
        %v7235 = vrot.slane %v7234, 2
        %v7236 = vadd.f32 %v7234, %v7235
        %v7237 = vrot.slane %v7236, 1
        %v7238 = vadd.f32 %v7236, %v7237
        %v7239 = vrot.slane %v6962, 4
        %v7240 = vadd.f32 %v6962, %v7239
        %v7241 = vrot.slane %v7240, 2
        %v7242 = vadd.f32 %v7240, %v7241
        %v7243 = vrot.slane %v7242, 1
        %v7244 = vadd.f32 %v7242, %v7243
        %v7245 = vsel %vm1199, %v6963, 0.0
        %v7246 = vrot.slane %v7245, 4
        %v7247 = vadd.f32 %v7245, %v7246
        %v7248 = vrot.slane %v7247, 2
        %v7249 = vadd.f32 %v7247, %v7248
        %v7250 = vrot.slane %v7249, 1
        %v7251 = vadd.f32 %v7249, %v7250
        %v7252 = vrot.slane %v6964, 4
        %v7253 = vadd.f32 %v6964, %v7252
        %v7254 = vrot.slane %v7253, 2
        %v7255 = vadd.f32 %v7253, %v7254
        %v7256 = vrot.slane %v7255, 1
        %v7257 = vadd.f32 %v7255, %v7256
        %v7258 = vrot.slane %v6965, 4
        %v7259 = vadd.f32 %v6965, %v7258
        %v7260 = vrot.slane %v7259, 2
        %v7261 = vadd.f32 %v7259, %v7260
        %v7262 = vrot.slane %v7261, 1
        %v7263 = vadd.f32 %v7261, %v7262
        %v7264 = vsel %vm1199, %v6966, 0.0
        %v7265 = vrot.slane %v7264, 4
        %v7266 = vadd.f32 %v7264, %v7265
        %v7267 = vrot.slane %v7266, 2
        %v7268 = vadd.f32 %v7266, %v7267
        %v7269 = vrot.slane %v7268, 1
        %v7270 = vadd.f32 %v7268, %v7269
        %v7271 = vrot.slane %v6967, 4
        %v7272 = vadd.f32 %v6967, %v7271
        %v7273 = vrot.slane %v7272, 2
        %v7274 = vadd.f32 %v7272, %v7273
        %v7275 = vrot.slane %v7274, 1
        %v7276 = vadd.f32 %v7274, %v7275
        %v7277 = vrot.slane %v6968, 4
        %v7278 = vadd.f32 %v6968, %v7277
        %v7279 = vrot.slane %v7278, 2
        %v7280 = vadd.f32 %v7278, %v7279
        %v7281 = vrot.slane %v7280, 1
        %v7282 = vadd.f32 %v7280, %v7281
        %v7283 = vsel %vm1199, %v6969, 0.0
        %v7284 = vrot.slane %v7283, 4
        %v7285 = vadd.f32 %v7283, %v7284
        %v7286 = vrot.slane %v7285, 2
        %v7287 = vadd.f32 %v7285, %v7286
        %v7288 = vrot.slane %v7287, 1
        %v7289 = vadd.f32 %v7287, %v7288
        %v7290 = vrot.slane %v6970, 4
        %v7291 = vadd.f32 %v6970, %v7290
        %v7292 = vrot.slane %v7291, 2
        %v7293 = vadd.f32 %v7291, %v7292
        %v7294 = vrot.slane %v7293, 1
        %v7295 = vadd.f32 %v7293, %v7294
        %v7296 = vrot.slane %v6971, 4
        %v7297 = vadd.f32 %v6971, %v7296
        %v7298 = vrot.slane %v7297, 2
        %v7299 = vadd.f32 %v7297, %v7298
        %v7300 = vrot.slane %v7299, 1
        %v7301 = vadd.f32 %v7299, %v7300
        %v7302 = vsel %vm1199, %v6972, 0.0
        %v7303 = vrot.slane %v7302, 4
        %v7304 = vadd.f32 %v7302, %v7303
        %v7305 = vrot.slane %v7304, 2
        %v7306 = vadd.f32 %v7304, %v7305
        %v7307 = vrot.slane %v7306, 1
        %v7308 = vadd.f32 %v7306, %v7307
        %v7309 = vrot.slane %v6973, 4
        %v7310 = vadd.f32 %v6973, %v7309
        %v7311 = vrot.slane %v7310, 2
        %v7312 = vadd.f32 %v7310, %v7311
        %v7313 = vrot.slane %v7312, 1
        %v7314 = vadd.f32 %v7312, %v7313
        %v7315 = vrot.slane %v6974, 4
        %v7316 = vadd.f32 %v6974, %v7315
        %v7317 = vrot.slane %v7316, 2
        %v7318 = vadd.f32 %v7316, %v7317
        %v7319 = vrot.slane %v7318, 1
        %v7320 = vadd.f32 %v7318, %v7319
        %v7321 = vsel %vm1199, %v6975, 0.0
        %v7322 = vrot.slane %v7321, 4
        %v7323 = vadd.f32 %v7321, %v7322
        %v7324 = vrot.slane %v7323, 2
        %v7325 = vadd.f32 %v7323, %v7324
        %v7326 = vrot.slane %v7325, 1
        %v7327 = vadd.f32 %v7325, %v7326
        %v7328 = vrot.slane %v6976, 4
        %v7329 = vadd.f32 %v6976, %v7328
        %v7330 = vrot.slane %v7329, 2
        %v7331 = vadd.f32 %v7329, %v7330
        %v7332 = vrot.slane %v7331, 1
        %v7333 = vadd.f32 %v7331, %v7332
        %v7334 = vrot.slane %v6977, 4
        %v7335 = vadd.f32 %v6977, %v7334
        %v7336 = vrot.slane %v7335, 2
        %v7337 = vadd.f32 %v7335, %v7336
        %v7338 = vrot.slane %v7337, 1
        %v7339 = vadd.f32 %v7337, %v7338
        %v7340 = vsel %vm1199, %v6978, 0.0
        %v7341 = vrot.slane %v7340, 4
        %v7342 = vadd.f32 %v7340, %v7341
        %v7343 = vrot.slane %v7342, 2
        %v7344 = vadd.f32 %v7342, %v7343
        %v7345 = vrot.slane %v7344, 1
        %v7346 = vadd.f32 %v7344, %v7345
        %v7347 = vrot.slane %v6979, 4
        %v7348 = vadd.f32 %v6979, %v7347
        %v7349 = vrot.slane %v7348, 2
        %v7350 = vadd.f32 %v7348, %v7349
        %v7351 = vrot.slane %v7350, 1
        %v7352 = vadd.f32 %v7350, %v7351
        %v7353 = vrot.slane %v6980, 4
        %v7354 = vadd.f32 %v6980, %v7353
        %v7355 = vrot.slane %v7354, 2
        %v7356 = vadd.f32 %v7354, %v7355
        %v7357 = vrot.slane %v7356, 1
        %v7358 = vadd.f32 %v7356, %v7357
        %v7359 = vsel %vm1199, %v6981, 0.0
        %v7360 = vrot.slane %v7359, 4
        %v7361 = vadd.f32 %v7359, %v7360
        %v7362 = vrot.slane %v7361, 2
        %v7363 = vadd.f32 %v7361, %v7362
        %v7364 = vrot.slane %v7363, 1
        %v7365 = vadd.f32 %v7363, %v7364
        %v7366 = vrot.slane %v6982, 4
        %v7367 = vadd.f32 %v6982, %v7366
        %v7368 = vrot.slane %v7367, 2
        %v7369 = vadd.f32 %v7367, %v7368
        %v7370 = vrot.slane %v7369, 1
        %v7371 = vadd.f32 %v7369, %v7370
        %v7372 = vrot.slane %v6983, 4
        %v7373 = vadd.f32 %v6983, %v7372
        %v7374 = vrot.slane %v7373, 2
        %v7375 = vadd.f32 %v7373, %v7374
        %v7376 = vrot.slane %v7375, 1
        %v7377 = vadd.f32 %v7375, %v7376
        %v7378 = vsel %vm1199, %v6984, 0.0
        %v7379 = vrot.slane %v7378, 4
        %v7380 = vadd.f32 %v7378, %v7379
        %v7381 = vrot.slane %v7380, 2
        %v7382 = vadd.f32 %v7380, %v7381
        %v7383 = vrot.slane %v7382, 1
        %v7384 = vadd.f32 %v7382, %v7383
        %v7385 = vrot.slane %v6985, 4
        %v7386 = vadd.f32 %v6985, %v7385
        %v7387 = vrot.slane %v7386, 2
        %v7388 = vadd.f32 %v7386, %v7387
        %v7389 = vrot.slane %v7388, 1
        %v7390 = vadd.f32 %v7388, %v7389
        %v7391 = vrot.slane %v6986, 4
        %v7392 = vadd.f32 %v6986, %v7391
        %v7393 = vrot.slane %v7392, 2
        %v7394 = vadd.f32 %v7392, %v7393
        %v7395 = vrot.slane %v7394, 1
        %v7396 = vadd.f32 %v7394, %v7395
        %v7397 = vsel %vm1199, %v6987, 0.0
        %v7398 = vrot.slane %v7397, 4
        %v7399 = vadd.f32 %v7397, %v7398
        %v7400 = vrot.slane %v7399, 2
        %v7401 = vadd.f32 %v7399, %v7400
        %v7402 = vrot.slane %v7401, 1
        %v7403 = vadd.f32 %v7401, %v7402
        %v7404 = vrot.slane %v6988, 4
        %v7405 = vadd.f32 %v6988, %v7404
        %v7406 = vrot.slane %v7405, 2
        %v7407 = vadd.f32 %v7405, %v7406
        %v7408 = vrot.slane %v7407, 1
        %v7409 = vadd.f32 %v7407, %v7408
        %v7410 = vrot.slane %v6989, 4
        %v7411 = vadd.f32 %v6989, %v7410
        %v7412 = vrot.slane %v7411, 2
        %v7413 = vadd.f32 %v7411, %v7412
        %v7414 = vrot.slane %v7413, 1
        %v7415 = vadd.f32 %v7413, %v7414
        %v7416 = vsel %vm1199, %v6990, 0.0
        %v7417 = vrot.slane %v7416, 4
        %v7418 = vadd.f32 %v7416, %v7417
        %v7419 = vrot.slane %v7418, 2
        %v7420 = vadd.f32 %v7418, %v7419
        %v7421 = vrot.slane %v7420, 1
        %v7422 = vadd.f32 %v7420, %v7421
        %v7423 = vrot.slane %v6991, 4
        %v7424 = vadd.f32 %v6991, %v7423
        %v7425 = vrot.slane %v7424, 2
        %v7426 = vadd.f32 %v7424, %v7425
        %v7427 = vrot.slane %v7426, 1
        %v7428 = vadd.f32 %v7426, %v7427
        %v7429 = vrot.slane %v6992, 4
        %v7430 = vadd.f32 %v6992, %v7429
        %v7431 = vrot.slane %v7430, 2
        %v7432 = vadd.f32 %v7430, %v7431
        %v7433 = vrot.slane %v7432, 1
        %v7434 = vadd.f32 %v7432, %v7433
        %v7435 = vsel %vm1199, %v6993, 0.0
        %v7436 = vrot.slane %v7435, 4
        %v7437 = vadd.f32 %v7435, %v7436
        %v7438 = vrot.slane %v7437, 2
        %v7439 = vadd.f32 %v7437, %v7438
        %v7440 = vrot.slane %v7439, 1
        %v7441 = vadd.f32 %v7439, %v7440
        %v7442 = vrot.slane %v6994, 4
        %v7443 = vadd.f32 %v6994, %v7442
        %v7444 = vrot.slane %v7443, 2
        %v7445 = vadd.f32 %v7443, %v7444
        %v7446 = vrot.slane %v7445, 1
        %v7447 = vadd.f32 %v7445, %v7446
        %v7448 = vrot.slane %v6995, 4
        %v7449 = vadd.f32 %v6995, %v7448
        %v7450 = vrot.slane %v7449, 2
        %v7451 = vadd.f32 %v7449, %v7450
        %v7452 = vrot.slane %v7451, 1
        %v7453 = vadd.f32 %v7451, %v7452
        %v7454 = vsel %vm1199, %v6996, 0.0
        %v7455 = vrot.slane %v7454, 4
        %v7456 = vadd.f32 %v7454, %v7455
        %v7457 = vrot.slane %v7456, 2
        %v7458 = vadd.f32 %v7456, %v7457
        %v7459 = vrot.slane %v7458, 1
        %v7460 = vadd.f32 %v7458, %v7459
        %v7461 = vrot.slane %v6997, 4
        %v7462 = vadd.f32 %v6997, %v7461
        %v7463 = vrot.slane %v7462, 2
        %v7464 = vadd.f32 %v7462, %v7463
        %v7465 = vrot.slane %v7464, 1
        %v7466 = vadd.f32 %v7464, %v7465
        %v7467 = vrot.slane %v6998, 4
        %v7468 = vadd.f32 %v6998, %v7467
        %v7469 = vrot.slane %v7468, 2
        %v7470 = vadd.f32 %v7468, %v7469
        %v7471 = vrot.slane %v7470, 1
        %v7472 = vadd.f32 %v7470, %v7471
        %v7473 = vsel %vm1199, %v6999, 0.0
        %v7474 = vrot.slane %v7473, 4
        %v7475 = vadd.f32 %v7473, %v7474
        %v7476 = vrot.slane %v7475, 2
        %v7477 = vadd.f32 %v7475, %v7476
        %v7478 = vrot.slane %v7477, 1
        %v7479 = vadd.f32 %v7477, %v7478
        %v7480 = vrot.slane %v7000, 4
        %v7481 = vadd.f32 %v7000, %v7480
        %v7482 = vrot.slane %v7481, 2
        %v7483 = vadd.f32 %v7481, %v7482
        %v7484 = vrot.slane %v7483, 1
        %v7485 = vadd.f32 %v7483, %v7484
        %v7486 = vrot.slane %v7001, 4
        %v7487 = vadd.f32 %v7001, %v7486
        %v7488 = vrot.slane %v7487, 2
        %v7489 = vadd.f32 %v7487, %v7488
        %v7490 = vrot.slane %v7489, 1
        %v7491 = vadd.f32 %v7489, %v7490
        %v7492 = vsel %vm1199, %v7002, 0.0
        %v7493 = vrot.slane %v7492, 4
        %v7494 = vadd.f32 %v7492, %v7493
        %v7495 = vrot.slane %v7494, 2
        %v7496 = vadd.f32 %v7494, %v7495
        %v7497 = vrot.slane %v7496, 1
        %v7498 = vadd.f32 %v7496, %v7497
        %v7499 = vrot.slane %v7003, 4
        %v7500 = vadd.f32 %v7003, %v7499
        %v7501 = vrot.slane %v7500, 2
        %v7502 = vadd.f32 %v7500, %v7501
        %v7503 = vrot.slane %v7502, 1
        %v7504 = vadd.f32 %v7502, %v7503
        %v7505 = vrot.slane %v7004, 4
        %v7506 = vadd.f32 %v7004, %v7505
        %v7507 = vrot.slane %v7506, 2
        %v7508 = vadd.f32 %v7506, %v7507
        %v7509 = vrot.slane %v7508, 1
        %v7510 = vadd.f32 %v7508, %v7509
        %v7511 = vsel %vm1199, %v7005, 0.0
        %v7512 = vrot.slane %v7511, 4
        %v7513 = vadd.f32 %v7511, %v7512
        %v7514 = vrot.slane %v7513, 2
        %v7515 = vadd.f32 %v7513, %v7514
        %v7516 = vrot.slane %v7515, 1
        %v7517 = vadd.f32 %v7515, %v7516
        %v7518 = vrot.slane %v7006, 4
        %v7519 = vadd.f32 %v7006, %v7518
        %v7520 = vrot.slane %v7519, 2
        %v7521 = vadd.f32 %v7519, %v7520
        %v7522 = vrot.slane %v7521, 1
        %v7523 = vadd.f32 %v7521, %v7522
        %v7524 = vrot.slane %v7007, 4
        %v7525 = vadd.f32 %v7007, %v7524
        %v7526 = vrot.slane %v7525, 2
        %v7527 = vadd.f32 %v7525, %v7526
        %v7528 = vrot.slane %v7527, 1
        %v7529 = vadd.f32 %v7527, %v7528
        %v7530 = vsel %vm1199, %v7008, 0.0
        %v7531 = vrot.slane %v7530, 4
        %v7532 = vadd.f32 %v7530, %v7531
        %v7533 = vrot.slane %v7532, 2
        %v7534 = vadd.f32 %v7532, %v7533
        %v7535 = vrot.slane %v7534, 1
        %v7536 = vadd.f32 %v7534, %v7535
        %v7537 = vrot.slane %v7009, 4
        %v7538 = vadd.f32 %v7009, %v7537
        %v7539 = vrot.slane %v7538, 2
        %v7540 = vadd.f32 %v7538, %v7539
        %v7541 = vrot.slane %v7540, 1
        %v7542 = vadd.f32 %v7540, %v7541
        %v7543 = vrot.slane %v7010, 4
        %v7544 = vadd.f32 %v7010, %v7543
        %v7545 = vrot.slane %v7544, 2
        %v7546 = vadd.f32 %v7544, %v7545
        %v7547 = vrot.slane %v7546, 1
        %v7548 = vadd.f32 %v7546, %v7547
        %v7549 = vsel %vm1199, %v7011, 0.0
        %v7550 = vrot.slane %v7549, 4
        %v7551 = vadd.f32 %v7549, %v7550
        %v7552 = vrot.slane %v7551, 2
        %v7553 = vadd.f32 %v7551, %v7552
        %v7554 = vrot.slane %v7553, 1
        %v7555 = vadd.f32 %v7553, %v7554
        %v7556 = vrot.slane %v7012, 4
        %v7557 = vadd.f32 %v7012, %v7556
        %v7558 = vrot.slane %v7557, 2
        %v7559 = vadd.f32 %v7557, %v7558
        %v7560 = vrot.slane %v7559, 1
        %v7561 = vadd.f32 %v7559, %v7560
        %v7562 = vrot.slane %v7013, 4
        %v7563 = vadd.f32 %v7013, %v7562
        %v7564 = vrot.slane %v7563, 2
        %v7565 = vadd.f32 %v7563, %v7564
        %v7566 = vrot.slane %v7565, 1
        %v7567 = vadd.f32 %v7565, %v7566
        %v7568 = vsel %vm1199, %v7014, 0.0
        %v7569 = vrot.slane %v7568, 4
        %v7570 = vadd.f32 %v7568, %v7569
        %v7571 = vrot.slane %v7570, 2
        %v7572 = vadd.f32 %v7570, %v7571
        %v7573 = vrot.slane %v7572, 1
        %v7574 = vadd.f32 %v7572, %v7573
        %v7575 = vrot.slane %v7015, 4
        %v7576 = vadd.f32 %v7015, %v7575
        %v7577 = vrot.slane %v7576, 2
        %v7578 = vadd.f32 %v7576, %v7577
        %v7579 = vrot.slane %v7578, 1
        %v7580 = vadd.f32 %v7578, %v7579
        %v7581 = vrot.slane %v7016, 4
        %v7582 = vadd.f32 %v7016, %v7581
        %v7583 = vrot.slane %v7582, 2
        %v7584 = vadd.f32 %v7582, %v7583
        %v7585 = vrot.slane %v7584, 1
        %v7586 = vadd.f32 %v7584, %v7585
        %v7587 = vsel %vm1199, %v7017, 0.0
        %v7588 = vrot.slane %v7587, 4
        %v7589 = vadd.f32 %v7587, %v7588
        %v7590 = vrot.slane %v7589, 2
        %v7591 = vadd.f32 %v7589, %v7590
        %v7592 = vrot.slane %v7591, 1
        %v7593 = vadd.f32 %v7591, %v7592
        %v7594 = vrot.slane %v7018, 4
        %v7595 = vadd.f32 %v7018, %v7594
        %v7596 = vrot.slane %v7595, 2
        %v7597 = vadd.f32 %v7595, %v7596
        %v7598 = vrot.slane %v7597, 1
        %v7599 = vadd.f32 %v7597, %v7598
        %v7600 = vrot.slane %v7019, 4
        %v7601 = vadd.f32 %v7019, %v7600
        %v7602 = vrot.slane %v7601, 2
        %v7603 = vadd.f32 %v7601, %v7602
        %v7604 = vrot.slane %v7603, 1
        %v7605 = vadd.f32 %v7603, %v7604
        %v7606 = vsel %vm1199, %v7020, 0.0
        %v7607 = vrot.slane %v7606, 4
        %v7608 = vadd.f32 %v7606, %v7607
        %v7609 = vrot.slane %v7608, 2
        %v7610 = vadd.f32 %v7608, %v7609
        %v7611 = vrot.slane %v7610, 1
        %v7612 = vadd.f32 %v7610, %v7611
        %v7613 = vrot.slane %v7021, 4
        %v7614 = vadd.f32 %v7021, %v7613
        %v7615 = vrot.slane %v7614, 2
        %v7616 = vadd.f32 %v7614, %v7615
        %v7617 = vrot.slane %v7616, 1
        %v7618 = vadd.f32 %v7616, %v7617
        %v7619 = vrot.slane %v7022, 4
        %v7620 = vadd.f32 %v7022, %v7619
        %v7621 = vrot.slane %v7620, 2
        %v7622 = vadd.f32 %v7620, %v7621
        %v7623 = vrot.slane %v7622, 1
        %v7624 = vadd.f32 %v7622, %v7623
        %v7625 = vsel %vm1199, %v7023, 0.0
        %v7626 = vrot.slane %v7625, 4
        %v7627 = vadd.f32 %v7625, %v7626
        %v7628 = vrot.slane %v7627, 2
        %v7629 = vadd.f32 %v7627, %v7628
        %v7630 = vrot.slane %v7629, 1
        %v7631 = vadd.f32 %v7629, %v7630
        %v7632 = vrot.slane %v7024, 4
        %v7633 = vadd.f32 %v7024, %v7632
        %v7634 = vrot.slane %v7633, 2
        %v7635 = vadd.f32 %v7633, %v7634
        %v7636 = vrot.slane %v7635, 1
        %v7637 = vadd.f32 %v7635, %v7636
        %v7638 = vrot.slane %v7025, 4
        %v7639 = vadd.f32 %v7025, %v7638
        %v7640 = vrot.slane %v7639, 2
        %v7641 = vadd.f32 %v7639, %v7640
        %v7642 = vrot.slane %v7641, 1
        %v7643 = vadd.f32 %v7641, %v7642
        %v7644 = vsel %vm1199, %v7026, 0.0
        %v7645 = vrot.slane %v7644, 4
        %v7646 = vadd.f32 %v7644, %v7645
        %v7647 = vrot.slane %v7646, 2
        %v7648 = vadd.f32 %v7646, %v7647
        %v7649 = vrot.slane %v7648, 1
        %v7650 = vadd.f32 %v7648, %v7649
        %v7651 = vrot.slane %v7027, 4
        %v7652 = vadd.f32 %v7027, %v7651
        %v7653 = vrot.slane %v7652, 2
        %v7654 = vadd.f32 %v7652, %v7653
        %v7655 = vrot.slane %v7654, 1
        %v7656 = vadd.f32 %v7654, %v7655
        %v7657 = vrot.slane %v7028, 4
        %v7658 = vadd.f32 %v7028, %v7657
        %v7659 = vrot.slane %v7658, 2
        %v7660 = vadd.f32 %v7658, %v7659
        %v7661 = vrot.slane %v7660, 1
        %v7662 = vadd.f32 %v7660, %v7661
        %v7663 = vsel %vm1199, %v7029, 0.0
        %v7664 = vrot.slane %v7663, 4
        %v7665 = vadd.f32 %v7663, %v7664
        %v7666 = vrot.slane %v7665, 2
        %v7667 = vadd.f32 %v7665, %v7666
        %v7668 = vrot.slane %v7667, 1
        %v7669 = vadd.f32 %v7667, %v7668
        %v7670 = vrot.slane %v7030, 4
        %v7671 = vadd.f32 %v7030, %v7670
        %v7672 = vrot.slane %v7671, 2
        %v7673 = vadd.f32 %v7671, %v7672
        %v7674 = vrot.slane %v7673, 1
        %v7675 = vadd.f32 %v7673, %v7674
        %v7676 = vrot.slane %v7031, 4
        %v7677 = vadd.f32 %v7031, %v7676
        %v7678 = vrot.slane %v7677, 2
        %v7679 = vadd.f32 %v7677, %v7678
        %v7680 = vrot.slane %v7679, 1
        %v7681 = vadd.f32 %v7679, %v7680
        %v7682 = vsel %vm1199, %v7032, 0.0
        %v7683 = vrot.slane %v7682, 4
        %v7684 = vadd.f32 %v7682, %v7683
        %v7685 = vrot.slane %v7684, 2
        %v7686 = vadd.f32 %v7684, %v7685
        %v7687 = vrot.slane %v7686, 1
        %v7688 = vadd.f32 %v7686, %v7687
        %v7689 = vrot.slane %v7033, 4
        %v7690 = vadd.f32 %v7033, %v7689
        %v7691 = vrot.slane %v7690, 2
        %v7692 = vadd.f32 %v7690, %v7691
        %v7693 = vrot.slane %v7692, 1
        %v7694 = vadd.f32 %v7692, %v7693
        %v7695 = vrot.slane %v7034, 4
        %v7696 = vadd.f32 %v7034, %v7695
        %v7697 = vrot.slane %v7696, 2
        %v7698 = vadd.f32 %v7696, %v7697
        %v7699 = vrot.slane %v7698, 1
        %v7700 = vadd.f32 %v7698, %v7699
        %v7701 = vsel %vm1199, %v7035, 0.0
        %v7702 = vrot.slane %v7701, 4
        %v7703 = vadd.f32 %v7701, %v7702
        %v7704 = vrot.slane %v7703, 2
        %v7705 = vadd.f32 %v7703, %v7704
        %v7706 = vrot.slane %v7705, 1
        %v7707 = vadd.f32 %v7705, %v7706
        %v7708 = vrot.slane %v7036, 4
        %v7709 = vadd.f32 %v7036, %v7708
        %v7710 = vrot.slane %v7709, 2
        %v7711 = vadd.f32 %v7709, %v7710
        %v7712 = vrot.slane %v7711, 1
        %v7713 = vadd.f32 %v7711, %v7712
        %v7714 = vrot.slane %v7037, 4
        %v7715 = vadd.f32 %v7037, %v7714
        %v7716 = vrot.slane %v7715, 2
        %v7717 = vadd.f32 %v7715, %v7716
        %v7718 = vrot.slane %v7717, 1
        %v7719 = vadd.f32 %v7717, %v7718
        %v7720 = vsel %vm1199, %v7038, 0.0
        %v7721 = vrot.slane %v7720, 4
        %v7722 = vadd.f32 %v7720, %v7721
        %v7723 = vrot.slane %v7722, 2
        %v7724 = vadd.f32 %v7722, %v7723
        %v7725 = vrot.slane %v7724, 1
        %v7726 = vadd.f32 %v7724, %v7725
        %v7727 = vrot.slane %v7039, 4
        %v7728 = vadd.f32 %v7039, %v7727
        %v7729 = vrot.slane %v7728, 2
        %v7730 = vadd.f32 %v7728, %v7729
        %v7731 = vrot.slane %v7730, 1
        %v7732 = vadd.f32 %v7730, %v7731
        %v7733 = vrot.slane %v7040, 4
        %v7734 = vadd.f32 %v7040, %v7733
        %v7735 = vrot.slane %v7734, 2
        %v7736 = vadd.f32 %v7734, %v7735
        %v7737 = vrot.slane %v7736, 1
        %v7738 = vadd.f32 %v7736, %v7737
        %v7739 = vsel %vm1199, %v7041, 0.0
        %v7740 = vrot.slane %v7739, 4
        %v7741 = vadd.f32 %v7739, %v7740
        %v7742 = vrot.slane %v7741, 2
        %v7743 = vadd.f32 %v7741, %v7742
        %v7744 = vrot.slane %v7743, 1
        %v7745 = vadd.f32 %v7743, %v7744
        %v7746 = vrot.slane %v7042, 4
        %v7747 = vadd.f32 %v7042, %v7746
        %v7748 = vrot.slane %v7747, 2
        %v7749 = vadd.f32 %v7747, %v7748
        %v7750 = vrot.slane %v7749, 1
        %v7751 = vadd.f32 %v7749, %v7750
        %v7752 = vrot.slane %v7043, 4
        %v7753 = vadd.f32 %v7043, %v7752
        %v7754 = vrot.slane %v7753, 2
        %v7755 = vadd.f32 %v7753, %v7754
        %v7756 = vrot.slane %v7755, 1
        %v7757 = vadd.f32 %v7755, %v7756
        %v7758 = vsel %vm1199, %v7044, 0.0
        %v7759 = vrot.slane %v7758, 4
        %v7760 = vadd.f32 %v7758, %v7759
        %v7761 = vrot.slane %v7760, 2
        %v7762 = vadd.f32 %v7760, %v7761
        %v7763 = vrot.slane %v7762, 1
        %v7764 = vadd.f32 %v7762, %v7763
        %v7765 = vrot.slane %v7045, 4
        %v7766 = vadd.f32 %v7045, %v7765
        %v7767 = vrot.slane %v7766, 2
        %v7768 = vadd.f32 %v7766, %v7767
        %v7769 = vrot.slane %v7768, 1
        %v7770 = vadd.f32 %v7768, %v7769
        %v7771 = vrot.slane %v7046, 4
        %v7772 = vadd.f32 %v7046, %v7771
        %v7773 = vrot.slane %v7772, 2
        %v7774 = vadd.f32 %v7772, %v7773
        %v7775 = vrot.slane %v7774, 1
        %v7776 = vadd.f32 %v7774, %v7775
        %v7777 = vsel %vm1199, %v7047, 0.0
        %v7778 = vrot.slane %v7777, 4
        %v7779 = vadd.f32 %v7777, %v7778
        %v7780 = vrot.slane %v7779, 2
        %v7781 = vadd.f32 %v7779, %v7780
        %v7782 = vrot.slane %v7781, 1
        %v7783 = vadd.f32 %v7781, %v7782
        %v7784 = vrot.slane %v7048, 4
        %v7785 = vadd.f32 %v7048, %v7784
        %v7786 = vrot.slane %v7785, 2
        %v7787 = vadd.f32 %v7785, %v7786
        %v7788 = vrot.slane %v7787, 1
        %v7789 = vadd.f32 %v7787, %v7788
        %v7790 = vrot.slane %v7049, 4
        %v7791 = vadd.f32 %v7049, %v7790
        %v7792 = vrot.slane %v7791, 2
        %v7793 = vadd.f32 %v7791, %v7792
        %v7794 = vrot.slane %v7793, 1
        %v7795 = vadd.f32 %v7793, %v7794
        %v7796 = vsel %vm1199, %v7050, 0.0
        %v7797 = vrot.slane %v7796, 4
        %v7798 = vadd.f32 %v7796, %v7797
        %v7799 = vrot.slane %v7798, 2
        %v7800 = vadd.f32 %v7798, %v7799
        %v7801 = vrot.slane %v7800, 1
        %v7802 = vadd.f32 %v7800, %v7801
        %v7803 = vrot.slane %v7051, 4
        %v7804 = vadd.f32 %v7051, %v7803
        %v7805 = vrot.slane %v7804, 2
        %v7806 = vadd.f32 %v7804, %v7805
        %v7807 = vrot.slane %v7806, 1
        %v7808 = vadd.f32 %v7806, %v7807
        %v7809 = vrot.slane %v7052, 4
        %v7810 = vadd.f32 %v7052, %v7809
        %v7811 = vrot.slane %v7810, 2
        %v7812 = vadd.f32 %v7810, %v7811
        %v7813 = vrot.slane %v7812, 1
        %v7814 = vadd.f32 %v7812, %v7813
        %v7815 = vsel %vm1199, %v7053, 0.0
        %v7816 = vrot.slane %v7815, 4
        %v7817 = vadd.f32 %v7815, %v7816
        %v7818 = vrot.slane %v7817, 2
        %v7819 = vadd.f32 %v7817, %v7818
        %v7820 = vrot.slane %v7819, 1
        %v7821 = vadd.f32 %v7819, %v7820
        %v7822 = vrot.slane %v7054, 4
        %v7823 = vadd.f32 %v7054, %v7822
        %v7824 = vrot.slane %v7823, 2
        %v7825 = vadd.f32 %v7823, %v7824
        %v7826 = vrot.slane %v7825, 1
        %v7827 = vadd.f32 %v7825, %v7826
        %v7828 = vrot.slane %v7055, 4
        %v7829 = vadd.f32 %v7055, %v7828
        %v7830 = vrot.slane %v7829, 2
        %v7831 = vadd.f32 %v7829, %v7830
        %v7832 = vrot.slane %v7831, 1
        %v7833 = vadd.f32 %v7831, %v7832
        %v7834 = vsel %vm1199, %v7056, 0.0
        %v7835 = vrot.slane %v7834, 4
        %v7836 = vadd.f32 %v7834, %v7835
        %v7837 = vrot.slane %v7836, 2
        %v7838 = vadd.f32 %v7836, %v7837
        %v7839 = vrot.slane %v7838, 1
        %v7840 = vadd.f32 %v7838, %v7839
        %v7841 = vrot.slane %v7057, 4
        %v7842 = vadd.f32 %v7057, %v7841
        %v7843 = vrot.slane %v7842, 2
        %v7844 = vadd.f32 %v7842, %v7843
        %v7845 = vrot.slane %v7844, 1
        %v7846 = vadd.f32 %v7844, %v7845
        %v7847 = vrot.slane %v7058, 4
        %v7848 = vadd.f32 %v7058, %v7847
        %v7849 = vrot.slane %v7848, 2
        %v7850 = vadd.f32 %v7848, %v7849
        %v7851 = vrot.slane %v7850, 1
        %v7852 = vadd.f32 %v7850, %v7851
        %v7853 = vsel %vm1199, %v7059, 0.0
        %v7854 = vrot.slane %v7853, 4
        %v7855 = vadd.f32 %v7853, %v7854
        %v7856 = vrot.slane %v7855, 2
        %v7857 = vadd.f32 %v7855, %v7856
        %v7858 = vrot.slane %v7857, 1
        %v7859 = vadd.f32 %v7857, %v7858
        %v7860 = vrot.slane %v7060, 4
        %v7861 = vadd.f32 %v7060, %v7860
        %v7862 = vrot.slane %v7861, 2
        %v7863 = vadd.f32 %v7861, %v7862
        %v7864 = vrot.slane %v7863, 1
        %v7865 = vadd.f32 %v7863, %v7864
        %v7866 = vrot.slane %v7061, 4
        %v7867 = vadd.f32 %v7061, %v7866
        %v7868 = vrot.slane %v7867, 2
        %v7869 = vadd.f32 %v7867, %v7868
        %v7870 = vrot.slane %v7869, 1
        %v7871 = vadd.f32 %v7869, %v7870
        %v7872 = vsel %vm1199, %v7062, 0.0
        %v7873 = vrot.slane %v7872, 4
        %v7874 = vadd.f32 %v7872, %v7873
        %v7875 = vrot.slane %v7874, 2
        %v7876 = vadd.f32 %v7874, %v7875
        %v7877 = vrot.slane %v7876, 1
        %v7878 = vadd.f32 %v7876, %v7877
        %v7879 = vrot.slane %v7063, 4
        %v7880 = vadd.f32 %v7063, %v7879
        %v7881 = vrot.slane %v7880, 2
        %v7882 = vadd.f32 %v7880, %v7881
        %v7883 = vrot.slane %v7882, 1
        %v7884 = vadd.f32 %v7882, %v7883
        %v7885 = vrot.slane %v7064, 4
        %v7886 = vadd.f32 %v7064, %v7885
        %v7887 = vrot.slane %v7886, 2
        %v7888 = vadd.f32 %v7886, %v7887
        %v7889 = vrot.slane %v7888, 1
        %v7890 = vadd.f32 %v7888, %v7889
        %v7891 = vsel %vm1199, %v7065, 0.0
        %v7892 = vrot.slane %v7891, 4
        %v7893 = vadd.f32 %v7891, %v7892
        %v7894 = vrot.slane %v7893, 2
        %v7895 = vadd.f32 %v7893, %v7894
        %v7896 = vrot.slane %v7895, 1
        %v7897 = vadd.f32 %v7895, %v7896
        %v7898 = vrot.slane %v7066, 4
        %v7899 = vadd.f32 %v7066, %v7898
        %v7900 = vrot.slane %v7899, 2
        %v7901 = vadd.f32 %v7899, %v7900
        %v7902 = vrot.slane %v7901, 1
        %v7903 = vadd.f32 %v7901, %v7902
        %v7904 = vrot.slane %v7067, 4
        %v7905 = vadd.f32 %v7067, %v7904
        %v7906 = vrot.slane %v7905, 2
        %v7907 = vadd.f32 %v7905, %v7906
        %v7908 = vrot.slane %v7907, 1
        %v7909 = vadd.f32 %v7907, %v7908
        %v7910 = vsel %vm1199, %v7068, 0.0
        %v7911 = vrot.slane %v7910, 4
        %v7912 = vadd.f32 %v7910, %v7911
        %v7913 = vrot.slane %v7912, 2
        %v7914 = vadd.f32 %v7912, %v7913
        %v7915 = vrot.slane %v7914, 1
        %v7916 = vadd.f32 %v7914, %v7915
        %v7917 = vrot.slane %v7069, 4
        %v7918 = vadd.f32 %v7069, %v7917
        %v7919 = vrot.slane %v7918, 2
        %v7920 = vadd.f32 %v7918, %v7919
        %v7921 = vrot.slane %v7920, 1
        %v7922 = vadd.f32 %v7920, %v7921
        %v7923 = vrot.slane %v7070, 4
        %v7924 = vadd.f32 %v7070, %v7923
        %v7925 = vrot.slane %v7924, 2
        %v7926 = vadd.f32 %v7924, %v7925
        %v7927 = vrot.slane %v7926, 1
        %v7928 = vadd.f32 %v7926, %v7927
        %v7929 = vsel %vm1199, %v7071, 0.0
        %v7930 = vrot.slane %v7929, 4
        %v7931 = vadd.f32 %v7929, %v7930
        %v7932 = vrot.slane %v7931, 2
        %v7933 = vadd.f32 %v7931, %v7932
        %v7934 = vrot.slane %v7933, 1
        %v7935 = vadd.f32 %v7933, %v7934
        %v7936 = vrot.slane %v7072, 4
        %v7937 = vadd.f32 %v7072, %v7936
        %v7938 = vrot.slane %v7937, 2
        %v7939 = vadd.f32 %v7937, %v7938
        %v7940 = vrot.slane %v7939, 1
        %v7941 = vadd.f32 %v7939, %v7940
        %v7942 = vrot.slane %v7073, 4
        %v7943 = vadd.f32 %v7073, %v7942
        %v7944 = vrot.slane %v7943, 2
        %v7945 = vadd.f32 %v7943, %v7944
        %v7946 = vrot.slane %v7945, 1
        %v7947 = vadd.f32 %v7945, %v7946
        %v7948 = vsel %vm1199, %v7074, 0.0
        %v7949 = vrot.slane %v7948, 4
        %v7950 = vadd.f32 %v7948, %v7949
        %v7951 = vrot.slane %v7950, 2
        %v7952 = vadd.f32 %v7950, %v7951
        %v7953 = vrot.slane %v7952, 1
        %v7954 = vadd.f32 %v7952, %v7953
        %v7955 = vrot.slane %v7075, 4
        %v7956 = vadd.f32 %v7075, %v7955
        %v7957 = vrot.slane %v7956, 2
        %v7958 = vadd.f32 %v7956, %v7957
        %v7959 = vrot.slane %v7958, 1
        %v7960 = vadd.f32 %v7958, %v7959
        %v7961 = vrot.slane %v7076, 4
        %v7962 = vadd.f32 %v7076, %v7961
        %v7963 = vrot.slane %v7962, 2
        %v7964 = vadd.f32 %v7962, %v7963
        %v7965 = vrot.slane %v7964, 1
        %v7966 = vadd.f32 %v7964, %v7965
        %v7967 = vsel %vm1199, %v7077, 0.0
        %v7968 = vrot.slane %v7967, 4
        %v7969 = vadd.f32 %v7967, %v7968
        %v7970 = vrot.slane %v7969, 2
        %v7971 = vadd.f32 %v7969, %v7970
        %v7972 = vrot.slane %v7971, 1
        %v7973 = vadd.f32 %v7971, %v7972
        %v7974 = vrot.slane %v7078, 4
        %v7975 = vadd.f32 %v7078, %v7974
        %v7976 = vrot.slane %v7975, 2
        %v7977 = vadd.f32 %v7975, %v7976
        %v7978 = vrot.slane %v7977, 1
        %v7979 = vadd.f32 %v7977, %v7978
        %v7980 = vrot.slane %v7079, 4
        %v7981 = vadd.f32 %v7079, %v7980
        %v7982 = vrot.slane %v7981, 2
        %v7983 = vadd.f32 %v7981, %v7982
        %v7984 = vrot.slane %v7983, 1
        %v7985 = vadd.f32 %v7983, %v7984
        %v7986 = vsel %vm1199, %v7080, 0.0
        %v7987 = vrot.slane %v7986, 4
        %v7988 = vadd.f32 %v7986, %v7987
        %v7989 = vrot.slane %v7988, 2
        %v7990 = vadd.f32 %v7988, %v7989
        %v7991 = vrot.slane %v7990, 1
        %v7992 = vadd.f32 %v7990, %v7991
        %v7993 = vrot.slane %v7081, 4
        %v7994 = vadd.f32 %v7081, %v7993
        %v7995 = vrot.slane %v7994, 2
        %v7996 = vadd.f32 %v7994, %v7995
        %v7997 = vrot.slane %v7996, 1
        %v7998 = vadd.f32 %v7996, %v7997
        %v7999 = vrot.slane %v7082, 4
        %v8000 = vadd.f32 %v7082, %v7999
        %v8001 = vrot.slane %v8000, 2
        %v8002 = vadd.f32 %v8000, %v8001
        %v8003 = vrot.slane %v8002, 1
        %v8004 = vadd.f32 %v8002, %v8003
        %v8005 = vsel %vm1199, %v7083, 0.0
        %v8006 = vrot.slane %v8005, 4
        %v8007 = vadd.f32 %v8005, %v8006
        %v8008 = vrot.slane %v8007, 2
        %v8009 = vadd.f32 %v8007, %v8008
        %v8010 = vrot.slane %v8009, 1
        %v8011 = vadd.f32 %v8009, %v8010
        %v8012 = vrot.slane %v7084, 4
        %v8013 = vadd.f32 %v7084, %v8012
        %v8014 = vrot.slane %v8013, 2
        %v8015 = vadd.f32 %v8013, %v8014
        %v8016 = vrot.slane %v8015, 1
        %v8017 = vadd.f32 %v8015, %v8016
        %v8018 = vrot.slane %v7085, 4
        %v8019 = vadd.f32 %v7085, %v8018
        %v8020 = vrot.slane %v8019, 2
        %v8021 = vadd.f32 %v8019, %v8020
        %v8022 = vrot.slane %v8021, 1
        %v8023 = vadd.f32 %v8021, %v8022
        %v8024 = vsel %vm1199, %v7086, 0.0
        %v8025 = vrot.slane %v8024, 4
        %v8026 = vadd.f32 %v8024, %v8025
        %v8027 = vrot.slane %v8026, 2
        %v8028 = vadd.f32 %v8026, %v8027
        %v8029 = vrot.slane %v8028, 1
        %v8030 = vadd.f32 %v8028, %v8029
        %v8031 = vrot.slane %v7087, 4
        %v8032 = vadd.f32 %v7087, %v8031
        %v8033 = vrot.slane %v8032, 2
        %v8034 = vadd.f32 %v8032, %v8033
        %v8035 = vrot.slane %v8034, 1
        %v8036 = vadd.f32 %v8034, %v8035
        %v8037 = vrot.slane %v7088, 4
        %v8038 = vadd.f32 %v7088, %v8037
        %v8039 = vrot.slane %v8038, 2
        %v8040 = vadd.f32 %v8038, %v8039
        %v8041 = vrot.slane %v8040, 1
        %v8042 = vadd.f32 %v8040, %v8041
        %v8043 = vsel %vm1199, %v7089, 0.0
        %v8044 = vrot.slane %v8043, 4
        %v8045 = vadd.f32 %v8043, %v8044
        %v8046 = vrot.slane %v8045, 2
        %v8047 = vadd.f32 %v8045, %v8046
        %v8048 = vrot.slane %v8047, 1
        %v8049 = vadd.f32 %v8047, %v8048
        %v8050 = vrot.slane %v7090, 4
        %v8051 = vadd.f32 %v7090, %v8050
        %v8052 = vrot.slane %v8051, 2
        %v8053 = vadd.f32 %v8051, %v8052
        %v8054 = vrot.slane %v8053, 1
        %v8055 = vadd.f32 %v8053, %v8054
        %v8056 = vrot.slane %v7091, 4
        %v8057 = vadd.f32 %v7091, %v8056
        %v8058 = vrot.slane %v8057, 2
        %v8059 = vadd.f32 %v8057, %v8058
        %v8060 = vrot.slane %v8059, 1
        %v8061 = vadd.f32 %v8059, %v8060
        %v8062 = vsel %vm1199, %v7092, 0.0
        %v8063 = vrot.slane %v8062, 4
        %v8064 = vadd.f32 %v8062, %v8063
        %v8065 = vrot.slane %v8064, 2
        %v8066 = vadd.f32 %v8064, %v8065
        %v8067 = vrot.slane %v8066, 1
        %v8068 = vadd.f32 %v8066, %v8067
        %v8069 = vrot.slane %v7093, 4
        %v8070 = vadd.f32 %v7093, %v8069
        %v8071 = vrot.slane %v8070, 2
        %v8072 = vadd.f32 %v8070, %v8071
        %v8073 = vrot.slane %v8072, 1
        %v8074 = vadd.f32 %v8072, %v8073
        %v8075 = vrot.slane %v7094, 4
        %v8076 = vadd.f32 %v7094, %v8075
        %v8077 = vrot.slane %v8076, 2
        %v8078 = vadd.f32 %v8076, %v8077
        %v8079 = vrot.slane %v8078, 1
        %v8080 = vadd.f32 %v8078, %v8079
        %v8081 = vsel %vm1199, %v7095, 0.0
        %v8082 = vrot.slane %v8081, 4
        %v8083 = vadd.f32 %v8081, %v8082
        %v8084 = vrot.slane %v8083, 2
        %v8085 = vadd.f32 %v8083, %v8084
        %v8086 = vrot.slane %v8085, 1
        %v8087 = vadd.f32 %v8085, %v8086
        %v8088 = vrot.slane %v7096, 4
        %v8089 = vadd.f32 %v7096, %v8088
        %v8090 = vrot.slane %v8089, 2
        %v8091 = vadd.f32 %v8089, %v8090
        %v8092 = vrot.slane %v8091, 1
        %v8093 = vadd.f32 %v8091, %v8092
        %v8094 = vrot.slane %v7097, 4
        %v8095 = vadd.f32 %v7097, %v8094
        %v8096 = vrot.slane %v8095, 2
        %v8097 = vadd.f32 %v8095, %v8096
        %v8098 = vrot.slane %v8097, 1
        %v8099 = vadd.f32 %v8097, %v8098
        %v8100 = vsel %vm1199, %v7098, 0.0
        %v8101 = vrot.slane %v8100, 4
        %v8102 = vadd.f32 %v8100, %v8101
        %v8103 = vrot.slane %v8102, 2
        %v8104 = vadd.f32 %v8102, %v8103
        %v8105 = vrot.slane %v8104, 1
        %v8106 = vadd.f32 %v8104, %v8105
        %v8107 = vrot.slane %v7099, 4
        %v8108 = vadd.f32 %v7099, %v8107
        %v8109 = vrot.slane %v8108, 2
        %v8110 = vadd.f32 %v8108, %v8109
        %v8111 = vrot.slane %v8110, 1
        %v8112 = vadd.f32 %v8110, %v8111
        %v8113 = vrot.slane %v7100, 4
        %v8114 = vadd.f32 %v7100, %v8113
        %v8115 = vrot.slane %v8114, 2
        %v8116 = vadd.f32 %v8114, %v8115
        %v8117 = vrot.slane %v8116, 1
        %v8118 = vadd.f32 %v8116, %v8117
        %v8119 = vsel %vm1199, %v7101, 0.0
        %v8120 = vrot.slane %v8119, 4
        %v8121 = vadd.f32 %v8119, %v8120
        %v8122 = vrot.slane %v8121, 2
        %v8123 = vadd.f32 %v8121, %v8122
        %v8124 = vrot.slane %v8123, 1
        %v8125 = vadd.f32 %v8123, %v8124
        %v8126 = vrot.slane %v7102, 4
        %v8127 = vadd.f32 %v7102, %v8126
        %v8128 = vrot.slane %v8127, 2
        %v8129 = vadd.f32 %v8127, %v8128
        %v8130 = vrot.slane %v8129, 1
        %v8131 = vadd.f32 %v8129, %v8130
        %v8132 = vrot.slane %v7103, 4
        %v8133 = vadd.f32 %v7103, %v8132
        %v8134 = vrot.slane %v8133, 2
        %v8135 = vadd.f32 %v8133, %v8134
        %v8136 = vrot.slane %v8135, 1
        %v8137 = vadd.f32 %v8135, %v8136
        %v8138 = vsel %vm1199, %v7104, 0.0
        %v8139 = vrot.slane %v8138, 4
        %v8140 = vadd.f32 %v8138, %v8139
        %v8141 = vrot.slane %v8140, 2
        %v8142 = vadd.f32 %v8140, %v8141
        %v8143 = vrot.slane %v8142, 1
        %v8144 = vadd.f32 %v8142, %v8143
        %v8145 = vrot.slane %v7105, 4
        %v8146 = vadd.f32 %v7105, %v8145
        %v8147 = vrot.slane %v8146, 2
        %v8148 = vadd.f32 %v8146, %v8147
        %v8149 = vrot.slane %v8148, 1
        %v8150 = vadd.f32 %v8148, %v8149
        %v8151 = vrot.slane %v7106, 4
        %v8152 = vadd.f32 %v7106, %v8151
        %v8153 = vrot.slane %v8152, 2
        %v8154 = vadd.f32 %v8152, %v8153
        %v8155 = vrot.slane %v8154, 1
        %v8156 = vadd.f32 %v8154, %v8155
        %v8157 = vsel %vm1199, %v7107, 0.0
        %v8158 = vrot.slane %v8157, 4
        %v8159 = vadd.f32 %v8157, %v8158
        %v8160 = vrot.slane %v8159, 2
        %v8161 = vadd.f32 %v8159, %v8160
        %v8162 = vrot.slane %v8161, 1
        %v8163 = vadd.f32 %v8161, %v8162
        %v8164 = vrot.slane %v7108, 4
        %v8165 = vadd.f32 %v7108, %v8164
        %v8166 = vrot.slane %v8165, 2
        %v8167 = vadd.f32 %v8165, %v8166
        %v8168 = vrot.slane %v8167, 1
        %v8169 = vadd.f32 %v8167, %v8168
        %v8170 = vrot.slane %v7109, 4
        %v8171 = vadd.f32 %v7109, %v8170
        %v8172 = vrot.slane %v8171, 2
        %v8173 = vadd.f32 %v8171, %v8172
        %v8174 = vrot.slane %v8173, 1
        %v8175 = vadd.f32 %v8173, %v8174
        %v8176 = vsel %vm1199, %v7110, 0.0
        %v8177 = vrot.slane %v8176, 4
        %v8178 = vadd.f32 %v8176, %v8177
        %v8179 = vrot.slane %v8178, 2
        %v8180 = vadd.f32 %v8178, %v8179
        %v8181 = vrot.slane %v8180, 1
        %v8182 = vadd.f32 %v8180, %v8181
        %v8183 = vrot.slane %v7111, 4
        %v8184 = vadd.f32 %v7111, %v8183
        %v8185 = vrot.slane %v8184, 2
        %v8186 = vadd.f32 %v8184, %v8185
        %v8187 = vrot.slane %v8186, 1
        %v8188 = vadd.f32 %v8186, %v8187
        %v8189 = vrot.slane %v7112, 4
        %v8190 = vadd.f32 %v7112, %v8189
        %v8191 = vrot.slane %v8190, 2
        %v8192 = vadd.f32 %v8190, %v8191
        %v8193 = vrot.slane %v8192, 1
        %v8194 = vadd.f32 %v8192, %v8193
        %v8195 = vsel %vm1199, %v7113, 0.0
        %v8196 = vrot.slane %v8195, 4
        %v8197 = vadd.f32 %v8195, %v8196
        %v8198 = vrot.slane %v8197, 2
        %v8199 = vadd.f32 %v8197, %v8198
        %v8200 = vrot.slane %v8199, 1
        %v8201 = vadd.f32 %v8199, %v8200
        %v8202 = vrot.slane %v7114, 4
        %v8203 = vadd.f32 %v7114, %v8202
        %v8204 = vrot.slane %v8203, 2
        %v8205 = vadd.f32 %v8203, %v8204
        %v8206 = vrot.slane %v8205, 1
        %v8207 = vadd.f32 %v8205, %v8206
        %v8208 = vrot.slane %v7115, 4
        %v8209 = vadd.f32 %v7115, %v8208
        %v8210 = vrot.slane %v8209, 2
        %v8211 = vadd.f32 %v8209, %v8210
        %v8212 = vrot.slane %v8211, 1
        %v8213 = vadd.f32 %v8211, %v8212
        %v8214 = vsel %vm1199, %v7116, 0.0
        %v8215 = vrot.slane %v8214, 4
        %v8216 = vadd.f32 %v8214, %v8215
        %v8217 = vrot.slane %v8216, 2
        %v8218 = vadd.f32 %v8216, %v8217
        %v8219 = vrot.slane %v8218, 1
        %v8220 = vadd.f32 %v8218, %v8219
        %v8221 = vrot.slane %v7117, 4
        %v8222 = vadd.f32 %v7117, %v8221
        %v8223 = vrot.slane %v8222, 2
        %v8224 = vadd.f32 %v8222, %v8223
        %v8225 = vrot.slane %v8224, 1
        %v8226 = vadd.f32 %v8224, %v8225
        %v8227 = vrot.slane %v7118, 4
        %v8228 = vadd.f32 %v7118, %v8227
        %v8229 = vrot.slane %v8228, 2
        %v8230 = vadd.f32 %v8228, %v8229
        %v8231 = vrot.slane %v8230, 1
        %v8232 = vadd.f32 %v8230, %v8231
        %v8233 = vsel %vm1199, %v7119, 0.0
        %v8234 = vrot.slane %v8233, 4
        %v8235 = vadd.f32 %v8233, %v8234
        %v8236 = vrot.slane %v8235, 2
        %v8237 = vadd.f32 %v8235, %v8236
        %v8238 = vrot.slane %v8237, 1
        %v8239 = vadd.f32 %v8237, %v8238
        %v8240 = vrot.slane %v7120, 4
        %v8241 = vadd.f32 %v7120, %v8240
        %v8242 = vrot.slane %v8241, 2
        %v8243 = vadd.f32 %v8241, %v8242
        %v8244 = vrot.slane %v8243, 1
        %v8245 = vadd.f32 %v8243, %v8244
        %v8246 = vrot.slane %v7121, 4
        %v8247 = vadd.f32 %v7121, %v8246
        %v8248 = vrot.slane %v8247, 2
        %v8249 = vadd.f32 %v8247, %v8248
        %v8250 = vrot.slane %v8249, 1
        %v8251 = vadd.f32 %v8249, %v8250
        %v8252 = vsel %vm1199, %v7122, 0.0
        %v8253 = vrot.slane %v8252, 4
        %v8254 = vadd.f32 %v8252, %v8253
        %v8255 = vrot.slane %v8254, 2
        %v8256 = vadd.f32 %v8254, %v8255
        %v8257 = vrot.slane %v8256, 1
        %v8258 = vadd.f32 %v8256, %v8257
        %v8259 = vrot.slane %v7123, 4
        %v8260 = vadd.f32 %v7123, %v8259
        %v8261 = vrot.slane %v8260, 2
        %v8262 = vadd.f32 %v8260, %v8261
        %v8263 = vrot.slane %v8262, 1
        %v8264 = vadd.f32 %v8262, %v8263
        %v8265 = vrot.slane %v7124, 4
        %v8266 = vadd.f32 %v7124, %v8265
        %v8267 = vrot.slane %v8266, 2
        %v8268 = vadd.f32 %v8266, %v8267
        %v8269 = vrot.slane %v8268, 1
        %v8270 = vadd.f32 %v8268, %v8269
        %v8271 = vsel %vm1199, %v7125, 0.0
        %v8272 = vrot.slane %v8271, 4
        %v8273 = vadd.f32 %v8271, %v8272
        %v8274 = vrot.slane %v8273, 2
        %v8275 = vadd.f32 %v8273, %v8274
        %v8276 = vrot.slane %v8275, 1
        %v8277 = vadd.f32 %v8275, %v8276
        %v8278 = vrot.slane %v7126, 4
        %v8279 = vadd.f32 %v7126, %v8278
        %v8280 = vrot.slane %v8279, 2
        %v8281 = vadd.f32 %v8279, %v8280
        %v8282 = vrot.slane %v8281, 1
        %v8283 = vadd.f32 %v8281, %v8282
        %v8284 = vrot.slane %v7127, 4
        %v8285 = vadd.f32 %v7127, %v8284
        %v8286 = vrot.slane %v8285, 2
        %v8287 = vadd.f32 %v8285, %v8286
        %v8288 = vrot.slane %v8287, 1
        %v8289 = vadd.f32 %v8287, %v8288
        %v8290 = vsel %vm1199, %v7128, 0.0
        %v8291 = vrot.slane %v8290, 4
        %v8292 = vadd.f32 %v8290, %v8291
        %v8293 = vrot.slane %v8292, 2
        %v8294 = vadd.f32 %v8292, %v8293
        %v8295 = vrot.slane %v8294, 1
        %v8296 = vadd.f32 %v8294, %v8295
        %v8297 = vrot.slane %v7129, 4
        %v8298 = vadd.f32 %v7129, %v8297
        %v8299 = vrot.slane %v8298, 2
        %v8300 = vadd.f32 %v8298, %v8299
        %v8301 = vrot.slane %v8300, 1
        %v8302 = vadd.f32 %v8300, %v8301
        %v8303 = vrot.slane %v7130, 4
        %v8304 = vadd.f32 %v7130, %v8303
        %v8305 = vrot.slane %v8304, 2
        %v8306 = vadd.f32 %v8304, %v8305
        %v8307 = vrot.slane %v8306, 1
        %v8308 = vadd.f32 %v8306, %v8307
        %v8309 = vsel %vm1199, %v7131, 0.0
        %v8310 = vrot.slane %v8309, 4
        %v8311 = vadd.f32 %v8309, %v8310
        %v8312 = vrot.slane %v8311, 2
        %v8313 = vadd.f32 %v8311, %v8312
        %v8314 = vrot.slane %v8313, 1
        %v8315 = vadd.f32 %v8313, %v8314
        %v8316 = vrot.slane %v7132, 4
        %v8317 = vadd.f32 %v7132, %v8316
        %v8318 = vrot.slane %v8317, 2
        %v8319 = vadd.f32 %v8317, %v8318
        %v8320 = vrot.slane %v8319, 1
        %v8321 = vadd.f32 %v8319, %v8320
        %v8322 = vrot.slane %v7133, 4
        %v8323 = vadd.f32 %v7133, %v8322
        %v8324 = vrot.slane %v8323, 2
        %v8325 = vadd.f32 %v8323, %v8324
        %v8326 = vrot.slane %v8325, 1
        %v8327 = vadd.f32 %v8325, %v8326
        %v8328 = vsel %vm1199, %v7134, 0.0
        %v8329 = vrot.slane %v8328, 4
        %v8330 = vadd.f32 %v8328, %v8329
        %v8331 = vrot.slane %v8330, 2
        %v8332 = vadd.f32 %v8330, %v8331
        %v8333 = vrot.slane %v8332, 1
        %v8334 = vadd.f32 %v8332, %v8333
        %v8335 = vrot.slane %v7135, 4
        %v8336 = vadd.f32 %v7135, %v8335
        %v8337 = vrot.slane %v8336, 2
        %v8338 = vadd.f32 %v8336, %v8337
        %v8339 = vrot.slane %v8338, 1
        %v8340 = vadd.f32 %v8338, %v8339
        %v8341 = vrot.slane %v7136, 4
        %v8342 = vadd.f32 %v7136, %v8341
        %v8343 = vrot.slane %v8342, 2
        %v8344 = vadd.f32 %v8342, %v8343
        %v8345 = vrot.slane %v8344, 1
        %v8346 = vadd.f32 %v8344, %v8345
        %v8347 = vsel %vm1199, %v7137, 0.0
        %v8348 = vrot.slane %v8347, 4
        %v8349 = vadd.f32 %v8347, %v8348
        %v8350 = vrot.slane %v8349, 2
        %v8351 = vadd.f32 %v8349, %v8350
        %v8352 = vrot.slane %v8351, 1
        %v8353 = vadd.f32 %v8351, %v8352
        %v8354 = vld [vmem:[%s11] sm:$0x7]
        %v8356 = vperm.slane %v8354, 0
        %v8357 = vperm.slane %v8354, 1
        %v8358 = vperm.slane %v8354, 2
        %v8362 = vmul.f32 %v2278, %v8356
        %v8363 = vmul.f32 %v2279, %v8357
        %v8364 = vmul.f32 %v2280, %v8358
        %v8365 = vmul.f32 %v2281, %v8356
        %v8366 = vmul.f32 %v2282, %v8357
        %v8367 = vmul.f32 %v2283, %v8358
        %v8368 = vmul.f32 %v2284, %v8356
        %v8369 = vmul.f32 %v2285, %v8357
        %v8370 = vmul.f32 %v2286, %v8358
        %v8371 = vmul.f32 %v2287, %v8356
        %v8372 = vmul.f32 %v2288, %v8357
        %v8373 = vmul.f32 %v2289, %v8358
        %v8374 = vmul.f32 %v2290, %v8356
        %v8375 = vmul.f32 %v2291, %v8357
        %v8376 = vmul.f32 %v2292, %v8358
        %v8377 = vmul.f32 %v2293, %v8356
        %v8378 = vmul.f32 %v2294, %v8357
        %v8379 = vmul.f32 %v2295, %v8358
        %v8380 = vmul.f32 %v2296, %v8356
        %v8381 = vmul.f32 %v2297, %v8357
        %v8382 = vmul.f32 %v2298, %v8358
        %v8383 = vmul.f32 %v2299, %v8356
        %v8384 = vmul.f32 %v2300, %v8357
        %v8385 = vmul.f32 %v2301, %v8358
        %v8410 = vrot.slane %v8362, 1
        %v8411 = vrot.slane %v8363, 1
        %v8412 = vrot.slane %v8364, 1
        %v8413 = vrot.slane %v8362, 2
        %v8414 = vrot.slane %v8363, 2
        %v8415 = vrot.slane %v8364, 2
        %v8416 = vrot.slane %v8362, 3
        %v8417 = vrot.slane %v8363, 3
        %v8418 = vrot.slane %v8364, 3
        %v8419 = vrot.slane %v8362, 4
        %v8420 = vrot.slane %v8363, 4
        %v8421 = vrot.slane %v8364, 4
        %v8422 = vrot.slane %v8362, 5
        %v8423 = vrot.slane %v8363, 5
        %v8424 = vrot.slane %v8364, 5
        %v8425 = vrot.slane %v8362, 6
        %v8426 = vrot.slane %v8363, 6
        %v8427 = vrot.slane %v8364, 6
        %v8428 = vrot.slane %v8362, 7
        %v8429 = vrot.slane %v8363, 7
        %v8430 = vrot.slane %v8364, 7
        %v8431 = vrot.slane %v8365, 1
        %v8432 = vrot.slane %v8366, 1
        %v8433 = vrot.slane %v8367, 1
        %v8434 = vrot.slane %v8365, 2
        %v8435 = vrot.slane %v8366, 2
        %v8436 = vrot.slane %v8367, 2
        %v8437 = vrot.slane %v8365, 3
        %v8438 = vrot.slane %v8366, 3
        %v8439 = vrot.slane %v8367, 3
        %v8440 = vrot.slane %v8365, 4
        %v8441 = vrot.slane %v8366, 4
        %v8442 = vrot.slane %v8367, 4
        %v8443 = vrot.slane %v8365, 5
        %v8444 = vrot.slane %v8366, 5
        %v8445 = vrot.slane %v8367, 5
        %v8446 = vrot.slane %v8365, 6
        %v8447 = vrot.slane %v8366, 6
        %v8448 = vrot.slane %v8367, 6
        %v8449 = vrot.slane %v8365, 7
        %v8450 = vrot.slane %v8366, 7
        %v8451 = vrot.slane %v8367, 7
        %v8452 = vrot.slane %v8368, 1
        %v8453 = vrot.slane %v8369, 1
        %v8454 = vrot.slane %v8370, 1
        %v8455 = vrot.slane %v8368, 2
        %v8456 = vrot.slane %v8369, 2
        %v8457 = vrot.slane %v8370, 2
        %v8458 = vrot.slane %v8368, 3
        %v8459 = vrot.slane %v8369, 3
        %v8460 = vrot.slane %v8370, 3
        %v8461 = vrot.slane %v8368, 4
        %v8462 = vrot.slane %v8369, 4
        %v8463 = vrot.slane %v8370, 4
        %v8464 = vrot.slane %v8368, 5
        %v8465 = vrot.slane %v8369, 5
        %v8466 = vrot.slane %v8370, 5
        %v8467 = vrot.slane %v8368, 6
        %v8468 = vrot.slane %v8369, 6
        %v8469 = vrot.slane %v8370, 6
        %v8470 = vrot.slane %v8368, 7
        %v8471 = vrot.slane %v8369, 7
        %v8472 = vrot.slane %v8370, 7
        %v8473 = vrot.slane %v8371, 1
        %v8474 = vrot.slane %v8372, 1
        %v8475 = vrot.slane %v8373, 1
        %v8476 = vrot.slane %v8371, 2
        %v8477 = vrot.slane %v8372, 2
        %v8478 = vrot.slane %v8373, 2
        %v8479 = vrot.slane %v8371, 3
        %v8480 = vrot.slane %v8372, 3
        %v8481 = vrot.slane %v8373, 3
        %v8482 = vrot.slane %v8371, 4
        %v8483 = vrot.slane %v8372, 4
        %v8484 = vrot.slane %v8373, 4
        %v8485 = vrot.slane %v8371, 5
        %v8486 = vrot.slane %v8372, 5
        %v8487 = vrot.slane %v8373, 5
        %v8488 = vrot.slane %v8371, 6
        %v8489 = vrot.slane %v8372, 6
        %v8490 = vrot.slane %v8373, 6
        %v8491 = vrot.slane %v8371, 7
        %v8492 = vrot.slane %v8372, 7
        %v8493 = vrot.slane %v8373, 7
        %v8494 = vrot.slane %v8374, 1
        %v8495 = vrot.slane %v8375, 1
        %v8496 = vrot.slane %v8376, 1
        %v8497 = vrot.slane %v8374, 2
        %v8498 = vrot.slane %v8375, 2
        %v8499 = vrot.slane %v8376, 2
        %v8500 = vrot.slane %v8374, 3
        %v8501 = vrot.slane %v8375, 3
        %v8502 = vrot.slane %v8376, 3
        %v8503 = vrot.slane %v8374, 4
        %v8504 = vrot.slane %v8375, 4
        %v8505 = vrot.slane %v8376, 4
        %v8506 = vrot.slane %v8374, 5
        %v8507 = vrot.slane %v8375, 5
        %v8508 = vrot.slane %v8376, 5
        %v8509 = vrot.slane %v8374, 6
        %v8510 = vrot.slane %v8375, 6
        %v8511 = vrot.slane %v8376, 6
        %v8512 = vrot.slane %v8374, 7
        %v8513 = vrot.slane %v8375, 7
        %v8514 = vrot.slane %v8376, 7
        %v8515 = vrot.slane %v8377, 1
        %v8516 = vrot.slane %v8378, 1
        %v8517 = vrot.slane %v8379, 1
        %v8518 = vrot.slane %v8377, 2
        %v8519 = vrot.slane %v8378, 2
        %v8520 = vrot.slane %v8379, 2
        %v8521 = vrot.slane %v8377, 3
        %v8522 = vrot.slane %v8378, 3
        %v8523 = vrot.slane %v8379, 3
        %v8524 = vrot.slane %v8377, 4
        %v8525 = vrot.slane %v8378, 4
        %v8526 = vrot.slane %v8379, 4
        %v8527 = vrot.slane %v8377, 5
        %v8528 = vrot.slane %v8378, 5
        %v8529 = vrot.slane %v8379, 5
        %v8530 = vrot.slane %v8377, 6
        %v8531 = vrot.slane %v8378, 6
        %v8532 = vrot.slane %v8379, 6
        %v8533 = vrot.slane %v8377, 7
        %v8534 = vrot.slane %v8378, 7
        %v8535 = vrot.slane %v8379, 7
        %v8536 = vrot.slane %v8380, 1
        %v8537 = vrot.slane %v8381, 1
        %v8538 = vrot.slane %v8382, 1
        %v8539 = vrot.slane %v8380, 2
        %v8540 = vrot.slane %v8381, 2
        %v8541 = vrot.slane %v8382, 2
        %v8542 = vrot.slane %v8380, 3
        %v8543 = vrot.slane %v8381, 3
        %v8544 = vrot.slane %v8382, 3
        %v8545 = vrot.slane %v8380, 4
        %v8546 = vrot.slane %v8381, 4
        %v8547 = vrot.slane %v8382, 4
        %v8548 = vrot.slane %v8380, 5
        %v8549 = vrot.slane %v8381, 5
        %v8550 = vrot.slane %v8382, 5
        %v8551 = vrot.slane %v8380, 6
        %v8552 = vrot.slane %v8381, 6
        %v8553 = vrot.slane %v8382, 6
        %v8554 = vrot.slane %v8380, 7
        %v8555 = vrot.slane %v8381, 7
        %v8556 = vrot.slane %v8382, 7
        %v8557 = vrot.slane %v8383, 1
        %v8558 = vrot.slane %v8384, 1
        %v8559 = vrot.slane %v8385, 1
        %v8560 = vrot.slane %v8383, 2
        %v8561 = vrot.slane %v8384, 2
        %v8562 = vrot.slane %v8385, 2
        %v8563 = vrot.slane %v8383, 3
        %v8564 = vrot.slane %v8384, 3
        %v8565 = vrot.slane %v8385, 3
        %v8566 = vrot.slane %v8383, 4
        %v8567 = vrot.slane %v8384, 4
        %v8568 = vrot.slane %v8385, 4
        %v8569 = vrot.slane %v8383, 5
        %v8570 = vrot.slane %v8384, 5
        %v8571 = vrot.slane %v8385, 5
        %v8572 = vrot.slane %v8383, 6
        %v8573 = vrot.slane %v8384, 6
        %v8574 = vrot.slane %v8385, 6
        %v8575 = vrot.slane %v8383, 7
        %v8576 = vrot.slane %v8384, 7
        %v8577 = vrot.slane %v8385, 7
        %v8770 = vadd.f32 %v7143, %v8362
        %v8771 = vadd.f32 %v7149, %v8363
        %v8772 = vadd.f32 %v7156, %v8364
        %v8773 = vadd.f32 %v7162, %v8410
        %v8774 = vadd.f32 %v7168, %v8411
        %v8775 = vadd.f32 %v7175, %v8412
        %v8776 = vadd.f32 %v7181, %v8413
        %v8777 = vadd.f32 %v7187, %v8414
        %v8778 = vadd.f32 %v7194, %v8415
        %v8779 = vadd.f32 %v7200, %v8416
        %v8780 = vadd.f32 %v7206, %v8417
        %v8781 = vadd.f32 %v7213, %v8418
        %v8782 = vadd.f32 %v7219, %v8419
        %v8783 = vadd.f32 %v7225, %v8420
        %v8784 = vadd.f32 %v7232, %v8421
        %v8785 = vadd.f32 %v7238, %v8422
        %v8786 = vadd.f32 %v7244, %v8423
        %v8787 = vadd.f32 %v7251, %v8424
        %v8788 = vadd.f32 %v7257, %v8425
        %v8789 = vadd.f32 %v7263, %v8426
        %v8790 = vadd.f32 %v7270, %v8427
        %v8791 = vadd.f32 %v7276, %v8428
        %v8792 = vadd.f32 %v7282, %v8429
        %v8793 = vadd.f32 %v7289, %v8430
        %v8794 = vadd.f32 %v7295, %v8365
        %v8795 = vadd.f32 %v7301, %v8366
        %v8796 = vadd.f32 %v7308, %v8367
        %v8797 = vadd.f32 %v7314, %v8431
        %v8798 = vadd.f32 %v7320, %v8432
        %v8799 = vadd.f32 %v7327, %v8433
        %v8800 = vadd.f32 %v7333, %v8434
        %v8801 = vadd.f32 %v7339, %v8435
        %v8802 = vadd.f32 %v7346, %v8436
        %v8803 = vadd.f32 %v7352, %v8437
        %v8804 = vadd.f32 %v7358, %v8438
        %v8805 = vadd.f32 %v7365, %v8439
        %v8806 = vadd.f32 %v7371, %v8440
        %v8807 = vadd.f32 %v7377, %v8441
        %v8808 = vadd.f32 %v7384, %v8442
        %v8809 = vadd.f32 %v7390, %v8443
        %v8810 = vadd.f32 %v7396, %v8444
        %v8811 = vadd.f32 %v7403, %v8445
        %v8812 = vadd.f32 %v7409, %v8446
        %v8813 = vadd.f32 %v7415, %v8447
        %v8814 = vadd.f32 %v7422, %v8448
        %v8815 = vadd.f32 %v7428, %v8449
        %v8816 = vadd.f32 %v7434, %v8450
        %v8817 = vadd.f32 %v7441, %v8451
        %v8818 = vadd.f32 %v7447, %v8368
        %v8819 = vadd.f32 %v7453, %v8369
        %v8820 = vadd.f32 %v7460, %v8370
        %v8821 = vadd.f32 %v7466, %v8452
        %v8822 = vadd.f32 %v7472, %v8453
        %v8823 = vadd.f32 %v7479, %v8454
        %v8824 = vadd.f32 %v7485, %v8455
        %v8825 = vadd.f32 %v7491, %v8456
        %v8826 = vadd.f32 %v7498, %v8457
        %v8827 = vadd.f32 %v7504, %v8458
        %v8828 = vadd.f32 %v7510, %v8459
        %v8829 = vadd.f32 %v7517, %v8460
        %v8830 = vadd.f32 %v7523, %v8461
        %v8831 = vadd.f32 %v7529, %v8462
        %v8832 = vadd.f32 %v7536, %v8463
        %v8833 = vadd.f32 %v7542, %v8464
        %v8834 = vadd.f32 %v7548, %v8465
        %v8835 = vadd.f32 %v7555, %v8466
        %v8836 = vadd.f32 %v7561, %v8467
        %v8837 = vadd.f32 %v7567, %v8468
        %v8838 = vadd.f32 %v7574, %v8469
        %v8839 = vadd.f32 %v7580, %v8470
        %v8840 = vadd.f32 %v7586, %v8471
        %v8841 = vadd.f32 %v7593, %v8472
        %v8842 = vadd.f32 %v7599, %v8371
        %v8843 = vadd.f32 %v7605, %v8372
        %v8844 = vadd.f32 %v7612, %v8373
        %v8845 = vadd.f32 %v7618, %v8473
        %v8846 = vadd.f32 %v7624, %v8474
        %v8847 = vadd.f32 %v7631, %v8475
        %v8848 = vadd.f32 %v7637, %v8476
        %v8849 = vadd.f32 %v7643, %v8477
        %v8850 = vadd.f32 %v7650, %v8478
        %v8851 = vadd.f32 %v7656, %v8479
        %v8852 = vadd.f32 %v7662, %v8480
        %v8853 = vadd.f32 %v7669, %v8481
        %v8854 = vadd.f32 %v7675, %v8482
        %v8855 = vadd.f32 %v7681, %v8483
        %v8856 = vadd.f32 %v7688, %v8484
        %v8857 = vadd.f32 %v7694, %v8485
        %v8858 = vadd.f32 %v7700, %v8486
        %v8859 = vadd.f32 %v7707, %v8487
        %v8860 = vadd.f32 %v7713, %v8488
        %v8861 = vadd.f32 %v7719, %v8489
        %v8862 = vadd.f32 %v7726, %v8490
        %v8863 = vadd.f32 %v7732, %v8491
        %v8864 = vadd.f32 %v7738, %v8492
        %v8865 = vadd.f32 %v7745, %v8493
        %v8866 = vadd.f32 %v7751, %v8374
        %v8867 = vadd.f32 %v7757, %v8375
        %v8868 = vadd.f32 %v7764, %v8376
        %v8869 = vadd.f32 %v7770, %v8494
        %v8870 = vadd.f32 %v7776, %v8495
        %v8871 = vadd.f32 %v7783, %v8496
        %v8872 = vadd.f32 %v7789, %v8497
        %v8873 = vadd.f32 %v7795, %v8498
        %v8874 = vadd.f32 %v7802, %v8499
        %v8875 = vadd.f32 %v7808, %v8500
        %v8876 = vadd.f32 %v7814, %v8501
        %v8877 = vadd.f32 %v7821, %v8502
        %v8878 = vadd.f32 %v7827, %v8503
        %v8879 = vadd.f32 %v7833, %v8504
        %v8880 = vadd.f32 %v7840, %v8505
        %v8881 = vadd.f32 %v7846, %v8506
        %v8882 = vadd.f32 %v7852, %v8507
        %v8883 = vadd.f32 %v7859, %v8508
        %v8884 = vadd.f32 %v7865, %v8509
        %v8885 = vadd.f32 %v7871, %v8510
        %v8886 = vadd.f32 %v7878, %v8511
        %v8887 = vadd.f32 %v7884, %v8512
        %v8888 = vadd.f32 %v7890, %v8513
        %v8889 = vadd.f32 %v7897, %v8514
        %v8890 = vadd.f32 %v7903, %v8377
        %v8891 = vadd.f32 %v7909, %v8378
        %v8892 = vadd.f32 %v7916, %v8379
        %v8893 = vadd.f32 %v7922, %v8515
        %v8894 = vadd.f32 %v7928, %v8516
        %v8895 = vadd.f32 %v7935, %v8517
        %v8896 = vadd.f32 %v7941, %v8518
        %v8897 = vadd.f32 %v7947, %v8519
        %v8898 = vadd.f32 %v7954, %v8520
        %v8899 = vadd.f32 %v7960, %v8521
        %v8900 = vadd.f32 %v7966, %v8522
        %v8901 = vadd.f32 %v7973, %v8523
        %v8902 = vadd.f32 %v7979, %v8524
        %v8903 = vadd.f32 %v7985, %v8525
        %v8904 = vadd.f32 %v7992, %v8526
        %v8905 = vadd.f32 %v7998, %v8527
        %v8906 = vadd.f32 %v8004, %v8528
        %v8907 = vadd.f32 %v8011, %v8529
        %v8908 = vadd.f32 %v8017, %v8530
        %v8909 = vadd.f32 %v8023, %v8531
        %v8910 = vadd.f32 %v8030, %v8532
        %v8911 = vadd.f32 %v8036, %v8533
        %v8912 = vadd.f32 %v8042, %v8534
        %v8913 = vadd.f32 %v8049, %v8535
        %v8914 = vadd.f32 %v8055, %v8380
        %v8915 = vadd.f32 %v8061, %v8381
        %v8916 = vadd.f32 %v8068, %v8382
        %v8917 = vadd.f32 %v8074, %v8536
        %v8918 = vadd.f32 %v8080, %v8537
        %v8919 = vadd.f32 %v8087, %v8538
        %v8920 = vadd.f32 %v8093, %v8539
        %v8921 = vadd.f32 %v8099, %v8540
        %v8922 = vadd.f32 %v8106, %v8541
        %v8923 = vadd.f32 %v8112, %v8542
        %v8924 = vadd.f32 %v8118, %v8543
        %v8925 = vadd.f32 %v8125, %v8544
        %v8926 = vadd.f32 %v8131, %v8545
        %v8927 = vadd.f32 %v8137, %v8546
        %v8928 = vadd.f32 %v8144, %v8547
        %v8929 = vadd.f32 %v8150, %v8548
        %v8930 = vadd.f32 %v8156, %v8549
        %v8931 = vadd.f32 %v8163, %v8550
        %v8932 = vadd.f32 %v8169, %v8551
        %v8933 = vadd.f32 %v8175, %v8552
        %v8934 = vadd.f32 %v8182, %v8553
        %v8935 = vadd.f32 %v8188, %v8554
        %v8936 = vadd.f32 %v8194, %v8555
        %v8937 = vadd.f32 %v8201, %v8556
        %v8938 = vadd.f32 %v8207, %v8383
        %v8939 = vadd.f32 %v8213, %v8384
        %v8940 = vadd.f32 %v8220, %v8385
        %v8941 = vadd.f32 %v8226, %v8557
        %v8942 = vadd.f32 %v8232, %v8558
        %v8943 = vadd.f32 %v8239, %v8559
        %v8944 = vadd.f32 %v8245, %v8560
        %v8945 = vadd.f32 %v8251, %v8561
        %v8946 = vadd.f32 %v8258, %v8562
        %v8947 = vadd.f32 %v8264, %v8563
        %v8948 = vadd.f32 %v8270, %v8564
        %v8949 = vadd.f32 %v8277, %v8565
        %v8950 = vadd.f32 %v8283, %v8566
        %v8951 = vadd.f32 %v8289, %v8567
        %v8952 = vadd.f32 %v8296, %v8568
        %v8953 = vadd.f32 %v8302, %v8569
        %v8954 = vadd.f32 %v8308, %v8570
        %v8955 = vadd.f32 %v8315, %v8571
        %v8956 = vadd.f32 %v8321, %v8572
        %v8957 = vadd.f32 %v8327, %v8573
        %v8958 = vadd.f32 %v8334, %v8574
        %v8959 = vadd.f32 %v8340, %v8575
        %v8960 = vadd.f32 %v8346, %v8576
        %v8961 = vadd.f32 %v8353, %v8577
        %v8962 = vxor.u32 %v905, 2147483648
        %v8963 = vxor.u32 %v987, 2147483648
        %v8964 = vxor.u32 %v1069, 2147483648
        %v8965 = vxor.u32 %v908, 2147483648
        %v8966 = vxor.u32 %v990, 2147483648
        %v8967 = vxor.u32 %v1072, 2147483648
        %v8968 = vxor.u32 %v911, 2147483648
        %v8969 = vxor.u32 %v993, 2147483648
        %v8970 = vxor.u32 %v1075, 2147483648
        %v8971 = vxor.u32 %v914, 2147483648
        %v8972 = vxor.u32 %v996, 2147483648
        %v8973 = vxor.u32 %v1078, 2147483648
        %v8974 = vxor.u32 %v917, 2147483648
        %v8975 = vxor.u32 %v999, 2147483648
        %v8976 = vxor.u32 %v1081, 2147483648
        %v8977 = vxor.u32 %v920, 2147483648
        %v8978 = vxor.u32 %v1002, 2147483648
        %v8979 = vxor.u32 %v1084, 2147483648
        %v8980 = vxor.u32 %v923, 2147483648
        %v8981 = vxor.u32 %v1005, 2147483648
        %v8982 = vxor.u32 %v1087, 2147483648
        %v8983 = vxor.u32 %v926, 2147483648
        %v8984 = vxor.u32 %v1008, 2147483648
        %v8985 = vxor.u32 %v1090, 2147483648
        %v8986 = vmul.f32 %v8962, 1.442695
        %v8987 = vpow.pop %v8986
        %v8988 = vmul.f32 %v8963, 1.442695
        %v8989 = vpow.pop %v8988
        %v8990 = vmul.f32 %v8964, 1.442695
        %v8991 = vpow.pop %v8990
        %v8992 = vmul.f32 %v8965, 1.442695
        %v8993 = vpow.pop %v8992
        %v8994 = vmul.f32 %v8966, 1.442695
        %v8995 = vpow.pop %v8994
        %v8996 = vmul.f32 %v8967, 1.442695
        %v8997 = vpow.pop %v8996
        %v8998 = vmul.f32 %v8968, 1.442695
        %v8999 = vpow.pop %v8998
        %v9000 = vmul.f32 %v8969, 1.442695
        %v9001 = vpow.pop %v9000
        %v9002 = vmul.f32 %v8970, 1.442695
        %v9003 = vpow.pop %v9002
        %v9004 = vmul.f32 %v8971, 1.442695
        %v9005 = vpow.pop %v9004
        %v9006 = vmul.f32 %v8972, 1.442695
        %v9007 = vpow.pop %v9006
        %v9008 = vmul.f32 %v8973, 1.442695
        %v9009 = vpow.pop %v9008
        %v9010 = vmul.f32 %v8974, 1.442695
        %v9011 = vpow.pop %v9010
        %v9012 = vmul.f32 %v8975, 1.442695
        %v9013 = vpow.pop %v9012
        %v9014 = vmul.f32 %v8976, 1.442695
        %v9015 = vpow.pop %v9014
        %v9016 = vmul.f32 %v8977, 1.442695
        %v9017 = vpow.pop %v9016
        %v9018 = vmul.f32 %v8978, 1.442695
        %v9019 = vpow.pop %v9018
        %v9020 = vmul.f32 %v8979, 1.442695
        %v9021 = vpow.pop %v9020
        %v9022 = vmul.f32 %v8980, 1.442695
        %v9023 = vpow.pop %v9022
        %v9024 = vmul.f32 %v8981, 1.442695
        %v9025 = vpow.pop %v9024
        %v9026 = vmul.f32 %v8982, 1.442695
        %v9027 = vpow.pop %v9026
        %v9028 = vmul.f32 %v8983, 1.442695
        %v9029 = vpow.pop %v9028
        %v9030 = vmul.f32 %v8984, 1.442695
        %v9031 = vpow.pop %v9030
        %v9032 = vmul.f32 %v8985, 1.442695
        %v9033 = vpow.pop %v9032
        %v9034 = vadd.f32 %v8987, 1.0
        %v9035 = vadd.f32 %v8989, 1.0
        %v9036 = vadd.f32 %v8991, 1.0
        %v9037 = vadd.f32 %v8993, 1.0
        %v9038 = vadd.f32 %v8995, 1.0
        %v9039 = vadd.f32 %v8997, 1.0
        %v9040 = vadd.f32 %v8999, 1.0
        %v9041 = vadd.f32 %v9001, 1.0
        %v9042 = vadd.f32 %v9003, 1.0
        %v9043 = vadd.f32 %v9005, 1.0
        %v9044 = vadd.f32 %v9007, 1.0
        %v9045 = vadd.f32 %v9009, 1.0
        %v9046 = vadd.f32 %v9011, 1.0
        %v9047 = vadd.f32 %v9013, 1.0
        %v9048 = vadd.f32 %v9015, 1.0
        %v9049 = vadd.f32 %v9017, 1.0
        %v9050 = vadd.f32 %v9019, 1.0
        %v9051 = vadd.f32 %v9021, 1.0
        %v9052 = vadd.f32 %v9023, 1.0
        %v9053 = vadd.f32 %v9025, 1.0
        %v9054 = vadd.f32 %v9027, 1.0
        %v9055 = vadd.f32 %v9029, 1.0
        %v9056 = vadd.f32 %v9031, 1.0
        %v9057 = vadd.f32 %v9033, 1.0
        %v9058 = vrcp.pop %v9034
        %v9059 = vmul.f32 %v9034, %v9058
        %v9060 = vsub.f32 1.0, %v9059
        %v9061 = vmul.f32 %v9058, %v9060
        %v9062 = vadd.f32 %v9058, %v9061
        %vm9063 = vweird.f32 %v9034
        %vm9064 = vweird.f32 %v9058
        %vm9065 = vmor %vm9063, %vm9064
        %v9066 = vsel %vm9065, %v9058, %v9062
        %v9067 = vand.u32 2147483647, %v9034
        %vm9068 = vcmp.eq.f32.partialorder %v9067, 8.507059e+37
        %v9069 = vand.u32 %v9034, 2147483648
        %v9070 = vor.u32 1.1754944e-38, %v9069
        %v9071 = vsel %vm9068, %v9070, %v9066
        %v9072 = vmul.f32 1.0, %v9071
        %v9073 = vrcp.pop %v9035
        %v9074 = vmul.f32 %v9035, %v9073
        %v9075 = vsub.f32 1.0, %v9074
        %v9076 = vmul.f32 %v9073, %v9075
        %v9077 = vadd.f32 %v9073, %v9076
        %vm9078 = vweird.f32 %v9035
        %vm9079 = vweird.f32 %v9073
        %vm9080 = vmor %vm9078, %vm9079
        %v9081 = vsel %vm9080, %v9073, %v9077
        %v9082 = vand.u32 2147483647, %v9035
        %vm9083 = vcmp.eq.f32.partialorder %v9082, 8.507059e+37
        %v9084 = vand.u32 %v9035, 2147483648
        %v9085 = vor.u32 1.1754944e-38, %v9084
        %v9086 = vsel %vm9083, %v9085, %v9081
        %v9087 = vmul.f32 1.0, %v9086
        %v9088 = vrcp.pop %v9036
        %v9089 = vmul.f32 %v9036, %v9088
        %v9090 = vsub.f32 1.0, %v9089
        %v9091 = vmul.f32 %v9088, %v9090
        %v9092 = vadd.f32 %v9088, %v9091
        %vm9093 = vweird.f32 %v9036
        %vm9094 = vweird.f32 %v9088
        %vm9095 = vmor %vm9093, %vm9094
        %v9096 = vsel %vm9095, %v9088, %v9092
        %v9097 = vand.u32 2147483647, %v9036
        %vm9098 = vcmp.eq.f32.partialorder %v9097, 8.507059e+37
        %v9099 = vand.u32 %v9036, 2147483648
        %v9100 = vor.u32 1.1754944e-38, %v9099
        %v9101 = vsel %vm9098, %v9100, %v9096
        %v9102 = vmul.f32 1.0, %v9101
        %v9103 = vrcp.pop %v9037
        %v9104 = vmul.f32 %v9037, %v9103
        %v9105 = vsub.f32 1.0, %v9104
        %v9106 = vmul.f32 %v9103, %v9105
        %v9107 = vadd.f32 %v9103, %v9106
        %vm9108 = vweird.f32 %v9037
        %vm9109 = vweird.f32 %v9103
        %vm9110 = vmor %vm9108, %vm9109
        %v9111 = vsel %vm9110, %v9103, %v9107
        %v9112 = vand.u32 2147483647, %v9037
        %vm9113 = vcmp.eq.f32.partialorder %v9112, 8.507059e+37
        %v9114 = vand.u32 %v9037, 2147483648
        %v9115 = vor.u32 1.1754944e-38, %v9114
        %v9116 = vsel %vm9113, %v9115, %v9111
        %v9117 = vmul.f32 1.0, %v9116
        %v9118 = vrcp.pop %v9038
        %v9119 = vmul.f32 %v9038, %v9118
        %v9120 = vsub.f32 1.0, %v9119
        %v9121 = vmul.f32 %v9118, %v9120
        %v9122 = vadd.f32 %v9118, %v9121
        %vm9123 = vweird.f32 %v9038
        %vm9124 = vweird.f32 %v9118
        %vm9125 = vmor %vm9123, %vm9124
        %v9126 = vsel %vm9125, %v9118, %v9122
        %v9127 = vand.u32 2147483647, %v9038
        %vm9128 = vcmp.eq.f32.partialorder %v9127, 8.507059e+37
        %v9129 = vand.u32 %v9038, 2147483648
        %v9130 = vor.u32 1.1754944e-38, %v9129
        %v9131 = vsel %vm9128, %v9130, %v9126
        %v9132 = vmul.f32 1.0, %v9131
        %v9133 = vrcp.pop %v9039
        %v9134 = vmul.f32 %v9039, %v9133
        %v9135 = vsub.f32 1.0, %v9134
        %v9136 = vmul.f32 %v9133, %v9135
        %v9137 = vadd.f32 %v9133, %v9136
        %vm9138 = vweird.f32 %v9039
        %vm9139 = vweird.f32 %v9133
        %vm9140 = vmor %vm9138, %vm9139
        %v9141 = vsel %vm9140, %v9133, %v9137
        %v9142 = vand.u32 2147483647, %v9039
        %vm9143 = vcmp.eq.f32.partialorder %v9142, 8.507059e+37
        %v9144 = vand.u32 %v9039, 2147483648
        %v9145 = vor.u32 1.1754944e-38, %v9144
        %v9146 = vsel %vm9143, %v9145, %v9141
        %v9147 = vmul.f32 1.0, %v9146
        %v9148 = vrcp.pop %v9040
        %v9149 = vmul.f32 %v9040, %v9148
        %v9150 = vsub.f32 1.0, %v9149
        %v9151 = vmul.f32 %v9148, %v9150
        %v9152 = vadd.f32 %v9148, %v9151
        %vm9153 = vweird.f32 %v9040
        %vm9154 = vweird.f32 %v9148
        %vm9155 = vmor %vm9153, %vm9154
        %v9156 = vsel %vm9155, %v9148, %v9152
        %v9157 = vand.u32 2147483647, %v9040
        %vm9158 = vcmp.eq.f32.partialorder %v9157, 8.507059e+37
        %v9159 = vand.u32 %v9040, 2147483648
        %v9160 = vor.u32 1.1754944e-38, %v9159
        %v9161 = vsel %vm9158, %v9160, %v9156
        %v9162 = vmul.f32 1.0, %v9161
        %v9163 = vrcp.pop %v9041
        %v9164 = vmul.f32 %v9041, %v9163
        %v9165 = vsub.f32 1.0, %v9164
        %v9166 = vmul.f32 %v9163, %v9165
        %v9167 = vadd.f32 %v9163, %v9166
        %vm9168 = vweird.f32 %v9041
        %vm9169 = vweird.f32 %v9163
        %vm9170 = vmor %vm9168, %vm9169
        %v9171 = vsel %vm9170, %v9163, %v9167
        %v9172 = vand.u32 2147483647, %v9041
        %vm9173 = vcmp.eq.f32.partialorder %v9172, 8.507059e+37
        %v9174 = vand.u32 %v9041, 2147483648
        %v9175 = vor.u32 1.1754944e-38, %v9174
        %v9176 = vsel %vm9173, %v9175, %v9171
        %v9177 = vmul.f32 1.0, %v9176
        %v9178 = vrcp.pop %v9042
        %v9179 = vmul.f32 %v9042, %v9178
        %v9180 = vsub.f32 1.0, %v9179
        %v9181 = vmul.f32 %v9178, %v9180
        %v9182 = vadd.f32 %v9178, %v9181
        %vm9183 = vweird.f32 %v9042
        %vm9184 = vweird.f32 %v9178
        %vm9185 = vmor %vm9183, %vm9184
        %v9186 = vsel %vm9185, %v9178, %v9182
        %v9187 = vand.u32 2147483647, %v9042
        %vm9188 = vcmp.eq.f32.partialorder %v9187, 8.507059e+37
        %v9189 = vand.u32 %v9042, 2147483648
        %v9190 = vor.u32 1.1754944e-38, %v9189
        %v9191 = vsel %vm9188, %v9190, %v9186
        %v9192 = vmul.f32 1.0, %v9191
        %v9193 = vrcp.pop %v9043
        %v9194 = vmul.f32 %v9043, %v9193
        %v9195 = vsub.f32 1.0, %v9194
        %v9196 = vmul.f32 %v9193, %v9195
        %v9197 = vadd.f32 %v9193, %v9196
        %vm9198 = vweird.f32 %v9043
        %vm9199 = vweird.f32 %v9193
        %vm9200 = vmor %vm9198, %vm9199
        %v9201 = vsel %vm9200, %v9193, %v9197
        %v9202 = vand.u32 2147483647, %v9043
        %vm9203 = vcmp.eq.f32.partialorder %v9202, 8.507059e+37
        %v9204 = vand.u32 %v9043, 2147483648
        %v9205 = vor.u32 1.1754944e-38, %v9204
        %v9206 = vsel %vm9203, %v9205, %v9201
        %v9207 = vmul.f32 1.0, %v9206
        %v9208 = vrcp.pop %v9044
        %v9209 = vmul.f32 %v9044, %v9208
        %v9210 = vsub.f32 1.0, %v9209
        %v9211 = vmul.f32 %v9208, %v9210
        %v9212 = vadd.f32 %v9208, %v9211
        %vm9213 = vweird.f32 %v9044
        %vm9214 = vweird.f32 %v9208
        %vm9215 = vmor %vm9213, %vm9214
        %v9216 = vsel %vm9215, %v9208, %v9212
        %v9217 = vand.u32 2147483647, %v9044
        %vm9218 = vcmp.eq.f32.partialorder %v9217, 8.507059e+37
        %v9219 = vand.u32 %v9044, 2147483648
        %v9220 = vor.u32 1.1754944e-38, %v9219
        %v9221 = vsel %vm9218, %v9220, %v9216
        %v9222 = vmul.f32 1.0, %v9221
        %v9223 = vrcp.pop %v9045
        %v9224 = vmul.f32 %v9045, %v9223
        %v9225 = vsub.f32 1.0, %v9224
        %v9226 = vmul.f32 %v9223, %v9225
        %v9227 = vadd.f32 %v9223, %v9226
        %vm9228 = vweird.f32 %v9045
        %vm9229 = vweird.f32 %v9223
        %vm9230 = vmor %vm9228, %vm9229
        %v9231 = vsel %vm9230, %v9223, %v9227
        %v9232 = vand.u32 2147483647, %v9045
        %vm9233 = vcmp.eq.f32.partialorder %v9232, 8.507059e+37
        %v9234 = vand.u32 %v9045, 2147483648
        %v9235 = vor.u32 1.1754944e-38, %v9234
        %v9236 = vsel %vm9233, %v9235, %v9231
        %v9237 = vmul.f32 1.0, %v9236
        %v9238 = vrcp.pop %v9046
        %v9239 = vmul.f32 %v9046, %v9238
        %v9240 = vsub.f32 1.0, %v9239
        %v9241 = vmul.f32 %v9238, %v9240
        %v9242 = vadd.f32 %v9238, %v9241
        %vm9243 = vweird.f32 %v9046
        %vm9244 = vweird.f32 %v9238
        %vm9245 = vmor %vm9243, %vm9244
        %v9246 = vsel %vm9245, %v9238, %v9242
        %v9247 = vand.u32 2147483647, %v9046
        %vm9248 = vcmp.eq.f32.partialorder %v9247, 8.507059e+37
        %v9249 = vand.u32 %v9046, 2147483648
        %v9250 = vor.u32 1.1754944e-38, %v9249
        %v9251 = vsel %vm9248, %v9250, %v9246
        %v9252 = vmul.f32 1.0, %v9251
        %v9253 = vrcp.pop %v9047
        %v9254 = vmul.f32 %v9047, %v9253
        %v9255 = vsub.f32 1.0, %v9254
        %v9256 = vmul.f32 %v9253, %v9255
        %v9257 = vadd.f32 %v9253, %v9256
        %vm9258 = vweird.f32 %v9047
        %vm9259 = vweird.f32 %v9253
        %vm9260 = vmor %vm9258, %vm9259
        %v9261 = vsel %vm9260, %v9253, %v9257
        %v9262 = vand.u32 2147483647, %v9047
        %vm9263 = vcmp.eq.f32.partialorder %v9262, 8.507059e+37
        %v9264 = vand.u32 %v9047, 2147483648
        %v9265 = vor.u32 1.1754944e-38, %v9264
        %v9266 = vsel %vm9263, %v9265, %v9261
        %v9267 = vmul.f32 1.0, %v9266
        %v9268 = vrcp.pop %v9048
        %v9269 = vmul.f32 %v9048, %v9268
        %v9270 = vsub.f32 1.0, %v9269
        %v9271 = vmul.f32 %v9268, %v9270
        %v9272 = vadd.f32 %v9268, %v9271
        %vm9273 = vweird.f32 %v9048
        %vm9274 = vweird.f32 %v9268
        %vm9275 = vmor %vm9273, %vm9274
        %v9276 = vsel %vm9275, %v9268, %v9272
        %v9277 = vand.u32 2147483647, %v9048
        %vm9278 = vcmp.eq.f32.partialorder %v9277, 8.507059e+37
        %v9279 = vand.u32 %v9048, 2147483648
        %v9280 = vor.u32 1.1754944e-38, %v9279
        %v9281 = vsel %vm9278, %v9280, %v9276
        %v9282 = vmul.f32 1.0, %v9281
        %v9283 = vrcp.pop %v9049
        %v9284 = vmul.f32 %v9049, %v9283
        %v9285 = vsub.f32 1.0, %v9284
        %v9286 = vmul.f32 %v9283, %v9285
        %v9287 = vadd.f32 %v9283, %v9286
        %vm9288 = vweird.f32 %v9049
        %vm9289 = vweird.f32 %v9283
        %vm9290 = vmor %vm9288, %vm9289
        %v9291 = vsel %vm9290, %v9283, %v9287
        %v9292 = vand.u32 2147483647, %v9049
        %vm9293 = vcmp.eq.f32.partialorder %v9292, 8.507059e+37
        %v9294 = vand.u32 %v9049, 2147483648
        %v9295 = vor.u32 1.1754944e-38, %v9294
        %v9296 = vsel %vm9293, %v9295, %v9291
        %v9297 = vmul.f32 1.0, %v9296
        %v9298 = vrcp.pop %v9050
        %v9299 = vmul.f32 %v9050, %v9298
        %v9300 = vsub.f32 1.0, %v9299
        %v9301 = vmul.f32 %v9298, %v9300
        %v9302 = vadd.f32 %v9298, %v9301
        %vm9303 = vweird.f32 %v9050
        %vm9304 = vweird.f32 %v9298
        %vm9305 = vmor %vm9303, %vm9304
        %v9306 = vsel %vm9305, %v9298, %v9302
        %v9307 = vand.u32 2147483647, %v9050
        %vm9308 = vcmp.eq.f32.partialorder %v9307, 8.507059e+37
        %v9309 = vand.u32 %v9050, 2147483648
        %v9310 = vor.u32 1.1754944e-38, %v9309
        %v9311 = vsel %vm9308, %v9310, %v9306
        %v9312 = vmul.f32 1.0, %v9311
        %v9313 = vrcp.pop %v9051
        %v9314 = vmul.f32 %v9051, %v9313
        %v9315 = vsub.f32 1.0, %v9314
        %v9316 = vmul.f32 %v9313, %v9315
        %v9317 = vadd.f32 %v9313, %v9316
        %vm9318 = vweird.f32 %v9051
        %vm9319 = vweird.f32 %v9313
        %vm9320 = vmor %vm9318, %vm9319
        %v9321 = vsel %vm9320, %v9313, %v9317
        %v9322 = vand.u32 2147483647, %v9051
        %vm9323 = vcmp.eq.f32.partialorder %v9322, 8.507059e+37
        %v9324 = vand.u32 %v9051, 2147483648
        %v9325 = vor.u32 1.1754944e-38, %v9324
        %v9326 = vsel %vm9323, %v9325, %v9321
        %v9327 = vmul.f32 1.0, %v9326
        %v9328 = vrcp.pop %v9052
        %v9329 = vmul.f32 %v9052, %v9328
        %v9330 = vsub.f32 1.0, %v9329
        %v9331 = vmul.f32 %v9328, %v9330
        %v9332 = vadd.f32 %v9328, %v9331
        %vm9333 = vweird.f32 %v9052
        %vm9334 = vweird.f32 %v9328
        %vm9335 = vmor %vm9333, %vm9334
        %v9336 = vsel %vm9335, %v9328, %v9332
        %v9337 = vand.u32 2147483647, %v9052
        %vm9338 = vcmp.eq.f32.partialorder %v9337, 8.507059e+37
        %v9339 = vand.u32 %v9052, 2147483648
        %v9340 = vor.u32 1.1754944e-38, %v9339
        %v9341 = vsel %vm9338, %v9340, %v9336
        %v9342 = vmul.f32 1.0, %v9341
        %v9343 = vrcp.pop %v9053
        %v9344 = vmul.f32 %v9053, %v9343
        %v9345 = vsub.f32 1.0, %v9344
        %v9346 = vmul.f32 %v9343, %v9345
        %v9347 = vadd.f32 %v9343, %v9346
        %vm9348 = vweird.f32 %v9053
        %vm9349 = vweird.f32 %v9343
        %vm9350 = vmor %vm9348, %vm9349
        %v9351 = vsel %vm9350, %v9343, %v9347
        %v9352 = vand.u32 2147483647, %v9053
        %vm9353 = vcmp.eq.f32.partialorder %v9352, 8.507059e+37
        %v9354 = vand.u32 %v9053, 2147483648
        %v9355 = vor.u32 1.1754944e-38, %v9354
        %v9356 = vsel %vm9353, %v9355, %v9351
        %v9357 = vmul.f32 1.0, %v9356
        %v9358 = vrcp.pop %v9054
        %v9359 = vmul.f32 %v9054, %v9358
        %v9360 = vsub.f32 1.0, %v9359
        %v9361 = vmul.f32 %v9358, %v9360
        %v9362 = vadd.f32 %v9358, %v9361
        %vm9363 = vweird.f32 %v9054
        %vm9364 = vweird.f32 %v9358
        %vm9365 = vmor %vm9363, %vm9364
        %v9366 = vsel %vm9365, %v9358, %v9362
        %v9367 = vand.u32 2147483647, %v9054
        %vm9368 = vcmp.eq.f32.partialorder %v9367, 8.507059e+37
        %v9369 = vand.u32 %v9054, 2147483648
        %v9370 = vor.u32 1.1754944e-38, %v9369
        %v9371 = vsel %vm9368, %v9370, %v9366
        %v9372 = vmul.f32 1.0, %v9371
        %v9373 = vrcp.pop %v9055
        %v9374 = vmul.f32 %v9055, %v9373
        %v9375 = vsub.f32 1.0, %v9374
        %v9376 = vmul.f32 %v9373, %v9375
        %v9377 = vadd.f32 %v9373, %v9376
        %vm9378 = vweird.f32 %v9055
        %vm9379 = vweird.f32 %v9373
        %vm9380 = vmor %vm9378, %vm9379
        %v9381 = vsel %vm9380, %v9373, %v9377
        %v9382 = vand.u32 2147483647, %v9055
        %vm9383 = vcmp.eq.f32.partialorder %v9382, 8.507059e+37
        %v9384 = vand.u32 %v9055, 2147483648
        %v9385 = vor.u32 1.1754944e-38, %v9384
        %v9386 = vsel %vm9383, %v9385, %v9381
        %v9387 = vmul.f32 1.0, %v9386
        %v9388 = vrcp.pop %v9056
        %v9389 = vmul.f32 %v9056, %v9388
        %v9390 = vsub.f32 1.0, %v9389
        %v9391 = vmul.f32 %v9388, %v9390
        %v9392 = vadd.f32 %v9388, %v9391
        %vm9393 = vweird.f32 %v9056
        %vm9394 = vweird.f32 %v9388
        %vm9395 = vmor %vm9393, %vm9394
        %v9396 = vsel %vm9395, %v9388, %v9392
        %v9397 = vand.u32 2147483647, %v9056
        %vm9398 = vcmp.eq.f32.partialorder %v9397, 8.507059e+37
        %v9399 = vand.u32 %v9056, 2147483648
        %v9400 = vor.u32 1.1754944e-38, %v9399
        %v9401 = vsel %vm9398, %v9400, %v9396
        %v9402 = vmul.f32 1.0, %v9401
        %v9403 = vrcp.pop %v9057
        %v9404 = vmul.f32 %v9057, %v9403
        %v9405 = vsub.f32 1.0, %v9404
        %v9406 = vmul.f32 %v9403, %v9405
        %v9407 = vadd.f32 %v9403, %v9406
        %vm9408 = vweird.f32 %v9057
        %vm9409 = vweird.f32 %v9403
        %vm9410 = vmor %vm9408, %vm9409
        %v9411 = vsel %vm9410, %v9403, %v9407
        %v9412 = vand.u32 2147483647, %v9057
        %vm9413 = vcmp.eq.f32.partialorder %v9412, 8.507059e+37
        %v9414 = vand.u32 %v9057, 2147483648
        %v9415 = vor.u32 1.1754944e-38, %v9414
        %v9416 = vsel %vm9413, %v9415, %v9411
        %v9417 = vmul.f32 1.0, %v9416
        %v9418 = vmul.f32 %v905, %v9072
        %v9419 = vmul.f32 %v987, %v9087
        %v9420 = vmul.f32 %v1069, %v9102
        %v9421 = vmul.f32 %v908, %v9117
        %v9422 = vmul.f32 %v990, %v9132
        %v9423 = vmul.f32 %v1072, %v9147
        %v9424 = vmul.f32 %v911, %v9162
        %v9425 = vmul.f32 %v993, %v9177
        %v9426 = vmul.f32 %v1075, %v9192
        %v9427 = vmul.f32 %v914, %v9207
        %v9428 = vmul.f32 %v996, %v9222
        %v9429 = vmul.f32 %v1078, %v9237
        %v9430 = vmul.f32 %v917, %v9252
        %v9431 = vmul.f32 %v999, %v9267
        %v9432 = vmul.f32 %v1081, %v9282
        %v9433 = vmul.f32 %v920, %v9297
        %v9434 = vmul.f32 %v1002, %v9312
        %v9435 = vmul.f32 %v1084, %v9327
        %v9436 = vmul.f32 %v923, %v9342
        %v9437 = vmul.f32 %v1005, %v9357
        %v9438 = vmul.f32 %v1087, %v9372
        %v9439 = vmul.f32 %v926, %v9387
        %v9440 = vmul.f32 %v1008, %v9402
        %v9441 = vmul.f32 %v1090, %v9417
        %v9466 = vrot.slane %v9418, 1
        %v9467 = vrot.slane %v9419, 1
        %v9468 = vrot.slane %v9420, 1
        %v9469 = vrot.slane %v9418, 2
        %v9470 = vrot.slane %v9419, 2
        %v9471 = vrot.slane %v9420, 2
        %v9472 = vrot.slane %v9418, 3
        %v9473 = vrot.slane %v9419, 3
        %v9474 = vrot.slane %v9420, 3
        %v9475 = vrot.slane %v9418, 4
        %v9476 = vrot.slane %v9419, 4
        %v9477 = vrot.slane %v9420, 4
        %v9478 = vrot.slane %v9418, 5
        %v9479 = vrot.slane %v9419, 5
        %v9480 = vrot.slane %v9420, 5
        %v9481 = vrot.slane %v9418, 6
        %v9482 = vrot.slane %v9419, 6
        %v9483 = vrot.slane %v9420, 6
        %v9484 = vrot.slane %v9418, 7
        %v9485 = vrot.slane %v9419, 7
        %v9486 = vrot.slane %v9420, 7
        %v9487 = vrot.slane %v9421, 1
        %v9488 = vrot.slane %v9422, 1
        %v9489 = vrot.slane %v9423, 1
        %v9490 = vrot.slane %v9421, 2
        %v9491 = vrot.slane %v9422, 2
        %v9492 = vrot.slane %v9423, 2
        %v9493 = vrot.slane %v9421, 3
        %v9494 = vrot.slane %v9422, 3
        %v9495 = vrot.slane %v9423, 3
        %v9496 = vrot.slane %v9421, 4
        %v9497 = vrot.slane %v9422, 4
        %v9498 = vrot.slane %v9423, 4
        %v9499 = vrot.slane %v9421, 5
        %v9500 = vrot.slane %v9422, 5
        %v9501 = vrot.slane %v9423, 5
        %v9502 = vrot.slane %v9421, 6
        %v9503 = vrot.slane %v9422, 6
        %v9504 = vrot.slane %v9423, 6
        %v9505 = vrot.slane %v9421, 7
        %v9506 = vrot.slane %v9422, 7
        %v9507 = vrot.slane %v9423, 7
        %v9508 = vrot.slane %v9424, 1
        %v9509 = vrot.slane %v9425, 1
        %v9510 = vrot.slane %v9426, 1
        %v9511 = vrot.slane %v9424, 2
        %v9512 = vrot.slane %v9425, 2
        %v9513 = vrot.slane %v9426, 2
        %v9514 = vrot.slane %v9424, 3
        %v9515 = vrot.slane %v9425, 3
        %v9516 = vrot.slane %v9426, 3
        %v9517 = vrot.slane %v9424, 4
        %v9518 = vrot.slane %v9425, 4
        %v9519 = vrot.slane %v9426, 4
        %v9520 = vrot.slane %v9424, 5
        %v9521 = vrot.slane %v9425, 5
        %v9522 = vrot.slane %v9426, 5
        %v9523 = vrot.slane %v9424, 6
        %v9524 = vrot.slane %v9425, 6
        %v9525 = vrot.slane %v9426, 6
        %v9526 = vrot.slane %v9424, 7
        %v9527 = vrot.slane %v9425, 7
        %v9528 = vrot.slane %v9426, 7
        %v9529 = vrot.slane %v9427, 1
        %v9530 = vrot.slane %v9428, 1
        %v9531 = vrot.slane %v9429, 1
        %v9532 = vrot.slane %v9427, 2
        %v9533 = vrot.slane %v9428, 2
        %v9534 = vrot.slane %v9429, 2
        %v9535 = vrot.slane %v9427, 3
        %v9536 = vrot.slane %v9428, 3
        %v9537 = vrot.slane %v9429, 3
        %v9538 = vrot.slane %v9427, 4
        %v9539 = vrot.slane %v9428, 4
        %v9540 = vrot.slane %v9429, 4
        %v9541 = vrot.slane %v9427, 5
        %v9542 = vrot.slane %v9428, 5
        %v9543 = vrot.slane %v9429, 5
        %v9544 = vrot.slane %v9427, 6
        %v9545 = vrot.slane %v9428, 6
        %v9546 = vrot.slane %v9429, 6
        %v9547 = vrot.slane %v9427, 7
        %v9548 = vrot.slane %v9428, 7
        %v9549 = vrot.slane %v9429, 7
        %v9550 = vrot.slane %v9430, 1
        %v9551 = vrot.slane %v9431, 1
        %v9552 = vrot.slane %v9432, 1
        %v9553 = vrot.slane %v9430, 2
        %v9554 = vrot.slane %v9431, 2
        %v9555 = vrot.slane %v9432, 2
        %v9556 = vrot.slane %v9430, 3
        %v9557 = vrot.slane %v9431, 3
        %v9558 = vrot.slane %v9432, 3
        %v9559 = vrot.slane %v9430, 4
        %v9560 = vrot.slane %v9431, 4
        %v9561 = vrot.slane %v9432, 4
        %v9562 = vrot.slane %v9430, 5
        %v9563 = vrot.slane %v9431, 5
        %v9564 = vrot.slane %v9432, 5
        %v9565 = vrot.slane %v9430, 6
        %v9566 = vrot.slane %v9431, 6
        %v9567 = vrot.slane %v9432, 6
        %v9568 = vrot.slane %v9430, 7
        %v9569 = vrot.slane %v9431, 7
        %v9570 = vrot.slane %v9432, 7
        %v9571 = vrot.slane %v9433, 1
        %v9572 = vrot.slane %v9434, 1
        %v9573 = vrot.slane %v9435, 1
        %v9574 = vrot.slane %v9433, 2
        %v9575 = vrot.slane %v9434, 2
        %v9576 = vrot.slane %v9435, 2
        %v9577 = vrot.slane %v9433, 3
        %v9578 = vrot.slane %v9434, 3
        %v9579 = vrot.slane %v9435, 3
        %v9580 = vrot.slane %v9433, 4
        %v9581 = vrot.slane %v9434, 4
        %v9582 = vrot.slane %v9435, 4
        %v9583 = vrot.slane %v9433, 5
        %v9584 = vrot.slane %v9434, 5
        %v9585 = vrot.slane %v9435, 5
        %v9586 = vrot.slane %v9433, 6
        %v9587 = vrot.slane %v9434, 6
        %v9588 = vrot.slane %v9435, 6
        %v9589 = vrot.slane %v9433, 7
        %v9590 = vrot.slane %v9434, 7
        %v9591 = vrot.slane %v9435, 7
        %v9592 = vrot.slane %v9436, 1
        %v9593 = vrot.slane %v9437, 1
        %v9594 = vrot.slane %v9438, 1
        %v9595 = vrot.slane %v9436, 2
        %v9596 = vrot.slane %v9437, 2
        %v9597 = vrot.slane %v9438, 2
        %v9598 = vrot.slane %v9436, 3
        %v9599 = vrot.slane %v9437, 3
        %v9600 = vrot.slane %v9438, 3
        %v9601 = vrot.slane %v9436, 4
        %v9602 = vrot.slane %v9437, 4
        %v9603 = vrot.slane %v9438, 4
        %v9604 = vrot.slane %v9436, 5
        %v9605 = vrot.slane %v9437, 5
        %v9606 = vrot.slane %v9438, 5
        %v9607 = vrot.slane %v9436, 6
        %v9608 = vrot.slane %v9437, 6
        %v9609 = vrot.slane %v9438, 6
        %v9610 = vrot.slane %v9436, 7
        %v9611 = vrot.slane %v9437, 7
        %v9612 = vrot.slane %v9438, 7
        %v9613 = vrot.slane %v9439, 1
        %v9614 = vrot.slane %v9440, 1
        %v9615 = vrot.slane %v9441, 1
        %v9616 = vrot.slane %v9439, 2
        %v9617 = vrot.slane %v9440, 2
        %v9618 = vrot.slane %v9441, 2
        %v9619 = vrot.slane %v9439, 3
        %v9620 = vrot.slane %v9440, 3
        %v9621 = vrot.slane %v9441, 3
        %v9622 = vrot.slane %v9439, 4
        %v9623 = vrot.slane %v9440, 4
        %v9624 = vrot.slane %v9441, 4
        %v9625 = vrot.slane %v9439, 5
        %v9626 = vrot.slane %v9440, 5
        %v9627 = vrot.slane %v9441, 5
        %v9628 = vrot.slane %v9439, 6
        %v9629 = vrot.slane %v9440, 6
        %v9630 = vrot.slane %v9441, 6
        %v9631 = vrot.slane %v9439, 7
        %v9632 = vrot.slane %v9440, 7
        %v9633 = vrot.slane %v9441, 7
        %v9826 = vmul.f32 %v8770, %v9418
        %v9827 = vmul.f32 %v8771, %v9419
        %v9828 = vmul.f32 %v8772, %v9420
        %v9829 = vmul.f32 %v8773, %v9466
        %v9830 = vmul.f32 %v8774, %v9467
        %v9831 = vmul.f32 %v8775, %v9468
        %v9832 = vmul.f32 %v8776, %v9469
        %v9833 = vmul.f32 %v8777, %v9470
        %v9834 = vmul.f32 %v8778, %v9471
        %v9835 = vmul.f32 %v8779, %v9472
        %v9836 = vmul.f32 %v8780, %v9473
        %v9837 = vmul.f32 %v8781, %v9474
        %v9838 = vmul.f32 %v8782, %v9475
        %v9839 = vmul.f32 %v8783, %v9476
        %v9840 = vmul.f32 %v8784, %v9477
        %v9841 = vmul.f32 %v8785, %v9478
        %v9842 = vmul.f32 %v8786, %v9479
        %v9843 = vmul.f32 %v8787, %v9480
        %v9844 = vmul.f32 %v8788, %v9481
        %v9845 = vmul.f32 %v8789, %v9482
        %v9846 = vmul.f32 %v8790, %v9483
        %v9847 = vmul.f32 %v8791, %v9484
        %v9848 = vmul.f32 %v8792, %v9485
        %v9849 = vmul.f32 %v8793, %v9486
        %v9850 = vmul.f32 %v8794, %v9421
        %v9851 = vmul.f32 %v8795, %v9422
        %v9852 = vmul.f32 %v8796, %v9423
        %v9853 = vmul.f32 %v8797, %v9487
        %v9854 = vmul.f32 %v8798, %v9488
        %v9855 = vmul.f32 %v8799, %v9489
        %v9856 = vmul.f32 %v8800, %v9490
        %v9857 = vmul.f32 %v8801, %v9491
        %v9858 = vmul.f32 %v8802, %v9492
        %v9859 = vmul.f32 %v8803, %v9493
        %v9860 = vmul.f32 %v8804, %v9494
        %v9861 = vmul.f32 %v8805, %v9495
        %v9862 = vmul.f32 %v8806, %v9496
        %v9863 = vmul.f32 %v8807, %v9497
        %v9864 = vmul.f32 %v8808, %v9498
        %v9865 = vmul.f32 %v8809, %v9499
        %v9866 = vmul.f32 %v8810, %v9500
        %v9867 = vmul.f32 %v8811, %v9501
        %v9868 = vmul.f32 %v8812, %v9502
        %v9869 = vmul.f32 %v8813, %v9503
        %v9870 = vmul.f32 %v8814, %v9504
        %v9871 = vmul.f32 %v8815, %v9505
        %v9872 = vmul.f32 %v8816, %v9506
        %v9873 = vmul.f32 %v8817, %v9507
        %v9874 = vmul.f32 %v8818, %v9424
        %v9875 = vmul.f32 %v8819, %v9425
        %v9876 = vmul.f32 %v8820, %v9426
        %v9877 = vmul.f32 %v8821, %v9508
        %v9878 = vmul.f32 %v8822, %v9509
        %v9879 = vmul.f32 %v8823, %v9510
        %v9880 = vmul.f32 %v8824, %v9511
        %v9881 = vmul.f32 %v8825, %v9512
        %v9882 = vmul.f32 %v8826, %v9513
        %v9883 = vmul.f32 %v8827, %v9514
        %v9884 = vmul.f32 %v8828, %v9515
        %v9885 = vmul.f32 %v8829, %v9516
        %v9886 = vmul.f32 %v8830, %v9517
        %v9887 = vmul.f32 %v8831, %v9518
        %v9888 = vmul.f32 %v8832, %v9519
        %v9889 = vmul.f32 %v8833, %v9520
        %v9890 = vmul.f32 %v8834, %v9521
        %v9891 = vmul.f32 %v8835, %v9522
        %v9892 = vmul.f32 %v8836, %v9523
        %v9893 = vmul.f32 %v8837, %v9524
        %v9894 = vmul.f32 %v8838, %v9525
        %v9895 = vmul.f32 %v8839, %v9526
        %v9896 = vmul.f32 %v8840, %v9527
        %v9897 = vmul.f32 %v8841, %v9528
        %v9898 = vmul.f32 %v8842, %v9427
        %v9899 = vmul.f32 %v8843, %v9428
        %v9900 = vmul.f32 %v8844, %v9429
        %v9901 = vmul.f32 %v8845, %v9529
        %v9902 = vmul.f32 %v8846, %v9530
        %v9903 = vmul.f32 %v8847, %v9531
        %v9904 = vmul.f32 %v8848, %v9532
        %v9905 = vmul.f32 %v8849, %v9533
        %v9906 = vmul.f32 %v8850, %v9534
        %v9907 = vmul.f32 %v8851, %v9535
        %v9908 = vmul.f32 %v8852, %v9536
        %v9909 = vmul.f32 %v8853, %v9537
        %v9910 = vmul.f32 %v8854, %v9538
        %v9911 = vmul.f32 %v8855, %v9539
        %v9912 = vmul.f32 %v8856, %v9540
        %v9913 = vmul.f32 %v8857, %v9541
        %v9914 = vmul.f32 %v8858, %v9542
        %v9915 = vmul.f32 %v8859, %v9543
        %v9916 = vmul.f32 %v8860, %v9544
        %v9917 = vmul.f32 %v8861, %v9545
        %v9918 = vmul.f32 %v8862, %v9546
        %v9919 = vmul.f32 %v8863, %v9547
        %v9920 = vmul.f32 %v8864, %v9548
        %v9921 = vmul.f32 %v8865, %v9549
        %v9922 = vmul.f32 %v8866, %v9430
        %v9923 = vmul.f32 %v8867, %v9431
        %v9924 = vmul.f32 %v8868, %v9432
        %v9925 = vmul.f32 %v8869, %v9550
        %v9926 = vmul.f32 %v8870, %v9551
        %v9927 = vmul.f32 %v8871, %v9552
        %v9928 = vmul.f32 %v8872, %v9553
        %v9929 = vmul.f32 %v8873, %v9554
        %v9930 = vmul.f32 %v8874, %v9555
        %v9931 = vmul.f32 %v8875, %v9556
        %v9932 = vmul.f32 %v8876, %v9557
        %v9933 = vmul.f32 %v8877, %v9558
        %v9934 = vmul.f32 %v8878, %v9559
        %v9935 = vmul.f32 %v8879, %v9560
        %v9936 = vmul.f32 %v8880, %v9561
        %v9937 = vmul.f32 %v8881, %v9562
        %v9938 = vmul.f32 %v8882, %v9563
        %v9939 = vmul.f32 %v8883, %v9564
        %v9940 = vmul.f32 %v8884, %v9565
        %v9941 = vmul.f32 %v8885, %v9566
        %v9942 = vmul.f32 %v8886, %v9567
        %v9943 = vmul.f32 %v8887, %v9568
        %v9944 = vmul.f32 %v8888, %v9569
        %v9945 = vmul.f32 %v8889, %v9570
        %v9946 = vmul.f32 %v8890, %v9433
        %v9947 = vmul.f32 %v8891, %v9434
        %v9948 = vmul.f32 %v8892, %v9435
        %v9949 = vmul.f32 %v8893, %v9571
        %v9950 = vmul.f32 %v8894, %v9572
        %v9951 = vmul.f32 %v8895, %v9573
        %v9952 = vmul.f32 %v8896, %v9574
        %v9953 = vmul.f32 %v8897, %v9575
        %v9954 = vmul.f32 %v8898, %v9576
        %v9955 = vmul.f32 %v8899, %v9577
        %v9956 = vmul.f32 %v8900, %v9578
        %v9957 = vmul.f32 %v8901, %v9579
        %v9958 = vmul.f32 %v8902, %v9580
        %v9959 = vmul.f32 %v8903, %v9581
        %v9960 = vmul.f32 %v8904, %v9582
        %v9961 = vmul.f32 %v8905, %v9583
        %v9962 = vmul.f32 %v8906, %v9584
        %v9963 = vmul.f32 %v8907, %v9585
        %v9964 = vmul.f32 %v8908, %v9586
        %v9965 = vmul.f32 %v8909, %v9587
        %v9966 = vmul.f32 %v8910, %v9588
        %v9967 = vmul.f32 %v8911, %v9589
        %v9968 = vmul.f32 %v8912, %v9590
        %v9969 = vmul.f32 %v8913, %v9591
        %v9970 = vmul.f32 %v8914, %v9436
        %v9971 = vmul.f32 %v8915, %v9437
        %v9972 = vmul.f32 %v8916, %v9438
        %v9973 = vmul.f32 %v8917, %v9592
        %v9974 = vmul.f32 %v8918, %v9593
        %v9975 = vmul.f32 %v8919, %v9594
        %v9976 = vmul.f32 %v8920, %v9595
        %v9977 = vmul.f32 %v8921, %v9596
        %v9978 = vmul.f32 %v8922, %v9597
        %v9979 = vmul.f32 %v8923, %v9598
        %v9980 = vmul.f32 %v8924, %v9599
        %v9981 = vmul.f32 %v8925, %v9600
        %v9982 = vmul.f32 %v8926, %v9601
        %v9983 = vmul.f32 %v8927, %v9602
        %v9984 = vmul.f32 %v8928, %v9603
        %v9985 = vmul.f32 %v8929, %v9604
        %v9986 = vmul.f32 %v8930, %v9605
        %v9987 = vmul.f32 %v8931, %v9606
        %v9988 = vmul.f32 %v8932, %v9607
        %v9989 = vmul.f32 %v8933, %v9608
        %v9990 = vmul.f32 %v8934, %v9609
        %v9991 = vmul.f32 %v8935, %v9610
        %v9992 = vmul.f32 %v8936, %v9611
        %v9993 = vmul.f32 %v8937, %v9612
        %v9994 = vmul.f32 %v8938, %v9439
        %v9995 = vmul.f32 %v8939, %v9440
        %v9996 = vmul.f32 %v8940, %v9441
        %v9997 = vmul.f32 %v8941, %v9613
        %v9998 = vmul.f32 %v8942, %v9614
        %v9999 = vmul.f32 %v8943, %v9615
        %v10000 = vmul.f32 %v8944, %v9616
        %v10001 = vmul.f32 %v8945, %v9617
        %v10002 = vmul.f32 %v8946, %v9618
        %v10003 = vmul.f32 %v8947, %v9619
        %v10004 = vmul.f32 %v8948, %v9620
        %v10005 = vmul.f32 %v8949, %v9621
        %v10006 = vmul.f32 %v8950, %v9622
        %v10007 = vmul.f32 %v8951, %v9623
        %v10008 = vmul.f32 %v8952, %v9624
        %v10009 = vmul.f32 %v8953, %v9625
        %v10010 = vmul.f32 %v8954, %v9626
        %v10011 = vmul.f32 %v8955, %v9627
        %v10012 = vmul.f32 %v8956, %v9628
        %v10013 = vmul.f32 %v8957, %v9629
        %v10014 = vmul.f32 %v8958, %v9630
        %v10015 = vmul.f32 %v8959, %v9631
        %v10016 = vmul.f32 %v8960, %v9632
        %v10017 = vmul.f32 %v8961, %v9633
        %v10018 = vld [vmem:[%s12] sm:$0xff]
        %v10019 = vld [vmem:[%s12 + $0x8] sm:$0xff]
        %v10020 = vld [vmem:[%s12 + $0x10] sm:$0xff]
        %v10021 = vld [vmem:[%s12 + $0x18] sm:$0xff]
        %v10022 = vld [vmem:[%s12 + $0x20] sm:$0xff]
        %v10023 = vld [vmem:[%s12 + $0x28] sm:$0xff]
        %v10024 = vld [vmem:[%s12 + $0x30] sm:$0xff]
        %v10025 = vld [vmem:[%s12 + $0x38] sm:$0xff]
        %v10026 = vld [vmem:[%s12 + $0x40] sm:$0xff]
        %v10027 = vld [vmem:[%s12 + $0x48] sm:$0xff]
        %v10028 = vld [vmem:[%s12 + $0x50] sm:$0xff]
        %v10029 = vld [vmem:[%s12 + $0x58] sm:$0xff]
        %v10030 = vld [vmem:[%s12 + $0x60] sm:$0xff]
        %v10031 = vld [vmem:[%s12 + $0x68] sm:$0xff]
        %v10032 = vld [vmem:[%s12 + $0x70] sm:$0xff]
        %v10033 = vld [vmem:[%s12 + $0x78] sm:$0xff]
        %v10034 = vld [vmem:[%s12 + $0x80] sm:$0xff]
        %v10035 = vld [vmem:[%s12 + $0x88] sm:$0xff]
        %v10036 = vld [vmem:[%s12 + $0x90] sm:$0xff]
        %v10037 = vld [vmem:[%s12 + $0x98] sm:$0xff]
        %v10038 = vld [vmem:[%s12 + $0xa0] sm:$0xff]
        %v10039 = vld [vmem:[%s12 + $0xa8] sm:$0xff]
        %v10040 = vld [vmem:[%s12 + $0xb0] sm:$0xff]
        %v10041 = vld [vmem:[%s12 + $0xb8] sm:$0xff]
        %v10042 = vld [vmem:[%s12 + $0xc0] sm:$0xff]
        %v10043 = vld [vmem:[%s12 + $0xc8] sm:$0xff]
        %v10044 = vld [vmem:[%s12 + $0xd0] sm:$0xff]
        %v10045 = vld [vmem:[%s12 + $0xd8] sm:$0xff]
        %v10046 = vld [vmem:[%s12 + $0xe0] sm:$0xff]
        %v10047 = vld [vmem:[%s12 + $0xe8] sm:$0xff]
        %v10048 = vld [vmem:[%s12 + $0xf0] sm:$0xff]
        %v10049 = vld [vmem:[%s12 + $0xf8] sm:$0xff]
        %v10050 = vld [vmem:[%s12 + $0x100] sm:$0xff]
        %v10051 = vld [vmem:[%s12 + $0x108] sm:$0xff]
        %v10052 = vld [vmem:[%s12 + $0x110] sm:$0xff]
        %v10053 = vld [vmem:[%s12 + $0x118] sm:$0xff]
        %v10054 = vld [vmem:[%s12 + $0x120] sm:$0xff]
        %v10055 = vld [vmem:[%s12 + $0x128] sm:$0xff]
        %v10056 = vld [vmem:[%s12 + $0x130] sm:$0xff]
        %v10057 = vld [vmem:[%s12 + $0x138] sm:$0xff]
        %v10058 = vld [vmem:[%s12 + $0x140] sm:$0xff]
        %v10059 = vld [vmem:[%s12 + $0x148] sm:$0xff]
        %v10060 = vld [vmem:[%s12 + $0x150] sm:$0xff]
        %v10061 = vld [vmem:[%s12 + $0x158] sm:$0xff]
        %v10062 = vld [vmem:[%s12 + $0x160] sm:$0xff]
        %v10063 = vld [vmem:[%s12 + $0x168] sm:$0xff]
        %v10064 = vld [vmem:[%s12 + $0x170] sm:$0xff]
        %v10065 = vld [vmem:[%s12 + $0x178] sm:$0xff]
        %v10066 = vld [vmem:[%s12 + $0x180] sm:$0xff]
        %v10067 = vld [vmem:[%s12 + $0x188] sm:$0xff]
        %v10068 = vld [vmem:[%s12 + $0x190] sm:$0xff]
        %v10069 = vld [vmem:[%s12 + $0x198] sm:$0xff]
        %v10070 = vld [vmem:[%s12 + $0x1a0] sm:$0xff]
        %v10071 = vld [vmem:[%s12 + $0x1a8] sm:$0xff]
        %v10072 = vld [vmem:[%s12 + $0x1b0] sm:$0xff]
        %v10073 = vld [vmem:[%s12 + $0x1b8] sm:$0xff]
        %v10074 = vld [vmem:[%s12 + $0x1c0] sm:$0xff]
        %v10075 = vld [vmem:[%s12 + $0x1c8] sm:$0xff]
        %v10076 = vld [vmem:[%s12 + $0x1d0] sm:$0xff]
        %v10077 = vld [vmem:[%s12 + $0x1d8] sm:$0xff]
        %v10078 = vld [vmem:[%s12 + $0x1e0] sm:$0xff]
        %v10079 = vld [vmem:[%s12 + $0x1e8] sm:$0xff]
        %v10080 = vld [vmem:[%s12 + $0x1f0] sm:$0xff]
        %v10081 = vld [vmem:[%s12 + $0x1f8] sm:$0xff]
        %v10082 = vld [vmem:[%s12 + $0x200] sm:$0xff]
        %v10083 = vld [vmem:[%s12 + $0x208] sm:$0xff]
        %v10084 = vld [vmem:[%s12 + $0x210] sm:$0xff]
        %v10085 = vld [vmem:[%s12 + $0x218] sm:$0xff]
        %v10086 = vld [vmem:[%s12 + $0x220] sm:$0xff]
        %v10087 = vld [vmem:[%s12 + $0x228] sm:$0xff]
        %v10088 = vld [vmem:[%s12 + $0x230] sm:$0xff]
        %v10089 = vld [vmem:[%s12 + $0x238] sm:$0xff]
        %v10090 = vld [vmem:[%s12 + $0x240] sm:$0xff]
        %v10091 = vld [vmem:[%s12 + $0x248] sm:$0xff]
        %v10092 = vld [vmem:[%s12 + $0x250] sm:$0xff]
        %v10093 = vld [vmem:[%s12 + $0x258] sm:$0xff]
        %v10094 = vld [vmem:[%s12 + $0x260] sm:$0xff]
        %v10095 = vld [vmem:[%s12 + $0x268] sm:$0xff]
        %v10096 = vld [vmem:[%s12 + $0x270] sm:$0xff]
        %v10097 = vld [vmem:[%s12 + $0x278] sm:$0xff]
        %v10290 = vrot.slane %v9829, 7
        %v10291 = vsel %vm3465, %v10290, %v9826
        %v10292 = vrot.slane %v9832, 6
        %v10293 = vsel %vm3470, %v10292, %v10291
        %v10294 = vrot.slane %v9835, 5
        %v10295 = vsel %vm3475, %v10294, %v10293
        %v10296 = vrot.slane %v9838, 4
        %v10297 = vsel %vm3480, %v10296, %v10295
        %v10298 = vrot.slane %v9841, 3
        %v10299 = vsel %vm3485, %v10298, %v10297
        %v10300 = vrot.slane %v9844, 2
        %v10301 = vsel %vm3490, %v10300, %v10299
        %v10302 = vrot.slane %v9847, 1
        %vm10303 = vcmask 1047559
        %v10304 = vsel %vm10303, %v10302, %v10301
        %v10305 = vrot.slane %v9830, 7
        %v10306 = vsel %vm3465, %v10305, %v9827
        %v10307 = vrot.slane %v9833, 6
        %v10308 = vsel %vm3470, %v10307, %v10306
        %v10309 = vrot.slane %v9836, 5
        %v10310 = vsel %vm3475, %v10309, %v10308
        %v10311 = vrot.slane %v9839, 4
        %v10312 = vsel %vm3480, %v10311, %v10310
        %v10313 = vrot.slane %v9842, 3
        %v10314 = vsel %vm3485, %v10313, %v10312
        %v10315 = vrot.slane %v9845, 2
        %v10316 = vsel %vm3490, %v10315, %v10314
        %v10317 = vrot.slane %v9848, 1
        %v10318 = vsel %vm10303, %v10317, %v10316
        %v10319 = vrot.slane %v9831, 7
        %v10320 = vsel %vm3465, %v10319, %v9828
        %v10321 = vrot.slane %v9834, 6
        %v10322 = vsel %vm3470, %v10321, %v10320
        %v10323 = vrot.slane %v9837, 5
        %v10324 = vsel %vm3475, %v10323, %v10322
        %v10325 = vrot.slane %v9840, 4
        %v10326 = vsel %vm3480, %v10325, %v10324
        %v10327 = vrot.slane %v9843, 3
        %v10328 = vsel %vm3485, %v10327, %v10326
        %v10329 = vrot.slane %v9846, 2
        %v10330 = vsel %vm3490, %v10329, %v10328
        %v10331 = vrot.slane %v9849, 1
        %v10332 = vsel %vm10303, %v10331, %v10330
        %v10333 = vrot.slane %v9853, 7
        %v10334 = vsel %vm3465, %v10333, %v9850
        %v10335 = vrot.slane %v9856, 6
        %v10336 = vsel %vm3470, %v10335, %v10334
        %v10337 = vrot.slane %v9859, 5
        %v10338 = vsel %vm3475, %v10337, %v10336
        %v10339 = vrot.slane %v9862, 4
        %v10340 = vsel %vm3480, %v10339, %v10338
        %v10341 = vrot.slane %v9865, 3
        %v10342 = vsel %vm3485, %v10341, %v10340
        %v10343 = vrot.slane %v9868, 2
        %v10344 = vsel %vm3490, %v10343, %v10342
        %v10345 = vrot.slane %v9871, 1
        %v10346 = vsel %vm10303, %v10345, %v10344
        %v10347 = vrot.slane %v9854, 7
        %v10348 = vsel %vm3465, %v10347, %v9851
        %v10349 = vrot.slane %v9857, 6
        %v10350 = vsel %vm3470, %v10349, %v10348
        %v10351 = vrot.slane %v9860, 5
        %v10352 = vsel %vm3475, %v10351, %v10350
        %v10353 = vrot.slane %v9863, 4
        %v10354 = vsel %vm3480, %v10353, %v10352
        %v10355 = vrot.slane %v9866, 3
        %v10356 = vsel %vm3485, %v10355, %v10354
        %v10357 = vrot.slane %v9869, 2
        %v10358 = vsel %vm3490, %v10357, %v10356
        %v10359 = vrot.slane %v9872, 1
        %v10360 = vsel %vm10303, %v10359, %v10358
        %v10361 = vrot.slane %v9855, 7
        %v10362 = vsel %vm3465, %v10361, %v9852
        %v10363 = vrot.slane %v9858, 6
        %v10364 = vsel %vm3470, %v10363, %v10362
        %v10365 = vrot.slane %v9861, 5
        %v10366 = vsel %vm3475, %v10365, %v10364
        %v10367 = vrot.slane %v9864, 4
        %v10368 = vsel %vm3480, %v10367, %v10366
        %v10369 = vrot.slane %v9867, 3
        %v10370 = vsel %vm3485, %v10369, %v10368
        %v10371 = vrot.slane %v9870, 2
        %v10372 = vsel %vm3490, %v10371, %v10370
        %v10373 = vrot.slane %v9873, 1
        %v10374 = vsel %vm10303, %v10373, %v10372
        %v10375 = vrot.slane %v9877, 7
        %v10376 = vsel %vm3465, %v10375, %v9874
        %v10377 = vrot.slane %v9880, 6
        %v10378 = vsel %vm3470, %v10377, %v10376
        %v10379 = vrot.slane %v9883, 5
        %v10380 = vsel %vm3475, %v10379, %v10378
        %v10381 = vrot.slane %v9886, 4
        %v10382 = vsel %vm3480, %v10381, %v10380
        %v10383 = vrot.slane %v9889, 3
        %v10384 = vsel %vm3485, %v10383, %v10382
        %v10385 = vrot.slane %v9892, 2
        %v10386 = vsel %vm3490, %v10385, %v10384
        %v10387 = vrot.slane %v9895, 1
        %v10388 = vsel %vm10303, %v10387, %v10386
        %v10389 = vrot.slane %v9878, 7
        %v10390 = vsel %vm3465, %v10389, %v9875
        %v10391 = vrot.slane %v9881, 6
        %v10392 = vsel %vm3470, %v10391, %v10390
        %v10393 = vrot.slane %v9884, 5
        %v10394 = vsel %vm3475, %v10393, %v10392
        %v10395 = vrot.slane %v9887, 4
        %v10396 = vsel %vm3480, %v10395, %v10394
        %v10397 = vrot.slane %v9890, 3
        %v10398 = vsel %vm3485, %v10397, %v10396
        %v10399 = vrot.slane %v9893, 2
        %v10400 = vsel %vm3490, %v10399, %v10398
        %v10401 = vrot.slane %v9896, 1
        %v10402 = vsel %vm10303, %v10401, %v10400
        %v10403 = vrot.slane %v9879, 7
        %v10404 = vsel %vm3465, %v10403, %v9876
        %v10405 = vrot.slane %v9882, 6
        %v10406 = vsel %vm3470, %v10405, %v10404
        %v10407 = vrot.slane %v9885, 5
        %v10408 = vsel %vm3475, %v10407, %v10406
        %v10409 = vrot.slane %v9888, 4
        %v10410 = vsel %vm3480, %v10409, %v10408
        %v10411 = vrot.slane %v9891, 3
        %v10412 = vsel %vm3485, %v10411, %v10410
        %v10413 = vrot.slane %v9894, 2
        %v10414 = vsel %vm3490, %v10413, %v10412
        %v10415 = vrot.slane %v9897, 1
        %v10416 = vsel %vm10303, %v10415, %v10414
        %v10417 = vrot.slane %v9901, 7
        %v10418 = vsel %vm3465, %v10417, %v9898
        %v10419 = vrot.slane %v9904, 6
        %v10420 = vsel %vm3470, %v10419, %v10418
        %v10421 = vrot.slane %v9907, 5
        %v10422 = vsel %vm3475, %v10421, %v10420
        %v10423 = vrot.slane %v9910, 4
        %v10424 = vsel %vm3480, %v10423, %v10422
        %v10425 = vrot.slane %v9913, 3
        %v10426 = vsel %vm3485, %v10425, %v10424
        %v10427 = vrot.slane %v9916, 2
        %v10428 = vsel %vm3490, %v10427, %v10426
        %v10429 = vrot.slane %v9919, 1
        %v10430 = vsel %vm10303, %v10429, %v10428
        %v10431 = vrot.slane %v9902, 7
        %v10432 = vsel %vm3465, %v10431, %v9899
        %v10433 = vrot.slane %v9905, 6
        %v10434 = vsel %vm3470, %v10433, %v10432
        %v10435 = vrot.slane %v9908, 5
        %v10436 = vsel %vm3475, %v10435, %v10434
        %v10437 = vrot.slane %v9911, 4
        %v10438 = vsel %vm3480, %v10437, %v10436
        %v10439 = vrot.slane %v9914, 3
        %v10440 = vsel %vm3485, %v10439, %v10438
        %v10441 = vrot.slane %v9917, 2
        %v10442 = vsel %vm3490, %v10441, %v10440
        %v10443 = vrot.slane %v9920, 1
        %v10444 = vsel %vm10303, %v10443, %v10442
        %v10445 = vrot.slane %v9903, 7
        %v10446 = vsel %vm3465, %v10445, %v9900
        %v10447 = vrot.slane %v9906, 6
        %v10448 = vsel %vm3470, %v10447, %v10446
        %v10449 = vrot.slane %v9909, 5
        %v10450 = vsel %vm3475, %v10449, %v10448
        %v10451 = vrot.slane %v9912, 4
        %v10452 = vsel %vm3480, %v10451, %v10450
        %v10453 = vrot.slane %v9915, 3
        %v10454 = vsel %vm3485, %v10453, %v10452
        %v10455 = vrot.slane %v9918, 2
        %v10456 = vsel %vm3490, %v10455, %v10454
        %v10457 = vrot.slane %v9921, 1
        %v10458 = vsel %vm10303, %v10457, %v10456
        %v10459 = vrot.slane %v9925, 7
        %v10460 = vsel %vm3465, %v10459, %v9922
        %v10461 = vrot.slane %v9928, 6
        %v10462 = vsel %vm3470, %v10461, %v10460
        %v10463 = vrot.slane %v9931, 5
        %v10464 = vsel %vm3475, %v10463, %v10462
        %v10465 = vrot.slane %v9934, 4
        %v10466 = vsel %vm3480, %v10465, %v10464
        %v10467 = vrot.slane %v9937, 3
        %v10468 = vsel %vm3485, %v10467, %v10466
        %v10469 = vrot.slane %v9940, 2
        %v10470 = vsel %vm3490, %v10469, %v10468
        %v10471 = vrot.slane %v9943, 1
        %v10472 = vsel %vm10303, %v10471, %v10470
        %v10473 = vrot.slane %v9926, 7
        %v10474 = vsel %vm3465, %v10473, %v9923
        %v10475 = vrot.slane %v9929, 6
        %v10476 = vsel %vm3470, %v10475, %v10474
        %v10477 = vrot.slane %v9932, 5
        %v10478 = vsel %vm3475, %v10477, %v10476
        %v10479 = vrot.slane %v9935, 4
        %v10480 = vsel %vm3480, %v10479, %v10478
        %v10481 = vrot.slane %v9938, 3
        %v10482 = vsel %vm3485, %v10481, %v10480
        %v10483 = vrot.slane %v9941, 2
        %v10484 = vsel %vm3490, %v10483, %v10482
        %v10485 = vrot.slane %v9944, 1
        %v10486 = vsel %vm10303, %v10485, %v10484
        %v10487 = vrot.slane %v9927, 7
        %v10488 = vsel %vm3465, %v10487, %v9924
        %v10489 = vrot.slane %v9930, 6
        %v10490 = vsel %vm3470, %v10489, %v10488
        %v10491 = vrot.slane %v9933, 5
        %v10492 = vsel %vm3475, %v10491, %v10490
        %v10493 = vrot.slane %v9936, 4
        %v10494 = vsel %vm3480, %v10493, %v10492
        %v10495 = vrot.slane %v9939, 3
        %v10496 = vsel %vm3485, %v10495, %v10494
        %v10497 = vrot.slane %v9942, 2
        %v10498 = vsel %vm3490, %v10497, %v10496
        %v10499 = vrot.slane %v9945, 1
        %v10500 = vsel %vm10303, %v10499, %v10498
        %v10501 = vrot.slane %v9949, 7
        %v10502 = vsel %vm3465, %v10501, %v9946
        %v10503 = vrot.slane %v9952, 6
        %v10504 = vsel %vm3470, %v10503, %v10502
        %v10505 = vrot.slane %v9955, 5
        %v10506 = vsel %vm3475, %v10505, %v10504
        %v10507 = vrot.slane %v9958, 4
        %v10508 = vsel %vm3480, %v10507, %v10506
        %v10509 = vrot.slane %v9961, 3
        %v10510 = vsel %vm3485, %v10509, %v10508
        %v10511 = vrot.slane %v9964, 2
        %v10512 = vsel %vm3490, %v10511, %v10510
        %v10513 = vrot.slane %v9967, 1
        %v10514 = vsel %vm10303, %v10513, %v10512
        %v10515 = vrot.slane %v9950, 7
        %v10516 = vsel %vm3465, %v10515, %v9947
        %v10517 = vrot.slane %v9953, 6
        %v10518 = vsel %vm3470, %v10517, %v10516
        %v10519 = vrot.slane %v9956, 5
        %v10520 = vsel %vm3475, %v10519, %v10518
        %v10521 = vrot.slane %v9959, 4
        %v10522 = vsel %vm3480, %v10521, %v10520
        %v10523 = vrot.slane %v9962, 3
        %v10524 = vsel %vm3485, %v10523, %v10522
        %v10525 = vrot.slane %v9965, 2
        %v10526 = vsel %vm3490, %v10525, %v10524
        %v10527 = vrot.slane %v9968, 1
        %v10528 = vsel %vm10303, %v10527, %v10526
        %v10529 = vrot.slane %v9951, 7
        %v10530 = vsel %vm3465, %v10529, %v9948
        %v10531 = vrot.slane %v9954, 6
        %v10532 = vsel %vm3470, %v10531, %v10530
        %v10533 = vrot.slane %v9957, 5
        %v10534 = vsel %vm3475, %v10533, %v10532
        %v10535 = vrot.slane %v9960, 4
        %v10536 = vsel %vm3480, %v10535, %v10534
        %v10537 = vrot.slane %v9963, 3
        %v10538 = vsel %vm3485, %v10537, %v10536
        %v10539 = vrot.slane %v9966, 2
        %v10540 = vsel %vm3490, %v10539, %v10538
        %v10541 = vrot.slane %v9969, 1
        %v10542 = vsel %vm10303, %v10541, %v10540
        %v10543 = vrot.slane %v9973, 7
        %v10544 = vsel %vm3465, %v10543, %v9970
        %v10545 = vrot.slane %v9976, 6
        %v10546 = vsel %vm3470, %v10545, %v10544
        %v10547 = vrot.slane %v9979, 5
        %v10548 = vsel %vm3475, %v10547, %v10546
        %v10549 = vrot.slane %v9982, 4
        %v10550 = vsel %vm3480, %v10549, %v10548
        %v10551 = vrot.slane %v9985, 3
        %v10552 = vsel %vm3485, %v10551, %v10550
        %v10553 = vrot.slane %v9988, 2
        %v10554 = vsel %vm3490, %v10553, %v10552
        %v10555 = vrot.slane %v9991, 1
        %v10556 = vsel %vm10303, %v10555, %v10554
        %v10557 = vrot.slane %v9974, 7
        %v10558 = vsel %vm3465, %v10557, %v9971
        %v10559 = vrot.slane %v9977, 6
        %v10560 = vsel %vm3470, %v10559, %v10558
        %v10561 = vrot.slane %v9980, 5
        %v10562 = vsel %vm3475, %v10561, %v10560
        %v10563 = vrot.slane %v9983, 4
        %v10564 = vsel %vm3480, %v10563, %v10562
        %v10565 = vrot.slane %v9986, 3
        %v10566 = vsel %vm3485, %v10565, %v10564
        %v10567 = vrot.slane %v9989, 2
        %v10568 = vsel %vm3490, %v10567, %v10566
        %v10569 = vrot.slane %v9992, 1
        %v10570 = vsel %vm10303, %v10569, %v10568
        %v10571 = vrot.slane %v9975, 7
        %v10572 = vsel %vm3465, %v10571, %v9972
        %v10573 = vrot.slane %v9978, 6
        %v10574 = vsel %vm3470, %v10573, %v10572
        %v10575 = vrot.slane %v9981, 5
        %v10576 = vsel %vm3475, %v10575, %v10574
        %v10577 = vrot.slane %v9984, 4
        %v10578 = vsel %vm3480, %v10577, %v10576
        %v10579 = vrot.slane %v9987, 3
        %v10580 = vsel %vm3485, %v10579, %v10578
        %v10581 = vrot.slane %v9990, 2
        %v10582 = vsel %vm3490, %v10581, %v10580
        %v10583 = vrot.slane %v9993, 1
        %v10584 = vsel %vm10303, %v10583, %v10582
        %v10585 = vrot.slane %v9997, 7
        %v10586 = vsel %vm3465, %v10585, %v9994
        %v10587 = vrot.slane %v10000, 6
        %v10588 = vsel %vm3470, %v10587, %v10586
        %v10589 = vrot.slane %v10003, 5
        %v10590 = vsel %vm3475, %v10589, %v10588
        %v10591 = vrot.slane %v10006, 4
        %v10592 = vsel %vm3480, %v10591, %v10590
        %v10593 = vrot.slane %v10009, 3
        %v10594 = vsel %vm3485, %v10593, %v10592
        %v10595 = vrot.slane %v10012, 2
        %v10596 = vsel %vm3490, %v10595, %v10594
        %v10597 = vrot.slane %v10015, 1
        %v10598 = vsel %vm10303, %v10597, %v10596
        %v10599 = vrot.slane %v9998, 7
        %v10600 = vsel %vm3465, %v10599, %v9995
        %v10601 = vrot.slane %v10001, 6
        %v10602 = vsel %vm3470, %v10601, %v10600
        %v10603 = vrot.slane %v10004, 5
        %v10604 = vsel %vm3475, %v10603, %v10602
        %v10605 = vrot.slane %v10007, 4
        %v10606 = vsel %vm3480, %v10605, %v10604
        %v10607 = vrot.slane %v10010, 3
        %v10608 = vsel %vm3485, %v10607, %v10606
        %v10609 = vrot.slane %v10013, 2
        %v10610 = vsel %vm3490, %v10609, %v10608
        %v10611 = vrot.slane %v10016, 1
        %v10612 = vsel %vm10303, %v10611, %v10610
        %v10613 = vrot.slane %v9999, 7
        %v10614 = vsel %vm3465, %v10613, %v9996
        %v10615 = vrot.slane %v10002, 6
        %v10616 = vsel %vm3470, %v10615, %v10614
        %v10617 = vrot.slane %v10005, 5
        %v10618 = vsel %vm3475, %v10617, %v10616
        %v10619 = vrot.slane %v10008, 4
        %v10620 = vsel %vm3480, %v10619, %v10618
        %v10621 = vrot.slane %v10011, 3
        %v10622 = vsel %vm3485, %v10621, %v10620
        %v10623 = vrot.slane %v10014, 2
        %v10624 = vsel %vm3490, %v10623, %v10622
        %v10625 = vrot.slane %v10017, 1
        %v10626 = vsel %vm10303, %v10625, %v10624
        %v10643 = vsel %vm1199, %v10332, 0
        %v10645 = vsel %vm1199, %v10374, 0
        %v10647 = vsel %vm1199, %v10416, 0
        %v10649 = vsel %vm1199, %v10458, 0
        %v10651 = vsel %vm1199, %v10500, 0
        %v10653 = vsel %vm1199, %v10542, 0
        %v10655 = vsel %vm1199, %v10584, 0
        %v10657 = vsel %vm1199, %v10626, 0
        %10659 = vmatpush.msra.mxu0 %v10048
        %10660 = vmatpush.msra.mxu0 %v10046
        %10661 = vmatpush.msra.mxu0 %v10044
        %10662 = vmatpush.msra.mxu0 %v10042
        %10663 = vmatpush.msra.mxu0 %v10040
        %10664 = vmatpush.msra.mxu0 %v10038
        %10665 = vmatpush.msra.mxu0 %v10036
        %10666 = vmatpush.msra.mxu0 %v10034
        %10667 = vmatpush.msra.mxu0 %v10032
        %10668 = vmatpush.msra.mxu0 %v10030
        %10669 = vmatpush.msra.mxu0 %v10028
        %10670 = vmatpush.msra.mxu0 %v10026
        %10671 = vmatpush.msra.mxu0 %v10024
        %10672 = vmatpush.msra.mxu0 %v10022
        %10673 = vmatpush.msra.mxu0 %v10020
        %10674 = vmatpush.msra.mxu0 %v10018
        %10675 = vmatmul.f32.gmra.mxu0 %v10304
        %v10676 = vpop.f32.mrf.mxu0
        %v10677 = vadd.f32 0.0, %v10676
        %10678 = vmatmul.f32.gmra.mxu0 %v10346
        %v10679 = vpop.f32.mrf.mxu0
        %v10680 = vadd.f32 0.0, %v10679
        %10681 = vmatmul.f32.gmra.mxu0 %v10388
        %v10682 = vpop.f32.mrf.mxu0
        %v10683 = vadd.f32 0.0, %v10682
        %10684 = vmatmul.f32.gmra.mxu0 %v10430
        %v10685 = vpop.f32.mrf.mxu0
        %v10686 = vadd.f32 0.0, %v10685
        %10687 = vmatmul.f32.gmra.mxu0 %v10472
        %v10688 = vpop.f32.mrf.mxu0
        %v10689 = vadd.f32 0.0, %v10688
        %10690 = vmatmul.f32.gmra.mxu0 %v10514
        %v10691 = vpop.f32.mrf.mxu0
        %v10692 = vadd.f32 0.0, %v10691
        %10693 = vmatmul.f32.gmra.mxu0 %v10556
        %v10694 = vpop.f32.mrf.mxu0
        %v10695 = vadd.f32 0.0, %v10694
        %10696 = vmatmul.f32.gmra.mxu0 %v10598
        %v10697 = vpop.f32.mrf.mxu0
        %v10698 = vadd.f32 0.0, %v10697
        %10699 = vdwg.mxu0
        %10700 = vmatpush.msra.mxu0 %v10080
        %10701 = vmatpush.msra.mxu0 %v10078
        %10702 = vmatpush.msra.mxu0 %v10076
        %10703 = vmatpush.msra.mxu0 %v10074
        %10704 = vmatpush.msra.mxu0 %v10072
        %10705 = vmatpush.msra.mxu0 %v10070
        %10706 = vmatpush.msra.mxu0 %v10068
        %10707 = vmatpush.msra.mxu0 %v10066
        %10708 = vmatpush.msra.mxu0 %v10064
        %10709 = vmatpush.msra.mxu0 %v10062
        %10710 = vmatpush.msra.mxu0 %v10060
        %10711 = vmatpush.msra.mxu0 %v10058
        %10712 = vmatpush.msra.mxu0 %v10056
        %10713 = vmatpush.msra.mxu0 %v10054
        %10714 = vmatpush.msra.mxu0 %v10052
        %10715 = vmatpush.msra.mxu0 %v10050
        %10716 = vmatmul.f32.gmra.mxu0 %v10318
        %v10717 = vpop.f32.mrf.mxu0
        %v10718 = vadd.f32 %v10677, %v10717
        %10719 = vmatmul.f32.gmra.mxu0 %v10360
        %v10720 = vpop.f32.mrf.mxu0
        %v10721 = vadd.f32 %v10680, %v10720
        %10722 = vmatmul.f32.gmra.mxu0 %v10402
        %v10723 = vpop.f32.mrf.mxu0
        %v10724 = vadd.f32 %v10683, %v10723
        %10725 = vmatmul.f32.gmra.mxu0 %v10444
        %v10726 = vpop.f32.mrf.mxu0
        %v10727 = vadd.f32 %v10686, %v10726
        %10728 = vmatmul.f32.gmra.mxu0 %v10486
        %v10729 = vpop.f32.mrf.mxu0
        %v10730 = vadd.f32 %v10689, %v10729
        %10731 = vmatmul.f32.gmra.mxu0 %v10528
        %v10732 = vpop.f32.mrf.mxu0
        %v10733 = vadd.f32 %v10692, %v10732
        %10734 = vmatmul.f32.gmra.mxu0 %v10570
        %v10735 = vpop.f32.mrf.mxu0
        %v10736 = vadd.f32 %v10695, %v10735
        %10737 = vmatmul.f32.gmra.mxu0 %v10612
        %v10738 = vpop.f32.mrf.mxu0
        %v10739 = vadd.f32 %v10698, %v10738
        %10740 = vdwg.mxu0
        %10741 = vmatpush.msra.mxu0 0.0
        %10742 = vmatpush.msra.mxu0 0.0
        %10743 = vmatpush.msra.mxu0 0.0
        %10744 = vmatpush.msra.mxu0 0.0
        %10745 = vmatpush.msra.mxu0 0.0
        %10746 = vmatpush.msra.mxu0 0.0
        %10747 = vmatpush.msra.mxu0 0.0
        %10748 = vmatpush.msra.mxu0 0.0
        %10749 = vmatpush.msra.mxu0 %v10096
        %10750 = vmatpush.msra.mxu0 %v10094
        %10751 = vmatpush.msra.mxu0 %v10092
        %10752 = vmatpush.msra.mxu0 %v10090
        %10753 = vmatpush.msra.mxu0 %v10088
        %10754 = vmatpush.msra.mxu0 %v10086
        %10755 = vmatpush.msra.mxu0 %v10084
        %10756 = vmatpush.msra.mxu0 %v10082
        %10757 = vmatmul.f32.gmra.mxu0 %v10643
        %v10758 = vpop.f32.mrf.mxu0
        %v10759 = vadd.f32 %v10718, %v10758
        %10760 = vmatmul.f32.gmra.mxu0 %v10645
        %v10761 = vpop.f32.mrf.mxu0
        %v10762 = vadd.f32 %v10721, %v10761
        %10763 = vmatmul.f32.gmra.mxu0 %v10647
        %v10764 = vpop.f32.mrf.mxu0
        %v10765 = vadd.f32 %v10724, %v10764
        %10766 = vmatmul.f32.gmra.mxu0 %v10649
        %v10767 = vpop.f32.mrf.mxu0
        %v10768 = vadd.f32 %v10727, %v10767
        %10769 = vmatmul.f32.gmra.mxu0 %v10651
        %v10770 = vpop.f32.mrf.mxu0
        %v10771 = vadd.f32 %v10730, %v10770
        %10772 = vmatmul.f32.gmra.mxu0 %v10653
        %v10773 = vpop.f32.mrf.mxu0
        %v10774 = vadd.f32 %v10733, %v10773
        %10775 = vmatmul.f32.gmra.mxu0 %v10655
        %v10776 = vpop.f32.mrf.mxu0
        %v10777 = vadd.f32 %v10736, %v10776
        %10778 = vmatmul.f32.gmra.mxu0 %v10657
        %v10779 = vpop.f32.mrf.mxu0
        %v10780 = vadd.f32 %v10739, %v10779
        %10781 = vdwg.mxu0
        %10782 = vmatpush.msra.mxu0 %v10049
        %10783 = vmatpush.msra.mxu0 %v10047
        %10784 = vmatpush.msra.mxu0 %v10045
        %10785 = vmatpush.msra.mxu0 %v10043
        %10786 = vmatpush.msra.mxu0 %v10041
        %10787 = vmatpush.msra.mxu0 %v10039
        %10788 = vmatpush.msra.mxu0 %v10037
        %10789 = vmatpush.msra.mxu0 %v10035
        %10790 = vmatpush.msra.mxu0 %v10033
        %10791 = vmatpush.msra.mxu0 %v10031
        %10792 = vmatpush.msra.mxu0 %v10029
        %10793 = vmatpush.msra.mxu0 %v10027
        %10794 = vmatpush.msra.mxu0 %v10025
        %10795 = vmatpush.msra.mxu0 %v10023
        %10796 = vmatpush.msra.mxu0 %v10021
        %10797 = vmatpush.msra.mxu0 %v10019
        %10798 = vmatmul.f32.gmra.mxu0 %v10304
        %v10799 = vpop.f32.mrf.mxu0
        %v10800 = vadd.f32 0.0, %v10799
        %10801 = vmatmul.f32.gmra.mxu0 %v10346
        %v10802 = vpop.f32.mrf.mxu0
        %v10803 = vadd.f32 0.0, %v10802
        %10804 = vmatmul.f32.gmra.mxu0 %v10388
        %v10805 = vpop.f32.mrf.mxu0
        %v10806 = vadd.f32 0.0, %v10805
        %10807 = vmatmul.f32.gmra.mxu0 %v10430
        %v10808 = vpop.f32.mrf.mxu0
        %v10809 = vadd.f32 0.0, %v10808
        %10810 = vmatmul.f32.gmra.mxu0 %v10472
        %v10811 = vpop.f32.mrf.mxu0
        %v10812 = vadd.f32 0.0, %v10811
        %10813 = vmatmul.f32.gmra.mxu0 %v10514
        %v10814 = vpop.f32.mrf.mxu0
        %v10815 = vadd.f32 0.0, %v10814
        %10816 = vmatmul.f32.gmra.mxu0 %v10556
        %v10817 = vpop.f32.mrf.mxu0
        %v10818 = vadd.f32 0.0, %v10817
        %10819 = vmatmul.f32.gmra.mxu0 %v10598
        %v10820 = vpop.f32.mrf.mxu0
        %v10821 = vadd.f32 0.0, %v10820
        %10822 = vdwg.mxu0
        %10823 = vmatpush.msra.mxu0 %v10081
        %10824 = vmatpush.msra.mxu0 %v10079
        %10825 = vmatpush.msra.mxu0 %v10077
        %10826 = vmatpush.msra.mxu0 %v10075
        %10827 = vmatpush.msra.mxu0 %v10073
        %10828 = vmatpush.msra.mxu0 %v10071
        %10829 = vmatpush.msra.mxu0 %v10069
        %10830 = vmatpush.msra.mxu0 %v10067
        %10831 = vmatpush.msra.mxu0 %v10065
        %10832 = vmatpush.msra.mxu0 %v10063
        %10833 = vmatpush.msra.mxu0 %v10061
        %10834 = vmatpush.msra.mxu0 %v10059
        %10835 = vmatpush.msra.mxu0 %v10057
        %10836 = vmatpush.msra.mxu0 %v10055
        %10837 = vmatpush.msra.mxu0 %v10053
        %10838 = vmatpush.msra.mxu0 %v10051
        %10839 = vmatmul.f32.gmra.mxu0 %v10318
        %v10840 = vpop.f32.mrf.mxu0
        %v10841 = vadd.f32 %v10800, %v10840
        %10842 = vmatmul.f32.gmra.mxu0 %v10360
        %v10843 = vpop.f32.mrf.mxu0
        %v10844 = vadd.f32 %v10803, %v10843
        %10845 = vmatmul.f32.gmra.mxu0 %v10402
        %v10846 = vpop.f32.mrf.mxu0
        %v10847 = vadd.f32 %v10806, %v10846
        %10848 = vmatmul.f32.gmra.mxu0 %v10444
        %v10849 = vpop.f32.mrf.mxu0
        %v10850 = vadd.f32 %v10809, %v10849
        %10851 = vmatmul.f32.gmra.mxu0 %v10486
        %v10852 = vpop.f32.mrf.mxu0
        %v10853 = vadd.f32 %v10812, %v10852
        %10854 = vmatmul.f32.gmra.mxu0 %v10528
        %v10855 = vpop.f32.mrf.mxu0
        %v10856 = vadd.f32 %v10815, %v10855
        %10857 = vmatmul.f32.gmra.mxu0 %v10570
        %v10858 = vpop.f32.mrf.mxu0
        %v10859 = vadd.f32 %v10818, %v10858
        %10860 = vmatmul.f32.gmra.mxu0 %v10612
        %v10861 = vpop.f32.mrf.mxu0
        %v10862 = vadd.f32 %v10821, %v10861
        %10863 = vdwg.mxu0
        %10864 = vmatpush.msra.mxu0 0.0
        %10865 = vmatpush.msra.mxu0 0.0
        %10866 = vmatpush.msra.mxu0 0.0
        %10867 = vmatpush.msra.mxu0 0.0
        %10868 = vmatpush.msra.mxu0 0.0
        %10869 = vmatpush.msra.mxu0 0.0
        %10870 = vmatpush.msra.mxu0 0.0
        %10871 = vmatpush.msra.mxu0 0.0
        %10872 = vmatpush.msra.mxu0 %v10097
        %10873 = vmatpush.msra.mxu0 %v10095
        %10874 = vmatpush.msra.mxu0 %v10093
        %10875 = vmatpush.msra.mxu0 %v10091
        %10876 = vmatpush.msra.mxu0 %v10089
        %10877 = vmatpush.msra.mxu0 %v10087
        %10878 = vmatpush.msra.mxu0 %v10085
        %10879 = vmatpush.msra.mxu0 %v10083
        %10880 = vmatmul.f32.gmra.mxu0 %v10643
        %v10881 = vpop.f32.mrf.mxu0
        %v10882 = vadd.f32 %v10841, %v10881
        %10883 = vmatmul.f32.gmra.mxu0 %v10645
        %v10884 = vpop.f32.mrf.mxu0
        %v10885 = vadd.f32 %v10844, %v10884
        %10886 = vmatmul.f32.gmra.mxu0 %v10647
        %v10887 = vpop.f32.mrf.mxu0
        %v10888 = vadd.f32 %v10847, %v10887
        %10889 = vmatmul.f32.gmra.mxu0 %v10649
        %v10890 = vpop.f32.mrf.mxu0
        %v10891 = vadd.f32 %v10850, %v10890
        %10892 = vmatmul.f32.gmra.mxu0 %v10651
        %v10893 = vpop.f32.mrf.mxu0
        %v10894 = vadd.f32 %v10853, %v10893
        %10895 = vmatmul.f32.gmra.mxu0 %v10653
        %v10896 = vpop.f32.mrf.mxu0
        %v10897 = vadd.f32 %v10856, %v10896
        %10898 = vmatmul.f32.gmra.mxu0 %v10655
        %v10899 = vpop.f32.mrf.mxu0
        %v10900 = vadd.f32 %v10859, %v10899
        %10901 = vmatmul.f32.gmra.mxu0 %v10657
        %v10902 = vpop.f32.mrf.mxu0
        %v10903 = vadd.f32 %v10862, %v10902
        %10904 = vdwg.mxu0
        %10905 = vst [vmem:[%s433] sm:$0xff] %v10759
        %10906 = vst.msk [vmem:[%s433 + $0x8] sm:$0xff] %vm515, %v10882
        %10907 = vst [vmem:[%s433 + $0x10] sm:$0xff] %v10762
        %10908 = vst.msk [vmem:[%s433 + $0x18] sm:$0xff] %vm515, %v10885
        %10909 = vst [vmem:[%s433 + $0x20] sm:$0xff] %v10765
        %10910 = vst.msk [vmem:[%s433 + $0x28] sm:$0xff] %vm515, %v10888
        %10911 = vst [vmem:[%s433 + $0x30] sm:$0xff] %v10768
        %10912 = vst.msk [vmem:[%s433 + $0x38] sm:$0xff] %vm515, %v10891
        %10913 = vst [vmem:[%s433 + $0x40] sm:$0xff] %v10771
        %10914 = vst.msk [vmem:[%s433 + $0x48] sm:$0xff] %vm515, %v10894
        %10915 = vst [vmem:[%s433 + $0x50] sm:$0xff] %v10774
        %10916 = vst.msk [vmem:[%s433 + $0x58] sm:$0xff] %vm515, %v10897
        %10917 = vst [vmem:[%s433 + $0x60] sm:$0xff] %v10777
        %10918 = vst.msk [vmem:[%s433 + $0x68] sm:$0xff] %vm515, %v10900
        %10919 = vst [vmem:[%s433 + $0x70] sm:$0xff] %v10780
        %10920 = vst.msk [vmem:[%s433 + $0x78] sm:$0xff] %vm515, %v10903
        %s10921 = sand.u32 %s313, 1
        %s10922 = scalar_lea.sflag [#allocation7], %s10921
        %s10923 = sand.u32 %s313, 1
        %s10924 = smul.addr %s10923, 128
        %s10925 = scalar_lea.vmem [#allocation6], %s10924
        // Predicated region
        $region80: #{mamba_layer_forward.3} parent=71 // pred_check
          %p10926 = pneg %p323
        $region81: #{mamba_layer_forward.3} parent=71 // pred_check_branch
          %10928 = sbr.rel (%p10926) target = $region83
        $region82: #{mamba_layer_forward.3} parent=71 // pred_region
          %10930 = vsyncadd %s10922, 0
          %s10931 = smul.addr %s27, 16
          %s10932 = smul.addr %s10931, 8
          %s10933 = scalar_lea.hbm %s13, %s10932
          %s10934 = sshll.u32 %s10925, 4
          %s10935 = int_to_ptr.vmem [resolvable:$true] %s10934
          %s10936 = sshll.u32 %s10933, 4
          %s10937 = int_to_ptr.hbm [resolvable:$true] %s10936
          %10942 = dma.vmem_to_hbm [thread:$0]  %s10935, 2048, %s10937, %s10922, 256, 256, 16
        $region83: #{mamba_layer_forward.3} parent=71 // pred_fallthru
          _
      $region72: #{mamba_layer_forward.3} parent=5 // pred_fallthru
        _
      %p10943 = scmp.le.s32.totalorder 2, %s22
      // Predicated region
      $region84: #{mamba_layer_forward.3} parent=5 // pred_check
        %p10944 = pneg %p10943
      $region85: #{mamba_layer_forward.3} parent=5 // pred_check_branch
        %10946 = sbr.rel (%p10944) target = $region87
      $region86: #{mamba_layer_forward.3} parent=5 // pred_region
        %s10947 = ssub.s32 %s22, 2
        // Predicated region
        $region88: #{mamba_layer_forward.3} parent=86 // pred_check
          %p10948 = pneg %p329
        $region89: #{mamba_layer_forward.3} parent=86 // pred_check_branch
          %10950 = sbr.rel (%p10948) target = $region91
        $region90: #{mamba_layer_forward.3} parent=86 // pred_region
          %s10951 = sand.u32 %s314, 1
          %s10952 = scalar_lea.sflag [#allocation7], %s10951
          %s10953 = sand.u32 %s314, 1
          %s10954 = smul.addr %s10953, 128
          %s10955 = scalar_lea.vmem [#allocation6], %s10954
          %10957 = dma.done %s10952, 2048
        $region91: #{mamba_layer_forward.3} parent=86 // pred_fallthru
          _
      $region87: #{mamba_layer_forward.3} parent=5 // pred_fallthru
        _
    $region6: #{mamba_layer_forward.3} parent=1 // loop_footer
      %s26 = sadd.s32 1, %s22
    $region7: #{mamba_layer_forward.3} parent=1 // loop_footer_branch
      %21 = sbr.rel target = $region3
    $region8: #{mamba_layer_forward.3} parent=1 // loop_exit
      _
    %10958 = vsyncpa [#allocation7], 1
    %s10959 = scalar_lea.sflag [#allocation7], 1
    %10960 = vsyncpa %s10959, 1

</llo_original>
